<compile_context>
chip_gen: v5e
topology: v5e:2x2
jax: 0.10.0
libtpu: 0.0.40
codegen_flags: <defaults>
</compile_context>

<pallas_src>
import math

import jax
import jax.numpy as jnp
from jax import lax
from jax.experimental import pallas as pl
from jax.experimental.pallas import tpu as pltpu

# ---------------- configuration (small shapes consistent with the module) ----------------
B = 2            # batch
N_AGV = 4        # number of agvs (first one is the "main" agv)
N_STAT = 3       # number of stations
F_AGV = 19       # per-agv feature count (indices up to 18 are used by forward())
EMBED = 32       # embed_dim
HEADS = 4        # GATv2 heads
HD = HEADS * EMBED   # 128
N_CONV = 4       # n_convolutions
POS_DIM = 2      # position_embedd_dim
ROWS, COLS = 4, 5
N_NODES = ROWS * COLS          # len(basegraph.nodes) == 20
NP = 24                        # node count padded to a sublane multiple
TQ = 8                         # target rows per attention slab
N_SLAB = NP // TQ              # 3
N_ACTIONS = 6
GOAL_IN = 4 + 2 * POS_DIM + 1  # 9
NODE_IN = 22
OUT_W = 8                      # merged output row: logits[0:6], value[6], pad[7]
LRELU_SLOPE = 0.01             # nn.LeakyReLU default
GAT_SLOPE = 0.2                # GATv2 internal leaky-relu default
BN_EPS = 1e-5
GN_EPS = 1e-5
FORCE_F32 = False              # explicit f32 fallback flag (parity tests)


def _use_bf16():
    # bf16 VPU/MXU path exists on v6e / v7x; v5e keeps f32.
    if FORCE_F32:
        return False
    try:
        dev = jax.devices()[0]
        if dev.platform != "tpu":
            return False
        kind = dev.device_kind.lower()
    except Exception:
        return False
    return any(tag in kind for tag in ("v6", "v7", "7x"))


USE_BF16 = _use_bf16()


def _lrelu(x, slope):
    return jnp.where(x >= 0, x, jnp.asarray(slope, x.dtype) * x)


# ======================================================================================
# Pallas kernel: one batch element per grid step (batch axis is "parallel").
# ======================================================================================
def gnn_routing_kernel(
    goal_ref, node_ref, reach_ref,
    edge_ref, goal_w_ref, node_w_ref, node_bn_ref, vec_ref,
    conv_w_ref, conv_att_ref, conv_vec_ref,
    head_w1_ref, head_wa_ref, head_wv_ref, g8_ref, fold_ref,
    out_ref,
):
    E = EMBED
    zdt = jnp.bfloat16 if USE_BF16 else jnp.float32

    vec = vec_ref[...]                        # [8, 256] packed bias / BN / GraphNorm rows

    # ---- embedd_goal: Linear -> LeakyReLU -> BatchNorm1d(1) -> Linear -> LeakyReLU -> BN
    # TODO(synk): BatchNorm implemented in eval mode (running stats folded into scale/shift).
    g = goal_ref[0]                                                        # [1, 9]
    wg1 = goal_w_ref[0:GOAL_IN, :]                                         # [9, 64]
    wg2 = goal_w_ref[GOAL_IN:GOAL_IN + 2 * E, 0:E]                         # [64, 32]
    bg1 = vec[0:1, 0:2 * E]
    sg1 = vec[0:1, 2 * E + 0:2 * E + 1]
    tg1 = vec[0:1, 2 * E + 1:2 * E + 2]
    sg2 = vec[0:1, 2 * E + 2:2 * E + 3]
    tg2 = vec[0:1, 2 * E + 3:2 * E + 4]
    bg2 = vec[1:2, 0:E]
    gh = _lrelu(jnp.dot(g, wg1, preferred_element_type=jnp.float32) + bg1, LRELU_SLOPE)
    gh = gh * sg1 + tg1
    gh = _lrelu(jnp.dot(gh, wg2, preferred_element_type=jnp.float32) + bg2, LRELU_SLOPE)
    goal_emb = gh * sg2 + tg2                                              # [1, E]

    # ---- embedd_node (BatchNorm1d(n_nodes): per-node scale/shift; padded rows -> 0)
    xn = node_ref[0]                                                       # [24, 22]
    wn1 = node_w_ref[0:NODE_IN, :]                                         # [22, 64]
    wn2 = node_w_ref[NODE_IN:NODE_IN + 2 * E, 0:E]                         # [64, 32]
    bn1 = vec[2:3, 0:2 * E]
    bn2 = vec[3:4, 0:E]
    nbn = node_bn_ref[...]                                                 # [24, 4]
    sn1 = nbn[:, 0:1]; tn1 = nbn[:, 1:2]; sn2 = nbn[:, 2:3]; tn2 = nbn[:, 3:4]
    nh = _lrelu(jnp.dot(xn, wn1, preferred_element_type=jnp.float32) + bn1, LRELU_SLOPE)
    nh = nh * sn1 + tn1
    nh = _lrelu(jnp.dot(nh, wn2, preferred_element_type=jnp.float32) + bn2, LRELU_SLOPE)
    x = nh * sn2 + tn2                                                     # [24, E]

    node_valid = (lax.broadcasted_iota(jnp.int32, (NP, 1), 0) < N_NODES).astype(jnp.float32)
    g8 = g8_ref[...].astype(zdt)                                           # [8, 192] group-sum
    fold = fold_ref[...]                                                   # [128, 32] head-mean fold

    # ---- 4 x (GATv2Conv(E, E, heads=4, concat=False) -> GraphNorm(E))
    for i in range(N_CONV):
        w_lr = conv_w_ref[i]                                               # [32, 256] = [w_l|w_r]
        att_w = conv_att_ref[i].astype(zdt)                                # [128, 128] lane-spread
        cvec = conv_vec_ref[i]                                             # [5, 256]
        blr = cvec[0:1, :]                                                 # [1, 256] = [bl | br]
        bo = cvec[1:2, 0:E]
        gamma = cvec[2:3, 0:E]
        beta = cvec[3:4, 0:E]
        mscale = cvec[4:5, 0:E]

        xlr = jnp.dot(x, w_lr, preferred_element_type=jnp.float32) + blr   # [24, 256]
        xl = xlr[:, 0:HD]                                                  # source / message terms
        xr = xlr[:, HD:2 * HD]                                             # target terms
        xl_z = xl.astype(zdt)
        xr_z = xr.astype(zdt)

        parts = []
        for j in range(N_SLAB):                                            # 3 slabs of 8 targets
            r0 = j * TQ
            xr_slab = xr_z[r0:r0 + TQ, :]                                  # [8, 128]
            # broadcast-add + leaky-relu, register resident (24 is a sublane multiple)
            z = _lrelu(xr_slab[:, None, :] + xl_z[None, :, :], GAT_SLOPE)  # [8, 24, 128]
            z2 = z.reshape(TQ * NP, HD)                                    # tile-aligned reshape
            # one score matmul; att_w is block-diag with each head's vector replicated
            # across its 32-lane block -> scores already lane-dense / head-spread.
            s = jnp.dot(z2, att_w, preferred_element_type=jnp.float32)     # [192, 128]
            s3 = s.reshape(TQ, NP, HD)
            # per-target max (constant within each softmax row) for overflow safety
            m = jnp.max(jnp.max(s3, axis=2, keepdims=True), axis=1, keepdims=True)
            p = jnp.exp(s3 - m)                                            # [8, 24, 128]
            edge_slab = edge_ref[r0 * NP:(r0 + TQ) * NP, :].reshape(TQ, NP, HD)
            pm = (p * edge_slab).astype(zdt)                               # multiplicative mask
            # fused softmax denominator + per-head aggregation (one group-sum matmul each)
            den = jnp.dot(g8, pm.reshape(TQ * NP, HD),
                          preferred_element_type=jnp.float32)              # [8, 128]
            num = jnp.dot(g8, (pm * xl_z[None, :, :]).reshape(TQ * NP, HD),
                          preferred_element_type=jnp.float32)              # [8, 128]
            parts.append(num * pl.reciprocal(den, approx=True))            # alpha_h @ xl_h per block

        xc_dense = jnp.concatenate(parts, axis=0)                          # [24, 128]
        # head mean (1/H folded into `fold`) and GATv2 output bias
        xc = jnp.dot(xc_dense, fold, preferred_element_type=jnp.float32) + bo   # [24, 32]

        # GraphNorm over the 20 real nodes (per-graph, per-channel)
        xm = xc * node_valid
        mean = jnp.sum(xm, axis=0, keepdims=True) * (1.0 / N_NODES)
        sub = xc - mscale * mean
        var = jnp.sum(sub * sub * node_valid, axis=0, keepdims=True) * (1.0 / N_NODES)
        x = sub * lax.rsqrt(var + GN_EPS) * gamma + beta

    # ---- gather in-reach nodes (one-hot matmul; last-node + pad zeroing is in reach_oh)
    reach = reach_ref[0]                                                   # [4, 24]
    filtered = jnp.dot(reach, x, preferred_element_type=jnp.float32)       # [4, 32]

    # fused first layers of action_net / value_net without the [4,32]->[1,128] relayout
    hb1 = vec[4:5, :]
    h1 = jnp.dot(goal_emb, head_w1_ref[4 * E:5 * E, :],
                 preferred_element_type=jnp.float32) + hb1                 # goal part
    for k in range(4):
        h1 = h1 + jnp.dot(filtered[k:k + 1, :], head_w1_ref[k * E:(k + 1) * E, :],
                          preferred_element_type=jnp.float32)
    h1 = _lrelu(h1, LRELU_SLOPE)                                           # [1, 256]
    a1 = h1[:, 0:4 * E]
    v1 = h1[:, 4 * E:8 * E]

    # action_net tail: 4E -> E -> 6
    aw2 = head_wa_ref[0:4 * E, :]                                          # [128, 32]
    aw3 = head_wa_ref[4 * E:5 * E, 0:N_ACTIONS]                            # [32, 6]
    ab2 = vec[5:6, 0:E]
    ab3 = vec[5:6, E:E + N_ACTIONS]
    a2 = _lrelu(jnp.dot(a1, aw2, preferred_element_type=jnp.float32) + ab2, LRELU_SLOPE)
    logits = jnp.dot(a2, aw3, preferred_element_type=jnp.float32) + ab3    # [1, 6]

    # value_net tail: 4E -> 4E -> E -> 1
    vw2 = head_wv_ref[0:4 * E, :]                                          # [128, 128]
    vw3 = head_wv_ref[4 * E:8 * E, 0:E]                                    # [128, 32]
    vw4 = head_wv_ref[8 * E:9 * E, 0:1]                                    # [32, 1]
    vb2 = vec[6:7, 0:4 * E]
    vb3 = vec[6:7, 4 * E:5 * E]
    vb4 = vec[6:7, 5 * E:5 * E + 1]
    v2 = _lrelu(jnp.dot(v1, vw2, preferred_element_type=jnp.float32) + vb2, LRELU_SLOPE)
    v3 = _lrelu(jnp.dot(v2, vw3, preferred_element_type=jnp.float32) + vb3, LRELU_SLOPE)
    val = jnp.dot(v3, vw4, preferred_element_type=jnp.float32) + vb4       # [1, 1]

    # merged output: logits in lanes 0:6, value in lane 6, pad in lane 7
    out_ref[0] = jnp.concatenate([logits, val, jnp.zeros((1, 1), jnp.float32)], axis=1)


# ======================================================================================
# pallas_call wrapper
# ======================================================================================
def _shared_spec(shape):
    nd = len(shape)
    return pl.BlockSpec(tuple(shape), lambda b, _nd=nd: (0,) * _nd)


def _batched_spec(shape):
    nd = len(shape)
    return pl.BlockSpec((1,) + tuple(shape[1:]), lambda b, _nd=nd: (b,) + (0,) * (_nd - 1))


def run_gnn_routing_kernel(goal_x, node_x, reach_oh, edge_lanes, packed_params):
    batch = goal_x.shape[0]
    batched = [goal_x, node_x, reach_oh]
    shared = [edge_lanes] + list(packed_params)
    in_specs = ([_batched_spec(a.shape) for a in batched]
                + [_shared_spec(a.shape) for a in shared])
    out_shape = jax.ShapeDtypeStruct((batch, 1, OUT_W), jnp.float32)
    out_specs = _batched_spec((batch, 1, OUT_W))
    # rough per-call cost so XLA can overlap this latency-bound kernel with the glue
    cost = pl.CostEstimate(flops=180_000_000, transcendentals=620_000,
                           bytes_accessed=1_500_000)
    fn = pl.pallas_call(
        gnn_routing_kernel,
        out_shape=out_shape,
        grid_spec=pltpu.PrefetchScalarGridSpec(
            num_scalar_prefetch=0,
            grid=(batch,),
            in_specs=in_specs,
            out_specs=out_specs,
        ),
        compiler_params=pltpu.CompilerParams(dimension_semantics=("parallel",)),
        cost_estimate=cost,
    )
    out = fn(*batched, *shared)
    return out[:, 0, 0:N_ACTIONS], out[:, 0, N_ACTIONS]


# ======================================================================================
# Base graph / glue (plain JAX: nearest-node lookup, scatter-add, masking)
# ======================================================================================
# TODO(synk): MatrixGraph / MiniMatrixGraph sources are not provided; synthesized as a
# deterministic ROWSxCOLS grid graph with bidirectional neighbor edges.
def build_grid_graph(rows, cols):
    nodes = []
    for r in range(rows):
        for c in range(cols):
            nodes.append((c / (cols - 1), r / (rows - 1)))
    nodes = jnp.asarray(nodes, jnp.float32)                                # [N, 2]
    edges = []
    nid = lambda r, c: r * cols + c
    for r in range(rows):
        for c in range(cols):
            if c + 1 < cols:
                edges += [(nid(r, c), nid(r, c + 1)), (nid(r, c + 1), nid(r, c))]
            if r + 1 < rows:
                edges += [(nid(r, c), nid(r + 1, c)), (nid(r + 1, c), nid(r, c))]
    paths = jnp.asarray(edges, jnp.int32).T                                # [2, n_edges]
    return nodes, paths


def get_node_indices(coords, nodes):
    d = jnp.sum((coords[..., None, :] - nodes) ** 2, axis=-1)
    return jnp.argmin(d, axis=-1).astype(jnp.int32)


def scatter_add(src, index, dim_size):
    b, _, k = src.shape
    out = jnp.zeros((b, dim_size, k), src.dtype)
    b_idx = jnp.arange(b)[:, None, None]
    k_idx = jnp.arange(k)[None, None, :]
    return out.at[b_idx, index, k_idx].add(src)


def feature_extractor_glue(obs, nodes, paths, pos_table):
    agvs = obs["agvs"]
    stat = obs["stat"]
    b = agvs.shape[0]
    coords = agvs[:, :, 2:16].reshape(b, -1, 7, 2)
    distance_percentage = agvs[:, :, 16:18]
    moving = agvs[:, :, 1]
    stat_coords = stat[:, :, :2].reshape(b, -1, 1, 2)
    obs_main = agvs[:, :1]

    goal_features = jnp.concatenate([obs_main[:, :1, 4:8], obs_main[:, :1, 18:19]], -1)  # [B,1,5]
    # TODO(synk): MatrixPositionEmbedder source not provided; synthesized as nearest-node
    # embedding-table lookup for the coordinate pairs starting at indices [0, 2].
    embeds = []
    for idx in (0, 2):
        pair = goal_features[:, :, idx:idx + 2]                            # [B,1,2]
        nidx = get_node_indices(pair, nodes)                               # [B,1]
        embeds.append(pos_table[nidx])                                     # [B,1,POS_DIM]
    goal_x = jnp.concatenate([goal_features] + embeds, axis=-1)            # [B,1,9]

    indices = get_node_indices(coords, nodes)                              # [B, n_agvs, 7]
    indices = jnp.concatenate(
        [indices, jnp.repeat(indices[:, :, 0:1], 2, axis=-1), indices[:, :, 1:2]], axis=-1)
    main_indices = indices[:, :1]
    agv_indices = indices[:, 1:]
    stat_indices = get_node_indices(stat_coords, nodes)                    # [B, n_stat, 1]

    src_main = jnp.ones(main_indices.shape, jnp.float32)
    src_main = src_main.at[:, :, 7].set(moving[:, :1])
    src_main = src_main.at[:, :, 8].set(distance_percentage[:, :1, 0])
    src_main = src_main.at[:, :, 9].set(distance_percentage[:, :1, 1])
    src_agvs = jnp.ones(agv_indices.shape, jnp.float32)
    src_agvs = src_agvs.at[:, :, 7].set(moving[:, 1:])
    src_agvs = src_agvs.at[:, :, 8].set(distance_percentage[:, 1:, 0])
    src_agvs = src_agvs.at[:, :, 9].set(distance_percentage[:, 1:, 1])
    src_stat = jnp.ones(stat_indices.shape, jnp.float32)

    node_info_main = scatter_add(src_main, main_indices, N_NODES)          # [B, 20, 10]
    node_info_agvs = scatter_add(src_agvs, agv_indices, N_NODES)           # [B, 20, 10]
    node_info_stat = scatter_add(src_stat, stat_indices, N_NODES)          # [B, 20, 1]
    distances = jnp.linalg.norm(nodes[None, :, :] - obs_main[:, :, 6:8], axis=2)  # [B, 20]
    node_x = jnp.concatenate(
        [node_info_main, node_info_agvs, node_info_stat, distances[..., None]], axis=2)  # [B,20,22]
    node_x = jnp.pad(node_x, ((0, 0), (0, NP - N_NODES), (0, 0)))          # [B,24,22]

    in_reach_indices = get_node_indices(obs_main[:, :, 8:16].reshape(-1, 4, 2), nodes)    # [B,4]
    reach_oh = jax.nn.one_hot(in_reach_indices, NP, dtype=jnp.float32)                    # [B,4,24]
    # convoluted_by_batch[:, -1] = 0 followed by gather == zeroing the last real node here
    reach_oh = reach_oh.at[:, :, N_NODES - 1].set(0.0)

    # multiplicative adjacency mask (GATv2 add_self_loops=True); self loops on padded
    # rows too (keeps padded-target softmax denominators > 0); replicated across lanes.
    src, dst = paths[0], paths[1]
    adj = jnp.zeros((NP, NP), jnp.float32).at[dst, src].set(1.0)
    adj = jnp.maximum(adj, jnp.eye(NP, dtype=jnp.float32))
    edge_lanes = jnp.tile(adj.reshape(NP * NP, 1), (1, HD)).astype(jnp.float32)  # [576,128]
    return goal_x, node_x, reach_oh, edge_lanes


# ======================================================================================
# Deterministic parameter init (synthetic; matches module __init__ shapes) + packing
# ======================================================================================
def _linear(key, fan_in, fan_out):
    k1, k2 = jax.random.split(key)
    lim = 1.0 / math.sqrt(fan_in)
    w = jax.random.uniform(k1, (fan_in, fan_out), jnp.float32, -lim, lim)
    bias = jax.random.uniform(k2, (1, fan_out), jnp.float32, -lim, lim)
    return w, bias


def _bn_affine(num_ch):
    # eval-mode BatchNorm: default running stats (mean 0, var 1), gamma=1, beta=0
    rm = jnp.zeros((num_ch, 1), jnp.float32)
    rv = jnp.ones((num_ch, 1), jnp.float32)
    gamma = jnp.ones((num_ch, 1), jnp.float32)
    beta = jnp.zeros((num_ch, 1), jnp.float32)
    scale = gamma / jnp.sqrt(rv + BN_EPS)
    shift = beta - rm * scale
    return scale, shift


def init_raw_params(key):
    keys = iter(jax.random.split(key, 64))
    raw = {}
    raw["wg1"], raw["bg1"] = _linear(next(keys), GOAL_IN, 2 * EMBED)
    raw["sg1"], raw["tg1"] = _bn_affine(1)
    raw["wg2"], raw["bg2"] = _linear(next(keys), 2 * EMBED, EMBED)
    raw["sg2"], raw["tg2"] = _bn_affine(1)
    raw["wn1"], raw["bn1"] = _linear(next(keys), NODE_IN, 2 * EMBED)
    raw["sn1"], raw["tn1"] = _bn_affine(N_NODES)
    raw["wn2"], raw["bn2"] = _linear(next(keys), 2 * EMBED, EMBED)
    raw["sn2"], raw["tn2"] = _bn_affine(N_NODES)
    convs = []
    lim = 1.0 / math.sqrt(EMBED)
    for _ in range(N_CONV):
        wl, bl = _linear(next(keys), EMBED, HEADS * EMBED)
        wr, br = _linear(next(keys), EMBED, HEADS * EMBED)
        att = jax.random.uniform(next(keys), (HEADS, EMBED), jnp.float32, -lim, lim)
        bo = jnp.zeros((1, EMBED), jnp.float32)
        gamma = jnp.ones((EMBED,), jnp.float32)        # GraphNorm weight
        beta = jnp.zeros((EMBED,), jnp.float32)        # GraphNorm bias
        mscale = jnp.ones((EMBED,), jnp.float32)       # GraphNorm mean_scale
        convs.append((wl, bl, wr, br, att, bo, gamma, beta, mscale))
    raw["convs"] = convs
    raw["aw1"], raw["ab1"] = _linear(next(keys), 5 * EMBED, 4 * EMBED)
    raw["aw2"], raw["ab2"] = _linear(next(keys), 4 * EMBED, EMBED)
    raw["aw3"], raw["ab3"] = _linear(next(keys), EMBED, N_ACTIONS)
    raw["vw1"], raw["vb1"] = _linear(next(keys), 5 * EMBED, 4 * EMBED)
    raw["vw2"], raw["vb2"] = _linear(next(keys), 4 * EMBED, 4 * EMBED)
    raw["vw3"], raw["vb3"] = _linear(next(keys), 4 * EMBED, EMBED)
    raw["vw4"], raw["vb4"] = _linear(next(keys), EMBED, 1)
    return raw


def pack_params(raw):
    E, H, HE = EMBED, HEADS, HEADS * EMBED
    # goal / node MLP weights
    goal_w = jnp.zeros((GOAL_IN + 2 * E, 2 * E), jnp.float32)
    goal_w = goal_w.at[:GOAL_IN, :].set(raw["wg1"])
    goal_w = goal_w.at[GOAL_IN:, :E].set(raw["wg2"])
    node_w = jnp.zeros((NODE_IN + 2 * E, 2 * E), jnp.float32)
    node_w = node_w.at[:NODE_IN, :].set(raw["wn1"])
    node_w = node_w.at[NODE_IN:, :E].set(raw["wn2"])
    node_bn = jnp.concatenate([raw["sn1"], raw["tn1"], raw["sn2"], raw["tn2"]], axis=1)  # [20,4]
    node_bn = jnp.pad(node_bn, ((0, NP - N_NODES), (0, 0)))               # padded rows -> 0

    # packed bias / BN / GraphNorm vectors, one row each (width 256)
    vec = jnp.zeros((8, 8 * E), jnp.float32)
    vec = vec.at[0, :2 * E].set(raw["bg1"][0])
    vec = vec.at[0, 2 * E + 0].set(raw["sg1"][0, 0])
    vec = vec.at[0, 2 * E + 1].set(raw["tg1"][0, 0])
    vec = vec.at[0, 2 * E + 2].set(raw["sg2"][0, 0])
    vec = vec.at[0, 2 * E + 3].set(raw["tg2"][0, 0])
    vec = vec.at[1, :E].set(raw["bg2"][0])
    vec = vec.at[2, :2 * E].set(raw["bn1"][0])
    vec = vec.at[3, :E].set(raw["bn2"][0])
    vec = vec.at[4, :].set(jnp.concatenate([raw["ab1"], raw["vb1"]], axis=1)[0])
    vec = vec.at[5, :E].set(raw["ab2"][0])
    vec = vec.at[5, E:E + N_ACTIONS].set(raw["ab3"][0])
    vec = vec.at[6, :4 * E].set(raw["vb2"][0])
    vec = vec.at[6, 4 * E:5 * E].set(raw["vb3"][0])
    vec = vec.at[6, 5 * E:5 * E + 1].set(raw["vb4"][0])

    # conv weights: [wl | wr], lane-spread per-head attention matrix, per-conv vectors
    conv_w = jnp.stack([jnp.concatenate([c[0], c[2]], axis=1) for c in raw["convs"]])  # [4,32,256]
    conv_att = jnp.zeros((N_CONV, HE, HE), jnp.float32)
    conv_vec = jnp.zeros((N_CONV, 5, 8 * E), jnp.float32)
    for i, (wl, bl, wr, br, att, bo, gamma, beta, mscale) in enumerate(raw["convs"]):
        for h in range(H):
            blk = jnp.repeat(att[h][:, None], E, axis=1)                   # [32,32], col e = a_h
            conv_att = conv_att.at[i, h * E:(h + 1) * E, h * E:(h + 1) * E].set(blk)
        conv_vec = conv_vec.at[i, 0, :HE].set(bl[0])
        conv_vec = conv_vec.at[i, 0, HE:2 * HE].set(br[0])
        conv_vec = conv_vec.at[i, 1, :E].set(bo[0])
        conv_vec = conv_vec.at[i, 2, :E].set(gamma)
        conv_vec = conv_vec.at[i, 3, :E].set(beta)
        conv_vec = conv_vec.at[i, 4, :E].set(mscale)

    # fused action/value first layer + packed tails
    head_w1 = jnp.concatenate([raw["aw1"], raw["vw1"]], axis=1)            # [160, 256]
    head_wa = jnp.zeros((5 * E, E), jnp.float32)
    head_wa = head_wa.at[:4 * E, :].set(raw["aw2"])
    head_wa = head_wa.at[4 * E:, :N_ACTIONS].set(raw["aw3"])
    head_wv = jnp.zeros((9 * E, 4 * E), jnp.float32)
    head_wv = head_wv.at[:4 * E, :].set(raw["vw2"])
    head_wv = head_wv.at[4 * E:8 * E, :E].set(raw["vw3"])
    head_wv = head_wv.at[8 * E:, :1].set(raw["vw4"])

    # constant structure matrices: per-slab group-sum and head-mean fold (1/H folded in)
    g8 = (jnp.repeat(jnp.arange(TQ), NP)[None, :] == jnp.arange(TQ)[:, None]).astype(jnp.float32)
    fold = jnp.tile(jnp.eye(E, dtype=jnp.float32), (H, 1)) * (1.0 / H)     # [128, 32]

    return (goal_w, node_w, node_bn, vec, conv_w, conv_att, conv_vec,
            head_w1, head_wa, head_wv, g8, fold)


# ======================================================================================
# Full GNNRoutingNet forward (+ value_function), action masking in glue
# ======================================================================================
def gnn_routing_net_forward(packed_params, obs, nodes, paths, pos_table):
    goal_x, node_x, reach_oh, edge_lanes = feature_extractor_glue(obs, nodes, paths, pos_table)
    actions, value = run_gnn_routing_kernel(goal_x, node_x, reach_oh, edge_lanes, packed_params)
    mask = obs["action_mask"]
    action_out = jnp.zeros(mask.shape, jnp.float32)
    if action_out.ndim == 3:
        action_out = action_out.at[:, 0, :N_ACTIONS].set(actions)
    else:
        action_out = action_out.at[:, :N_ACTIONS].set(actions)
    action_out = jnp.where(mask == 0, -100000000.0, action_out)
    return action_out.reshape(action_out.shape[0], -1), value


if __name__ == "__main__":
    key = jax.random.PRNGKey(0)
    k_agv, k_stat, k_pos, k_params = jax.random.split(key, 4)
    nodes, paths = build_grid_graph(ROWS, COLS)
    pos_table = 0.1 * jax.random.normal(k_pos, (N_NODES, POS_DIM), dtype=jnp.float32)
    obs = {
        "agvs": jax.random.uniform(k_agv, (B, N_AGV, F_AGV), jnp.float32),
        "stat": jax.random.uniform(k_stat, (B, N_STAT, 2), jnp.float32),
        "action_mask": jnp.array([[1, 1, 0, 1, 1, 1], [1, 0, 1, 1, 1, 0]], jnp.float32),
    }
    packed_params = pack_params(init_raw_params(k_params))

    action_out, value = gnn_routing_net_forward(packed_params, obs, nodes, paths, pos_table)
    jax.block_until_ready((action_out, value))
    assert action_out.shape == (B, N_ACTIONS) and value.shape == (B,)
    assert bool(jnp.all(jnp.isfinite(action_out))) and bool(jnp.all(jnp.isfinite(value)))
    print("KERNEL_OK")
</pallas_src>

<mosaic_0001>
module attributes {stable_mosaic.version = 11 : i64} {
  func.func @gnn_routing_kernel(%arg0: i32, %arg1: memref<1x1x9xf32, #tpu.memory_space<vmem>>, %arg2: memref<1x24x22xf32, #tpu.memory_space<vmem>>, %arg3: memref<1x4x24xf32, #tpu.memory_space<vmem>>, %arg4: memref<576x128xf32, #tpu.memory_space<vmem>>, %arg5: memref<73x64xf32, #tpu.memory_space<vmem>>, %arg6: memref<86x64xf32, #tpu.memory_space<vmem>>, %arg7: memref<24x4xf32, #tpu.memory_space<vmem>>, %arg8: memref<8x256xf32, #tpu.memory_space<vmem>>, %arg9: memref<4x32x256xf32, #tpu.memory_space<vmem>>, %arg10: memref<4x128x128xf32, #tpu.memory_space<vmem>>, %arg11: memref<4x5x256xf32, #tpu.memory_space<vmem>>, %arg12: memref<160x256xf32, #tpu.memory_space<vmem>>, %arg13: memref<160x32xf32, #tpu.memory_space<vmem>>, %arg14: memref<288x128xf32, #tpu.memory_space<vmem>>, %arg15: memref<8x192xf32, #tpu.memory_space<vmem>>, %arg16: memref<128x32xf32, #tpu.memory_space<vmem>>, %arg17: memref<1x1x8xf32, #tpu.memory_space<vmem>>) attributes {dimension_semantics = [#tpu.dimension_semantics<parallel>], iteration_bounds = array<i64: 2>, scalar_prefetch = 0 : i64, scratch_operands = 0 : i64, tpu.core_type = #tpu.core_type<tc>, window_params = [{transform_indices = @transform_0, window_bounds = array<i64: 1, 1, 9>}, {transform_indices = @transform_1, window_bounds = array<i64: 1, 24, 22>}, {transform_indices = @transform_2, window_bounds = array<i64: 1, 4, 24>}, {pipeline_mode = #tpu.pipeline_mode<synchronous>, transform_indices = @transform_3, window_bounds = array<i64: 576, 128>}, {pipeline_mode = #tpu.pipeline_mode<synchronous>, transform_indices = @transform_4, window_bounds = array<i64: 73, 64>}, {pipeline_mode = #tpu.pipeline_mode<synchronous>, transform_indices = @transform_5, window_bounds = array<i64: 86, 64>}, {pipeline_mode = #tpu.pipeline_mode<synchronous>, transform_indices = @transform_6, window_bounds = array<i64: 24, 4>}, {pipeline_mode = #tpu.pipeline_mode<synchronous>, transform_indices = @transform_7, window_bounds = array<i64: 8, 256>}, {pipeline_mode = #tpu.pipeline_mode<synchronous>, transform_indices = @transform_8, window_bounds = array<i64: 4, 32, 256>}, {pipeline_mode = #tpu.pipeline_mode<synchronous>, transform_indices = @transform_9, window_bounds = array<i64: 4, 128, 128>}, {pipeline_mode = #tpu.pipeline_mode<synchronous>, transform_indices = @transform_10, window_bounds = array<i64: 4, 5, 256>}, {pipeline_mode = #tpu.pipeline_mode<synchronous>, transform_indices = @transform_11, window_bounds = array<i64: 160, 256>}, {pipeline_mode = #tpu.pipeline_mode<synchronous>, transform_indices = @transform_12, window_bounds = array<i64: 160, 32>}, {pipeline_mode = #tpu.pipeline_mode<synchronous>, transform_indices = @transform_13, window_bounds = array<i64: 288, 128>}, {pipeline_mode = #tpu.pipeline_mode<synchronous>, transform_indices = @transform_14, window_bounds = array<i64: 8, 192>}, {pipeline_mode = #tpu.pipeline_mode<synchronous>, transform_indices = @transform_15, window_bounds = array<i64: 128, 32>}, {transform_indices = @transform_16, window_bounds = array<i64: 1, 1, 8>}]} {
    %c0 = arith.constant 0 : index
    %c0_0 = arith.constant 0 : index
    %0 = vector.load %arg8[%c0, %c0_0] : memref<8x256xf32, #tpu.memory_space<vmem>>, vector<8x256xf32>
    %c0_1 = arith.constant 0 : index
    %c0_2 = arith.constant 0 : index
    %c0_3 = arith.constant 0 : index
    %1 = vector.load %arg1[%c0_1, %c0_2, %c0_3] : memref<1x1x9xf32, #tpu.memory_space<vmem>>, vector<1x1x9xf32>
    %2 = vector.shape_cast %1 : vector<1x1x9xf32> to vector<1x9xf32>
    %c0_4 = arith.constant 0 : index
    %c0_5 = arith.constant 0 : index
    %3 = vector.load %arg5[%c0_4, %c0_5] : memref<73x64xf32, #tpu.memory_space<vmem>>, vector<9x64xf32>
    %c9 = arith.constant 9 : index
    %c0_6 = arith.constant 0 : index
    %4 = vector.load %arg5[%c9, %c0_6] : memref<73x64xf32, #tpu.memory_space<vmem>>, vector<64x32xf32>
    %5 = vector.extract_strided_slice %0 {offsets = [0, 0], sizes = [1, 64], strides = [1, 1]} : vector<8x256xf32> to vector<1x64xf32>
    %6 = vector.extract_strided_slice %0 {offsets = [0, 64], sizes = [1, 1], strides = [1, 1]} : vector<8x256xf32> to vector<1x1xf32>
    %7 = vector.extract_strided_slice %0 {offsets = [0, 65], sizes = [1, 1], strides = [1, 1]} : vector<8x256xf32> to vector<1x1xf32>
    %8 = vector.extract_strided_slice %0 {offsets = [0, 66], sizes = [1, 1], strides = [1, 1]} : vector<8x256xf32> to vector<1x1xf32>
    %9 = vector.extract_strided_slice %0 {offsets = [0, 67], sizes = [1, 1], strides = [1, 1]} : vector<8x256xf32> to vector<1x1xf32>
    %10 = vector.extract_strided_slice %0 {offsets = [1, 0], sizes = [1, 32], strides = [1, 1]} : vector<8x256xf32> to vector<1x32xf32>
    %cst = arith.constant dense<0.000000e+00> : vector<1x64xf32>
    %11 = tpu.matmul %2, %3, %cst {dimension_numbers = #tpu.dot_dimension_numbers<[1], [0], [0], [1], [0, 0, 1, 1], [], []>} : vector<1x9xf32>, vector<9x64xf32>, vector<1x64xf32> -> vector<1x64xf32>
    %12 = arith.addf %11, %5 : vector<1x64xf32>
    %cst_7 = arith.constant 0.000000e+00 : f32
    %13 = vector.broadcast %cst_7 : f32 to vector<1x64xf32>
    %14 = arith.cmpf oge, %12, %13 : vector<1x64xf32>
    %cst_8 = arith.constant 0.00999999977 : f32
    %15 = vector.broadcast %cst_8 : f32 to vector<1x64xf32>
    %16 = arith.mulf %15, %12 : vector<1x64xf32>
    %17 = arith.select %14, %12, %16 : vector<1x64xi1>, vector<1x64xf32>
    %18 = vector.broadcast %6 : vector<1x1xf32> to vector<1x64xf32>
    %19 = arith.mulf %17, %18 : vector<1x64xf32>
    %20 = vector.broadcast %7 : vector<1x1xf32> to vector<1x64xf32>
    %21 = arith.addf %19, %20 : vector<1x64xf32>
    %cst_9 = arith.constant dense<0.000000e+00> : vector<1x32xf32>
    %22 = tpu.matmul %21, %4, %cst_9 {dimension_numbers = #tpu.dot_dimension_numbers<[1], [0], [0], [1], [0, 0, 1, 1], [], []>} : vector<1x64xf32>, vector<64x32xf32>, vector<1x32xf32> -> vector<1x32xf32>
    %23 = arith.addf %22, %10 : vector<1x32xf32>
    %cst_10 = arith.constant 0.000000e+00 : f32
    %24 = vector.broadcast %cst_10 : f32 to vector<1x32xf32>
    %25 = arith.cmpf oge, %23, %24 : vector<1x32xf32>
    %cst_11 = arith.constant 0.00999999977 : f32
    %26 = vector.broadcast %cst_11 : f32 to vector<1x32xf32>
    %27 = arith.mulf %26, %23 : vector<1x32xf32>
    %28 = arith.select %25, %23, %27 : vector<1x32xi1>, vector<1x32xf32>
    %29 = vector.broadcast %8 : vector<1x1xf32> to vector<1x32xf32>
    %30 = arith.mulf %28, %29 : vector<1x32xf32>
    %31 = vector.broadcast %9 : vector<1x1xf32> to vector<1x32xf32>
    %32 = arith.addf %30, %31 : vector<1x32xf32>
    %c0_12 = arith.constant 0 : index
    %c0_13 = arith.constant 0 : index
    %c0_14 = arith.constant 0 : index
    %33 = vector.load %arg2[%c0_12, %c0_13, %c0_14] : memref<1x24x22xf32, #tpu.memory_space<vmem>>, vector<1x24x22xf32>
    %34 = vector.shape_cast %33 : vector<1x24x22xf32> to vector<24x22xf32>
    %c0_15 = arith.constant 0 : index
    %c0_16 = arith.constant 0 : index
    %35 = vector.load %arg6[%c0_15, %c0_16] : memref<86x64xf32, #tpu.memory_space<vmem>>, vector<22x64xf32>
    %c22 = arith.constant 22 : index
    %c0_17 = arith.constant 0 : index
    %36 = vector.load %arg6[%c22, %c0_17] : memref<86x64xf32, #tpu.memory_space<vmem>>, vector<64x32xf32>
    %37 = vector.extract_strided_slice %0 {offsets = [2, 0], sizes = [1, 64], strides = [1, 1]} : vector<8x256xf32> to vector<1x64xf32>
    %38 = vector.extract_strided_slice %0 {offsets = [3, 0], sizes = [1, 32], strides = [1, 1]} : vector<8x256xf32> to vector<1x32xf32>
    %c0_18 = arith.constant 0 : index
    %c0_19 = arith.constant 0 : index
    %39 = vector.load %arg7[%c0_18, %c0_19] : memref<24x4xf32, #tpu.memory_space<vmem>>, vector<24x4xf32>
    %40 = vector.extract_strided_slice %39 {offsets = [0, 0], sizes = [24, 1], strides = [1, 1]} : vector<24x4xf32> to vector<24x1xf32>
    %41 = vector.extract_strided_slice %39 {offsets = [0, 1], sizes = [24, 1], strides = [1, 1]} : vector<24x4xf32> to vector<24x1xf32>
    %42 = vector.extract_strided_slice %39 {offsets = [0, 2], sizes = [24, 1], strides = [1, 1]} : vector<24x4xf32> to vector<24x1xf32>
    %43 = vector.extract_strided_slice %39 {offsets = [0, 3], sizes = [24, 1], strides = [1, 1]} : vector<24x4xf32> to vector<24x1xf32>
    %cst_20 = arith.constant dense<0.000000e+00> : vector<24x64xf32>
    %44 = tpu.matmul %34, %35, %cst_20 {dimension_numbers = #tpu.dot_dimension_numbers<[1], [0], [0], [1], [0, 0, 1, 1], [], []>} : vector<24x22xf32>, vector<22x64xf32>, vector<24x64xf32> -> vector<24x64xf32>
    %45 = vector.broadcast %37 : vector<1x64xf32> to vector<24x64xf32>
    %46 = arith.addf %44, %45 : vector<24x64xf32>
    %cst_21 = arith.constant 0.000000e+00 : f32
    %47 = vector.broadcast %cst_21 : f32 to vector<24x64xf32>
    %48 = arith.cmpf oge, %46, %47 : vector<24x64xf32>
    %cst_22 = arith.constant 0.00999999977 : f32
    %49 = vector.broadcast %cst_22 : f32 to vector<24x64xf32>
    %50 = arith.mulf %49, %46 : vector<24x64xf32>
    %51 = arith.select %48, %46, %50 : vector<24x64xi1>, vector<24x64xf32>
    %52 = vector.broadcast %40 : vector<24x1xf32> to vector<24x64xf32>
    %53 = arith.mulf %51, %52 : vector<24x64xf32>
    %54 = vector.broadcast %41 : vector<24x1xf32> to vector<24x64xf32>
    %55 = arith.addf %53, %54 : vector<24x64xf32>
    %cst_23 = arith.constant dense<0.000000e+00> : vector<24x32xf32>
    %56 = tpu.matmul %55, %36, %cst_23 {dimension_numbers = #tpu.dot_dimension_numbers<[1], [0], [0], [1], [0, 0, 1, 1], [], []>} : vector<24x64xf32>, vector<64x32xf32>, vector<24x32xf32> -> vector<24x32xf32>
    %57 = vector.broadcast %38 : vector<1x32xf32> to vector<24x32xf32>
    %58 = arith.addf %56, %57 : vector<24x32xf32>
    %cst_24 = arith.constant 0.000000e+00 : f32
    %59 = vector.broadcast %cst_24 : f32 to vector<24x32xf32>
    %60 = arith.cmpf oge, %58, %59 : vector<24x32xf32>
    %cst_25 = arith.constant 0.00999999977 : f32
    %61 = vector.broadcast %cst_25 : f32 to vector<24x32xf32>
    %62 = arith.mulf %61, %58 : vector<24x32xf32>
    %63 = arith.select %60, %58, %62 : vector<24x32xi1>, vector<24x32xf32>
    %64 = vector.broadcast %42 : vector<24x1xf32> to vector<24x32xf32>
    %65 = arith.mulf %63, %64 : vector<24x32xf32>
    %66 = vector.broadcast %43 : vector<24x1xf32> to vector<24x32xf32>
    %67 = arith.addf %65, %66 : vector<24x32xf32>
    %68 = tpu.iota {dimensions = array<i32: 0>} : vector<24x1xi32>
    %c20_i32 = arith.constant 20 : i32
    %69 = vector.broadcast %c20_i32 : i32 to vector<24x1xi32>
    %70 = arith.cmpi slt, %68, %69 : vector<24x1xi32>
    %71 = arith.extui %70 : vector<24x1xi1> to vector<24x1xi32>
    %72 = arith.sitofp %71 : vector<24x1xi32> to vector<24x1xf32>
    %c0_26 = arith.constant 0 : index
    %c0_27 = arith.constant 0 : index
    %73 = vector.load %arg15[%c0_26, %c0_27] : memref<8x192xf32, #tpu.memory_space<vmem>>, vector<8x192xf32>
    %c0_28 = arith.constant 0 : index
    %c0_29 = arith.constant 0 : index
    %74 = vector.load %arg16[%c0_28, %c0_29] : memref<128x32xf32, #tpu.memory_space<vmem>>, vector<128x32xf32>
    %c0_30 = arith.constant 0 : index
    %c0_31 = arith.constant 0 : index
    %c0_32 = arith.constant 0 : index
    %75 = vector.load %arg9[%c0_30, %c0_31, %c0_32] : memref<4x32x256xf32, #tpu.memory_space<vmem>>, vector<1x32x256xf32>
    %76 = vector.shape_cast %75 : vector<1x32x256xf32> to vector<32x256xf32>
    %c0_33 = arith.constant 0 : index
    %c0_34 = arith.constant 0 : index
    %c0_35 = arith.constant 0 : index
    %77 = vector.load %arg10[%c0_33, %c0_34, %c0_35] : memref<4x128x128xf32, #tpu.memory_space<vmem>>, vector<1x128x128xf32>
    %78 = vector.shape_cast %77 : vector<1x128x128xf32> to vector<128x128xf32>
    %c0_36 = arith.constant 0 : index
    %c0_37 = arith.constant 0 : index
    %c0_38 = arith.constant 0 : index
    %79 = vector.load %arg11[%c0_36, %c0_37, %c0_38] : memref<4x5x256xf32, #tpu.memory_space<vmem>>, vector<1x5x256xf32>
    %80 = vector.shape_cast %79 : vector<1x5x256xf32> to vector<5x256xf32>
    %81 = vector.extract_strided_slice %80 {offsets = [0, 0], sizes = [1, 256], strides = [1, 1]} : vector<5x256xf32> to vector<1x256xf32>
    %82 = vector.extract_strided_slice %80 {offsets = [1, 0], sizes = [1, 32], strides = [1, 1]} : vector<5x256xf32> to vector<1x32xf32>
    %83 = vector.extract_strided_slice %80 {offsets = [2, 0], sizes = [1, 32], strides = [1, 1]} : vector<5x256xf32> to vector<1x32xf32>
    %84 = vector.extract_strided_slice %80 {offsets = [3, 0], sizes = [1, 32], strides = [1, 1]} : vector<5x256xf32> to vector<1x32xf32>
    %85 = vector.extract_strided_slice %80 {offsets = [4, 0], sizes = [1, 32], strides = [1, 1]} : vector<5x256xf32> to vector<1x32xf32>
    %cst_39 = arith.constant dense<0.000000e+00> : vector<24x256xf32>
    %86 = tpu.matmul %67, %76, %cst_39 {dimension_numbers = #tpu.dot_dimension_numbers<[1], [0], [0], [1], [0, 0, 1, 1], [], []>} : vector<24x32xf32>, vector<32x256xf32>, vector<24x256xf32> -> vector<24x256xf32>
    %87 = vector.broadcast %81 : vector<1x256xf32> to vector<24x256xf32>
    %88 = arith.addf %86, %87 : vector<24x256xf32>
    %89 = vector.extract_strided_slice %88 {offsets = [0, 0], sizes = [24, 128], strides = [1, 1]} : vector<24x256xf32> to vector<24x128xf32>
    %90 = vector.extract_strided_slice %88 {offsets = [0, 128], sizes = [24, 128], strides = [1, 1]} : vector<24x256xf32> to vector<24x128xf32>
    %91 = vector.extract_strided_slice %90 {offsets = [0, 0], sizes = [8, 128], strides = [1, 1]} : vector<24x128xf32> to vector<8x128xf32>
    %92 = vector.shape_cast %91 : vector<8x128xf32> to vector<8x1x128xf32>
    %93 = vector.shape_cast %89 : vector<24x128xf32> to vector<1x24x128xf32>
    %94 = vector.broadcast %92 : vector<8x1x128xf32> to vector<8x24x128xf32>
    %95 = vector.broadcast %93 : vector<1x24x128xf32> to vector<8x24x128xf32>
    %96 = arith.addf %94, %95 : vector<8x24x128xf32>
    %cst_40 = arith.constant 0.000000e+00 : f32
    %97 = vector.broadcast %cst_40 : f32 to vector<8x24x128xf32>
    %98 = arith.cmpf oge, %96, %97 : vector<8x24x128xf32>
    %cst_41 = arith.constant 2.000000e-01 : f32
    %99 = vector.broadcast %cst_41 : f32 to vector<8x24x128xf32>
    %100 = arith.mulf %99, %96 : vector<8x24x128xf32>
    %101 = arith.select %98, %96, %100 : vector<8x24x128xi1>, vector<8x24x128xf32>
    %102 = vector.shape_cast %101 : vector<8x24x128xf32> to vector<192x128xf32>
    %cst_42 = arith.constant dense<0.000000e+00> : vector<192x128xf32>
    %103 = tpu.matmul %102, %78, %cst_42 {dimension_numbers = #tpu.dot_dimension_numbers<[1], [0], [0], [1], [0, 0, 1, 1], [], []>} : vector<192x128xf32>, vector<128x128xf32>, vector<192x128xf32> -> vector<192x128xf32>
    %104 = vector.shape_cast %103 : vector<192x128xf32> to vector<8x24x128xf32>
    %cst_43 = arith.constant dense<0xFF800000> : vector<8x24xf32>
    %105 = vector.multi_reduction <maximumf>, %104, %cst_43 [2] : vector<8x24x128xf32> to vector<8x24xf32>
    %106 = vector.shape_cast %105 : vector<8x24xf32> to vector<8x24x1xf32>
    %cst_44 = arith.constant dense<0xFF800000> : vector<8x1xf32>
    %107 = vector.multi_reduction <maximumf>, %106, %cst_44 [1] : vector<8x24x1xf32> to vector<8x1xf32>
    %108 = vector.shape_cast %107 : vector<8x1xf32> to vector<8x1x1xf32>
    %109 = vector.broadcast %108 : vector<8x1x1xf32> to vector<8x24x128xf32>
    %110 = arith.subf %104, %109 : vector<8x24x128xf32>
    %111 = math.exp %110 : vector<8x24x128xf32>
    %c0_45 = arith.constant 0 : index
    %c0_46 = arith.constant 0 : index
    %112 = vector.load %arg4[%c0_45, %c0_46] : memref<576x128xf32, #tpu.memory_space<vmem>>, vector<192x128xf32>
    %113 = vector.shape_cast %112 : vector<192x128xf32> to vector<8x24x128xf32>
    %114 = arith.mulf %111, %113 : vector<8x24x128xf32>
    %115 = vector.shape_cast %114 : vector<8x24x128xf32> to vector<192x128xf32>
    %cst_47 = arith.constant dense<0.000000e+00> : vector<8x128xf32>
    %116 = tpu.matmul %73, %115, %cst_47 {dimension_numbers = #tpu.dot_dimension_numbers<[1], [0], [0], [1], [0, 0, 1, 1], [], []>} : vector<8x192xf32>, vector<192x128xf32>, vector<8x128xf32> -> vector<8x128xf32>
    %117 = vector.shape_cast %89 : vector<24x128xf32> to vector<1x24x128xf32>
    %118 = vector.broadcast %117 : vector<1x24x128xf32> to vector<8x24x128xf32>
    %119 = arith.mulf %114, %118 : vector<8x24x128xf32>
    %120 = vector.shape_cast %119 : vector<8x24x128xf32> to vector<192x128xf32>
    %cst_48 = arith.constant dense<0.000000e+00> : vector<8x128xf32>
    %121 = tpu.matmul %73, %120, %cst_48 {dimension_numbers = #tpu.dot_dimension_numbers<[1], [0], [0], [1], [0, 0, 1, 1], [], []>} : vector<8x192xf32>, vector<192x128xf32>, vector<8x128xf32> -> vector<8x128xf32>
    %122 = tpu.reciprocal %116 {approx = true} : vector<8x128xf32> -> vector<8x128xf32>
    %123 = arith.mulf %121, %122 : vector<8x128xf32>
    %124 = vector.extract_strided_slice %90 {offsets = [8, 0], sizes = [8, 128], strides = [1, 1]} : vector<24x128xf32> to vector<8x128xf32>
    %125 = vector.shape_cast %124 : vector<8x128xf32> to vector<8x1x128xf32>
    %126 = vector.shape_cast %89 : vector<24x128xf32> to vector<1x24x128xf32>
    %127 = vector.broadcast %125 : vector<8x1x128xf32> to vector<8x24x128xf32>
    %128 = vector.broadcast %126 : vector<1x24x128xf32> to vector<8x24x128xf32>
    %129 = arith.addf %127, %128 : vector<8x24x128xf32>
    %cst_49 = arith.constant 0.000000e+00 : f32
    %130 = vector.broadcast %cst_49 : f32 to vector<8x24x128xf32>
    %131 = arith.cmpf oge, %129, %130 : vector<8x24x128xf32>
    %cst_50 = arith.constant 2.000000e-01 : f32
    %132 = vector.broadcast %cst_50 : f32 to vector<8x24x128xf32>
    %133 = arith.mulf %132, %129 : vector<8x24x128xf32>
    %134 = arith.select %131, %129, %133 : vector<8x24x128xi1>, vector<8x24x128xf32>
    %135 = vector.shape_cast %134 : vector<8x24x128xf32> to vector<192x128xf32>
    %cst_51 = arith.constant dense<0.000000e+00> : vector<192x128xf32>
    %136 = tpu.matmul %135, %78, %cst_51 {dimension_numbers = #tpu.dot_dimension_numbers<[1], [0], [0], [1], [0, 0, 1, 1], [], []>} : vector<192x128xf32>, vector<128x128xf32>, vector<192x128xf32> -> vector<192x128xf32>
    %137 = vector.shape_cast %136 : vector<192x128xf32> to vector<8x24x128xf32>
    %cst_52 = arith.constant dense<0xFF800000> : vector<8x24xf32>
    %138 = vector.multi_reduction <maximumf>, %137, %cst_52 [2] : vector<8x24x128xf32> to vector<8x24xf32>
    %139 = vector.shape_cast %138 : vector<8x24xf32> to vector<8x24x1xf32>
    %cst_53 = arith.constant dense<0xFF800000> : vector<8x1xf32>
    %140 = vector.multi_reduction <maximumf>, %139, %cst_53 [1] : vector<8x24x1xf32> to vector<8x1xf32>
    %141 = vector.shape_cast %140 : vector<8x1xf32> to vector<8x1x1xf32>
    %142 = vector.broadcast %141 : vector<8x1x1xf32> to vector<8x24x128xf32>
    %143 = arith.subf %137, %142 : vector<8x24x128xf32>
    %144 = math.exp %143 : vector<8x24x128xf32>
    %c192 = arith.constant 192 : index
    %c0_54 = arith.constant 0 : index
    %145 = vector.load %arg4[%c192, %c0_54] : memref<576x128xf32, #tpu.memory_space<vmem>>, vector<192x128xf32>
    %146 = vector.shape_cast %145 : vector<192x128xf32> to vector<8x24x128xf32>
    %147 = arith.mulf %144, %146 : vector<8x24x128xf32>
    %148 = vector.shape_cast %147 : vector<8x24x128xf32> to vector<192x128xf32>
    %cst_55 = arith.constant dense<0.000000e+00> : vector<8x128xf32>
    %149 = tpu.matmul %73, %148, %cst_55 {dimension_numbers = #tpu.dot_dimension_numbers<[1], [0], [0], [1], [0, 0, 1, 1], [], []>} : vector<8x192xf32>, vector<192x128xf32>, vector<8x128xf32> -> vector<8x128xf32>
    %150 = vector.shape_cast %89 : vector<24x128xf32> to vector<1x24x128xf32>
    %151 = vector.broadcast %150 : vector<1x24x128xf32> to vector<8x24x128xf32>
    %152 = arith.mulf %147, %151 : vector<8x24x128xf32>
    %153 = vector.shape_cast %152 : vector<8x24x128xf32> to vector<192x128xf32>
    %cst_56 = arith.constant dense<0.000000e+00> : vector<8x128xf32>
    %154 = tpu.matmul %73, %153, %cst_56 {dimension_numbers = #tpu.dot_dimension_numbers<[1], [0], [0], [1], [0, 0, 1, 1], [], []>} : vector<8x192xf32>, vector<192x128xf32>, vector<8x128xf32> -> vector<8x128xf32>
    %155 = tpu.reciprocal %149 {approx = true} : vector<8x128xf32> -> vector<8x128xf32>
    %156 = arith.mulf %154, %155 : vector<8x128xf32>
    %157 = vector.extract_strided_slice %90 {offsets = [16, 0], sizes = [8, 128], strides = [1, 1]} : vector<24x128xf32> to vector<8x128xf32>
    %158 = vector.shape_cast %157 : vector<8x128xf32> to vector<8x1x128xf32>
    %159 = vector.shape_cast %89 : vector<24x128xf32> to vector<1x24x128xf32>
    %160 = vector.broadcast %158 : vector<8x1x128xf32> to vector<8x24x128xf32>
    %161 = vector.broadcast %159 : vector<1x24x128xf32> to vector<8x24x128xf32>
    %162 = arith.addf %160, %161 : vector<8x24x128xf32>
    %cst_57 = arith.constant 0.000000e+00 : f32
    %163 = vector.broadcast %cst_57 : f32 to vector<8x24x128xf32>
    %164 = arith.cmpf oge, %162, %163 : vector<8x24x128xf32>
    %cst_58 = arith.constant 2.000000e-01 : f32
    %165 = vector.broadcast %cst_58 : f32 to vector<8x24x128xf32>
    %166 = arith.mulf %165, %162 : vector<8x24x128xf32>
    %167 = arith.select %164, %162, %166 : vector<8x24x128xi1>, vector<8x24x128xf32>
    %168 = vector.shape_cast %167 : vector<8x24x128xf32> to vector<192x128xf32>
    %cst_59 = arith.constant dense<0.000000e+00> : vector<192x128xf32>
    %169 = tpu.matmul %168, %78, %cst_59 {dimension_numbers = #tpu.dot_dimension_numbers<[1], [0], [0], [1], [0, 0, 1, 1], [], []>} : vector<192x128xf32>, vector<128x128xf32>, vector<192x128xf32> -> vector<192x128xf32>
    %170 = vector.shape_cast %169 : vector<192x128xf32> to vector<8x24x128xf32>
    %cst_60 = arith.constant dense<0xFF800000> : vector<8x24xf32>
    %171 = vector.multi_reduction <maximumf>, %170, %cst_60 [2] : vector<8x24x128xf32> to vector<8x24xf32>
    %172 = vector.shape_cast %171 : vector<8x24xf32> to vector<8x24x1xf32>
    %cst_61 = arith.constant dense<0xFF800000> : vector<8x1xf32>
    %173 = vector.multi_reduction <maximumf>, %172, %cst_61 [1] : vector<8x24x1xf32> to vector<8x1xf32>
    %174 = vector.shape_cast %173 : vector<8x1xf32> to vector<8x1x1xf32>
    %175 = vector.broadcast %174 : vector<8x1x1xf32> to vector<8x24x128xf32>
    %176 = arith.subf %170, %175 : vector<8x24x128xf32>
    %177 = math.exp %176 : vector<8x24x128xf32>
    %c384 = arith.constant 384 : index
    %c0_62 = arith.constant 0 : index
    %178 = vector.load %arg4[%c384, %c0_62] : memref<576x128xf32, #tpu.memory_space<vmem>>, vector<192x128xf32>
    %179 = vector.shape_cast %178 : vector<192x128xf32> to vector<8x24x128xf32>
    %180 = arith.mulf %177, %179 : vector<8x24x128xf32>
    %181 = vector.shape_cast %180 : vector<8x24x128xf32> to vector<192x128xf32>
    %cst_63 = arith.constant dense<0.000000e+00> : vector<8x128xf32>
    %182 = tpu.matmul %73, %181, %cst_63 {dimension_numbers = #tpu.dot_dimension_numbers<[1], [0], [0], [1], [0, 0, 1, 1], [], []>} : vector<8x192xf32>, vector<192x128xf32>, vector<8x128xf32> -> vector<8x128xf32>
    %183 = vector.shape_cast %89 : vector<24x128xf32> to vector<1x24x128xf32>
    %184 = vector.broadcast %183 : vector<1x24x128xf32> to vector<8x24x128xf32>
    %185 = arith.mulf %180, %184 : vector<8x24x128xf32>
    %186 = vector.shape_cast %185 : vector<8x24x128xf32> to vector<192x128xf32>
    %cst_64 = arith.constant dense<0.000000e+00> : vector<8x128xf32>
    %187 = tpu.matmul %73, %186, %cst_64 {dimension_numbers = #tpu.dot_dimension_numbers<[1], [0], [0], [1], [0, 0, 1, 1], [], []>} : vector<8x192xf32>, vector<192x128xf32>, vector<8x128xf32> -> vector<8x128xf32>
    %188 = tpu.reciprocal %182 {approx = true} : vector<8x128xf32> -> vector<8x128xf32>
    %189 = arith.mulf %187, %188 : vector<8x128xf32>
    %190 = tpu.concatenate %123, %156, %189 in 0 : vector<8x128xf32>, vector<8x128xf32>, vector<8x128xf32> -> vector<24x128xf32>
    %cst_65 = arith.constant dense<0.000000e+00> : vector<24x32xf32>
    %191 = tpu.matmul %190, %74, %cst_65 {dimension_numbers = #tpu.dot_dimension_numbers<[1], [0], [0], [1], [0, 0, 1, 1], [], []>} : vector<24x128xf32>, vector<128x32xf32>, vector<24x32xf32> -> vector<24x32xf32>
    %192 = vector.broadcast %82 : vector<1x32xf32> to vector<24x32xf32>
    %193 = arith.addf %191, %192 : vector<24x32xf32>
    %194 = vector.broadcast %72 : vector<24x1xf32> to vector<24x32xf32>
    %195 = arith.mulf %193, %194 : vector<24x32xf32>
    %cst_66 = arith.constant dense<0.000000e+00> : vector<32xf32>
    %196 = vector.multi_reduction <add>, %195, %cst_66 [0] : vector<24x32xf32> to vector<32xf32>
    %197 = vector.shape_cast %196 : vector<32xf32> to vector<1x32xf32>
    %cst_67 = arith.constant 5.000000e-02 : f32
    %198 = vector.broadcast %cst_67 : f32 to vector<1x32xf32>
    %199 = arith.mulf %197, %198 : vector<1x32xf32>
    %200 = arith.mulf %85, %199 : vector<1x32xf32>
    %201 = vector.broadcast %200 : vector<1x32xf32> to vector<24x32xf32>
    %202 = arith.subf %193, %201 : vector<24x32xf32>
    %203 = arith.mulf %202, %202 : vector<24x32xf32>
    %204 = vector.broadcast %72 : vector<24x1xf32> to vector<24x32xf32>
    %205 = arith.mulf %203, %204 : vector<24x32xf32>
    %cst_68 = arith.constant dense<0.000000e+00> : vector<32xf32>
    %206 = vector.multi_reduction <add>, %205, %cst_68 [0] : vector<24x32xf32> to vector<32xf32>
    %207 = vector.shape_cast %206 : vector<32xf32> to vector<1x32xf32>
    %cst_69 = arith.constant 5.000000e-02 : f32
    %208 = vector.broadcast %cst_69 : f32 to vector<1x32xf32>
    %209 = arith.mulf %207, %208 : vector<1x32xf32>
    %cst_70 = arith.constant 9.99999974E-6 : f32
    %210 = vector.broadcast %cst_70 : f32 to vector<1x32xf32>
    %211 = arith.addf %209, %210 : vector<1x32xf32>
    %212 = math.rsqrt %211 : vector<1x32xf32>
    %213 = vector.broadcast %212 : vector<1x32xf32> to vector<24x32xf32>
    %214 = arith.mulf %202, %213 : vector<24x32xf32>
    %215 = vector.broadcast %83 : vector<1x32xf32> to vector<24x32xf32>
    %216 = arith.mulf %214, %215 : vector<24x32xf32>
    %217 = vector.broadcast %84 : vector<1x32xf32> to vector<24x32xf32>
    %218 = arith.addf %216, %217 : vector<24x32xf32>
    %c1 = arith.constant 1 : index
    %c0_71 = arith.constant 0 : index
    %c0_72 = arith.constant 0 : index
    %219 = vector.load %arg9[%c1, %c0_71, %c0_72] : memref<4x32x256xf32, #tpu.memory_space<vmem>>, vector<1x32x256xf32>
    %220 = vector.shape_cast %219 : vector<1x32x256xf32> to vector<32x256xf32>
    %c1_73 = arith.constant 1 : index
    %c0_74 = arith.constant 0 : index
    %c0_75 = arith.constant 0 : index
    %221 = vector.load %arg10[%c1_73, %c0_74, %c0_75] : memref<4x128x128xf32, #tpu.memory_space<vmem>>, vector<1x128x128xf32>
    %222 = vector.shape_cast %221 : vector<1x128x128xf32> to vector<128x128xf32>
    %c1_76 = arith.constant 1 : index
    %c0_77 = arith.constant 0 : index
    %c0_78 = arith.constant 0 : index
    %223 = vector.load %arg11[%c1_76, %c0_77, %c0_78] : memref<4x5x256xf32, #tpu.memory_space<vmem>>, vector<1x5x256xf32>
    %224 = vector.shape_cast %223 : vector<1x5x256xf32> to vector<5x256xf32>
    %225 = vector.extract_strided_slice %224 {offsets = [0, 0], sizes = [1, 256], strides = [1, 1]} : vector<5x256xf32> to vector<1x256xf32>
    %226 = vector.extract_strided_slice %224 {offsets = [1, 0], sizes = [1, 32], strides = [1, 1]} : vector<5x256xf32> to vector<1x32xf32>
    %227 = vector.extract_strided_slice %224 {offsets = [2, 0], sizes = [1, 32], strides = [1, 1]} : vector<5x256xf32> to vector<1x32xf32>
    %228 = vector.extract_strided_slice %224 {offsets = [3, 0], sizes = [1, 32], strides = [1, 1]} : vector<5x256xf32> to vector<1x32xf32>
    %229 = vector.extract_strided_slice %224 {offsets = [4, 0], sizes = [1, 32], strides = [1, 1]} : vector<5x256xf32> to vector<1x32xf32>
    %cst_79 = arith.constant dense<0.000000e+00> : vector<24x256xf32>
    %230 = tpu.matmul %218, %220, %cst_79 {dimension_numbers = #tpu.dot_dimension_numbers<[1], [0], [0], [1], [0, 0, 1, 1], [], []>} : vector<24x32xf32>, vector<32x256xf32>, vector<24x256xf32> -> vector<24x256xf32>
    %231 = vector.broadcast %225 : vector<1x256xf32> to vector<24x256xf32>
    %232 = arith.addf %230, %231 : vector<24x256xf32>
    %233 = vector.extract_strided_slice %232 {offsets = [0, 0], sizes = [24, 128], strides = [1, 1]} : vector<24x256xf32> to vector<24x128xf32>
    %234 = vector.extract_strided_slice %232 {offsets = [0, 128], sizes = [24, 128], strides = [1, 1]} : vector<24x256xf32> to vector<24x128xf32>
    %235 = vector.extract_strided_slice %234 {offsets = [0, 0], sizes = [8, 128], strides = [1, 1]} : vector<24x128xf32> to vector<8x128xf32>
    %236 = vector.shape_cast %235 : vector<8x128xf32> to vector<8x1x128xf32>
    %237 = vector.shape_cast %233 : vector<24x128xf32> to vector<1x24x128xf32>
    %238 = vector.broadcast %236 : vector<8x1x128xf32> to vector<8x24x128xf32>
    %239 = vector.broadcast %237 : vector<1x24x128xf32> to vector<8x24x128xf32>
    %240 = arith.addf %238, %239 : vector<8x24x128xf32>
    %cst_80 = arith.constant 0.000000e+00 : f32
    %241 = vector.broadcast %cst_80 : f32 to vector<8x24x128xf32>
    %242 = arith.cmpf oge, %240, %241 : vector<8x24x128xf32>
    %cst_81 = arith.constant 2.000000e-01 : f32
    %243 = vector.broadcast %cst_81 : f32 to vector<8x24x128xf32>
    %244 = arith.mulf %243, %240 : vector<8x24x128xf32>
    %245 = arith.select %242, %240, %244 : vector<8x24x128xi1>, vector<8x24x128xf32>
    %246 = vector.shape_cast %245 : vector<8x24x128xf32> to vector<192x128xf32>
    %cst_82 = arith.constant dense<0.000000e+00> : vector<192x128xf32>
    %247 = tpu.matmul %246, %222, %cst_82 {dimension_numbers = #tpu.dot_dimension_numbers<[1], [0], [0], [1], [0, 0, 1, 1], [], []>} : vector<192x128xf32>, vector<128x128xf32>, vector<192x128xf32> -> vector<192x128xf32>
    %248 = vector.shape_cast %247 : vector<192x128xf32> to vector<8x24x128xf32>
    %cst_83 = arith.constant dense<0xFF800000> : vector<8x24xf32>
    %249 = vector.multi_reduction <maximumf>, %248, %cst_83 [2] : vector<8x24x128xf32> to vector<8x24xf32>
    %250 = vector.shape_cast %249 : vector<8x24xf32> to vector<8x24x1xf32>
    %cst_84 = arith.constant dense<0xFF800000> : vector<8x1xf32>
    %251 = vector.multi_reduction <maximumf>, %250, %cst_84 [1] : vector<8x24x1xf32> to vector<8x1xf32>
    %252 = vector.shape_cast %251 : vector<8x1xf32> to vector<8x1x1xf32>
    %253 = vector.broadcast %252 : vector<8x1x1xf32> to vector<8x24x128xf32>
    %254 = arith.subf %248, %253 : vector<8x24x128xf32>
    %255 = math.exp %254 : vector<8x24x128xf32>
    %c0_85 = arith.constant 0 : index
    %c0_86 = arith.constant 0 : index
    %256 = vector.load %arg4[%c0_85, %c0_86] : memref<576x128xf32, #tpu.memory_space<vmem>>, vector<192x128xf32>
    %257 = vector.shape_cast %256 : vector<192x128xf32> to vector<8x24x128xf32>
    %258 = arith.mulf %255, %257 : vector<8x24x128xf32>
    %259 = vector.shape_cast %258 : vector<8x24x128xf32> to vector<192x128xf32>
    %cst_87 = arith.constant dense<0.000000e+00> : vector<8x128xf32>
    %260 = tpu.matmul %73, %259, %cst_87 {dimension_numbers = #tpu.dot_dimension_numbers<[1], [0], [0], [1], [0, 0, 1, 1], [], []>} : vector<8x192xf32>, vector<192x128xf32>, vector<8x128xf32> -> vector<8x128xf32>
    %261 = vector.shape_cast %233 : vector<24x128xf32> to vector<1x24x128xf32>
    %262 = vector.broadcast %261 : vector<1x24x128xf32> to vector<8x24x128xf32>
    %263 = arith.mulf %258, %262 : vector<8x24x128xf32>
    %264 = vector.shape_cast %263 : vector<8x24x128xf32> to vector<192x128xf32>
    %cst_88 = arith.constant dense<0.000000e+00> : vector<8x128xf32>
    %265 = tpu.matmul %73, %264, %cst_88 {dimension_numbers = #tpu.dot_dimension_numbers<[1], [0], [0], [1], [0, 0, 1, 1], [], []>} : vector<8x192xf32>, vector<192x128xf32>, vector<8x128xf32> -> vector<8x128xf32>
    %266 = tpu.reciprocal %260 {approx = true} : vector<8x128xf32> -> vector<8x128xf32>
    %267 = arith.mulf %265, %266 : vector<8x128xf32>
    %268 = vector.extract_strided_slice %234 {offsets = [8, 0], sizes = [8, 128], strides = [1, 1]} : vector<24x128xf32> to vector<8x128xf32>
    %269 = vector.shape_cast %268 : vector<8x128xf32> to vector<8x1x128xf32>
    %270 = vector.shape_cast %233 : vector<24x128xf32> to vector<1x24x128xf32>
    %271 = vector.broadcast %269 : vector<8x1x128xf32> to vector<8x24x128xf32>
    %272 = vector.broadcast %270 : vector<1x24x128xf32> to vector<8x24x128xf32>
    %273 = arith.addf %271, %272 : vector<8x24x128xf32>
    %cst_89 = arith.constant 0.000000e+00 : f32
    %274 = vector.broadcast %cst_89 : f32 to vector<8x24x128xf32>
    %275 = arith.cmpf oge, %273, %274 : vector<8x24x128xf32>
    %cst_90 = arith.constant 2.000000e-01 : f32
    %276 = vector.broadcast %cst_90 : f32 to vector<8x24x128xf32>
    %277 = arith.mulf %276, %273 : vector<8x24x128xf32>
    %278 = arith.select %275, %273, %277 : vector<8x24x128xi1>, vector<8x24x128xf32>
    %279 = vector.shape_cast %278 : vector<8x24x128xf32> to vector<192x128xf32>
    %cst_91 = arith.constant dense<0.000000e+00> : vector<192x128xf32>
    %280 = tpu.matmul %279, %222, %cst_91 {dimension_numbers = #tpu.dot_dimension_numbers<[1], [0], [0], [1], [0, 0, 1, 1], [], []>} : vector<192x128xf32>, vector<128x128xf32>, vector<192x128xf32> -> vector<192x128xf32>
    %281 = vector.shape_cast %280 : vector<192x128xf32> to vector<8x24x128xf32>
    %cst_92 = arith.constant dense<0xFF800000> : vector<8x24xf32>
    %282 = vector.multi_reduction <maximumf>, %281, %cst_92 [2] : vector<8x24x128xf32> to vector<8x24xf32>
    %283 = vector.shape_cast %282 : vector<8x24xf32> to vector<8x24x1xf32>
    %cst_93 = arith.constant dense<0xFF800000> : vector<8x1xf32>
    %284 = vector.multi_reduction <maximumf>, %283, %cst_93 [1] : vector<8x24x1xf32> to vector<8x1xf32>
    %285 = vector.shape_cast %284 : vector<8x1xf32> to vector<8x1x1xf32>
    %286 = vector.broadcast %285 : vector<8x1x1xf32> to vector<8x24x128xf32>
    %287 = arith.subf %281, %286 : vector<8x24x128xf32>
    %288 = math.exp %287 : vector<8x24x128xf32>
    %c192_94 = arith.constant 192 : index
    %c0_95 = arith.constant 0 : index
    %289 = vector.load %arg4[%c192_94, %c0_95] : memref<576x128xf32, #tpu.memory_space<vmem>>, vector<192x128xf32>
    %290 = vector.shape_cast %289 : vector<192x128xf32> to vector<8x24x128xf32>
    %291 = arith.mulf %288, %290 : vector<8x24x128xf32>
    %292 = vector.shape_cast %291 : vector<8x24x128xf32> to vector<192x128xf32>
    %cst_96 = arith.constant dense<0.000000e+00> : vector<8x128xf32>
    %293 = tpu.matmul %73, %292, %cst_96 {dimension_numbers = #tpu.dot_dimension_numbers<[1], [0], [0], [1], [0, 0, 1, 1], [], []>} : vector<8x192xf32>, vector<192x128xf32>, vector<8x128xf32> -> vector<8x128xf32>
    %294 = vector.shape_cast %233 : vector<24x128xf32> to vector<1x24x128xf32>
    %295 = vector.broadcast %294 : vector<1x24x128xf32> to vector<8x24x128xf32>
    %296 = arith.mulf %291, %295 : vector<8x24x128xf32>
    %297 = vector.shape_cast %296 : vector<8x24x128xf32> to vector<192x128xf32>
    %cst_97 = arith.constant dense<0.000000e+00> : vector<8x128xf32>
    %298 = tpu.matmul %73, %297, %cst_97 {dimension_numbers = #tpu.dot_dimension_numbers<[1], [0], [0], [1], [0, 0, 1, 1], [], []>} : vector<8x192xf32>, vector<192x128xf32>, vector<8x128xf32> -> vector<8x128xf32>
    %299 = tpu.reciprocal %293 {approx = true} : vector<8x128xf32> -> vector<8x128xf32>
    %300 = arith.mulf %298, %299 : vector<8x128xf32>
    %301 = vector.extract_strided_slice %234 {offsets = [16, 0], sizes = [8, 128], strides = [1, 1]} : vector<24x128xf32> to vector<8x128xf32>
    %302 = vector.shape_cast %301 : vector<8x128xf32> to vector<8x1x128xf32>
    %303 = vector.shape_cast %233 : vector<24x128xf32> to vector<1x24x128xf32>
    %304 = vector.broadcast %302 : vector<8x1x128xf32> to vector<8x24x128xf32>
    %305 = vector.broadcast %303 : vector<1x24x128xf32> to vector<8x24x128xf32>
    %306 = arith.addf %304, %305 : vector<8x24x128xf32>
    %cst_98 = arith.constant 0.000000e+00 : f32
    %307 = vector.broadcast %cst_98 : f32 to vector<8x24x128xf32>
    %308 = arith.cmpf oge, %306, %307 : vector<8x24x128xf32>
    %cst_99 = arith.constant 2.000000e-01 : f32
    %309 = vector.broadcast %cst_99 : f32 to vector<8x24x128xf32>
    %310 = arith.mulf %309, %306 : vector<8x24x128xf32>
    %311 = arith.select %308, %306, %310 : vector<8x24x128xi1>, vector<8x24x128xf32>
    %312 = vector.shape_cast %311 : vector<8x24x128xf32> to vector<192x128xf32>
    %cst_100 = arith.constant dense<0.000000e+00> : vector<192x128xf32>
    %313 = tpu.matmul %312, %222, %cst_100 {dimension_numbers = #tpu.dot_dimension_numbers<[1], [0], [0], [1], [0, 0, 1, 1], [], []>} : vector<192x128xf32>, vector<128x128xf32>, vector<192x128xf32> -> vector<192x128xf32>
    %314 = vector.shape_cast %313 : vector<192x128xf32> to vector<8x24x128xf32>
    %cst_101 = arith.constant dense<0xFF800000> : vector<8x24xf32>
    %315 = vector.multi_reduction <maximumf>, %314, %cst_101 [2] : vector<8x24x128xf32> to vector<8x24xf32>
    %316 = vector.shape_cast %315 : vector<8x24xf32> to vector<8x24x1xf32>
    %cst_102 = arith.constant dense<0xFF800000> : vector<8x1xf32>
    %317 = vector.multi_reduction <maximumf>, %316, %cst_102 [1] : vector<8x24x1xf32> to vector<8x1xf32>
    %318 = vector.shape_cast %317 : vector<8x1xf32> to vector<8x1x1xf32>
    %319 = vector.broadcast %318 : vector<8x1x1xf32> to vector<8x24x128xf32>
    %320 = arith.subf %314, %319 : vector<8x24x128xf32>
    %321 = math.exp %320 : vector<8x24x128xf32>
    %c384_103 = arith.constant 384 : index
    %c0_104 = arith.constant 0 : index
    %322 = vector.load %arg4[%c384_103, %c0_104] : memref<576x128xf32, #tpu.memory_space<vmem>>, vector<192x128xf32>
    %323 = vector.shape_cast %322 : vector<192x128xf32> to vector<8x24x128xf32>
    %324 = arith.mulf %321, %323 : vector<8x24x128xf32>
    %325 = vector.shape_cast %324 : vector<8x24x128xf32> to vector<192x128xf32>
    %cst_105 = arith.constant dense<0.000000e+00> : vector<8x128xf32>
    %326 = tpu.matmul %73, %325, %cst_105 {dimension_numbers = #tpu.dot_dimension_numbers<[1], [0], [0], [1], [0, 0, 1, 1], [], []>} : vector<8x192xf32>, vector<192x128xf32>, vector<8x128xf32> -> vector<8x128xf32>
    %327 = vector.shape_cast %233 : vector<24x128xf32> to vector<1x24x128xf32>
    %328 = vector.broadcast %327 : vector<1x24x128xf32> to vector<8x24x128xf32>
    %329 = arith.mulf %324, %328 : vector<8x24x128xf32>
    %330 = vector.shape_cast %329 : vector<8x24x128xf32> to vector<192x128xf32>
    %cst_106 = arith.constant dense<0.000000e+00> : vector<8x128xf32>
    %331 = tpu.matmul %73, %330, %cst_106 {dimension_numbers = #tpu.dot_dimension_numbers<[1], [0], [0], [1], [0, 0, 1, 1], [], []>} : vector<8x192xf32>, vector<192x128xf32>, vector<8x128xf32> -> vector<8x128xf32>
    %332 = tpu.reciprocal %326 {approx = true} : vector<8x128xf32> -> vector<8x128xf32>
    %333 = arith.mulf %331, %332 : vector<8x128xf32>
    %334 = tpu.concatenate %267, %300, %333 in 0 : vector<8x128xf32>, vector<8x128xf32>, vector<8x128xf32> -> vector<24x128xf32>
    %cst_107 = arith.constant dense<0.000000e+00> : vector<24x32xf32>
    %335 = tpu.matmul %334, %74, %cst_107 {dimension_numbers = #tpu.dot_dimension_numbers<[1], [0], [0], [1], [0, 0, 1, 1], [], []>} : vector<24x128xf32>, vector<128x32xf32>, vector<24x32xf32> -> vector<24x32xf32>
    %336 = vector.broadcast %226 : vector<1x32xf32> to vector<24x32xf32>
    %337 = arith.addf %335, %336 : vector<24x32xf32>
    %338 = vector.broadcast %72 : vector<24x1xf32> to vector<24x32xf32>
    %339 = arith.mulf %337, %338 : vector<24x32xf32>
    %cst_108 = arith.constant dense<0.000000e+00> : vector<32xf32>
    %340 = vector.multi_reduction <add>, %339, %cst_108 [0] : vector<24x32xf32> to vector<32xf32>
    %341 = vector.shape_cast %340 : vector<32xf32> to vector<1x32xf32>
    %cst_109 = arith.constant 5.000000e-02 : f32
    %342 = vector.broadcast %cst_109 : f32 to vector<1x32xf32>
    %343 = arith.mulf %341, %342 : vector<1x32xf32>
    %344 = arith.mulf %229, %343 : vector<1x32xf32>
    %345 = vector.broadcast %344 : vector<1x32xf32> to vector<24x32xf32>
    %346 = arith.subf %337, %345 : vector<24x32xf32>
    %347 = arith.mulf %346, %346 : vector<24x32xf32>
    %348 = vector.broadcast %72 : vector<24x1xf32> to vector<24x32xf32>
    %349 = arith.mulf %347, %348 : vector<24x32xf32>
    %cst_110 = arith.constant dense<0.000000e+00> : vector<32xf32>
    %350 = vector.multi_reduction <add>, %349, %cst_110 [0] : vector<24x32xf32> to vector<32xf32>
    %351 = vector.shape_cast %350 : vector<32xf32> to vector<1x32xf32>
    %cst_111 = arith.constant 5.000000e-02 : f32
    %352 = vector.broadcast %cst_111 : f32 to vector<1x32xf32>
    %353 = arith.mulf %351, %352 : vector<1x32xf32>
    %cst_112 = arith.constant 9.99999974E-6 : f32
    %354 = vector.broadcast %cst_112 : f32 to vector<1x32xf32>
    %355 = arith.addf %353, %354 : vector<1x32xf32>
    %356 = math.rsqrt %355 : vector<1x32xf32>
    %357 = vector.broadcast %356 : vector<1x32xf32> to vector<24x32xf32>
    %358 = arith.mulf %346, %357 : vector<24x32xf32>
    %359 = vector.broadcast %227 : vector<1x32xf32> to vector<24x32xf32>
    %360 = arith.mulf %358, %359 : vector<24x32xf32>
    %361 = vector.broadcast %228 : vector<1x32xf32> to vector<24x32xf32>
    %362 = arith.addf %360, %361 : vector<24x32xf32>
    %c2 = arith.constant 2 : index
    %c0_113 = arith.constant 0 : index
    %c0_114 = arith.constant 0 : index
    %363 = vector.load %arg9[%c2, %c0_113, %c0_114] : memref<4x32x256xf32, #tpu.memory_space<vmem>>, vector<1x32x256xf32>
    %364 = vector.shape_cast %363 : vector<1x32x256xf32> to vector<32x256xf32>
    %c2_115 = arith.constant 2 : index
    %c0_116 = arith.constant 0 : index
    %c0_117 = arith.constant 0 : index
    %365 = vector.load %arg10[%c2_115, %c0_116, %c0_117] : memref<4x128x128xf32, #tpu.memory_space<vmem>>, vector<1x128x128xf32>
    %366 = vector.shape_cast %365 : vector<1x128x128xf32> to vector<128x128xf32>
    %c2_118 = arith.constant 2 : index
    %c0_119 = arith.constant 0 : index
    %c0_120 = arith.constant 0 : index
    %367 = vector.load %arg11[%c2_118, %c0_119, %c0_120] : memref<4x5x256xf32, #tpu.memory_space<vmem>>, vector<1x5x256xf32>
    %368 = vector.shape_cast %367 : vector<1x5x256xf32> to vector<5x256xf32>
    %369 = vector.extract_strided_slice %368 {offsets = [0, 0], sizes = [1, 256], strides = [1, 1]} : vector<5x256xf32> to vector<1x256xf32>
    %370 = vector.extract_strided_slice %368 {offsets = [1, 0], sizes = [1, 32], strides = [1, 1]} : vector<5x256xf32> to vector<1x32xf32>
    %371 = vector.extract_strided_slice %368 {offsets = [2, 0], sizes = [1, 32], strides = [1, 1]} : vector<5x256xf32> to vector<1x32xf32>
    %372 = vector.extract_strided_slice %368 {offsets = [3, 0], sizes = [1, 32], strides = [1, 1]} : vector<5x256xf32> to vector<1x32xf32>
    %373 = vector.extract_strided_slice %368 {offsets = [4, 0], sizes = [1, 32], strides = [1, 1]} : vector<5x256xf32> to vector<1x32xf32>
    %cst_121 = arith.constant dense<0.000000e+00> : vector<24x256xf32>
    %374 = tpu.matmul %362, %364, %cst_121 {dimension_numbers = #tpu.dot_dimension_numbers<[1], [0], [0], [1], [0, 0, 1, 1], [], []>} : vector<24x32xf32>, vector<32x256xf32>, vector<24x256xf32> -> vector<24x256xf32>
    %375 = vector.broadcast %369 : vector<1x256xf32> to vector<24x256xf32>
    %376 = arith.addf %374, %375 : vector<24x256xf32>
    %377 = vector.extract_strided_slice %376 {offsets = [0, 0], sizes = [24, 128], strides = [1, 1]} : vector<24x256xf32> to vector<24x128xf32>
    %378 = vector.extract_strided_slice %376 {offsets = [0, 128], sizes = [24, 128], strides = [1, 1]} : vector<24x256xf32> to vector<24x128xf32>
    %379 = vector.extract_strided_slice %378 {offsets = [0, 0], sizes = [8, 128], strides = [1, 1]} : vector<24x128xf32> to vector<8x128xf32>
    %380 = vector.shape_cast %379 : vector<8x128xf32> to vector<8x1x128xf32>
    %381 = vector.shape_cast %377 : vector<24x128xf32> to vector<1x24x128xf32>
    %382 = vector.broadcast %380 : vector<8x1x128xf32> to vector<8x24x128xf32>
    %383 = vector.broadcast %381 : vector<1x24x128xf32> to vector<8x24x128xf32>
    %384 = arith.addf %382, %383 : vector<8x24x128xf32>
    %cst_122 = arith.constant 0.000000e+00 : f32
    %385 = vector.broadcast %cst_122 : f32 to vector<8x24x128xf32>
    %386 = arith.cmpf oge, %384, %385 : vector<8x24x128xf32>
    %cst_123 = arith.constant 2.000000e-01 : f32
    %387 = vector.broadcast %cst_123 : f32 to vector<8x24x128xf32>
    %388 = arith.mulf %387, %384 : vector<8x24x128xf32>
    %389 = arith.select %386, %384, %388 : vector<8x24x128xi1>, vector<8x24x128xf32>
    %390 = vector.shape_cast %389 : vector<8x24x128xf32> to vector<192x128xf32>
    %cst_124 = arith.constant dense<0.000000e+00> : vector<192x128xf32>
    %391 = tpu.matmul %390, %366, %cst_124 {dimension_numbers = #tpu.dot_dimension_numbers<[1], [0], [0], [1], [0, 0, 1, 1], [], []>} : vector<192x128xf32>, vector<128x128xf32>, vector<192x128xf32> -> vector<192x128xf32>
    %392 = vector.shape_cast %391 : vector<192x128xf32> to vector<8x24x128xf32>
    %cst_125 = arith.constant dense<0xFF800000> : vector<8x24xf32>
    %393 = vector.multi_reduction <maximumf>, %392, %cst_125 [2] : vector<8x24x128xf32> to vector<8x24xf32>
    %394 = vector.shape_cast %393 : vector<8x24xf32> to vector<8x24x1xf32>
    %cst_126 = arith.constant dense<0xFF800000> : vector<8x1xf32>
    %395 = vector.multi_reduction <maximumf>, %394, %cst_126 [1] : vector<8x24x1xf32> to vector<8x1xf32>
    %396 = vector.shape_cast %395 : vector<8x1xf32> to vector<8x1x1xf32>
    %397 = vector.broadcast %396 : vector<8x1x1xf32> to vector<8x24x128xf32>
    %398 = arith.subf %392, %397 : vector<8x24x128xf32>
    %399 = math.exp %398 : vector<8x24x128xf32>
    %c0_127 = arith.constant 0 : index
    %c0_128 = arith.constant 0 : index
    %400 = vector.load %arg4[%c0_127, %c0_128] : memref<576x128xf32, #tpu.memory_space<vmem>>, vector<192x128xf32>
    %401 = vector.shape_cast %400 : vector<192x128xf32> to vector<8x24x128xf32>
    %402 = arith.mulf %399, %401 : vector<8x24x128xf32>
    %403 = vector.shape_cast %402 : vector<8x24x128xf32> to vector<192x128xf32>
    %cst_129 = arith.constant dense<0.000000e+00> : vector<8x128xf32>
    %404 = tpu.matmul %73, %403, %cst_129 {dimension_numbers = #tpu.dot_dimension_numbers<[1], [0], [0], [1], [0, 0, 1, 1], [], []>} : vector<8x192xf32>, vector<192x128xf32>, vector<8x128xf32> -> vector<8x128xf32>
    %405 = vector.shape_cast %377 : vector<24x128xf32> to vector<1x24x128xf32>
    %406 = vector.broadcast %405 : vector<1x24x128xf32> to vector<8x24x128xf32>
    %407 = arith.mulf %402, %406 : vector<8x24x128xf32>
    %408 = vector.shape_cast %407 : vector<8x24x128xf32> to vector<192x128xf32>
    %cst_130 = arith.constant dense<0.000000e+00> : vector<8x128xf32>
    %409 = tpu.matmul %73, %408, %cst_130 {dimension_numbers = #tpu.dot_dimension_numbers<[1], [0], [0], [1], [0, 0, 1, 1], [], []>} : vector<8x192xf32>, vector<192x128xf32>, vector<8x128xf32> -> vector<8x128xf32>
    %410 = tpu.reciprocal %404 {approx = true} : vector<8x128xf32> -> vector<8x128xf32>
    %411 = arith.mulf %409, %410 : vector<8x128xf32>
    %412 = vector.extract_strided_slice %378 {offsets = [8, 0], sizes = [8, 128], strides = [1, 1]} : vector<24x128xf32> to vector<8x128xf32>
    %413 = vector.shape_cast %412 : vector<8x128xf32> to vector<8x1x128xf32>
    %414 = vector.shape_cast %377 : vector<24x128xf32> to vector<1x24x128xf32>
    %415 = vector.broadcast %413 : vector<8x1x128xf32> to vector<8x24x128xf32>
    %416 = vector.broadcast %414 : vector<1x24x128xf32> to vector<8x24x128xf32>
    %417 = arith.addf %415, %416 : vector<8x24x128xf32>
    %cst_131 = arith.constant 0.000000e+00 : f32
    %418 = vector.broadcast %cst_131 : f32 to vector<8x24x128xf32>
    %419 = arith.cmpf oge, %417, %418 : vector<8x24x128xf32>
    %cst_132 = arith.constant 2.000000e-01 : f32
    %420 = vector.broadcast %cst_132 : f32 to vector<8x24x128xf32>
    %421 = arith.mulf %420, %417 : vector<8x24x128xf32>
    %422 = arith.select %419, %417, %421 : vector<8x24x128xi1>, vector<8x24x128xf32>
    %423 = vector.shape_cast %422 : vector<8x24x128xf32> to vector<192x128xf32>
    %cst_133 = arith.constant dense<0.000000e+00> : vector<192x128xf32>
    %424 = tpu.matmul %423, %366, %cst_133 {dimension_numbers = #tpu.dot_dimension_numbers<[1], [0], [0], [1], [0, 0, 1, 1], [], []>} : vector<192x128xf32>, vector<128x128xf32>, vector<192x128xf32> -> vector<192x128xf32>
    %425 = vector.shape_cast %424 : vector<192x128xf32> to vector<8x24x128xf32>
    %cst_134 = arith.constant dense<0xFF800000> : vector<8x24xf32>
    %426 = vector.multi_reduction <maximumf>, %425, %cst_134 [2] : vector<8x24x128xf32> to vector<8x24xf32>
    %427 = vector.shape_cast %426 : vector<8x24xf32> to vector<8x24x1xf32>
    %cst_135 = arith.constant dense<0xFF800000> : vector<8x1xf32>
    %428 = vector.multi_reduction <maximumf>, %427, %cst_135 [1] : vector<8x24x1xf32> to vector<8x1xf32>
    %429 = vector.shape_cast %428 : vector<8x1xf32> to vector<8x1x1xf32>
    %430 = vector.broadcast %429 : vector<8x1x1xf32> to vector<8x24x128xf32>
    %431 = arith.subf %425, %430 : vector<8x24x128xf32>
    %432 = math.exp %431 : vector<8x24x128xf32>
    %c192_136 = arith.constant 192 : index
    %c0_137 = arith.constant 0 : index
    %433 = vector.load %arg4[%c192_136, %c0_137] : memref<576x128xf32, #tpu.memory_space<vmem>>, vector<192x128xf32>
    %434 = vector.shape_cast %433 : vector<192x128xf32> to vector<8x24x128xf32>
    %435 = arith.mulf %432, %434 : vector<8x24x128xf32>
    %436 = vector.shape_cast %435 : vector<8x24x128xf32> to vector<192x128xf32>
    %cst_138 = arith.constant dense<0.000000e+00> : vector<8x128xf32>
    %437 = tpu.matmul %73, %436, %cst_138 {dimension_numbers = #tpu.dot_dimension_numbers<[1], [0], [0], [1], [0, 0, 1, 1], [], []>} : vector<8x192xf32>, vector<192x128xf32>, vector<8x128xf32> -> vector<8x128xf32>
    %438 = vector.shape_cast %377 : vector<24x128xf32> to vector<1x24x128xf32>
    %439 = vector.broadcast %438 : vector<1x24x128xf32> to vector<8x24x128xf32>
    %440 = arith.mulf %435, %439 : vector<8x24x128xf32>
    %441 = vector.shape_cast %440 : vector<8x24x128xf32> to vector<192x128xf32>
    %cst_139 = arith.constant dense<0.000000e+00> : vector<8x128xf32>
    %442 = tpu.matmul %73, %441, %cst_139 {dimension_numbers = #tpu.dot_dimension_numbers<[1], [0], [0], [1], [0, 0, 1, 1], [], []>} : vector<8x192xf32>, vector<192x128xf32>, vector<8x128xf32> -> vector<8x128xf32>
    %443 = tpu.reciprocal %437 {approx = true} : vector<8x128xf32> -> vector<8x128xf32>
    %444 = arith.mulf %442, %443 : vector<8x128xf32>
    %445 = vector.extract_strided_slice %378 {offsets = [16, 0], sizes = [8, 128], strides = [1, 1]} : vector<24x128xf32> to vector<8x128xf32>
    %446 = vector.shape_cast %445 : vector<8x128xf32> to vector<8x1x128xf32>
    %447 = vector.shape_cast %377 : vector<24x128xf32> to vector<1x24x128xf32>
    %448 = vector.broadcast %446 : vector<8x1x128xf32> to vector<8x24x128xf32>
    %449 = vector.broadcast %447 : vector<1x24x128xf32> to vector<8x24x128xf32>
    %450 = arith.addf %448, %449 : vector<8x24x128xf32>
    %cst_140 = arith.constant 0.000000e+00 : f32
    %451 = vector.broadcast %cst_140 : f32 to vector<8x24x128xf32>
    %452 = arith.cmpf oge, %450, %451 : vector<8x24x128xf32>
    %cst_141 = arith.constant 2.000000e-01 : f32
    %453 = vector.broadcast %cst_141 : f32 to vector<8x24x128xf32>
    %454 = arith.mulf %453, %450 : vector<8x24x128xf32>
    %455 = arith.select %452, %450, %454 : vector<8x24x128xi1>, vector<8x24x128xf32>
    %456 = vector.shape_cast %455 : vector<8x24x128xf32> to vector<192x128xf32>
    %cst_142 = arith.constant dense<0.000000e+00> : vector<192x128xf32>
    %457 = tpu.matmul %456, %366, %cst_142 {dimension_numbers = #tpu.dot_dimension_numbers<[1], [0], [0], [1], [0, 0, 1, 1], [], []>} : vector<192x128xf32>, vector<128x128xf32>, vector<192x128xf32> -> vector<192x128xf32>
    %458 = vector.shape_cast %457 : vector<192x128xf32> to vector<8x24x128xf32>
    %cst_143 = arith.constant dense<0xFF800000> : vector<8x24xf32>
    %459 = vector.multi_reduction <maximumf>, %458, %cst_143 [2] : vector<8x24x128xf32> to vector<8x24xf32>
    %460 = vector.shape_cast %459 : vector<8x24xf32> to vector<8x24x1xf32>
    %cst_144 = arith.constant dense<0xFF800000> : vector<8x1xf32>
    %461 = vector.multi_reduction <maximumf>, %460, %cst_144 [1] : vector<8x24x1xf32> to vector<8x1xf32>
    %462 = vector.shape_cast %461 : vector<8x1xf32> to vector<8x1x1xf32>
    %463 = vector.broadcast %462 : vector<8x1x1xf32> to vector<8x24x128xf32>
    %464 = arith.subf %458, %463 : vector<8x24x128xf32>
    %465 = math.exp %464 : vector<8x24x128xf32>
    %c384_145 = arith.constant 384 : index
    %c0_146 = arith.constant 0 : index
    %466 = vector.load %arg4[%c384_145, %c0_146] : memref<576x128xf32, #tpu.memory_space<vmem>>, vector<192x128xf32>
    %467 = vector.shape_cast %466 : vector<192x128xf32> to vector<8x24x128xf32>
    %468 = arith.mulf %465, %467 : vector<8x24x128xf32>
    %469 = vector.shape_cast %468 : vector<8x24x128xf32> to vector<192x128xf32>
    %cst_147 = arith.constant dense<0.000000e+00> : vector<8x128xf32>
    %470 = tpu.matmul %73, %469, %cst_147 {dimension_numbers = #tpu.dot_dimension_numbers<[1], [0], [0], [1], [0, 0, 1, 1], [], []>} : vector<8x192xf32>, vector<192x128xf32>, vector<8x128xf32> -> vector<8x128xf32>
    %471 = vector.shape_cast %377 : vector<24x128xf32> to vector<1x24x128xf32>
    %472 = vector.broadcast %471 : vector<1x24x128xf32> to vector<8x24x128xf32>
    %473 = arith.mulf %468, %472 : vector<8x24x128xf32>
    %474 = vector.shape_cast %473 : vector<8x24x128xf32> to vector<192x128xf32>
    %cst_148 = arith.constant dense<0.000000e+00> : vector<8x128xf32>
    %475 = tpu.matmul %73, %474, %cst_148 {dimension_numbers = #tpu.dot_dimension_numbers<[1], [0], [0], [1], [0, 0, 1, 1], [], []>} : vector<8x192xf32>, vector<192x128xf32>, vector<8x128xf32> -> vector<8x128xf32>
    %476 = tpu.reciprocal %470 {approx = true} : vector<8x128xf32> -> vector<8x128xf32>
    %477 = arith.mulf %475, %476 : vector<8x128xf32>
    %478 = tpu.concatenate %411, %444, %477 in 0 : vector<8x128xf32>, vector<8x128xf32>, vector<8x128xf32> -> vector<24x128xf32>
    %cst_149 = arith.constant dense<0.000000e+00> : vector<24x32xf32>
    %479 = tpu.matmul %478, %74, %cst_149 {dimension_numbers = #tpu.dot_dimension_numbers<[1], [0], [0], [1], [0, 0, 1, 1], [], []>} : vector<24x128xf32>, vector<128x32xf32>, vector<24x32xf32> -> vector<24x32xf32>
    %480 = vector.broadcast %370 : vector<1x32xf32> to vector<24x32xf32>
    %481 = arith.addf %479, %480 : vector<24x32xf32>
    %482 = vector.broadcast %72 : vector<24x1xf32> to vector<24x32xf32>
    %483 = arith.mulf %481, %482 : vector<24x32xf32>
    %cst_150 = arith.constant dense<0.000000e+00> : vector<32xf32>
    %484 = vector.multi_reduction <add>, %483, %cst_150 [0] : vector<24x32xf32> to vector<32xf32>
    %485 = vector.shape_cast %484 : vector<32xf32> to vector<1x32xf32>
    %cst_151 = arith.constant 5.000000e-02 : f32
    %486 = vector.broadcast %cst_151 : f32 to vector<1x32xf32>
    %487 = arith.mulf %485, %486 : vector<1x32xf32>
    %488 = arith.mulf %373, %487 : vector<1x32xf32>
    %489 = vector.broadcast %488 : vector<1x32xf32> to vector<24x32xf32>
    %490 = arith.subf %481, %489 : vector<24x32xf32>
    %491 = arith.mulf %490, %490 : vector<24x32xf32>
    %492 = vector.broadcast %72 : vector<24x1xf32> to vector<24x32xf32>
    %493 = arith.mulf %491, %492 : vector<24x32xf32>
    %cst_152 = arith.constant dense<0.000000e+00> : vector<32xf32>
    %494 = vector.multi_reduction <add>, %493, %cst_152 [0] : vector<24x32xf32> to vector<32xf32>
    %495 = vector.shape_cast %494 : vector<32xf32> to vector<1x32xf32>
    %cst_153 = arith.constant 5.000000e-02 : f32
    %496 = vector.broadcast %cst_153 : f32 to vector<1x32xf32>
    %497 = arith.mulf %495, %496 : vector<1x32xf32>
    %cst_154 = arith.constant 9.99999974E-6 : f32
    %498 = vector.broadcast %cst_154 : f32 to vector<1x32xf32>
    %499 = arith.addf %497, %498 : vector<1x32xf32>
    %500 = math.rsqrt %499 : vector<1x32xf32>
    %501 = vector.broadcast %500 : vector<1x32xf32> to vector<24x32xf32>
    %502 = arith.mulf %490, %501 : vector<24x32xf32>
    %503 = vector.broadcast %371 : vector<1x32xf32> to vector<24x32xf32>
    %504 = arith.mulf %502, %503 : vector<24x32xf32>
    %505 = vector.broadcast %372 : vector<1x32xf32> to vector<24x32xf32>
    %506 = arith.addf %504, %505 : vector<24x32xf32>
    %c3 = arith.constant 3 : index
    %c0_155 = arith.constant 0 : index
    %c0_156 = arith.constant 0 : index
    %507 = vector.load %arg9[%c3, %c0_155, %c0_156] : memref<4x32x256xf32, #tpu.memory_space<vmem>>, vector<1x32x256xf32>
    %508 = vector.shape_cast %507 : vector<1x32x256xf32> to vector<32x256xf32>
    %c3_157 = arith.constant 3 : index
    %c0_158 = arith.constant 0 : index
    %c0_159 = arith.constant 0 : index
    %509 = vector.load %arg10[%c3_157, %c0_158, %c0_159] : memref<4x128x128xf32, #tpu.memory_space<vmem>>, vector<1x128x128xf32>
    %510 = vector.shape_cast %509 : vector<1x128x128xf32> to vector<128x128xf32>
    %c3_160 = arith.constant 3 : index
    %c0_161 = arith.constant 0 : index
    %c0_162 = arith.constant 0 : index
    %511 = vector.load %arg11[%c3_160, %c0_161, %c0_162] : memref<4x5x256xf32, #tpu.memory_space<vmem>>, vector<1x5x256xf32>
    %512 = vector.shape_cast %511 : vector<1x5x256xf32> to vector<5x256xf32>
    %513 = vector.extract_strided_slice %512 {offsets = [0, 0], sizes = [1, 256], strides = [1, 1]} : vector<5x256xf32> to vector<1x256xf32>
    %514 = vector.extract_strided_slice %512 {offsets = [1, 0], sizes = [1, 32], strides = [1, 1]} : vector<5x256xf32> to vector<1x32xf32>
    %515 = vector.extract_strided_slice %512 {offsets = [2, 0], sizes = [1, 32], strides = [1, 1]} : vector<5x256xf32> to vector<1x32xf32>
    %516 = vector.extract_strided_slice %512 {offsets = [3, 0], sizes = [1, 32], strides = [1, 1]} : vector<5x256xf32> to vector<1x32xf32>
    %517 = vector.extract_strided_slice %512 {offsets = [4, 0], sizes = [1, 32], strides = [1, 1]} : vector<5x256xf32> to vector<1x32xf32>
    %cst_163 = arith.constant dense<0.000000e+00> : vector<24x256xf32>
    %518 = tpu.matmul %506, %508, %cst_163 {dimension_numbers = #tpu.dot_dimension_numbers<[1], [0], [0], [1], [0, 0, 1, 1], [], []>} : vector<24x32xf32>, vector<32x256xf32>, vector<24x256xf32> -> vector<24x256xf32>
    %519 = vector.broadcast %513 : vector<1x256xf32> to vector<24x256xf32>
    %520 = arith.addf %518, %519 : vector<24x256xf32>
    %521 = vector.extract_strided_slice %520 {offsets = [0, 0], sizes = [24, 128], strides = [1, 1]} : vector<24x256xf32> to vector<24x128xf32>
    %522 = vector.extract_strided_slice %520 {offsets = [0, 128], sizes = [24, 128], strides = [1, 1]} : vector<24x256xf32> to vector<24x128xf32>
    %523 = vector.extract_strided_slice %522 {offsets = [0, 0], sizes = [8, 128], strides = [1, 1]} : vector<24x128xf32> to vector<8x128xf32>
    %524 = vector.shape_cast %523 : vector<8x128xf32> to vector<8x1x128xf32>
    %525 = vector.shape_cast %521 : vector<24x128xf32> to vector<1x24x128xf32>
    %526 = vector.broadcast %524 : vector<8x1x128xf32> to vector<8x24x128xf32>
    %527 = vector.broadcast %525 : vector<1x24x128xf32> to vector<8x24x128xf32>
    %528 = arith.addf %526, %527 : vector<8x24x128xf32>
    %cst_164 = arith.constant 0.000000e+00 : f32
    %529 = vector.broadcast %cst_164 : f32 to vector<8x24x128xf32>
    %530 = arith.cmpf oge, %528, %529 : vector<8x24x128xf32>
    %cst_165 = arith.constant 2.000000e-01 : f32
    %531 = vector.broadcast %cst_165 : f32 to vector<8x24x128xf32>
    %532 = arith.mulf %531, %528 : vector<8x24x128xf32>
    %533 = arith.select %530, %528, %532 : vector<8x24x128xi1>, vector<8x24x128xf32>
    %534 = vector.shape_cast %533 : vector<8x24x128xf32> to vector<192x128xf32>
    %cst_166 = arith.constant dense<0.000000e+00> : vector<192x128xf32>
    %535 = tpu.matmul %534, %510, %cst_166 {dimension_numbers = #tpu.dot_dimension_numbers<[1], [0], [0], [1], [0, 0, 1, 1], [], []>} : vector<192x128xf32>, vector<128x128xf32>, vector<192x128xf32> -> vector<192x128xf32>
    %536 = vector.shape_cast %535 : vector<192x128xf32> to vector<8x24x128xf32>
    %cst_167 = arith.constant dense<0xFF800000> : vector<8x24xf32>
    %537 = vector.multi_reduction <maximumf>, %536, %cst_167 [2] : vector<8x24x128xf32> to vector<8x24xf32>
    %538 = vector.shape_cast %537 : vector<8x24xf32> to vector<8x24x1xf32>
    %cst_168 = arith.constant dense<0xFF800000> : vector<8x1xf32>
    %539 = vector.multi_reduction <maximumf>, %538, %cst_168 [1] : vector<8x24x1xf32> to vector<8x1xf32>
    %540 = vector.shape_cast %539 : vector<8x1xf32> to vector<8x1x1xf32>
    %541 = vector.broadcast %540 : vector<8x1x1xf32> to vector<8x24x128xf32>
    %542 = arith.subf %536, %541 : vector<8x24x128xf32>
    %543 = math.exp %542 : vector<8x24x128xf32>
    %c0_169 = arith.constant 0 : index
    %c0_170 = arith.constant 0 : index
    %544 = vector.load %arg4[%c0_169, %c0_170] : memref<576x128xf32, #tpu.memory_space<vmem>>, vector<192x128xf32>
    %545 = vector.shape_cast %544 : vector<192x128xf32> to vector<8x24x128xf32>
    %546 = arith.mulf %543, %545 : vector<8x24x128xf32>
    %547 = vector.shape_cast %546 : vector<8x24x128xf32> to vector<192x128xf32>
    %cst_171 = arith.constant dense<0.000000e+00> : vector<8x128xf32>
    %548 = tpu.matmul %73, %547, %cst_171 {dimension_numbers = #tpu.dot_dimension_numbers<[1], [0], [0], [1], [0, 0, 1, 1], [], []>} : vector<8x192xf32>, vector<192x128xf32>, vector<8x128xf32> -> vector<8x128xf32>
    %549 = vector.shape_cast %521 : vector<24x128xf32> to vector<1x24x128xf32>
    %550 = vector.broadcast %549 : vector<1x24x128xf32> to vector<8x24x128xf32>
    %551 = arith.mulf %546, %550 : vector<8x24x128xf32>
    %552 = vector.shape_cast %551 : vector<8x24x128xf32> to vector<192x128xf32>
    %cst_172 = arith.constant dense<0.000000e+00> : vector<8x128xf32>
    %553 = tpu.matmul %73, %552, %cst_172 {dimension_numbers = #tpu.dot_dimension_numbers<[1], [0], [0], [1], [0, 0, 1, 1], [], []>} : vector<8x192xf32>, vector<192x128xf32>, vector<8x128xf32> -> vector<8x128xf32>
    %554 = tpu.reciprocal %548 {approx = true} : vector<8x128xf32> -> vector<8x128xf32>
    %555 = arith.mulf %553, %554 : vector<8x128xf32>
    %556 = vector.extract_strided_slice %522 {offsets = [8, 0], sizes = [8, 128], strides = [1, 1]} : vector<24x128xf32> to vector<8x128xf32>
    %557 = vector.shape_cast %556 : vector<8x128xf32> to vector<8x1x128xf32>
    %558 = vector.shape_cast %521 : vector<24x128xf32> to vector<1x24x128xf32>
    %559 = vector.broadcast %557 : vector<8x1x128xf32> to vector<8x24x128xf32>
    %560 = vector.broadcast %558 : vector<1x24x128xf32> to vector<8x24x128xf32>
    %561 = arith.addf %559, %560 : vector<8x24x128xf32>
    %cst_173 = arith.constant 0.000000e+00 : f32
    %562 = vector.broadcast %cst_173 : f32 to vector<8x24x128xf32>
    %563 = arith.cmpf oge, %561, %562 : vector<8x24x128xf32>
    %cst_174 = arith.constant 2.000000e-01 : f32
    %564 = vector.broadcast %cst_174 : f32 to vector<8x24x128xf32>
    %565 = arith.mulf %564, %561 : vector<8x24x128xf32>
    %566 = arith.select %563, %561, %565 : vector<8x24x128xi1>, vector<8x24x128xf32>
    %567 = vector.shape_cast %566 : vector<8x24x128xf32> to vector<192x128xf32>
    %cst_175 = arith.constant dense<0.000000e+00> : vector<192x128xf32>
    %568 = tpu.matmul %567, %510, %cst_175 {dimension_numbers = #tpu.dot_dimension_numbers<[1], [0], [0], [1], [0, 0, 1, 1], [], []>} : vector<192x128xf32>, vector<128x128xf32>, vector<192x128xf32> -> vector<192x128xf32>
    %569 = vector.shape_cast %568 : vector<192x128xf32> to vector<8x24x128xf32>
    %cst_176 = arith.constant dense<0xFF800000> : vector<8x24xf32>
    %570 = vector.multi_reduction <maximumf>, %569, %cst_176 [2] : vector<8x24x128xf32> to vector<8x24xf32>
    %571 = vector.shape_cast %570 : vector<8x24xf32> to vector<8x24x1xf32>
    %cst_177 = arith.constant dense<0xFF800000> : vector<8x1xf32>
    %572 = vector.multi_reduction <maximumf>, %571, %cst_177 [1] : vector<8x24x1xf32> to vector<8x1xf32>
    %573 = vector.shape_cast %572 : vector<8x1xf32> to vector<8x1x1xf32>
    %574 = vector.broadcast %573 : vector<8x1x1xf32> to vector<8x24x128xf32>
    %575 = arith.subf %569, %574 : vector<8x24x128xf32>
    %576 = math.exp %575 : vector<8x24x128xf32>
    %c192_178 = arith.constant 192 : index
    %c0_179 = arith.constant 0 : index
    %577 = vector.load %arg4[%c192_178, %c0_179] : memref<576x128xf32, #tpu.memory_space<vmem>>, vector<192x128xf32>
    %578 = vector.shape_cast %577 : vector<192x128xf32> to vector<8x24x128xf32>
    %579 = arith.mulf %576, %578 : vector<8x24x128xf32>
    %580 = vector.shape_cast %579 : vector<8x24x128xf32> to vector<192x128xf32>
    %cst_180 = arith.constant dense<0.000000e+00> : vector<8x128xf32>
    %581 = tpu.matmul %73, %580, %cst_180 {dimension_numbers = #tpu.dot_dimension_numbers<[1], [0], [0], [1], [0, 0, 1, 1], [], []>} : vector<8x192xf32>, vector<192x128xf32>, vector<8x128xf32> -> vector<8x128xf32>
    %582 = vector.shape_cast %521 : vector<24x128xf32> to vector<1x24x128xf32>
    %583 = vector.broadcast %582 : vector<1x24x128xf32> to vector<8x24x128xf32>
    %584 = arith.mulf %579, %583 : vector<8x24x128xf32>
    %585 = vector.shape_cast %584 : vector<8x24x128xf32> to vector<192x128xf32>
    %cst_181 = arith.constant dense<0.000000e+00> : vector<8x128xf32>
    %586 = tpu.matmul %73, %585, %cst_181 {dimension_numbers = #tpu.dot_dimension_numbers<[1], [0], [0], [1], [0, 0, 1, 1], [], []>} : vector<8x192xf32>, vector<192x128xf32>, vector<8x128xf32> -> vector<8x128xf32>
    %587 = tpu.reciprocal %581 {approx = true} : vector<8x128xf32> -> vector<8x128xf32>
    %588 = arith.mulf %586, %587 : vector<8x128xf32>
    %589 = vector.extract_strided_slice %522 {offsets = [16, 0], sizes = [8, 128], strides = [1, 1]} : vector<24x128xf32> to vector<8x128xf32>
    %590 = vector.shape_cast %589 : vector<8x128xf32> to vector<8x1x128xf32>
    %591 = vector.shape_cast %521 : vector<24x128xf32> to vector<1x24x128xf32>
    %592 = vector.broadcast %590 : vector<8x1x128xf32> to vector<8x24x128xf32>
    %593 = vector.broadcast %591 : vector<1x24x128xf32> to vector<8x24x128xf32>
    %594 = arith.addf %592, %593 : vector<8x24x128xf32>
    %cst_182 = arith.constant 0.000000e+00 : f32
    %595 = vector.broadcast %cst_182 : f32 to vector<8x24x128xf32>
    %596 = arith.cmpf oge, %594, %595 : vector<8x24x128xf32>
    %cst_183 = arith.constant 2.000000e-01 : f32
    %597 = vector.broadcast %cst_183 : f32 to vector<8x24x128xf32>
    %598 = arith.mulf %597, %594 : vector<8x24x128xf32>
    %599 = arith.select %596, %594, %598 : vector<8x24x128xi1>, vector<8x24x128xf32>
    %600 = vector.shape_cast %599 : vector<8x24x128xf32> to vector<192x128xf32>
    %cst_184 = arith.constant dense<0.000000e+00> : vector<192x128xf32>
    %601 = tpu.matmul %600, %510, %cst_184 {dimension_numbers = #tpu.dot_dimension_numbers<[1], [0], [0], [1], [0, 0, 1, 1], [], []>} : vector<192x128xf32>, vector<128x128xf32>, vector<192x128xf32> -> vector<192x128xf32>
    %602 = vector.shape_cast %601 : vector<192x128xf32> to vector<8x24x128xf32>
    %cst_185 = arith.constant dense<0xFF800000> : vector<8x24xf32>
    %603 = vector.multi_reduction <maximumf>, %602, %cst_185 [2] : vector<8x24x128xf32> to vector<8x24xf32>
    %604 = vector.shape_cast %603 : vector<8x24xf32> to vector<8x24x1xf32>
    %cst_186 = arith.constant dense<0xFF800000> : vector<8x1xf32>
    %605 = vector.multi_reduction <maximumf>, %604, %cst_186 [1] : vector<8x24x1xf32> to vector<8x1xf32>
    %606 = vector.shape_cast %605 : vector<8x1xf32> to vector<8x1x1xf32>
    %607 = vector.broadcast %606 : vector<8x1x1xf32> to vector<8x24x128xf32>
    %608 = arith.subf %602, %607 : vector<8x24x128xf32>
    %609 = math.exp %608 : vector<8x24x128xf32>
    %c384_187 = arith.constant 384 : index
    %c0_188 = arith.constant 0 : index
    %610 = vector.load %arg4[%c384_187, %c0_188] : memref<576x128xf32, #tpu.memory_space<vmem>>, vector<192x128xf32>
    %611 = vector.shape_cast %610 : vector<192x128xf32> to vector<8x24x128xf32>
    %612 = arith.mulf %609, %611 : vector<8x24x128xf32>
    %613 = vector.shape_cast %612 : vector<8x24x128xf32> to vector<192x128xf32>
    %cst_189 = arith.constant dense<0.000000e+00> : vector<8x128xf32>
    %614 = tpu.matmul %73, %613, %cst_189 {dimension_numbers = #tpu.dot_dimension_numbers<[1], [0], [0], [1], [0, 0, 1, 1], [], []>} : vector<8x192xf32>, vector<192x128xf32>, vector<8x128xf32> -> vector<8x128xf32>
    %615 = vector.shape_cast %521 : vector<24x128xf32> to vector<1x24x128xf32>
    %616 = vector.broadcast %615 : vector<1x24x128xf32> to vector<8x24x128xf32>
    %617 = arith.mulf %612, %616 : vector<8x24x128xf32>
    %618 = vector.shape_cast %617 : vector<8x24x128xf32> to vector<192x128xf32>
    %cst_190 = arith.constant dense<0.000000e+00> : vector<8x128xf32>
    %619 = tpu.matmul %73, %618, %cst_190 {dimension_numbers = #tpu.dot_dimension_numbers<[1], [0], [0], [1], [0, 0, 1, 1], [], []>} : vector<8x192xf32>, vector<192x128xf32>, vector<8x128xf32> -> vector<8x128xf32>
    %620 = tpu.reciprocal %614 {approx = true} : vector<8x128xf32> -> vector<8x128xf32>
    %621 = arith.mulf %619, %620 : vector<8x128xf32>
    %622 = tpu.concatenate %555, %588, %621 in 0 : vector<8x128xf32>, vector<8x128xf32>, vector<8x128xf32> -> vector<24x128xf32>
    %cst_191 = arith.constant dense<0.000000e+00> : vector<24x32xf32>
    %623 = tpu.matmul %622, %74, %cst_191 {dimension_numbers = #tpu.dot_dimension_numbers<[1], [0], [0], [1], [0, 0, 1, 1], [], []>} : vector<24x128xf32>, vector<128x32xf32>, vector<24x32xf32> -> vector<24x32xf32>
    %624 = vector.broadcast %514 : vector<1x32xf32> to vector<24x32xf32>
    %625 = arith.addf %623, %624 : vector<24x32xf32>
    %626 = vector.broadcast %72 : vector<24x1xf32> to vector<24x32xf32>
    %627 = arith.mulf %625, %626 : vector<24x32xf32>
    %cst_192 = arith.constant dense<0.000000e+00> : vector<32xf32>
    %628 = vector.multi_reduction <add>, %627, %cst_192 [0] : vector<24x32xf32> to vector<32xf32>
    %629 = vector.shape_cast %628 : vector<32xf32> to vector<1x32xf32>
    %cst_193 = arith.constant 5.000000e-02 : f32
    %630 = vector.broadcast %cst_193 : f32 to vector<1x32xf32>
    %631 = arith.mulf %629, %630 : vector<1x32xf32>
    %632 = arith.mulf %517, %631 : vector<1x32xf32>
    %633 = vector.broadcast %632 : vector<1x32xf32> to vector<24x32xf32>
    %634 = arith.subf %625, %633 : vector<24x32xf32>
    %635 = arith.mulf %634, %634 : vector<24x32xf32>
    %636 = vector.broadcast %72 : vector<24x1xf32> to vector<24x32xf32>
    %637 = arith.mulf %635, %636 : vector<24x32xf32>
    %cst_194 = arith.constant dense<0.000000e+00> : vector<32xf32>
    %638 = vector.multi_reduction <add>, %637, %cst_194 [0] : vector<24x32xf32> to vector<32xf32>
    %639 = vector.shape_cast %638 : vector<32xf32> to vector<1x32xf32>
    %cst_195 = arith.constant 5.000000e-02 : f32
    %640 = vector.broadcast %cst_195 : f32 to vector<1x32xf32>
    %641 = arith.mulf %639, %640 : vector<1x32xf32>
    %cst_196 = arith.constant 9.99999974E-6 : f32
    %642 = vector.broadcast %cst_196 : f32 to vector<1x32xf32>
    %643 = arith.addf %641, %642 : vector<1x32xf32>
    %644 = math.rsqrt %643 : vector<1x32xf32>
    %645 = vector.broadcast %644 : vector<1x32xf32> to vector<24x32xf32>
    %646 = arith.mulf %634, %645 : vector<24x32xf32>
    %647 = vector.broadcast %515 : vector<1x32xf32> to vector<24x32xf32>
    %648 = arith.mulf %646, %647 : vector<24x32xf32>
    %649 = vector.broadcast %516 : vector<1x32xf32> to vector<24x32xf32>
    %650 = arith.addf %648, %649 : vector<24x32xf32>
    %c0_197 = arith.constant 0 : index
    %c0_198 = arith.constant 0 : index
    %c0_199 = arith.constant 0 : index
    %651 = vector.load %arg3[%c0_197, %c0_198, %c0_199] : memref<1x4x24xf32, #tpu.memory_space<vmem>>, vector<1x4x24xf32>
    %652 = vector.shape_cast %651 : vector<1x4x24xf32> to vector<4x24xf32>
    %cst_200 = arith.constant dense<0.000000e+00> : vector<4x32xf32>
    %653 = tpu.matmul %652, %650, %cst_200 {dimension_numbers = #tpu.dot_dimension_numbers<[1], [0], [0], [1], [0, 0, 1, 1], [], []>} : vector<4x24xf32>, vector<24x32xf32>, vector<4x32xf32> -> vector<4x32xf32>
    %654 = vector.extract_strided_slice %0 {offsets = [4, 0], sizes = [1, 256], strides = [1, 1]} : vector<8x256xf32> to vector<1x256xf32>
    %c128 = arith.constant 128 : index
    %c0_201 = arith.constant 0 : index
    %655 = vector.load %arg12[%c128, %c0_201] : memref<160x256xf32, #tpu.memory_space<vmem>>, vector<32x256xf32>
    %cst_202 = arith.constant dense<0.000000e+00> : vector<1x256xf32>
    %656 = tpu.matmul %32, %655, %cst_202 {dimension_numbers = #tpu.dot_dimension_numbers<[1], [0], [0], [1], [0, 0, 1, 1], [], []>} : vector<1x32xf32>, vector<32x256xf32>, vector<1x256xf32> -> vector<1x256xf32>
    %657 = arith.addf %656, %654 : vector<1x256xf32>
    %658 = vector.extract_strided_slice %653 {offsets = [0, 0], sizes = [1, 32], strides = [1, 1]} : vector<4x32xf32> to vector<1x32xf32>
    %c0_203 = arith.constant 0 : index
    %c0_204 = arith.constant 0 : index
    %659 = vector.load %arg12[%c0_203, %c0_204] : memref<160x256xf32, #tpu.memory_space<vmem>>, vector<32x256xf32>
    %cst_205 = arith.constant dense<0.000000e+00> : vector<1x256xf32>
    %660 = tpu.matmul %658, %659, %cst_205 {dimension_numbers = #tpu.dot_dimension_numbers<[1], [0], [0], [1], [0, 0, 1, 1], [], []>} : vector<1x32xf32>, vector<32x256xf32>, vector<1x256xf32> -> vector<1x256xf32>
    %661 = arith.addf %657, %660 : vector<1x256xf32>
    %662 = vector.extract_strided_slice %653 {offsets = [1, 0], sizes = [1, 32], strides = [1, 1]} : vector<4x32xf32> to vector<1x32xf32>
    %c32 = arith.constant 32 : index
    %c0_206 = arith.constant 0 : index
    %663 = vector.load %arg12[%c32, %c0_206] : memref<160x256xf32, #tpu.memory_space<vmem>>, vector<32x256xf32>
    %cst_207 = arith.constant dense<0.000000e+00> : vector<1x256xf32>
    %664 = tpu.matmul %662, %663, %cst_207 {dimension_numbers = #tpu.dot_dimension_numbers<[1], [0], [0], [1], [0, 0, 1, 1], [], []>} : vector<1x32xf32>, vector<32x256xf32>, vector<1x256xf32> -> vector<1x256xf32>
    %665 = arith.addf %661, %664 : vector<1x256xf32>
    %666 = vector.extract_strided_slice %653 {offsets = [2, 0], sizes = [1, 32], strides = [1, 1]} : vector<4x32xf32> to vector<1x32xf32>
    %c64 = arith.constant 64 : index
    %c0_208 = arith.constant 0 : index
    %667 = vector.load %arg12[%c64, %c0_208] : memref<160x256xf32, #tpu.memory_space<vmem>>, vector<32x256xf32>
    %cst_209 = arith.constant dense<0.000000e+00> : vector<1x256xf32>
    %668 = tpu.matmul %666, %667, %cst_209 {dimension_numbers = #tpu.dot_dimension_numbers<[1], [0], [0], [1], [0, 0, 1, 1], [], []>} : vector<1x32xf32>, vector<32x256xf32>, vector<1x256xf32> -> vector<1x256xf32>
    %669 = arith.addf %665, %668 : vector<1x256xf32>
    %670 = vector.extract_strided_slice %653 {offsets = [3, 0], sizes = [1, 32], strides = [1, 1]} : vector<4x32xf32> to vector<1x32xf32>
    %c96 = arith.constant 96 : index
    %c0_210 = arith.constant 0 : index
    %671 = vector.load %arg12[%c96, %c0_210] : memref<160x256xf32, #tpu.memory_space<vmem>>, vector<32x256xf32>
    %cst_211 = arith.constant dense<0.000000e+00> : vector<1x256xf32>
    %672 = tpu.matmul %670, %671, %cst_211 {dimension_numbers = #tpu.dot_dimension_numbers<[1], [0], [0], [1], [0, 0, 1, 1], [], []>} : vector<1x32xf32>, vector<32x256xf32>, vector<1x256xf32> -> vector<1x256xf32>
    %673 = arith.addf %669, %672 : vector<1x256xf32>
    %cst_212 = arith.constant 0.000000e+00 : f32
    %674 = vector.broadcast %cst_212 : f32 to vector<1x256xf32>
    %675 = arith.cmpf oge, %673, %674 : vector<1x256xf32>
    %cst_213 = arith.constant 0.00999999977 : f32
    %676 = vector.broadcast %cst_213 : f32 to vector<1x256xf32>
    %677 = arith.mulf %676, %673 : vector<1x256xf32>
    %678 = arith.select %675, %673, %677 : vector<1x256xi1>, vector<1x256xf32>
    %679 = vector.extract_strided_slice %678 {offsets = [0, 0], sizes = [1, 128], strides = [1, 1]} : vector<1x256xf32> to vector<1x128xf32>
    %680 = vector.extract_strided_slice %678 {offsets = [0, 128], sizes = [1, 128], strides = [1, 1]} : vector<1x256xf32> to vector<1x128xf32>
    %c0_214 = arith.constant 0 : index
    %c0_215 = arith.constant 0 : index
    %681 = vector.load %arg13[%c0_214, %c0_215] : memref<160x32xf32, #tpu.memory_space<vmem>>, vector<128x32xf32>
    %c128_216 = arith.constant 128 : index
    %c0_217 = arith.constant 0 : index
    %682 = vector.load %arg13[%c128_216, %c0_217] : memref<160x32xf32, #tpu.memory_space<vmem>>, vector<32x6xf32>
    %683 = vector.extract_strided_slice %0 {offsets = [5, 0], sizes = [1, 32], strides = [1, 1]} : vector<8x256xf32> to vector<1x32xf32>
    %684 = vector.extract_strided_slice %0 {offsets = [5, 32], sizes = [1, 6], strides = [1, 1]} : vector<8x256xf32> to vector<1x6xf32>
    %cst_218 = arith.constant dense<0.000000e+00> : vector<1x32xf32>
    %685 = tpu.matmul %679, %681, %cst_218 {dimension_numbers = #tpu.dot_dimension_numbers<[1], [0], [0], [1], [0, 0, 1, 1], [], []>} : vector<1x128xf32>, vector<128x32xf32>, vector<1x32xf32> -> vector<1x32xf32>
    %686 = arith.addf %685, %683 : vector<1x32xf32>
    %cst_219 = arith.constant 0.000000e+00 : f32
    %687 = vector.broadcast %cst_219 : f32 to vector<1x32xf32>
    %688 = arith.cmpf oge, %686, %687 : vector<1x32xf32>
    %cst_220 = arith.constant 0.00999999977 : f32
    %689 = vector.broadcast %cst_220 : f32 to vector<1x32xf32>
    %690 = arith.mulf %689, %686 : vector<1x32xf32>
    %691 = arith.select %688, %686, %690 : vector<1x32xi1>, vector<1x32xf32>
    %cst_221 = arith.constant dense<0.000000e+00> : vector<1x6xf32>
    %692 = tpu.matmul %691, %682, %cst_221 {dimension_numbers = #tpu.dot_dimension_numbers<[1], [0], [0], [1], [0, 0, 1, 1], [], []>} : vector<1x32xf32>, vector<32x6xf32>, vector<1x6xf32> -> vector<1x6xf32>
    %693 = arith.addf %692, %684 : vector<1x6xf32>
    %c0_222 = arith.constant 0 : index
    %c0_223 = arith.constant 0 : index
    %694 = vector.load %arg14[%c0_222, %c0_223] : memref<288x128xf32, #tpu.memory_space<vmem>>, vector<128x128xf32>
    %c128_224 = arith.constant 128 : index
    %c0_225 = arith.constant 0 : index
    %695 = vector.load %arg14[%c128_224, %c0_225] : memref<288x128xf32, #tpu.memory_space<vmem>>, vector<128x32xf32>
    %c256 = arith.constant 256 : index
    %c0_226 = arith.constant 0 : index
    %696 = vector.load %arg14[%c256, %c0_226] : memref<288x128xf32, #tpu.memory_space<vmem>>, vector<32x1xf32>
    %697 = vector.extract_strided_slice %0 {offsets = [6, 0], sizes = [1, 128], strides = [1, 1]} : vector<8x256xf32> to vector<1x128xf32>
    %698 = vector.extract_strided_slice %0 {offsets = [6, 128], sizes = [1, 32], strides = [1, 1]} : vector<8x256xf32> to vector<1x32xf32>
    %699 = vector.extract_strided_slice %0 {offsets = [6, 160], sizes = [1, 1], strides = [1, 1]} : vector<8x256xf32> to vector<1x1xf32>
    %cst_227 = arith.constant dense<0.000000e+00> : vector<1x128xf32>
    %700 = tpu.matmul %680, %694, %cst_227 {dimension_numbers = #tpu.dot_dimension_numbers<[1], [0], [0], [1], [0, 0, 1, 1], [], []>} : vector<1x128xf32>, vector<128x128xf32>, vector<1x128xf32> -> vector<1x128xf32>
    %701 = arith.addf %700, %697 : vector<1x128xf32>
    %cst_228 = arith.constant 0.000000e+00 : f32
    %702 = vector.broadcast %cst_228 : f32 to vector<1x128xf32>
    %703 = arith.cmpf oge, %701, %702 : vector<1x128xf32>
    %cst_229 = arith.constant 0.00999999977 : f32
    %704 = vector.broadcast %cst_229 : f32 to vector<1x128xf32>
    %705 = arith.mulf %704, %701 : vector<1x128xf32>
    %706 = arith.select %703, %701, %705 : vector<1x128xi1>, vector<1x128xf32>
    %cst_230 = arith.constant dense<0.000000e+00> : vector<1x32xf32>
    %707 = tpu.matmul %706, %695, %cst_230 {dimension_numbers = #tpu.dot_dimension_numbers<[1], [0], [0], [1], [0, 0, 1, 1], [], []>} : vector<1x128xf32>, vector<128x32xf32>, vector<1x32xf32> -> vector<1x32xf32>
    %708 = arith.addf %707, %698 : vector<1x32xf32>
    %cst_231 = arith.constant 0.000000e+00 : f32
    %709 = vector.broadcast %cst_231 : f32 to vector<1x32xf32>
    %710 = arith.cmpf oge, %708, %709 : vector<1x32xf32>
    %cst_232 = arith.constant 0.00999999977 : f32
    %711 = vector.broadcast %cst_232 : f32 to vector<1x32xf32>
    %712 = arith.mulf %711, %708 : vector<1x32xf32>
    %713 = arith.select %710, %708, %712 : vector<1x32xi1>, vector<1x32xf32>
    %cst_233 = arith.constant dense<0.000000e+00> : vector<1x1xf32>
    %714 = tpu.matmul %713, %696, %cst_233 {dimension_numbers = #tpu.dot_dimension_numbers<[1], [0], [0], [1], [0, 0, 1, 1], [], []>} : vector<1x32xf32>, vector<32x1xf32>, vector<1x1xf32> -> vector<1x1xf32>
    %715 = arith.addf %714, %699 : vector<1x1xf32>
    %cst_234 = arith.constant 0.000000e+00 : f32
    %716 = vector.broadcast %cst_234 : f32 to vector<1x1xf32>
    %717 = tpu.concatenate %693, %715, %716 in 1 : vector<1x6xf32>, vector<1x1xf32>, vector<1x1xf32> -> vector<1x8xf32>
    %c0_235 = arith.constant 0 : index
    %c0_236 = arith.constant 0 : index
    %c0_237 = arith.constant 0 : index
    %718 = vector.load %arg17[%c0_235, %c0_236, %c0_237] : memref<1x1x8xf32, #tpu.memory_space<vmem>>, vector<1x1x8xf32>
    %719 = vector.shape_cast %718 : vector<1x1x8xf32> to vector<1x8xf32>
    %720 = vector.shape_cast %717 : vector<1x8xf32> to vector<1x1x8xf32>
    tpu.vector_store %arg17[%c0_235, %c0_236, %c0_237], %720 {strides = array<i32>} : memref<1x1x8xf32, #tpu.memory_space<vmem>>, vector<1x1x8xf32>,
    return
  }
  func.func @transform_0(%arg0: i32) -> (i32, i32, i32) {
    %c0_i32 = arith.constant 0 : i32
    %c0_i32_0 = arith.constant 0 : i32
    %c0_i32_1 = arith.constant 0 : i32
    return %arg0, %c0_i32, %c0_i32_0 : i32, i32, i32
  }
  func.func @transform_1(%arg0: i32) -> (i32, i32, i32) {
    %c0_i32 = arith.constant 0 : i32
    %c0_i32_0 = arith.constant 0 : i32
    %c0_i32_1 = arith.constant 0 : i32
    return %arg0, %c0_i32, %c0_i32_0 : i32, i32, i32
  }
  func.func @transform_2(%arg0: i32) -> (i32, i32, i32) {
    %c0_i32 = arith.constant 0 : i32
    %c0_i32_0 = arith.constant 0 : i32
    %c0_i32_1 = arith.constant 0 : i32
    return %arg0, %c0_i32, %c0_i32_0 : i32, i32, i32
  }
  func.func @transform_3(%arg0: i32) -> (i32, i32) {
    %c0_i32 = arith.constant 0 : i32
    %c0_i32_0 = arith.constant 0 : i32
    %c0_i32_1 = arith.constant 0 : i32
    return %c0_i32, %c0_i32_0 : i32, i32
  }
  func.func @transform_4(%arg0: i32) -> (i32, i32) {
    %c0_i32 = arith.constant 0 : i32
    %c0_i32_0 = arith.constant 0 : i32
    %c0_i32_1 = arith.constant 0 : i32
    return %c0_i32, %c0_i32_0 : i32, i32
  }
  func.func @transform_5(%arg0: i32) -> (i32, i32) {
    %c0_i32 = arith.constant 0 : i32
    %c0_i32_0 = arith.constant 0 : i32
    %c0_i32_1 = arith.constant 0 : i32
    return %c0_i32, %c0_i32_0 : i32, i32
  }
  func.func @transform_6(%arg0: i32) -> (i32, i32) {
    %c0_i32 = arith.constant 0 : i32
    %c0_i32_0 = arith.constant 0 : i32
    %c0_i32_1 = arith.constant 0 : i32
    return %c0_i32, %c0_i32_0 : i32, i32
  }
  func.func @transform_7(%arg0: i32) -> (i32, i32) {
    %c0_i32 = arith.constant 0 : i32
    %c0_i32_0 = arith.constant 0 : i32
    %c0_i32_1 = arith.constant 0 : i32
    return %c0_i32, %c0_i32_0 : i32, i32
  }
  func.func @transform_8(%arg0: i32) -> (i32, i32, i32) {
    %c0_i32 = arith.constant 0 : i32
    %c0_i32_0 = arith.constant 0 : i32
    %c0_i32_1 = arith.constant 0 : i32
    %c0_i32_2 = arith.constant 0 : i32
    return %c0_i32, %c0_i32_0, %c0_i32_1 : i32, i32, i32
  }
  func.func @transform_9(%arg0: i32) -> (i32, i32, i32) {
    %c0_i32 = arith.constant 0 : i32
    %c0_i32_0 = arith.constant 0 : i32
    %c0_i32_1 = arith.constant 0 : i32
    %c0_i32_2 = arith.constant 0 : i32
    return %c0_i32, %c0_i32_0, %c0_i32_1 : i32, i32, i32
  }
  func.func @transform_10(%arg0: i32) -> (i32, i32, i32) {
    %c0_i32 = arith.constant 0 : i32
    %c0_i32_0 = arith.constant 0 : i32
    %c0_i32_1 = arith.constant 0 : i32
    %c0_i32_2 = arith.constant 0 : i32
    return %c0_i32, %c0_i32_0, %c0_i32_1 : i32, i32, i32
  }
  func.func @transform_11(%arg0: i32) -> (i32, i32) {
    %c0_i32 = arith.constant 0 : i32
    %c0_i32_0 = arith.constant 0 : i32
    %c0_i32_1 = arith.constant 0 : i32
    return %c0_i32, %c0_i32_0 : i32, i32
  }
  func.func @transform_12(%arg0: i32) -> (i32, i32) {
    %c0_i32 = arith.constant 0 : i32
    %c0_i32_0 = arith.constant 0 : i32
    %c0_i32_1 = arith.constant 0 : i32
    return %c0_i32, %c0_i32_0 : i32, i32
  }
  func.func @transform_13(%arg0: i32) -> (i32, i32) {
    %c0_i32 = arith.constant 0 : i32
    %c0_i32_0 = arith.constant 0 : i32
    %c0_i32_1 = arith.constant 0 : i32
    return %c0_i32, %c0_i32_0 : i32, i32
  }
  func.func @transform_14(%arg0: i32) -> (i32, i32) {
    %c0_i32 = arith.constant 0 : i32
    %c0_i32_0 = arith.constant 0 : i32
    %c0_i32_1 = arith.constant 0 : i32
    return %c0_i32, %c0_i32_0 : i32, i32
  }
  func.func @transform_15(%arg0: i32) -> (i32, i32) {
    %c0_i32 = arith.constant 0 : i32
    %c0_i32_0 = arith.constant 0 : i32
    %c0_i32_1 = arith.constant 0 : i32
    return %c0_i32, %c0_i32_0 : i32, i32
  }
  func.func @transform_16(%arg0: i32) -> (i32, i32, i32) {
    %c0_i32 = arith.constant 0 : i32
    %c0_i32_0 = arith.constant 0 : i32
    %c0_i32_1 = arith.constant 0 : i32
    return %arg0, %c0_i32, %c0_i32_0 : i32, i32, i32
  }
}

</mosaic_0001>

<llo_original>
// kernel: tpu_custom_call.1
$region0: #{tpu_custom_call.1}
  #allocation0 [shape = 'u32[]', space=smem, size = 0x4, offset = 0x4, fixed_abs, tag = 'smem constant byte address 0x4 - core index']
  #allocation1 [shape = 'u32[72,128]{1,0:T(1,128)}', space=vmem, size = 0x9000, scoped, tag = 'internal scratch']
  %s0 = inlined_call_operand.hbm [shape: f32[2,1,9], index: 0, kind: input, shape index: {}]
  %s1 = inlined_call_operand.vmem [shape: f32[2,24,22], index: 1, kind: input, shape index: {}]
  %s2 = inlined_call_operand.hbm [shape: f32[2,4,24], index: 2, kind: input, shape index: {}]
  %s3 = inlined_call_operand.vmem [shape: f32[576,128], index: 3, kind: input, shape index: {}]
  %s4 = inlined_call_operand.vmem [shape: f32[73,64], index: 4, kind: input, shape index: {}]
  %s5 = inlined_call_operand.vmem [shape: f32[86,64], index: 5, kind: input, shape index: {}]
  %s6 = inlined_call_operand.vmem [shape: f32[24,4], index: 6, kind: input, shape index: {}]
  %s7 = inlined_call_operand.hbm [shape: f32[8,256], index: 7, kind: input, shape index: {}]
  %s8 = inlined_call_operand.hbm [shape: f32[4,32,256], index: 8, kind: input, shape index: {}]
  %s9 = inlined_call_operand.hbm [shape: f32[4,128,128], index: 9, kind: input, shape index: {}]
  %s10 = inlined_call_operand.vmem [shape: f32[4,5,256], index: 10, kind: input, shape index: {}]
  %s11 = inlined_call_operand.vmem [shape: f32[160,256], index: 11, kind: input, shape index: {}]
  %s12 = inlined_call_operand.vmem [shape: f32[160,32], index: 12, kind: input, shape index: {}]
  %s13 = inlined_call_operand.hbm [shape: f32[288,128], index: 13, kind: input, shape index: {}]
  %s14 = inlined_call_operand.vmem [shape: f32[8,192], index: 14, kind: input, shape index: {}]
  %s15 = inlined_call_operand.vmem [shape: f32[128,32], index: 15, kind: input, shape index: {}]
  %s16 = inlined_call_operand.hbm [shape: f32[2,1,8], index: 16, kind: output, shape index: {}]
  %s17 = sld [smem:[#allocation0]]
  $region121: #{tpu_custom_call.1} parent=0
    _
  %s19 = ssub.s32 1, %s17
  %s20 = scalar_select 0, %s19, %s17
  $region1: #{tpu_custom_call.1} parent=0
    #allocation2 [shape = 'u8[1024]{0}', space=vmem, size = 0x400, scoped, tag = 'input window, operand 0']
    #allocation3 [shape = 's32[2]{0}', space=sflag, size = 0x8, scoped, tag = 'scoped memory for tpu_custom_call.1']
    #allocation4 [shape = 's32[2]{0}', space=sflag, size = 0x8, scoped, tag = 'scoped memory for tpu_custom_call.1']
    #allocation5 [shape = 'u8[4096]{0}', space=vmem, size = 0x1000, scoped, tag = 'input window, operand 2']
    #allocation6 [shape = 's32[2]{0}', space=sflag, size = 0x8, scoped, tag = 'scoped memory for tpu_custom_call.1']
    #allocation7 [shape = 'u8[8192]{0}', space=vmem, size = 0x2000, scoped, tag = 'input window, operand 7, single buffered']
    #allocation8 [shape = 'u8[131072]{0}', space=vmem, size = 0x20000, scoped, tag = 'input window, operand 8, single buffered']
    #allocation9 [shape = 's32[1]{0}', space=sflag, size = 0x4, scoped, tag = 'scoped memory for tpu_custom_call.1']
    #allocation10 [shape = 'u8[262144]{0}', space=vmem, size = 0x40000, scoped, tag = 'input window, operand 9, single buffered']
    #allocation11 [shape = 'u8[147456]{0}', space=vmem, size = 0x24000, scoped, tag = 'input window, operand 13, single buffered']
    #allocation12 [shape = 's32[1]{0}', space=sflag, size = 0x4, scoped, tag = 'scoped memory for tpu_custom_call.1']
    #allocation13 [shape = 'u8[1024]{0}', space=vmem, size = 0x400, scoped, tag = 'output window, operand 0']
    %21 = vsyncpa [#allocation3], 0
    %s22 = scalar_lea.sflag [#allocation3], 1
    %23 = vsyncpa %s22, 0
    %24 = vsyncpa [#allocation6], 0
    %s25 = scalar_lea.sflag [#allocation6], 1
    %26 = vsyncpa %s25, 0
    %27 = vsyncpa [#allocation9], 0
    %28 = vsyncpa [#allocation12], 0
    %29 = vsyncpa [#allocation4], 0
    %s30 = scalar_lea.sflag [#allocation4], 1
    %31 = vsyncpa %s30, 0
    loop: start=0, step=1, limit=4
    $region2: #{tpu_custom_call.1} parent=1 // loop_pre_header
      _
    $region3: #{tpu_custom_call.1} parent=1 // loop_header
      %s33 = sphi 0, %s37
      %p34 = scmp.ge.s32.totalorder %s33, 4
      %s43 = sphi 0, %s45
      %s46 = sphi 0, %s43
      %s47 = sphi 0, %s46
      %s63 = sphi 0, %s47
      %s69 = sphi 0, %s71
      %s72 = sphi 0, %s69
      %s73 = sphi 0, %s72
      %s89 = sphi 0, %s73
      %s95 = sphi 0, %s97
      %s98 = sphi 0, %s95
      %s99 = sphi 0, %s98
      %s115 = sphi 0, %s99
      %s119 = sphi 0, %s119
      %s121 = sphi 0, %s119
      %s122 = sphi 0, %s121
      %s136 = sphi 0, %s122
      %s140 = sphi 0, %s140
      %s142 = sphi 0, %s140
      %s143 = sphi 0, %s142
      %s157 = sphi 0, %s143
      %s161 = sphi 0, %s161
      %s163 = sphi 0, %s161
      %s164 = sphi 0, %s163
      %s178 = sphi 0, %s164
      %s182 = sphi 0, %s182
      %s184 = sphi 0, %s182
      %s185 = sphi 0, %s184
      %s199 = sphi 0, %s185
      %s203 = sphi 0, %s203
      %s205 = sphi 0, %s203
      %s206 = sphi 0, %s205
      %s220 = sphi 0, %s206
      %s224 = sphi 0, %s224
      %s226 = sphi 0, %s224
      %s227 = sphi 0, %s226
      %s241 = sphi 0, %s227
      %s245 = sphi 0, %s245
      %s247 = sphi 0, %s245
      %s248 = sphi 0, %s247
      %s262 = sphi 0, %s248
      %s266 = sphi 0, %s266
      %s268 = sphi 0, %s266
      %s269 = sphi 0, %s268
      %s283 = sphi 0, %s269
      %s287 = sphi 0, %s287
      %s289 = sphi 0, %s287
      %s290 = sphi 0, %s289
      %s304 = sphi 0, %s290
      %s308 = sphi 0, %s308
      %s310 = sphi 0, %s308
      %s311 = sphi 0, %s310
      %s325 = sphi 0, %s311
      %s329 = sphi 0, %s329
      %s331 = sphi 0, %s329
      %s332 = sphi 0, %s331
      %s346 = sphi 0, %s332
      %s350 = sphi 0, %s350
      %s352 = sphi 0, %s350
      %s353 = sphi 0, %s352
      %s367 = sphi 0, %s353
      %s371 = sphi 0, %s371
      %s373 = sphi 0, %s371
      %s374 = sphi 0, %s373
      %s388 = sphi 0, %s374
      %s394 = sphi 0, %s396
      %s397 = sphi 0, %s394
      %s398 = sphi 0, %s397
      %s414 = sphi 0, %s398
    $region4: #{tpu_custom_call.1} parent=1 // loop_header_branch
      %36 = sbr.rel (%p34) target = $region8
    $region5: #{tpu_custom_call.1} parent=1 // loop_body
      %s38 = ssub.s32 %s33, 1
      %s39 = ssub.s32 %s33, 2
      %s40 = sadd.s32 %s33, 1
      %s41 = ssub.s32 %s33, %s40
      %p42 = scmp.eq.s32.totalorder %s41, 0
      %s44 = sadd.s32 %s43, 1
      %s45 = scalar_select %p42, %s43, %s44
      %p48 = pneg %p42
      %p49 = scmp.eq.s32.totalorder %s33, 1
      %p50 = por %p48, %p49
      %p51 = scmp.ne.s32.totalorder %s43, %s46
      %p52 = scmp.eq.s32.totalorder %s33, 0
      %p53 = por %p51, %p52
      %p54 = scmp.ne.s32.totalorder %s43, %s46
      %p55 = scmp.eq.s32.totalorder %s38, 1
      %p56 = por %p54, %p55
      %p57 = scmp.ne.s32.totalorder %s46, %s47
      %p58 = scmp.eq.s32.totalorder %s38, 0
      %p59 = por %p57, %p58
      %p60 = scmp.ne.s32.totalorder %s46, %s47
      %p61 = scmp.eq.s32.totalorder %s39, 1
      %p62 = por %p60, %p61
      %p64 = scmp.ne.s32.totalorder %s47, %s63
      %p65 = scmp.eq.s32.totalorder %s39, 0
      %p66 = por %p64, %p65
      %s67 = ssub.s32 %s33, %s40
      %p68 = scmp.eq.s32.totalorder %s67, 0
      %s70 = sadd.s32 %s69, 1
      %s71 = scalar_select %p68, %s69, %s70
      %p74 = pneg %p68
      %p75 = scmp.eq.s32.totalorder %s33, 1
      %p76 = por %p74, %p75
      %p77 = scmp.ne.s32.totalorder %s69, %s72
      %p78 = scmp.eq.s32.totalorder %s33, 0
      %p79 = por %p77, %p78
      %p80 = scmp.ne.s32.totalorder %s69, %s72
      %p81 = scmp.eq.s32.totalorder %s38, 1
      %p82 = por %p80, %p81
      %p83 = scmp.ne.s32.totalorder %s72, %s73
      %p84 = scmp.eq.s32.totalorder %s38, 0
      %p85 = por %p83, %p84
      %p86 = scmp.ne.s32.totalorder %s72, %s73
      %p87 = scmp.eq.s32.totalorder %s39, 1
      %p88 = por %p86, %p87
      %p90 = scmp.ne.s32.totalorder %s73, %s89
      %p91 = scmp.eq.s32.totalorder %s39, 0
      %p92 = por %p90, %p91
      %s93 = ssub.s32 %s33, %s40
      %p94 = scmp.eq.s32.totalorder %s93, 0
      %s96 = sadd.s32 %s95, 1
      %s97 = scalar_select %p94, %s95, %s96
      %p100 = pneg %p94
      %p101 = scmp.eq.s32.totalorder %s33, 1
      %p102 = por %p100, %p101
      %p103 = scmp.ne.s32.totalorder %s95, %s98
      %p104 = scmp.eq.s32.totalorder %s33, 0
      %p105 = por %p103, %p104
      %p106 = scmp.ne.s32.totalorder %s95, %s98
      %p107 = scmp.eq.s32.totalorder %s38, 1
      %p108 = por %p106, %p107
      %p109 = scmp.ne.s32.totalorder %s98, %s99
      %p110 = scmp.eq.s32.totalorder %s38, 0
      %p111 = por %p109, %p110
      %p112 = scmp.ne.s32.totalorder %s98, %s99
      %p113 = scmp.eq.s32.totalorder %s39, 1
      %p114 = por %p112, %p113
      %p116 = scmp.ne.s32.totalorder %s99, %s115
      %p117 = scmp.eq.s32.totalorder %s39, 0
      %p118 = por %p116, %p117
      %s120 = sadd.s32 %s119, 1
      %p123 = scmp.eq.s32.totalorder %s33, 1
      %p124 = scmp.ne.s32.totalorder %s119, %s121
      %p125 = scmp.eq.s32.totalorder %s33, 0
      %p126 = por %p124, %p125
      %p127 = scmp.ne.s32.totalorder %s119, %s121
      %p128 = scmp.eq.s32.totalorder %s38, 1
      %p129 = por %p127, %p128
      %p130 = scmp.ne.s32.totalorder %s121, %s122
      %p131 = scmp.eq.s32.totalorder %s38, 0
      %p132 = por %p130, %p131
      %p133 = scmp.ne.s32.totalorder %s121, %s122
      %p134 = scmp.eq.s32.totalorder %s39, 1
      %p135 = por %p133, %p134
      %p137 = scmp.ne.s32.totalorder %s122, %s136
      %p138 = scmp.eq.s32.totalorder %s39, 0
      %p139 = por %p137, %p138
      %s141 = sadd.s32 %s140, 1
      %p144 = scmp.eq.s32.totalorder %s33, 1
      %p145 = scmp.ne.s32.totalorder %s140, %s142
      %p146 = scmp.eq.s32.totalorder %s33, 0
      %p147 = por %p145, %p146
      %p148 = scmp.ne.s32.totalorder %s140, %s142
      %p149 = scmp.eq.s32.totalorder %s38, 1
      %p150 = por %p148, %p149
      %p151 = scmp.ne.s32.totalorder %s142, %s143
      %p152 = scmp.eq.s32.totalorder %s38, 0
      %p153 = por %p151, %p152
      %p154 = scmp.ne.s32.totalorder %s142, %s143
      %p155 = scmp.eq.s32.totalorder %s39, 1
      %p156 = por %p154, %p155
      %p158 = scmp.ne.s32.totalorder %s143, %s157
      %p159 = scmp.eq.s32.totalorder %s39, 0
      %p160 = por %p158, %p159
      %s162 = sadd.s32 %s161, 1
      %p165 = scmp.eq.s32.totalorder %s33, 1
      %p166 = scmp.ne.s32.totalorder %s161, %s163
      %p167 = scmp.eq.s32.totalorder %s33, 0
      %p168 = por %p166, %p167
      %p169 = scmp.ne.s32.totalorder %s161, %s163
      %p170 = scmp.eq.s32.totalorder %s38, 1
      %p171 = por %p169, %p170
      %p172 = scmp.ne.s32.totalorder %s163, %s164
      %p173 = scmp.eq.s32.totalorder %s38, 0
      %p174 = por %p172, %p173
      %p175 = scmp.ne.s32.totalorder %s163, %s164
      %p176 = scmp.eq.s32.totalorder %s39, 1
      %p177 = por %p175, %p176
      %p179 = scmp.ne.s32.totalorder %s164, %s178
      %p180 = scmp.eq.s32.totalorder %s39, 0
      %p181 = por %p179, %p180
      %s183 = sadd.s32 %s182, 1
      %p186 = scmp.eq.s32.totalorder %s33, 1
      %p187 = scmp.ne.s32.totalorder %s182, %s184
      %p188 = scmp.eq.s32.totalorder %s33, 0
      %p189 = por %p187, %p188
      %p190 = scmp.ne.s32.totalorder %s182, %s184
      %p191 = scmp.eq.s32.totalorder %s38, 1
      %p192 = por %p190, %p191
      %p193 = scmp.ne.s32.totalorder %s184, %s185
      %p194 = scmp.eq.s32.totalorder %s38, 0
      %p195 = por %p193, %p194
      %p196 = scmp.ne.s32.totalorder %s184, %s185
      %p197 = scmp.eq.s32.totalorder %s39, 1
      %p198 = por %p196, %p197
      %p200 = scmp.ne.s32.totalorder %s185, %s199
      %p201 = scmp.eq.s32.totalorder %s39, 0
      %p202 = por %p200, %p201
      %s204 = sadd.s32 %s203, 1
      %p207 = scmp.eq.s32.totalorder %s33, 1
      %p208 = scmp.ne.s32.totalorder %s203, %s205
      %p209 = scmp.eq.s32.totalorder %s33, 0
      %p210 = por %p208, %p209
      %p211 = scmp.ne.s32.totalorder %s203, %s205
      %p212 = scmp.eq.s32.totalorder %s38, 1
      %p213 = por %p211, %p212
      %p214 = scmp.ne.s32.totalorder %s205, %s206
      %p215 = scmp.eq.s32.totalorder %s38, 0
      %p216 = por %p214, %p215
      %p217 = scmp.ne.s32.totalorder %s205, %s206
      %p218 = scmp.eq.s32.totalorder %s39, 1
      %p219 = por %p217, %p218
      %p221 = scmp.ne.s32.totalorder %s206, %s220
      %p222 = scmp.eq.s32.totalorder %s39, 0
      %p223 = por %p221, %p222
      %s225 = sadd.s32 %s224, 1
      %p228 = scmp.eq.s32.totalorder %s33, 1
      %p229 = scmp.ne.s32.totalorder %s224, %s226
      %p230 = scmp.eq.s32.totalorder %s33, 0
      %p231 = por %p229, %p230
      %p232 = scmp.ne.s32.totalorder %s224, %s226
      %p233 = scmp.eq.s32.totalorder %s38, 1
      %p234 = por %p232, %p233
      %p235 = scmp.ne.s32.totalorder %s226, %s227
      %p236 = scmp.eq.s32.totalorder %s38, 0
      %p237 = por %p235, %p236
      %p238 = scmp.ne.s32.totalorder %s226, %s227
      %p239 = scmp.eq.s32.totalorder %s39, 1
      %p240 = por %p238, %p239
      %p242 = scmp.ne.s32.totalorder %s227, %s241
      %p243 = scmp.eq.s32.totalorder %s39, 0
      %p244 = por %p242, %p243
      %s246 = sadd.s32 %s245, 1
      %p249 = scmp.eq.s32.totalorder %s33, 1
      %p250 = scmp.ne.s32.totalorder %s245, %s247
      %p251 = scmp.eq.s32.totalorder %s33, 0
      %p252 = por %p250, %p251
      %p253 = scmp.ne.s32.totalorder %s245, %s247
      %p254 = scmp.eq.s32.totalorder %s38, 1
      %p255 = por %p253, %p254
      %p256 = scmp.ne.s32.totalorder %s247, %s248
      %p257 = scmp.eq.s32.totalorder %s38, 0
      %p258 = por %p256, %p257
      %p259 = scmp.ne.s32.totalorder %s247, %s248
      %p260 = scmp.eq.s32.totalorder %s39, 1
      %p261 = por %p259, %p260
      %p263 = scmp.ne.s32.totalorder %s248, %s262
      %p264 = scmp.eq.s32.totalorder %s39, 0
      %p265 = por %p263, %p264
      %s267 = sadd.s32 %s266, 1
      %p270 = scmp.eq.s32.totalorder %s33, 1
      %p271 = scmp.ne.s32.totalorder %s266, %s268
      %p272 = scmp.eq.s32.totalorder %s33, 0
      %p273 = por %p271, %p272
      %p274 = scmp.ne.s32.totalorder %s266, %s268
      %p275 = scmp.eq.s32.totalorder %s38, 1
      %p276 = por %p274, %p275
      %p277 = scmp.ne.s32.totalorder %s268, %s269
      %p278 = scmp.eq.s32.totalorder %s38, 0
      %p279 = por %p277, %p278
      %p280 = scmp.ne.s32.totalorder %s268, %s269
      %p281 = scmp.eq.s32.totalorder %s39, 1
      %p282 = por %p280, %p281
      %p284 = scmp.ne.s32.totalorder %s269, %s283
      %p285 = scmp.eq.s32.totalorder %s39, 0
      %p286 = por %p284, %p285
      %s288 = sadd.s32 %s287, 1
      %p291 = scmp.eq.s32.totalorder %s33, 1
      %p292 = scmp.ne.s32.totalorder %s287, %s289
      %p293 = scmp.eq.s32.totalorder %s33, 0
      %p294 = por %p292, %p293
      %p295 = scmp.ne.s32.totalorder %s287, %s289
      %p296 = scmp.eq.s32.totalorder %s38, 1
      %p297 = por %p295, %p296
      %p298 = scmp.ne.s32.totalorder %s289, %s290
      %p299 = scmp.eq.s32.totalorder %s38, 0
      %p300 = por %p298, %p299
      %p301 = scmp.ne.s32.totalorder %s289, %s290
      %p302 = scmp.eq.s32.totalorder %s39, 1
      %p303 = por %p301, %p302
      %p305 = scmp.ne.s32.totalorder %s290, %s304
      %p306 = scmp.eq.s32.totalorder %s39, 0
      %p307 = por %p305, %p306
      %s309 = sadd.s32 %s308, 1
      %p312 = scmp.eq.s32.totalorder %s33, 1
      %p313 = scmp.ne.s32.totalorder %s308, %s310
      %p314 = scmp.eq.s32.totalorder %s33, 0
      %p315 = por %p313, %p314
      %p316 = scmp.ne.s32.totalorder %s308, %s310
      %p317 = scmp.eq.s32.totalorder %s38, 1
      %p318 = por %p316, %p317
      %p319 = scmp.ne.s32.totalorder %s310, %s311
      %p320 = scmp.eq.s32.totalorder %s38, 0
      %p321 = por %p319, %p320
      %p322 = scmp.ne.s32.totalorder %s310, %s311
      %p323 = scmp.eq.s32.totalorder %s39, 1
      %p324 = por %p322, %p323
      %p326 = scmp.ne.s32.totalorder %s311, %s325
      %p327 = scmp.eq.s32.totalorder %s39, 0
      %p328 = por %p326, %p327
      %s330 = sadd.s32 %s329, 1
      %p333 = scmp.eq.s32.totalorder %s33, 1
      %p334 = scmp.ne.s32.totalorder %s329, %s331
      %p335 = scmp.eq.s32.totalorder %s33, 0
      %p336 = por %p334, %p335
      %p337 = scmp.ne.s32.totalorder %s329, %s331
      %p338 = scmp.eq.s32.totalorder %s38, 1
      %p339 = por %p337, %p338
      %p340 = scmp.ne.s32.totalorder %s331, %s332
      %p341 = scmp.eq.s32.totalorder %s38, 0
      %p342 = por %p340, %p341
      %p343 = scmp.ne.s32.totalorder %s331, %s332
      %p344 = scmp.eq.s32.totalorder %s39, 1
      %p345 = por %p343, %p344
      %p347 = scmp.ne.s32.totalorder %s332, %s346
      %p348 = scmp.eq.s32.totalorder %s39, 0
      %p349 = por %p347, %p348
      %s351 = sadd.s32 %s350, 1
      %p354 = scmp.eq.s32.totalorder %s33, 1
      %p355 = scmp.ne.s32.totalorder %s350, %s352
      %p356 = scmp.eq.s32.totalorder %s33, 0
      %p357 = por %p355, %p356
      %p358 = scmp.ne.s32.totalorder %s350, %s352
      %p359 = scmp.eq.s32.totalorder %s38, 1
      %p360 = por %p358, %p359
      %p361 = scmp.ne.s32.totalorder %s352, %s353
      %p362 = scmp.eq.s32.totalorder %s38, 0
      %p363 = por %p361, %p362
      %p364 = scmp.ne.s32.totalorder %s352, %s353
      %p365 = scmp.eq.s32.totalorder %s39, 1
      %p366 = por %p364, %p365
      %p368 = scmp.ne.s32.totalorder %s353, %s367
      %p369 = scmp.eq.s32.totalorder %s39, 0
      %p370 = por %p368, %p369
      %s372 = sadd.s32 %s371, 1
      %p375 = scmp.eq.s32.totalorder %s33, 1
      %p376 = scmp.ne.s32.totalorder %s371, %s373
      %p377 = scmp.eq.s32.totalorder %s33, 0
      %p378 = por %p376, %p377
      %p379 = scmp.ne.s32.totalorder %s371, %s373
      %p380 = scmp.eq.s32.totalorder %s38, 1
      %p381 = por %p379, %p380
      %p382 = scmp.ne.s32.totalorder %s373, %s374
      %p383 = scmp.eq.s32.totalorder %s38, 0
      %p384 = por %p382, %p383
      %p385 = scmp.ne.s32.totalorder %s373, %s374
      %p386 = scmp.eq.s32.totalorder %s39, 1
      %p387 = por %p385, %p386
      %p389 = scmp.ne.s32.totalorder %s374, %s388
      %p390 = scmp.eq.s32.totalorder %s39, 0
      %p391 = por %p389, %p390
      %s392 = ssub.s32 %s33, %s40
      %p393 = scmp.eq.s32.totalorder %s392, 0
      %s395 = sadd.s32 %s394, 1
      %s396 = scalar_select %p393, %s394, %s395
      %p399 = pneg %p393
      %p400 = scmp.eq.s32.totalorder %s33, 1
      %p401 = por %p399, %p400
      %p402 = scmp.ne.s32.totalorder %s394, %s397
      %p403 = scmp.eq.s32.totalorder %s33, 0
      %p404 = por %p402, %p403
      %p405 = scmp.ne.s32.totalorder %s394, %s397
      %p406 = scmp.eq.s32.totalorder %s38, 1
      %p407 = por %p405, %p406
      %p408 = scmp.ne.s32.totalorder %s397, %s398
      %p409 = scmp.eq.s32.totalorder %s38, 0
      %p410 = por %p408, %p409
      %p411 = scmp.ne.s32.totalorder %s397, %s398
      %p412 = scmp.eq.s32.totalorder %s39, 1
      %p413 = por %p411, %p412
      %p415 = scmp.ne.s32.totalorder %s398, %s414
      %p416 = scmp.eq.s32.totalorder %s39, 0
      %p417 = por %p415, %p416
      %p418 = scmp.le.s32.totalorder 1, %s33
      %p419 = scmp.lt.s32.totalorder %s33, 3
      %p420 = pnand %p418, %p419
      %p421 = pneg %p420
      // Predicated region
      $region9: #{tpu_custom_call.1} parent=5 // pred_check
        _
      $region10: #{tpu_custom_call.1} parent=5 // pred_check_branch
        %423 = sbr.rel (%p420) target = $region12
      $region11: #{tpu_custom_call.1} parent=5 // pred_region
        %s424 = ssub.s32 %s33, 1
        // Predicated region
        $region13: #{tpu_custom_call.1} parent=11 // pred_check
          %p425 = pneg %p132
        $region14: #{tpu_custom_call.1} parent=11 // pred_check_branch
          %427 = sbr.rel (%p425) target = $region16
        $region15: #{tpu_custom_call.1} parent=11 // pred_region
          _
        $region16: #{tpu_custom_call.1} parent=11 // pred_fallthru
          _
        // Predicated region
        $region17: #{tpu_custom_call.1} parent=11 // pred_check
          %p428 = pneg %p153
        $region18: #{tpu_custom_call.1} parent=11 // pred_check_branch
          %430 = sbr.rel (%p428) target = $region20
        $region19: #{tpu_custom_call.1} parent=11 // pred_region
          _
        $region20: #{tpu_custom_call.1} parent=11 // pred_fallthru
          _
        // Predicated region
        $region21: #{tpu_custom_call.1} parent=11 // pred_check
          %p431 = pneg %p174
        $region22: #{tpu_custom_call.1} parent=11 // pred_check_branch
          %433 = sbr.rel (%p431) target = $region24
        $region23: #{tpu_custom_call.1} parent=11 // pred_region
          _
        $region24: #{tpu_custom_call.1} parent=11 // pred_fallthru
          _
        // Predicated region
        $region25: #{tpu_custom_call.1} parent=11 // pred_check
          %p434 = pneg %p195
        $region26: #{tpu_custom_call.1} parent=11 // pred_check_branch
          %436 = sbr.rel (%p434) target = $region28
        $region27: #{tpu_custom_call.1} parent=11 // pred_region
          _
        $region28: #{tpu_custom_call.1} parent=11 // pred_fallthru
          _
        // Predicated region
        $region29: #{tpu_custom_call.1} parent=11 // pred_check
          %p437 = pneg %p216
        $region30: #{tpu_custom_call.1} parent=11 // pred_check_branch
          %439 = sbr.rel (%p437) target = $region32
        $region31: #{tpu_custom_call.1} parent=11 // pred_region
          %441 = vsyncadd [#allocation6], 0
          %s443 = sshll.u32 %s7, 4
          %s444 = int_to_ptr.hbm [resolvable:$true] %s443
          %s445 = sshll.u32 [#allocation7], 4
          %s446 = int_to_ptr.vmem [resolvable:$true] %s445
          %448 = dma.hbm_to_vmem [thread:$0]  %s444, 256, %s446, [#allocation6]
        $region32: #{tpu_custom_call.1} parent=11 // pred_fallthru
          _
        // Predicated region
        $region33: #{tpu_custom_call.1} parent=11 // pred_check
          %p449 = pneg %p237
        $region34: #{tpu_custom_call.1} parent=11 // pred_check_branch
          %451 = sbr.rel (%p449) target = $region36
        $region35: #{tpu_custom_call.1} parent=11 // pred_region
          %453 = vsyncadd [#allocation9], 0
          %s454 = sshll.u32 %s8, 4
          %s455 = int_to_ptr.hbm [resolvable:$true] %s454
          %s456 = sshll.u32 [#allocation8], 4
          %s457 = int_to_ptr.vmem [resolvable:$true] %s456
          %462 = dma.hbm_to_vmem [thread:$0]  %s455, 4096, %s457, [#allocation9], 256, 256, 16
        $region36: #{tpu_custom_call.1} parent=11 // pred_fallthru
          _
        // Predicated region
        $region37: #{tpu_custom_call.1} parent=11 // pred_check
          %p463 = pneg %p258
        $region38: #{tpu_custom_call.1} parent=11 // pred_check_branch
          %465 = sbr.rel (%p463) target = $region40
        $region39: #{tpu_custom_call.1} parent=11 // pred_region
          %467 = vsyncadd [#allocation9], 0
          %s468 = sshll.u32 %s9, 4
          %s469 = int_to_ptr.hbm [resolvable:$true] %s468
          %s470 = sshll.u32 [#allocation10], 4
          %s471 = int_to_ptr.vmem [resolvable:$true] %s470
          %476 = dma.hbm_to_vmem [thread:$0]  %s469, 8192, %s471, [#allocation9], 128, 128, 8
        $region40: #{tpu_custom_call.1} parent=11 // pred_fallthru
          _
        // Predicated region
        $region41: #{tpu_custom_call.1} parent=11 // pred_check
          %p477 = pneg %p279
        $region42: #{tpu_custom_call.1} parent=11 // pred_check_branch
          %479 = sbr.rel (%p477) target = $region44
        $region43: #{tpu_custom_call.1} parent=11 // pred_region
          _
        $region44: #{tpu_custom_call.1} parent=11 // pred_fallthru
          _
        // Predicated region
        $region45: #{tpu_custom_call.1} parent=11 // pred_check
          %p480 = pneg %p300
        $region46: #{tpu_custom_call.1} parent=11 // pred_check_branch
          %482 = sbr.rel (%p480) target = $region48
        $region47: #{tpu_custom_call.1} parent=11 // pred_region
          _
        $region48: #{tpu_custom_call.1} parent=11 // pred_fallthru
          _
        // Predicated region
        $region49: #{tpu_custom_call.1} parent=11 // pred_check
          %p483 = pneg %p321
        $region50: #{tpu_custom_call.1} parent=11 // pred_check_branch
          %485 = sbr.rel (%p483) target = $region52
        $region51: #{tpu_custom_call.1} parent=11 // pred_region
          _
        $region52: #{tpu_custom_call.1} parent=11 // pred_fallthru
          _
        // Predicated region
        $region53: #{tpu_custom_call.1} parent=11 // pred_check
          %p486 = pneg %p342
        $region54: #{tpu_custom_call.1} parent=11 // pred_check_branch
          %488 = sbr.rel (%p486) target = $region56
        $region55: #{tpu_custom_call.1} parent=11 // pred_region
          %490 = vsyncadd [#allocation12], 0
          %s491 = sshll.u32 %s13, 4
          %s492 = int_to_ptr.hbm [resolvable:$true] %s491
          %s493 = sshll.u32 [#allocation11], 4
          %s494 = int_to_ptr.vmem [resolvable:$true] %s493
          %499 = dma.hbm_to_vmem [thread:$0]  %s492, 4608, %s494, [#allocation12], 128, 128, 8
        $region56: #{tpu_custom_call.1} parent=11 // pred_fallthru
          _
        // Predicated region
        $region57: #{tpu_custom_call.1} parent=11 // pred_check
          %p500 = pneg %p363
        $region58: #{tpu_custom_call.1} parent=11 // pred_check_branch
          %502 = sbr.rel (%p500) target = $region60
        $region59: #{tpu_custom_call.1} parent=11 // pred_region
          _
        $region60: #{tpu_custom_call.1} parent=11 // pred_fallthru
          _
        // Predicated region
        $region61: #{tpu_custom_call.1} parent=11 // pred_check
          %p503 = pneg %p384
        $region62: #{tpu_custom_call.1} parent=11 // pred_check_branch
          %505 = sbr.rel (%p503) target = $region64
        $region63: #{tpu_custom_call.1} parent=11 // pred_region
          _
        $region64: #{tpu_custom_call.1} parent=11 // pred_fallthru
          _
      $region12: #{tpu_custom_call.1} parent=5 // pred_fallthru
        _
      %p506 = scmp.lt.s32.totalorder %s33, 2
      // Predicated region
      $region65: #{tpu_custom_call.1} parent=5 // pred_check
        %p507 = pneg %p506
      $region66: #{tpu_custom_call.1} parent=5 // pred_check_branch
        %509 = sbr.rel (%p507) target = $region68
      $region67: #{tpu_custom_call.1} parent=5 // pred_region
        // Predicated region
        $region69: #{tpu_custom_call.1} parent=67 // pred_check
          %p510 = pneg %p53
        $region70: #{tpu_custom_call.1} parent=67 // pred_check_branch
          %512 = sbr.rel (%p510) target = $region72
        $region71: #{tpu_custom_call.1} parent=67 // pred_region
          %s513 = sand.u32 %s43, 1
          %s514 = scalar_lea.sflag [#allocation3], %s513
          %s515 = sand.u32 %s43, 1
          %s516 = scalar_lea.vmem [#allocation2], %s515
          %518 = vsyncadd %s514, 0
          %s519 = scalar_lea.hbm %s0, %s33
          %s521 = sshll.u32 %s519, 4
          %s522 = int_to_ptr.hbm [resolvable:$true] %s521
          %s523 = sshll.u32 %s516, 4
          %s524 = int_to_ptr.vmem [resolvable:$true] %s523
          %526 = dma.hbm_to_vmem [thread:$0]  %s522, 16, %s524, %s514
        $region72: #{tpu_custom_call.1} parent=67 // pred_fallthru
          _
        // Predicated region
        $region73: #{tpu_custom_call.1} parent=67 // pred_check
          %p527 = pneg %p79
        $region74: #{tpu_custom_call.1} parent=67 // pred_check_branch
          %529 = sbr.rel (%p527) target = $region76
        $region75: #{tpu_custom_call.1} parent=67 // pred_region
          %p530 = scmp.lt.s32.totalorder %s33, 1
          %s531 = scalar_select %p530, %s33, 1
          %s532 = smul.addr %s531, 3
          %s533 = smul.addr %s532, 8
          %s534 = scalar_lea.vmem %s1, %s533
        $region76: #{tpu_custom_call.1} parent=67 // pred_fallthru
          _
        // Predicated region
        $region77: #{tpu_custom_call.1} parent=67 // pred_check
          %p535 = pneg %p105
        $region78: #{tpu_custom_call.1} parent=67 // pred_check_branch
          %537 = sbr.rel (%p535) target = $region80
        $region79: #{tpu_custom_call.1} parent=67 // pred_region
          %s538 = sand.u32 %s33, 1
          %s539 = scalar_lea.sflag [#allocation6], %s538
          %s540 = sand.u32 %s95, 1
          %s541 = smul.addr %s540, 4
          %s542 = scalar_lea.vmem [#allocation5], %s541
          %544 = vsyncadd %s539, 0
          %s545 = smul.addr %s33, 4
          %s546 = scalar_lea.hbm %s2, %s545
          %s548 = sshll.u32 %s546, 4
          %s549 = int_to_ptr.hbm [resolvable:$true] %s548
          %s550 = sshll.u32 %s542, 4
          %s551 = int_to_ptr.vmem [resolvable:$true] %s550
          %553 = dma.hbm_to_vmem [thread:$0]  %s549, 64, %s551, %s539
        $region80: #{tpu_custom_call.1} parent=67 // pred_fallthru
          _
      $region68: #{tpu_custom_call.1} parent=5 // pred_fallthru
        _
      %p554 = scmp.le.s32.totalorder 1, %s33
      %p555 = scmp.lt.s32.totalorder %s33, 3
      %p556 = pnand %p554, %p555
      %p557 = pneg %p556
      // Predicated region
      $region81: #{tpu_custom_call.1} parent=5 // pred_check
        _
      $region82: #{tpu_custom_call.1} parent=5 // pred_check_branch
        %559 = sbr.rel (%p556) target = $region84
      $region83: #{tpu_custom_call.1} parent=5 // pred_region
        %s560 = ssub.s32 %s33, 1
        %s561 = sand.u32 %s46, 1
        %s562 = scalar_lea.sflag [#allocation3], %s561
        %s563 = sand.u32 %s46, 1
        %s564 = scalar_lea.vmem [#allocation2], %s563
        // Predicated region
        $region85: #{tpu_custom_call.1} parent=83 // pred_check
          %p565 = pneg %p59
        $region86: #{tpu_custom_call.1} parent=83 // pred_check_branch
          %567 = sbr.rel (%p565) target = $region88
        $region87: #{tpu_custom_call.1} parent=83 // pred_region
          %569 = dma.done %s562, 16
        $region88: #{tpu_custom_call.1} parent=83 // pred_fallthru
          _
        %s570 = sand.u32 %s38, 1
        %s571 = scalar_lea.sflag [#allocation6], %s570
        %s572 = sand.u32 %s98, 1
        %s573 = smul.addr %s572, 4
        %s574 = scalar_lea.vmem [#allocation5], %s573
        // Predicated region
        $region89: #{tpu_custom_call.1} parent=83 // pred_check
          %p575 = pneg %p111
        $region90: #{tpu_custom_call.1} parent=83 // pred_check_branch
          %577 = sbr.rel (%p575) target = $region92
        $region91: #{tpu_custom_call.1} parent=83 // pred_region
          %579 = dma.done %s571, 64
        $region92: #{tpu_custom_call.1} parent=83 // pred_fallthru
          _
        // Predicated region
        $region93: #{tpu_custom_call.1} parent=83 // pred_check
          %p580 = pneg %p216
        $region94: #{tpu_custom_call.1} parent=83 // pred_check_branch
          %582 = sbr.rel (%p580) target = $region96
        $region95: #{tpu_custom_call.1} parent=83 // pred_region
          %584 = dma.done [#allocation6], 256
        $region96: #{tpu_custom_call.1} parent=83 // pred_fallthru
          _
        // Predicated region
        $region97: #{tpu_custom_call.1} parent=83 // pred_check
          %p585 = pneg %p237
        $region98: #{tpu_custom_call.1} parent=83 // pred_check_branch
          %587 = sbr.rel (%p585) target = $region100
        $region99: #{tpu_custom_call.1} parent=83 // pred_region
          %589 = dma.done [#allocation9], 4096
        $region100: #{tpu_custom_call.1} parent=83 // pred_fallthru
          _
        // Predicated region
        $region101: #{tpu_custom_call.1} parent=83 // pred_check
          %p590 = pneg %p258
        $region102: #{tpu_custom_call.1} parent=83 // pred_check_branch
          %592 = sbr.rel (%p590) target = $region104
        $region103: #{tpu_custom_call.1} parent=83 // pred_region
          %594 = dma.done [#allocation9], 8192
        $region104: #{tpu_custom_call.1} parent=83 // pred_fallthru
          _
        // Predicated region
        $region105: #{tpu_custom_call.1} parent=83 // pred_check
          %p595 = pneg %p342
        $region106: #{tpu_custom_call.1} parent=83 // pred_check_branch
          %597 = sbr.rel (%p595) target = $region108
        $region107: #{tpu_custom_call.1} parent=83 // pred_region
          %599 = dma.done [#allocation12], 4608
        $region108: #{tpu_custom_call.1} parent=83 // pred_fallthru
          _
        %s600 = sand.u32 %s46, 1
        %s601 = scalar_lea.sflag [#allocation3], %s600
        %s602 = sand.u32 %s46, 1
        %s603 = scalar_lea.vmem [#allocation2], %s602
        %p604 = pneg %p59
        %p605 = pneg %p56
        %p606 = scmp.lt.s32.totalorder %s38, 1
        %s607 = scalar_select %p606, %s38, 1
        %s608 = smul.addr %s607, 3
        %s609 = smul.addr %s608, 8
        %s610 = scalar_lea.vmem %s1, %s609
        %p611 = pneg %p85
        %p612 = pneg %p82
        %s613 = sand.u32 %s38, 1
        %s614 = scalar_lea.sflag [#allocation6], %s613
        %s615 = sand.u32 %s98, 1
        %s616 = smul.addr %s615, 4
        %s617 = scalar_lea.vmem [#allocation5], %s616
        %p618 = pneg %p111
        %p619 = pneg %p108
        %p620 = pneg %p132
        %p621 = pneg %p129
        %p622 = pneg %p153
        %p623 = pneg %p150
        %p624 = pneg %p174
        %p625 = pneg %p171
        %p626 = pneg %p195
        %p627 = pneg %p192
        %p628 = pneg %p216
        %p629 = pneg %p213
        %p630 = pneg %p237
        %p631 = pneg %p234
        %p632 = pneg %p258
        %p633 = pneg %p255
        %p634 = pneg %p279
        %p635 = pneg %p276
        %p636 = pneg %p300
        %p637 = pneg %p297
        %p638 = pneg %p321
        %p639 = pneg %p318
        %p640 = pneg %p342
        %p641 = pneg %p339
        %p642 = pneg %p363
        %p643 = pneg %p360
        %p644 = pneg %p384
        %p645 = pneg %p381
        %p646 = pneg %p410
        %p647 = pneg %p407
        %s648 = sand.u32 %s397, 1
        %s649 = scalar_lea.sflag [#allocation4], %s648
        %s650 = sand.u32 %s397, 1
        %s651 = scalar_lea.vmem [#allocation13], %s650
        %p652 = scmp.lt.s32.totalorder %s38, 1
        %s653 = scalar_select %p652, %s38, 1
        %s654 = smul.addr %s653, 3
        %s655 = smul.addr %s654, 8
        %s656 = scalar_lea.vmem %s1, %s655
        %v657 = vld [vmem:[#allocation7] sm:$0xff]
        %v658 = vld [vmem:[#allocation7 + $0x8] sm:$0xff]
        %v659 = vld [vmem:[%s564] sm:$0x1]
        %v660 = vld [vmem:[%s4] sm:$0xff]
        %v661 = vld [vmem:[%s4 + $0x8] sm:$0x1]
        %v662 = vld [vmem:[%s4 + $0x9] sm:$0xff]
        %v663 = vld [vmem:[%s4 + $0x11] sm:$0xff]
        %v664 = vld [vmem:[%s4 + $0x19] sm:$0xff]
        %v665 = vld [vmem:[%s4 + $0x21] sm:$0xff]
        %v666 = vld [vmem:[%s4 + $0x29] sm:$0xff]
        %v667 = vld [vmem:[%s4 + $0x31] sm:$0xff]
        %v668 = vld [vmem:[%s4 + $0x39] sm:$0xff]
        %v669 = vld [vmem:[%s4 + $0x41] sm:$0xff]
        %vm670 = vcmask 72704
        %v672 = vsel %vm670, %v659, 0
        %vm674 = vcmask 1040384
        %v676 = vsel %vm674, %v661, 0
        %678 = vmatpush.msra.mxu0 0.0
        %679 = vmatpush.msra.mxu0 0.0
        %680 = vmatpush.msra.mxu0 0.0
        %681 = vmatpush.msra.mxu0 0.0
        %682 = vmatpush.msra.mxu0 0.0
        %683 = vmatpush.msra.mxu0 0.0
        %684 = vmatpush.msra.mxu0 0.0
        %685 = vmatpush.msra.mxu0 0.0
        %686 = vmatpush.msra.mxu0 0.0
        %687 = vmatpush.msra.mxu0 0.0
        %688 = vmatpush.msra.mxu0 0.0
        %689 = vmatpush.msra.mxu0 0.0
        %690 = vmatpush.msra.mxu0 0.0
        %691 = vmatpush.msra.mxu0 0.0
        %692 = vmatpush.msra.mxu0 %v676
        %693 = vmatpush.msra.mxu0 %v660
        %694 = vmatmul.f32.gmra.mxu0 %v672
        %v695 = vpop.f32.mrf.mxu0
        %v696 = vadd.f32 %v657, %v695
        %697 = vdwg.mxu0
        %vm698 = vcmp.ge.f32.partialorder %v696, 0.0
        %v699 = vmul.f32 %v696, 0.01
        %v700 = vsel %vm698, %v696, %v699
        %702 = vset.pattern.permute.xlu0 64
        %703 = vperm.xlu0 %702, %v657
        %v704 = vpop.permute.xlu0 %703
        %v706 = vmul.f32 %v700, %v704
        %707 = vset.pattern.permute.xlu0 65
        %708 = vperm.xlu0 %707, %v657
        %v709 = vpop.permute.xlu0 %708
        %v711 = vadd.f32 %v706, %v709
        %v712 = vrot.slane %v657, 1
        %vm714 = vcmask 523264
        %v716 = vsel %vm714, %v711, 0
        %718 = vmatpush.msra.mxu0 0.0
        %719 = vmatpush.msra.mxu0 0.0
        %720 = vmatpush.msra.mxu0 0.0
        %721 = vmatpush.msra.mxu0 0.0
        %722 = vmatpush.msra.mxu0 0.0
        %723 = vmatpush.msra.mxu0 0.0
        %724 = vmatpush.msra.mxu0 0.0
        %725 = vmatpush.msra.mxu0 0.0
        %726 = vmatpush.msra.mxu0 %v669
        %727 = vmatpush.msra.mxu0 %v668
        %728 = vmatpush.msra.mxu0 %v667
        %729 = vmatpush.msra.mxu0 %v666
        %730 = vmatpush.msra.mxu0 %v665
        %731 = vmatpush.msra.mxu0 %v664
        %732 = vmatpush.msra.mxu0 %v663
        %733 = vmatpush.msra.mxu0 %v662
        %734 = vmatmul.f32.gmra.mxu0 %v716
        %v735 = vpop.f32.mrf.mxu0
        %v736 = vadd.f32 %v712, %v735
        %737 = vdwg.mxu0
        %vm738 = vcmp.ge.f32.partialorder %v736, 0.0
        %v739 = vmul.f32 %v736, 0.01
        %v740 = vsel %vm738, %v736, %v739
        %741 = vset.pattern.permute.xlu0 66
        %742 = vperm.xlu0 %741, %v657
        %v743 = vpop.permute.xlu0 %742
        %v745 = vmul.f32 %v740, %v743
        %746 = vset.pattern.permute.xlu0 67
        %747 = vperm.xlu0 %746, %v657
        %v748 = vpop.permute.xlu0 %747
        %v750 = vadd.f32 %v745, %v748
        %v751 = vld [vmem:[%s656] sm:$0xff]
        %v752 = vld [vmem:[%s656 + $0x8] sm:$0xff]
        %v753 = vld [vmem:[%s656 + $0x10] sm:$0xff]
        %v754 = vld [vmem:[%s5] sm:$0xff]
        %v755 = vld [vmem:[%s5 + $0x8] sm:$0xff]
        %v756 = vld [vmem:[%s5 + $0x10] sm:$0x3f]
        %v757 = vld [vmem:[%s5 + $0x16] sm:$0xff]
        %v758 = vld [vmem:[%s5 + $0x1e] sm:$0xff]
        %v759 = vld [vmem:[%s5 + $0x26] sm:$0xff]
        %v760 = vld [vmem:[%s5 + $0x2e] sm:$0xff]
        %v761 = vld [vmem:[%s5 + $0x36] sm:$0xff]
        %v762 = vld [vmem:[%s5 + $0x3e] sm:$0xff]
        %v763 = vld [vmem:[%s5 + $0x46] sm:$0xff]
        %v764 = vld [vmem:[%s5 + $0x4e] sm:$0xff]
        %v765 = vld [vmem:[%s6] sm:$0xff]
        %v766 = vld [vmem:[%s6 + $0x8] sm:$0xff]
        %v767 = vld [vmem:[%s6 + $0x10] sm:$0xff]
        %v768 = vperm.slane %v657, 2
        %vm769 = vcmask 179200
        %v771 = vsel %vm769, %v751, 0
        %v774 = vsel %vm769, %v752, 0
        %v777 = vsel %vm769, %v753, 0
        %vm779 = vcmask 1045504
        %v781 = vsel %vm779, %v756, 0
        %783 = vmatpush.msra.mxu0 0.0
        %784 = vmatpush.msra.mxu0 0.0
        %785 = vmatpush.msra.mxu0 0.0
        %786 = vmatpush.msra.mxu0 0.0
        %787 = vmatpush.msra.mxu0 0.0
        %788 = vmatpush.msra.mxu0 0.0
        %789 = vmatpush.msra.mxu0 0.0
        %790 = vmatpush.msra.mxu0 0.0
        %791 = vmatpush.msra.mxu0 0.0
        %792 = vmatpush.msra.mxu0 0.0
        %793 = vmatpush.msra.mxu0 0.0
        %794 = vmatpush.msra.mxu0 0.0
        %795 = vmatpush.msra.mxu0 0.0
        %796 = vmatpush.msra.mxu0 %v781
        %797 = vmatpush.msra.mxu0 %v755
        %798 = vmatpush.msra.mxu0 %v754
        %799 = vmatmul.f32.gmra.mxu0 %v771
        %v800 = vpop.f32.mrf.mxu0
        %v801 = vadd.f32 %v768, %v800
        %802 = vmatmul.f32.gmra.mxu0 %v774
        %v803 = vpop.f32.mrf.mxu0
        %v804 = vadd.f32 %v768, %v803
        %805 = vmatmul.f32.gmra.mxu0 %v777
        %v806 = vpop.f32.mrf.mxu0
        %v807 = vadd.f32 %v768, %v806
        %808 = vdwg.mxu0
        %vm809 = vcmp.ge.f32.partialorder %v801, 0.0
        %vm810 = vcmp.ge.f32.partialorder %v804, 0.0
        %vm811 = vcmp.ge.f32.partialorder %v807, 0.0
        %v812 = vmul.f32 %v801, 0.01
        %v813 = vmul.f32 %v804, 0.01
        %v814 = vmul.f32 %v807, 0.01
        %v815 = vsel %vm809, %v801, %v812
        %v816 = vsel %vm810, %v804, %v813
        %v817 = vsel %vm811, %v807, %v814
        %819 = vset.pattern.permute.xlu0 0
        %820 = vperm.xlu0 %819, %v765
        %v821 = vpop.permute.xlu0 %820
        %824 = vset.pattern.permute.xlu0 0
        %825 = vperm.xlu0 %824, %v766
        %v826 = vpop.permute.xlu0 %825
        %829 = vset.pattern.permute.xlu0 0
        %830 = vperm.xlu0 %829, %v767
        %v831 = vpop.permute.xlu0 %830
        %v833 = vmul.f32 %v815, %v821
        %v834 = vmul.f32 %v816, %v826
        %v835 = vmul.f32 %v817, %v831
        %836 = vset.pattern.permute.xlu0 1
        %837 = vperm.xlu0 %836, %v765
        %v838 = vpop.permute.xlu0 %837
        %840 = vset.pattern.permute.xlu0 1
        %841 = vperm.xlu0 %840, %v766
        %v842 = vpop.permute.xlu0 %841
        %844 = vset.pattern.permute.xlu0 1
        %845 = vperm.xlu0 %844, %v767
        %v846 = vpop.permute.xlu0 %845
        %v848 = vadd.f32 %v833, %v838
        %v849 = vadd.f32 %v834, %v842
        %v850 = vadd.f32 %v835, %v846
        %v851 = vperm.slane %v657, 3
        %v853 = vsel %vm714, %v848, 0
        %v856 = vsel %vm714, %v849, 0
        %v859 = vsel %vm714, %v850, 0
        %861 = vmatpush.msra.mxu0 0.0
        %862 = vmatpush.msra.mxu0 0.0
        %863 = vmatpush.msra.mxu0 0.0
        %864 = vmatpush.msra.mxu0 0.0
        %865 = vmatpush.msra.mxu0 0.0
        %866 = vmatpush.msra.mxu0 0.0
        %867 = vmatpush.msra.mxu0 0.0
        %868 = vmatpush.msra.mxu0 0.0
        %869 = vmatpush.msra.mxu0 %v764
        %870 = vmatpush.msra.mxu0 %v763
        %871 = vmatpush.msra.mxu0 %v762
        %872 = vmatpush.msra.mxu0 %v761
        %873 = vmatpush.msra.mxu0 %v760
        %874 = vmatpush.msra.mxu0 %v759
        %875 = vmatpush.msra.mxu0 %v758
        %876 = vmatpush.msra.mxu0 %v757
        %877 = vmatmul.f32.gmra.mxu0 %v853
        %v878 = vpop.f32.mrf.mxu0
        %v879 = vadd.f32 %v851, %v878
        %880 = vmatmul.f32.gmra.mxu0 %v856
        %v881 = vpop.f32.mrf.mxu0
        %v882 = vadd.f32 %v851, %v881
        %883 = vmatmul.f32.gmra.mxu0 %v859
        %v884 = vpop.f32.mrf.mxu0
        %v885 = vadd.f32 %v851, %v884
        %886 = vdwg.mxu0
        %vm887 = vcmp.ge.f32.partialorder %v879, 0.0
        %vm888 = vcmp.ge.f32.partialorder %v882, 0.0
        %vm889 = vcmp.ge.f32.partialorder %v885, 0.0
        %v890 = vmul.f32 %v879, 0.01
        %v891 = vmul.f32 %v882, 0.01
        %v892 = vmul.f32 %v885, 0.01
        %v893 = vsel %vm887, %v879, %v890
        %v894 = vsel %vm888, %v882, %v891
        %v895 = vsel %vm889, %v885, %v892
        %896 = vset.pattern.permute.xlu0 2
        %897 = vperm.xlu0 %896, %v765
        %v898 = vpop.permute.xlu0 %897
        %900 = vset.pattern.permute.xlu0 2
        %901 = vperm.xlu0 %900, %v766
        %v902 = vpop.permute.xlu0 %901
        %904 = vset.pattern.permute.xlu0 2
        %905 = vperm.xlu0 %904, %v767
        %v906 = vpop.permute.xlu0 %905
        %v908 = vmul.f32 %v893, %v898
        %v909 = vmul.f32 %v894, %v902
        %v910 = vmul.f32 %v895, %v906
        %911 = vset.pattern.permute.xlu0 3
        %912 = vperm.xlu0 %911, %v765
        %v913 = vpop.permute.xlu0 %912
        %915 = vset.pattern.permute.xlu0 3
        %916 = vperm.xlu0 %915, %v766
        %v917 = vpop.permute.xlu0 %916
        %919 = vset.pattern.permute.xlu0 3
        %920 = vperm.xlu0 %919, %v767
        %v921 = vpop.permute.xlu0 %920
        %v923 = vadd.f32 %v908, %v913
        %v924 = vadd.f32 %v909, %v917
        %v925 = vadd.f32 %v910, %v921
        %v926 = vlaneseq
        %v927 = vshrl.u32 %v926, 7
        %v928 = vadd.s32 %v927, 8
        %v929 = vadd.s32 %v927, 16
        %vm930 = vcmp.lt.s32.totalorder %v927, 20
        %vm931 = vcmp.lt.s32.totalorder %v928, 20
        %vm932 = vcmp.lt.s32.totalorder %v929, 20
        %v933 = vsel %vm930, 1, 0
        %v934 = vsel %vm931, 1, 0
        %v935 = vsel %vm932, 1, 0
        %v936 = vcvt.s32.f32 %v933
        %v937 = vcvt.s32.f32 %v934
        %v938 = vcvt.s32.f32 %v935
        %v939 = vld [vmem:[%s14] sm:$0xff]
        %v940 = vld [vmem:[%s14 + $0x8] sm:$0xff]
        %v941 = vld [vmem:[%s15] sm:$0xff]
        %v942 = vld [vmem:[%s15 + $0x8] sm:$0xff]
        %v943 = vld [vmem:[%s15 + $0x10] sm:$0xff]
        %v944 = vld [vmem:[%s15 + $0x18] sm:$0xff]
        %v945 = vld [vmem:[%s15 + $0x20] sm:$0xff]
        %v946 = vld [vmem:[%s15 + $0x28] sm:$0xff]
        %v947 = vld [vmem:[%s15 + $0x30] sm:$0xff]
        %v948 = vld [vmem:[%s15 + $0x38] sm:$0xff]
        %v949 = vld [vmem:[%s15 + $0x40] sm:$0xff]
        %v950 = vld [vmem:[%s15 + $0x48] sm:$0xff]
        %v951 = vld [vmem:[%s15 + $0x50] sm:$0xff]
        %v952 = vld [vmem:[%s15 + $0x58] sm:$0xff]
        %v953 = vld [vmem:[%s15 + $0x60] sm:$0xff]
        %v954 = vld [vmem:[%s15 + $0x68] sm:$0xff]
        %v955 = vld [vmem:[%s15 + $0x70] sm:$0xff]
        %v956 = vld [vmem:[%s15 + $0x78] sm:$0xff]
        %v957 = vld [vmem:[#allocation8] sm:$0xff]
        %v958 = vld [vmem:[#allocation8 + $0x8] sm:$0xff]
        %v959 = vld [vmem:[#allocation8 + $0x10] sm:$0xff]
        %v960 = vld [vmem:[#allocation8 + $0x18] sm:$0xff]
        %v961 = vld [vmem:[#allocation8 + $0x20] sm:$0xff]
        %v962 = vld [vmem:[#allocation8 + $0x28] sm:$0xff]
        %v963 = vld [vmem:[#allocation8 + $0x30] sm:$0xff]
        %v964 = vld [vmem:[#allocation8 + $0x38] sm:$0xff]
        %v965 = vld [vmem:[#allocation10] sm:$0xff]
        %v966 = vld [vmem:[#allocation10 + $0x8] sm:$0xff]
        %v967 = vld [vmem:[#allocation10 + $0x10] sm:$0xff]
        %v968 = vld [vmem:[#allocation10 + $0x18] sm:$0xff]
        %v969 = vld [vmem:[#allocation10 + $0x20] sm:$0xff]
        %v970 = vld [vmem:[#allocation10 + $0x28] sm:$0xff]
        %v971 = vld [vmem:[#allocation10 + $0x30] sm:$0xff]
        %v972 = vld [vmem:[#allocation10 + $0x38] sm:$0xff]
        %v973 = vld [vmem:[#allocation10 + $0x40] sm:$0xff]
        %v974 = vld [vmem:[#allocation10 + $0x48] sm:$0xff]
        %v975 = vld [vmem:[#allocation10 + $0x50] sm:$0xff]
        %v976 = vld [vmem:[#allocation10 + $0x58] sm:$0xff]
        %v977 = vld [vmem:[#allocation10 + $0x60] sm:$0xff]
        %v978 = vld [vmem:[#allocation10 + $0x68] sm:$0xff]
        %v979 = vld [vmem:[#allocation10 + $0x70] sm:$0xff]
        %v980 = vld [vmem:[#allocation10 + $0x78] sm:$0xff]
        %v981 = vld [vmem:[%s10] sm:$0x1f]
        %v982 = vld [vmem:[%s10 + $0x8] sm:$0x1f]
        %v983 = vperm.slane %v981, 0
        %v984 = vperm.slane %v982, 0
        %vm985 = vcmask 261120
        %v987 = vsel %vm985, %v923, 0
        %v990 = vsel %vm985, %v924, 0
        %v993 = vsel %vm985, %v925, 0
        %995 = vmatpush.msra.mxu0 0.0
        %996 = vmatpush.msra.mxu0 0.0
        %997 = vmatpush.msra.mxu0 0.0
        %998 = vmatpush.msra.mxu0 0.0
        %999 = vmatpush.msra.mxu0 0.0
        %1000 = vmatpush.msra.mxu0 0.0
        %1001 = vmatpush.msra.mxu0 0.0
        %1002 = vmatpush.msra.mxu0 0.0
        %1003 = vmatpush.msra.mxu0 0.0
        %1004 = vmatpush.msra.mxu0 0.0
        %1005 = vmatpush.msra.mxu0 0.0
        %1006 = vmatpush.msra.mxu0 0.0
        %1007 = vmatpush.msra.mxu0 %v963
        %1008 = vmatpush.msra.mxu0 %v961
        %1009 = vmatpush.msra.mxu0 %v959
        %1010 = vmatpush.msra.mxu0 %v957
        %1011 = vmatmul.f32.gmra.mxu0 %v987
        %v1012 = vpop.f32.mrf.mxu0
        %v1013 = vadd.f32 %v983, %v1012
        %1014 = vmatmul.f32.gmra.mxu0 %v990
        %v1015 = vpop.f32.mrf.mxu0
        %v1016 = vadd.f32 %v983, %v1015
        %1017 = vmatmul.f32.gmra.mxu0 %v993
        %v1018 = vpop.f32.mrf.mxu0
        %v1019 = vadd.f32 %v983, %v1018
        %1020 = vdwg.mxu0
        %1021 = vmatpush.msra.mxu0 0.0
        %1022 = vmatpush.msra.mxu0 0.0
        %1023 = vmatpush.msra.mxu0 0.0
        %1024 = vmatpush.msra.mxu0 0.0
        %1025 = vmatpush.msra.mxu0 0.0
        %1026 = vmatpush.msra.mxu0 0.0
        %1027 = vmatpush.msra.mxu0 0.0
        %1028 = vmatpush.msra.mxu0 0.0
        %1029 = vmatpush.msra.mxu0 0.0
        %1030 = vmatpush.msra.mxu0 0.0
        %1031 = vmatpush.msra.mxu0 0.0
        %1032 = vmatpush.msra.mxu0 0.0
        %1033 = vmatpush.msra.mxu0 %v964
        %1034 = vmatpush.msra.mxu0 %v962
        %1035 = vmatpush.msra.mxu0 %v960
        %1036 = vmatpush.msra.mxu0 %v958
        %1037 = vmatmul.f32.gmra.mxu0 %v987
        %v1038 = vpop.f32.mrf.mxu0
        %v1039 = vadd.f32 %v984, %v1038
        %1040 = vmatmul.f32.gmra.mxu0 %v990
        %v1041 = vpop.f32.mrf.mxu0
        %v1042 = vadd.f32 %v984, %v1041
        %1043 = vmatmul.f32.gmra.mxu0 %v993
        %v1044 = vpop.f32.mrf.mxu0
        %v1045 = vadd.f32 %v984, %v1044
        %1046 = vdwg.mxu0
        %v1048 = vrot.slane %v1039, 1
        %v1049 = vrot.slane %v1039, 2
        %v1050 = vrot.slane %v1039, 3
        %v1051 = vrot.slane %v1039, 4
        %v1052 = vrot.slane %v1039, 5
        %v1053 = vrot.slane %v1039, 6
        %v1054 = vrot.slane %v1039, 7
        %v1055 = vperm.slane %v1039, 0
        %v1056 = vperm.slane %v1048, 0
        %v1057 = vperm.slane %v1049, 0
        %v1058 = vperm.slane %v1050, 0
        %v1059 = vperm.slane %v1051, 0
        %v1060 = vperm.slane %v1052, 0
        %v1061 = vperm.slane %v1053, 0
        %v1062 = vperm.slane %v1054, 0
        %v1071 = vadd.f32 %v1055, %v1013
        %v1072 = vadd.f32 %v1055, %v1016
        %v1073 = vadd.f32 %v1055, %v1019
        %v1074 = vadd.f32 %v1056, %v1013
        %v1075 = vadd.f32 %v1056, %v1016
        %v1076 = vadd.f32 %v1056, %v1019
        %v1077 = vadd.f32 %v1057, %v1013
        %v1078 = vadd.f32 %v1057, %v1016
        %v1079 = vadd.f32 %v1057, %v1019
        %v1080 = vadd.f32 %v1058, %v1013
        %v1081 = vadd.f32 %v1058, %v1016
        %v1082 = vadd.f32 %v1058, %v1019
        %v1083 = vadd.f32 %v1059, %v1013
        %v1084 = vadd.f32 %v1059, %v1016
        %v1085 = vadd.f32 %v1059, %v1019
        %v1086 = vadd.f32 %v1060, %v1013
        %v1087 = vadd.f32 %v1060, %v1016
        %v1088 = vadd.f32 %v1060, %v1019
        %v1089 = vadd.f32 %v1061, %v1013
        %v1090 = vadd.f32 %v1061, %v1016
        %v1091 = vadd.f32 %v1061, %v1019
        %v1092 = vadd.f32 %v1062, %v1013
        %v1093 = vadd.f32 %v1062, %v1016
        %v1094 = vadd.f32 %v1062, %v1019
        %vm1095 = vcmp.ge.f32.partialorder %v1071, 0.0
        %vm1096 = vcmp.ge.f32.partialorder %v1072, 0.0
        %vm1097 = vcmp.ge.f32.partialorder %v1073, 0.0
        %vm1098 = vcmp.ge.f32.partialorder %v1074, 0.0
        %vm1099 = vcmp.ge.f32.partialorder %v1075, 0.0
        %vm1100 = vcmp.ge.f32.partialorder %v1076, 0.0
        %vm1101 = vcmp.ge.f32.partialorder %v1077, 0.0
        %vm1102 = vcmp.ge.f32.partialorder %v1078, 0.0
        %vm1103 = vcmp.ge.f32.partialorder %v1079, 0.0
        %vm1104 = vcmp.ge.f32.partialorder %v1080, 0.0
        %vm1105 = vcmp.ge.f32.partialorder %v1081, 0.0
        %vm1106 = vcmp.ge.f32.partialorder %v1082, 0.0
        %vm1107 = vcmp.ge.f32.partialorder %v1083, 0.0
        %vm1108 = vcmp.ge.f32.partialorder %v1084, 0.0
        %vm1109 = vcmp.ge.f32.partialorder %v1085, 0.0
        %vm1110 = vcmp.ge.f32.partialorder %v1086, 0.0
        %vm1111 = vcmp.ge.f32.partialorder %v1087, 0.0
        %vm1112 = vcmp.ge.f32.partialorder %v1088, 0.0
        %vm1113 = vcmp.ge.f32.partialorder %v1089, 0.0
        %vm1114 = vcmp.ge.f32.partialorder %v1090, 0.0
        %vm1115 = vcmp.ge.f32.partialorder %v1091, 0.0
        %vm1116 = vcmp.ge.f32.partialorder %v1092, 0.0
        %vm1117 = vcmp.ge.f32.partialorder %v1093, 0.0
        %vm1118 = vcmp.ge.f32.partialorder %v1094, 0.0
        %v1119 = vmul.f32 %v1071, 0.2
        %v1120 = vmul.f32 %v1072, 0.2
        %v1121 = vmul.f32 %v1073, 0.2
        %v1122 = vmul.f32 %v1074, 0.2
        %v1123 = vmul.f32 %v1075, 0.2
        %v1124 = vmul.f32 %v1076, 0.2
        %v1125 = vmul.f32 %v1077, 0.2
        %v1126 = vmul.f32 %v1078, 0.2
        %v1127 = vmul.f32 %v1079, 0.2
        %v1128 = vmul.f32 %v1080, 0.2
        %v1129 = vmul.f32 %v1081, 0.2
        %v1130 = vmul.f32 %v1082, 0.2
        %v1131 = vmul.f32 %v1083, 0.2
        %v1132 = vmul.f32 %v1084, 0.2
        %v1133 = vmul.f32 %v1085, 0.2
        %v1134 = vmul.f32 %v1086, 0.2
        %v1135 = vmul.f32 %v1087, 0.2
        %v1136 = vmul.f32 %v1088, 0.2
        %v1137 = vmul.f32 %v1089, 0.2
        %v1138 = vmul.f32 %v1090, 0.2
        %v1139 = vmul.f32 %v1091, 0.2
        %v1140 = vmul.f32 %v1092, 0.2
        %v1141 = vmul.f32 %v1093, 0.2
        %v1142 = vmul.f32 %v1094, 0.2
        %v1143 = vsel %vm1095, %v1071, %v1119
        %v1144 = vsel %vm1096, %v1072, %v1120
        %v1145 = vsel %vm1097, %v1073, %v1121
        %v1146 = vsel %vm1098, %v1074, %v1122
        %v1147 = vsel %vm1099, %v1075, %v1123
        %v1148 = vsel %vm1100, %v1076, %v1124
        %v1149 = vsel %vm1101, %v1077, %v1125
        %v1150 = vsel %vm1102, %v1078, %v1126
        %v1151 = vsel %vm1103, %v1079, %v1127
        %v1152 = vsel %vm1104, %v1080, %v1128
        %v1153 = vsel %vm1105, %v1081, %v1129
        %v1154 = vsel %vm1106, %v1082, %v1130
        %v1155 = vsel %vm1107, %v1083, %v1131
        %v1156 = vsel %vm1108, %v1084, %v1132
        %v1157 = vsel %vm1109, %v1085, %v1133
        %v1158 = vsel %vm1110, %v1086, %v1134
        %v1159 = vsel %vm1111, %v1087, %v1135
        %v1160 = vsel %vm1112, %v1088, %v1136
        %v1161 = vsel %vm1113, %v1089, %v1137
        %v1162 = vsel %vm1114, %v1090, %v1138
        %v1163 = vsel %vm1115, %v1091, %v1139
        %v1164 = vsel %vm1116, %v1092, %v1140
        %v1165 = vsel %vm1117, %v1093, %v1141
        %v1166 = vsel %vm1118, %v1094, %v1142
        %1167 = vmatpush.msra.mxu0 %v980
        %1168 = vmatpush.msra.mxu0 %v979
        %1169 = vmatpush.msra.mxu0 %v978
        %1170 = vmatpush.msra.mxu0 %v977
        %1171 = vmatpush.msra.mxu0 %v976
        %1172 = vmatpush.msra.mxu0 %v975
        %1173 = vmatpush.msra.mxu0 %v974
        %1174 = vmatpush.msra.mxu0 %v973
        %1175 = vmatpush.msra.mxu0 %v972
        %1176 = vmatpush.msra.mxu0 %v971
        %1177 = vmatpush.msra.mxu0 %v970
        %1178 = vmatpush.msra.mxu0 %v969
        %1179 = vmatpush.msra.mxu0 %v968
        %1180 = vmatpush.msra.mxu0 %v967
        %1181 = vmatpush.msra.mxu0 %v966
        %1182 = vmatpush.msra.mxu0 %v965
        %1183 = vmatmul.f32.gmra.mxu0 %v1143
        %v1184 = vpop.f32.mrf.mxu0
        %v1185 = vadd.f32 0.0, %v1184
        %1186 = vmatmul.f32.gmra.mxu0 %v1144
        %v1187 = vpop.f32.mrf.mxu0
        %v1188 = vadd.f32 0.0, %v1187
        %1189 = vmatmul.f32.gmra.mxu0 %v1145
        %v1190 = vpop.f32.mrf.mxu0
        %v1191 = vadd.f32 0.0, %v1190
        %1192 = vmatmul.f32.gmra.mxu0 %v1146
        %v1193 = vpop.f32.mrf.mxu0
        %v1194 = vadd.f32 0.0, %v1193
        %1195 = vmatmul.f32.gmra.mxu0 %v1147
        %v1196 = vpop.f32.mrf.mxu0
        %v1197 = vadd.f32 0.0, %v1196
        %1198 = vmatmul.f32.gmra.mxu0 %v1148
        %v1199 = vpop.f32.mrf.mxu0
        %v1200 = vadd.f32 0.0, %v1199
        %1201 = vmatmul.f32.gmra.mxu0 %v1149
        %v1202 = vpop.f32.mrf.mxu0
        %v1203 = vadd.f32 0.0, %v1202
        %1204 = vmatmul.f32.gmra.mxu0 %v1150
        %v1205 = vpop.f32.mrf.mxu0
        %v1206 = vadd.f32 0.0, %v1205
        %1207 = vmatmul.f32.gmra.mxu0 %v1151
        %v1208 = vpop.f32.mrf.mxu0
        %v1209 = vadd.f32 0.0, %v1208
        %1210 = vmatmul.f32.gmra.mxu0 %v1152
        %v1211 = vpop.f32.mrf.mxu0
        %v1212 = vadd.f32 0.0, %v1211
        %1213 = vmatmul.f32.gmra.mxu0 %v1153
        %v1214 = vpop.f32.mrf.mxu0
        %v1215 = vadd.f32 0.0, %v1214
        %1216 = vmatmul.f32.gmra.mxu0 %v1154
        %v1217 = vpop.f32.mrf.mxu0
        %v1218 = vadd.f32 0.0, %v1217
        %1219 = vmatmul.f32.gmra.mxu0 %v1155
        %v1220 = vpop.f32.mrf.mxu0
        %v1221 = vadd.f32 0.0, %v1220
        %1222 = vmatmul.f32.gmra.mxu0 %v1156
        %v1223 = vpop.f32.mrf.mxu0
        %v1224 = vadd.f32 0.0, %v1223
        %1225 = vmatmul.f32.gmra.mxu0 %v1157
        %v1226 = vpop.f32.mrf.mxu0
        %v1227 = vadd.f32 0.0, %v1226
        %1228 = vmatmul.f32.gmra.mxu0 %v1158
        %v1229 = vpop.f32.mrf.mxu0
        %v1230 = vadd.f32 0.0, %v1229
        %1231 = vmatmul.f32.gmra.mxu0 %v1159
        %v1232 = vpop.f32.mrf.mxu0
        %v1233 = vadd.f32 0.0, %v1232
        %1234 = vmatmul.f32.gmra.mxu0 %v1160
        %v1235 = vpop.f32.mrf.mxu0
        %v1236 = vadd.f32 0.0, %v1235
        %1237 = vmatmul.f32.gmra.mxu0 %v1161
        %v1238 = vpop.f32.mrf.mxu0
        %v1239 = vadd.f32 0.0, %v1238
        %1240 = vmatmul.f32.gmra.mxu0 %v1162
        %v1241 = vpop.f32.mrf.mxu0
        %v1242 = vadd.f32 0.0, %v1241
        %1243 = vmatmul.f32.gmra.mxu0 %v1163
        %v1244 = vpop.f32.mrf.mxu0
        %v1245 = vadd.f32 0.0, %v1244
        %1246 = vmatmul.f32.gmra.mxu0 %v1164
        %v1247 = vpop.f32.mrf.mxu0
        %v1248 = vadd.f32 0.0, %v1247
        %1249 = vmatmul.f32.gmra.mxu0 %v1165
        %v1250 = vpop.f32.mrf.mxu0
        %v1251 = vadd.f32 0.0, %v1250
        %1252 = vmatmul.f32.gmra.mxu0 %v1166
        %v1253 = vpop.f32.mrf.mxu0
        %v1254 = vadd.f32 0.0, %v1253
        %1255 = vdwg.mxu0
        %1256 = vmax.xlane.f32.xlu0 %v1185
        %v1257 = vpop.xlane.xlu0 %1256
        %1258 = vmax.xlane.f32.xlu0 %v1188
        %v1259 = vpop.xlane.xlu0 %1258
        %1260 = vmax.xlane.f32.xlu0 %v1191
        %v1261 = vpop.xlane.xlu0 %1260
        %1262 = vmax.xlane.f32.xlu0 %v1194
        %v1263 = vpop.xlane.xlu0 %1262
        %1264 = vmax.xlane.f32.xlu0 %v1197
        %v1265 = vpop.xlane.xlu0 %1264
        %1266 = vmax.xlane.f32.xlu0 %v1200
        %v1267 = vpop.xlane.xlu0 %1266
        %1268 = vmax.xlane.f32.xlu0 %v1203
        %v1269 = vpop.xlane.xlu0 %1268
        %1270 = vmax.xlane.f32.xlu0 %v1206
        %v1271 = vpop.xlane.xlu0 %1270
        %1272 = vmax.xlane.f32.xlu0 %v1209
        %v1273 = vpop.xlane.xlu0 %1272
        %1274 = vmax.xlane.f32.xlu0 %v1212
        %v1275 = vpop.xlane.xlu0 %1274
        %1276 = vmax.xlane.f32.xlu0 %v1215
        %v1277 = vpop.xlane.xlu0 %1276
        %1278 = vmax.xlane.f32.xlu0 %v1218
        %v1279 = vpop.xlane.xlu0 %1278
        %1280 = vmax.xlane.f32.xlu0 %v1221
        %v1281 = vpop.xlane.xlu0 %1280
        %1282 = vmax.xlane.f32.xlu0 %v1224
        %v1283 = vpop.xlane.xlu0 %1282
        %1284 = vmax.xlane.f32.xlu0 %v1227
        %v1285 = vpop.xlane.xlu0 %1284
        %1286 = vmax.xlane.f32.xlu0 %v1230
        %v1287 = vpop.xlane.xlu0 %1286
        %1288 = vmax.xlane.f32.xlu0 %v1233
        %v1289 = vpop.xlane.xlu0 %1288
        %1290 = vmax.xlane.f32.xlu0 %v1236
        %v1291 = vpop.xlane.xlu0 %1290
        %1292 = vmax.xlane.f32.xlu0 %v1239
        %v1293 = vpop.xlane.xlu0 %1292
        %1294 = vmax.xlane.f32.xlu0 %v1242
        %v1295 = vpop.xlane.xlu0 %1294
        %1296 = vmax.xlane.f32.xlu0 %v1245
        %v1297 = vpop.xlane.xlu0 %1296
        %1298 = vmax.xlane.f32.xlu0 %v1248
        %v1299 = vpop.xlane.xlu0 %1298
        %1300 = vmax.xlane.f32.xlu0 %v1251
        %v1301 = vpop.xlane.xlu0 %1300
        %1302 = vmax.xlane.f32.xlu0 %v1254
        %v1303 = vpop.xlane.xlu0 %1302
        %v1304 = vmax.f32 %v1257, %v1259
        %v1305 = vmax.f32 %v1304, %v1261
        %v1306 = vrot.slane %v1305, 4
        %v1307 = vmax.f32 %v1305, %v1306
        %v1308 = vrot.slane %v1307, 2
        %v1309 = vmax.f32 %v1307, %v1308
        %v1310 = vrot.slane %v1309, 1
        %v1311 = vmax.f32 %v1309, %v1310
        %v1312 = vmax.f32 %v1263, %v1265
        %v1313 = vmax.f32 %v1312, %v1267
        %v1314 = vrot.slane %v1313, 4
        %v1315 = vmax.f32 %v1313, %v1314
        %v1316 = vrot.slane %v1315, 2
        %v1317 = vmax.f32 %v1315, %v1316
        %v1318 = vrot.slane %v1317, 1
        %v1319 = vmax.f32 %v1317, %v1318
        %v1320 = vmax.f32 %v1269, %v1271
        %v1321 = vmax.f32 %v1320, %v1273
        %v1322 = vrot.slane %v1321, 4
        %v1323 = vmax.f32 %v1321, %v1322
        %v1324 = vrot.slane %v1323, 2
        %v1325 = vmax.f32 %v1323, %v1324
        %v1326 = vrot.slane %v1325, 1
        %v1327 = vmax.f32 %v1325, %v1326
        %v1328 = vmax.f32 %v1275, %v1277
        %v1329 = vmax.f32 %v1328, %v1279
        %v1330 = vrot.slane %v1329, 4
        %v1331 = vmax.f32 %v1329, %v1330
        %v1332 = vrot.slane %v1331, 2
        %v1333 = vmax.f32 %v1331, %v1332
        %v1334 = vrot.slane %v1333, 1
        %v1335 = vmax.f32 %v1333, %v1334
        %v1336 = vmax.f32 %v1281, %v1283
        %v1337 = vmax.f32 %v1336, %v1285
        %v1338 = vrot.slane %v1337, 4
        %v1339 = vmax.f32 %v1337, %v1338
        %v1340 = vrot.slane %v1339, 2
        %v1341 = vmax.f32 %v1339, %v1340
        %v1342 = vrot.slane %v1341, 1
        %v1343 = vmax.f32 %v1341, %v1342
        %v1344 = vmax.f32 %v1287, %v1289
        %v1345 = vmax.f32 %v1344, %v1291
        %v1346 = vrot.slane %v1345, 4
        %v1347 = vmax.f32 %v1345, %v1346
        %v1348 = vrot.slane %v1347, 2
        %v1349 = vmax.f32 %v1347, %v1348
        %v1350 = vrot.slane %v1349, 1
        %v1351 = vmax.f32 %v1349, %v1350
        %v1352 = vmax.f32 %v1293, %v1295
        %v1353 = vmax.f32 %v1352, %v1297
        %v1354 = vrot.slane %v1353, 4
        %v1355 = vmax.f32 %v1353, %v1354
        %v1356 = vrot.slane %v1355, 2
        %v1357 = vmax.f32 %v1355, %v1356
        %v1358 = vrot.slane %v1357, 1
        %v1359 = vmax.f32 %v1357, %v1358
        %v1360 = vmax.f32 %v1299, %v1301
        %v1361 = vmax.f32 %v1360, %v1303
        %v1362 = vrot.slane %v1361, 4
        %v1363 = vmax.f32 %v1361, %v1362
        %v1364 = vrot.slane %v1363, 2
        %v1365 = vmax.f32 %v1363, %v1364
        %v1366 = vrot.slane %v1365, 1
        %v1367 = vmax.f32 %v1365, %v1366
        %v1368 = vsub.f32 %v1185, %v1311
        %v1369 = vsub.f32 %v1188, %v1311
        %v1370 = vsub.f32 %v1191, %v1311
        %v1371 = vsub.f32 %v1194, %v1319
        %v1372 = vsub.f32 %v1197, %v1319
        %v1373 = vsub.f32 %v1200, %v1319
        %v1374 = vsub.f32 %v1203, %v1327
        %v1375 = vsub.f32 %v1206, %v1327
        %v1376 = vsub.f32 %v1209, %v1327
        %v1377 = vsub.f32 %v1212, %v1335
        %v1378 = vsub.f32 %v1215, %v1335
        %v1379 = vsub.f32 %v1218, %v1335
        %v1380 = vsub.f32 %v1221, %v1343
        %v1381 = vsub.f32 %v1224, %v1343
        %v1382 = vsub.f32 %v1227, %v1343
        %v1383 = vsub.f32 %v1230, %v1351
        %v1384 = vsub.f32 %v1233, %v1351
        %v1385 = vsub.f32 %v1236, %v1351
        %v1386 = vsub.f32 %v1239, %v1359
        %v1387 = vsub.f32 %v1242, %v1359
        %v1388 = vsub.f32 %v1245, %v1359
        %v1389 = vsub.f32 %v1248, %v1367
        %v1390 = vsub.f32 %v1251, %v1367
        %v1391 = vsub.f32 %v1254, %v1367
        %v1392 = vmul.f32 %v1368, 1.442695
        %v1393 = vpow.pop %v1392
        %v1394 = vmul.f32 %v1369, 1.442695
        %v1395 = vpow.pop %v1394
        %v1396 = vmul.f32 %v1370, 1.442695
        %v1397 = vpow.pop %v1396
        %v1398 = vmul.f32 %v1371, 1.442695
        %v1399 = vpow.pop %v1398
        %v1400 = vmul.f32 %v1372, 1.442695
        %v1401 = vpow.pop %v1400
        %v1402 = vmul.f32 %v1373, 1.442695
        %v1403 = vpow.pop %v1402
        %v1404 = vmul.f32 %v1374, 1.442695
        %v1405 = vpow.pop %v1404
        %v1406 = vmul.f32 %v1375, 1.442695
        %v1407 = vpow.pop %v1406
        %v1408 = vmul.f32 %v1376, 1.442695
        %v1409 = vpow.pop %v1408
        %v1410 = vmul.f32 %v1377, 1.442695
        %v1411 = vpow.pop %v1410
        %v1412 = vmul.f32 %v1378, 1.442695
        %v1413 = vpow.pop %v1412
        %v1414 = vmul.f32 %v1379, 1.442695
        %v1415 = vpow.pop %v1414
        %v1416 = vmul.f32 %v1380, 1.442695
        %v1417 = vpow.pop %v1416
        %v1418 = vmul.f32 %v1381, 1.442695
        %v1419 = vpow.pop %v1418
        %v1420 = vmul.f32 %v1382, 1.442695
        %v1421 = vpow.pop %v1420
        %v1422 = vmul.f32 %v1383, 1.442695
        %v1423 = vpow.pop %v1422
        %v1424 = vmul.f32 %v1384, 1.442695
        %v1425 = vpow.pop %v1424
        %v1426 = vmul.f32 %v1385, 1.442695
        %v1427 = vpow.pop %v1426
        %v1428 = vmul.f32 %v1386, 1.442695
        %v1429 = vpow.pop %v1428
        %v1430 = vmul.f32 %v1387, 1.442695
        %v1431 = vpow.pop %v1430
        %v1432 = vmul.f32 %v1388, 1.442695
        %v1433 = vpow.pop %v1432
        %v1434 = vmul.f32 %v1389, 1.442695
        %v1435 = vpow.pop %v1434
        %v1436 = vmul.f32 %v1390, 1.442695
        %v1437 = vpow.pop %v1436
        %v1438 = vmul.f32 %v1391, 1.442695
        %v1439 = vpow.pop %v1438
        %v1440 = vld [vmem:[%s3] sm:$0xff]
        %v1441 = vld [vmem:[%s3 + $0x8] sm:$0xff]
        %v1442 = vld [vmem:[%s3 + $0x10] sm:$0xff]
        %v1443 = vld [vmem:[%s3 + $0x18] sm:$0xff]
        %v1444 = vld [vmem:[%s3 + $0x20] sm:$0xff]
        %v1445 = vld [vmem:[%s3 + $0x28] sm:$0xff]
        %v1446 = vld [vmem:[%s3 + $0x30] sm:$0xff]
        %v1447 = vld [vmem:[%s3 + $0x38] sm:$0xff]
        %v1448 = vld [vmem:[%s3 + $0x40] sm:$0xff]
        %v1449 = vld [vmem:[%s3 + $0x48] sm:$0xff]
        %v1450 = vld [vmem:[%s3 + $0x50] sm:$0xff]
        %v1451 = vld [vmem:[%s3 + $0x58] sm:$0xff]
        %v1452 = vld [vmem:[%s3 + $0x60] sm:$0xff]
        %v1453 = vld [vmem:[%s3 + $0x68] sm:$0xff]
        %v1454 = vld [vmem:[%s3 + $0x70] sm:$0xff]
        %v1455 = vld [vmem:[%s3 + $0x78] sm:$0xff]
        %v1456 = vld [vmem:[%s3 + $0x80] sm:$0xff]
        %v1457 = vld [vmem:[%s3 + $0x88] sm:$0xff]
        %v1458 = vld [vmem:[%s3 + $0x90] sm:$0xff]
        %v1459 = vld [vmem:[%s3 + $0x98] sm:$0xff]
        %v1460 = vld [vmem:[%s3 + $0xa0] sm:$0xff]
        %v1461 = vld [vmem:[%s3 + $0xa8] sm:$0xff]
        %v1462 = vld [vmem:[%s3 + $0xb0] sm:$0xff]
        %v1463 = vld [vmem:[%s3 + $0xb8] sm:$0xff]
        %v1464 = vmul.f32 %v1393, %v1440
        %v1465 = vmul.f32 %v1395, %v1441
        %v1466 = vmul.f32 %v1397, %v1442
        %v1467 = vmul.f32 %v1399, %v1443
        %v1468 = vmul.f32 %v1401, %v1444
        %v1469 = vmul.f32 %v1403, %v1445
        %v1470 = vmul.f32 %v1405, %v1446
        %v1471 = vmul.f32 %v1407, %v1447
        %v1472 = vmul.f32 %v1409, %v1448
        %v1473 = vmul.f32 %v1411, %v1449
        %v1474 = vmul.f32 %v1413, %v1450
        %v1475 = vmul.f32 %v1415, %v1451
        %v1476 = vmul.f32 %v1417, %v1452
        %v1477 = vmul.f32 %v1419, %v1453
        %v1478 = vmul.f32 %v1421, %v1454
        %v1479 = vmul.f32 %v1423, %v1455
        %v1480 = vmul.f32 %v1425, %v1456
        %v1481 = vmul.f32 %v1427, %v1457
        %v1482 = vmul.f32 %v1429, %v1458
        %v1483 = vmul.f32 %v1431, %v1459
        %v1484 = vmul.f32 %v1433, %v1460
        %v1485 = vmul.f32 %v1435, %v1461
        %v1486 = vmul.f32 %v1437, %v1462
        %v1487 = vmul.f32 %v1439, %v1463
        %v1489 = vsel %vm714, %v940, 0
        %1491 = vmatpush.msra.mxu0 %v1479
        %1492 = vmatpush.msra.mxu0 %v1478
        %1493 = vmatpush.msra.mxu0 %v1477
        %1494 = vmatpush.msra.mxu0 %v1476
        %1495 = vmatpush.msra.mxu0 %v1475
        %1496 = vmatpush.msra.mxu0 %v1474
        %1497 = vmatpush.msra.mxu0 %v1473
        %1498 = vmatpush.msra.mxu0 %v1472
        %1499 = vmatpush.msra.mxu0 %v1471
        %1500 = vmatpush.msra.mxu0 %v1470
        %1501 = vmatpush.msra.mxu0 %v1469
        %1502 = vmatpush.msra.mxu0 %v1468
        %1503 = vmatpush.msra.mxu0 %v1467
        %1504 = vmatpush.msra.mxu0 %v1466
        %1505 = vmatpush.msra.mxu0 %v1465
        %1506 = vmatpush.msra.mxu0 %v1464
        %1507 = vmatmul.f32.gmra.mxu0 %v939
        %v1508 = vpop.f32.mrf.mxu0
        %v1509 = vadd.f32 0.0, %v1508
        %1510 = vdwg.mxu0
        %1511 = vmatpush.msra.mxu0 0.0
        %1512 = vmatpush.msra.mxu0 0.0
        %1513 = vmatpush.msra.mxu0 0.0
        %1514 = vmatpush.msra.mxu0 0.0
        %1515 = vmatpush.msra.mxu0 0.0
        %1516 = vmatpush.msra.mxu0 0.0
        %1517 = vmatpush.msra.mxu0 0.0
        %1518 = vmatpush.msra.mxu0 0.0
        %1519 = vmatpush.msra.mxu0 %v1487
        %1520 = vmatpush.msra.mxu0 %v1486
        %1521 = vmatpush.msra.mxu0 %v1485
        %1522 = vmatpush.msra.mxu0 %v1484
        %1523 = vmatpush.msra.mxu0 %v1483
        %1524 = vmatpush.msra.mxu0 %v1482
        %1525 = vmatpush.msra.mxu0 %v1481
        %1526 = vmatpush.msra.mxu0 %v1480
        %1527 = vmatmul.f32.gmra.mxu0 %v1489
        %v1528 = vpop.f32.mrf.mxu0
        %v1529 = vadd.f32 %v1509, %v1528
        %1530 = vdwg.mxu0
        %v1531 = vmul.f32 %v1464, %v1013
        %v1532 = vmul.f32 %v1465, %v1016
        %v1533 = vmul.f32 %v1466, %v1019
        %v1534 = vmul.f32 %v1467, %v1013
        %v1535 = vmul.f32 %v1468, %v1016
        %v1536 = vmul.f32 %v1469, %v1019
        %v1537 = vmul.f32 %v1470, %v1013
        %v1538 = vmul.f32 %v1471, %v1016
        %v1539 = vmul.f32 %v1472, %v1019
        %v1540 = vmul.f32 %v1473, %v1013
        %v1541 = vmul.f32 %v1474, %v1016
        %v1542 = vmul.f32 %v1475, %v1019
        %v1543 = vmul.f32 %v1476, %v1013
        %v1544 = vmul.f32 %v1477, %v1016
        %v1545 = vmul.f32 %v1478, %v1019
        %v1546 = vmul.f32 %v1479, %v1013
        %v1547 = vmul.f32 %v1480, %v1016
        %v1548 = vmul.f32 %v1481, %v1019
        %v1549 = vmul.f32 %v1482, %v1013
        %v1550 = vmul.f32 %v1483, %v1016
        %v1551 = vmul.f32 %v1484, %v1019
        %v1552 = vmul.f32 %v1485, %v1013
        %v1553 = vmul.f32 %v1486, %v1016
        %v1554 = vmul.f32 %v1487, %v1019
        %1555 = vmatpush.msra.mxu0 %v1546
        %1556 = vmatpush.msra.mxu0 %v1545
        %1557 = vmatpush.msra.mxu0 %v1544
        %1558 = vmatpush.msra.mxu0 %v1543
        %1559 = vmatpush.msra.mxu0 %v1542
        %1560 = vmatpush.msra.mxu0 %v1541
        %1561 = vmatpush.msra.mxu0 %v1540
        %1562 = vmatpush.msra.mxu0 %v1539
        %1563 = vmatpush.msra.mxu0 %v1538
        %1564 = vmatpush.msra.mxu0 %v1537
        %1565 = vmatpush.msra.mxu0 %v1536
        %1566 = vmatpush.msra.mxu0 %v1535
        %1567 = vmatpush.msra.mxu0 %v1534
        %1568 = vmatpush.msra.mxu0 %v1533
        %1569 = vmatpush.msra.mxu0 %v1532
        %1570 = vmatpush.msra.mxu0 %v1531
        %1571 = vmatmul.f32.gmra.mxu0 %v939
        %v1572 = vpop.f32.mrf.mxu0
        %v1573 = vadd.f32 0.0, %v1572
        %1574 = vdwg.mxu0
        %1575 = vmatpush.msra.mxu0 0.0
        %1576 = vmatpush.msra.mxu0 0.0
        %1577 = vmatpush.msra.mxu0 0.0
        %1578 = vmatpush.msra.mxu0 0.0
        %1579 = vmatpush.msra.mxu0 0.0
        %1580 = vmatpush.msra.mxu0 0.0
        %1581 = vmatpush.msra.mxu0 0.0
        %1582 = vmatpush.msra.mxu0 0.0
        %1583 = vmatpush.msra.mxu0 %v1554
        %1584 = vmatpush.msra.mxu0 %v1553
        %1585 = vmatpush.msra.mxu0 %v1552
        %1586 = vmatpush.msra.mxu0 %v1551
        %1587 = vmatpush.msra.mxu0 %v1550
        %1588 = vmatpush.msra.mxu0 %v1549
        %1589 = vmatpush.msra.mxu0 %v1548
        %1590 = vmatpush.msra.mxu0 %v1547
        %1591 = vmatmul.f32.gmra.mxu0 %v1489
        %v1592 = vpop.f32.mrf.mxu0
        %v1593 = vadd.f32 %v1573, %v1592
        %1594 = vdwg.mxu0
        %v1595 = vrcp.pop %v1529
        %v1596 = vmul.f32 %v1593, %v1595
        %v1598 = vrot.slane %v1042, 1
        %v1599 = vrot.slane %v1042, 2
        %v1600 = vrot.slane %v1042, 3
        %v1601 = vrot.slane %v1042, 4
        %v1602 = vrot.slane %v1042, 5
        %v1603 = vrot.slane %v1042, 6
        %v1604 = vrot.slane %v1042, 7
        %v1605 = vperm.slane %v1042, 0
        %v1606 = vperm.slane %v1598, 0
        %v1607 = vperm.slane %v1599, 0
        %v1608 = vperm.slane %v1600, 0
        %v1609 = vperm.slane %v1601, 0
        %v1610 = vperm.slane %v1602, 0
        %v1611 = vperm.slane %v1603, 0
        %v1612 = vperm.slane %v1604, 0
        %v1621 = vadd.f32 %v1605, %v1013
        %v1622 = vadd.f32 %v1605, %v1016
        %v1623 = vadd.f32 %v1605, %v1019
        %v1624 = vadd.f32 %v1606, %v1013
        %v1625 = vadd.f32 %v1606, %v1016
        %v1626 = vadd.f32 %v1606, %v1019
        %v1627 = vadd.f32 %v1607, %v1013
        %v1628 = vadd.f32 %v1607, %v1016
        %v1629 = vadd.f32 %v1607, %v1019
        %v1630 = vadd.f32 %v1608, %v1013
        %v1631 = vadd.f32 %v1608, %v1016
        %v1632 = vadd.f32 %v1608, %v1019
        %v1633 = vadd.f32 %v1609, %v1013
        %v1634 = vadd.f32 %v1609, %v1016
        %v1635 = vadd.f32 %v1609, %v1019
        %v1636 = vadd.f32 %v1610, %v1013
        %v1637 = vadd.f32 %v1610, %v1016
        %v1638 = vadd.f32 %v1610, %v1019
        %v1639 = vadd.f32 %v1611, %v1013
        %v1640 = vadd.f32 %v1611, %v1016
        %v1641 = vadd.f32 %v1611, %v1019
        %v1642 = vadd.f32 %v1612, %v1013
        %v1643 = vadd.f32 %v1612, %v1016
        %v1644 = vadd.f32 %v1612, %v1019
        %vm1645 = vcmp.ge.f32.partialorder %v1621, 0.0
        %vm1646 = vcmp.ge.f32.partialorder %v1622, 0.0
        %vm1647 = vcmp.ge.f32.partialorder %v1623, 0.0
        %vm1648 = vcmp.ge.f32.partialorder %v1624, 0.0
        %vm1649 = vcmp.ge.f32.partialorder %v1625, 0.0
        %vm1650 = vcmp.ge.f32.partialorder %v1626, 0.0
        %vm1651 = vcmp.ge.f32.partialorder %v1627, 0.0
        %vm1652 = vcmp.ge.f32.partialorder %v1628, 0.0
        %vm1653 = vcmp.ge.f32.partialorder %v1629, 0.0
        %vm1654 = vcmp.ge.f32.partialorder %v1630, 0.0
        %vm1655 = vcmp.ge.f32.partialorder %v1631, 0.0
        %vm1656 = vcmp.ge.f32.partialorder %v1632, 0.0
        %vm1657 = vcmp.ge.f32.partialorder %v1633, 0.0
        %vm1658 = vcmp.ge.f32.partialorder %v1634, 0.0
        %vm1659 = vcmp.ge.f32.partialorder %v1635, 0.0
        %vm1660 = vcmp.ge.f32.partialorder %v1636, 0.0
        %vm1661 = vcmp.ge.f32.partialorder %v1637, 0.0
        %vm1662 = vcmp.ge.f32.partialorder %v1638, 0.0
        %vm1663 = vcmp.ge.f32.partialorder %v1639, 0.0
        %vm1664 = vcmp.ge.f32.partialorder %v1640, 0.0
        %vm1665 = vcmp.ge.f32.partialorder %v1641, 0.0
        %vm1666 = vcmp.ge.f32.partialorder %v1642, 0.0
        %vm1667 = vcmp.ge.f32.partialorder %v1643, 0.0
        %vm1668 = vcmp.ge.f32.partialorder %v1644, 0.0
        %v1669 = vmul.f32 %v1621, 0.2
        %v1670 = vmul.f32 %v1622, 0.2
        %v1671 = vmul.f32 %v1623, 0.2
        %v1672 = vmul.f32 %v1624, 0.2
        %v1673 = vmul.f32 %v1625, 0.2
        %v1674 = vmul.f32 %v1626, 0.2
        %v1675 = vmul.f32 %v1627, 0.2
        %v1676 = vmul.f32 %v1628, 0.2
        %v1677 = vmul.f32 %v1629, 0.2
        %v1678 = vmul.f32 %v1630, 0.2
        %v1679 = vmul.f32 %v1631, 0.2
        %v1680 = vmul.f32 %v1632, 0.2
        %v1681 = vmul.f32 %v1633, 0.2
        %v1682 = vmul.f32 %v1634, 0.2
        %v1683 = vmul.f32 %v1635, 0.2
        %v1684 = vmul.f32 %v1636, 0.2
        %v1685 = vmul.f32 %v1637, 0.2
        %v1686 = vmul.f32 %v1638, 0.2
        %v1687 = vmul.f32 %v1639, 0.2
        %v1688 = vmul.f32 %v1640, 0.2
        %v1689 = vmul.f32 %v1641, 0.2
        %v1690 = vmul.f32 %v1642, 0.2
        %v1691 = vmul.f32 %v1643, 0.2
        %v1692 = vmul.f32 %v1644, 0.2
        %v1693 = vsel %vm1645, %v1621, %v1669
        %v1694 = vsel %vm1646, %v1622, %v1670
        %v1695 = vsel %vm1647, %v1623, %v1671
        %v1696 = vsel %vm1648, %v1624, %v1672
        %v1697 = vsel %vm1649, %v1625, %v1673
        %v1698 = vsel %vm1650, %v1626, %v1674
        %v1699 = vsel %vm1651, %v1627, %v1675
        %v1700 = vsel %vm1652, %v1628, %v1676
        %v1701 = vsel %vm1653, %v1629, %v1677
        %v1702 = vsel %vm1654, %v1630, %v1678
        %v1703 = vsel %vm1655, %v1631, %v1679
        %v1704 = vsel %vm1656, %v1632, %v1680
        %v1705 = vsel %vm1657, %v1633, %v1681
        %v1706 = vsel %vm1658, %v1634, %v1682
        %v1707 = vsel %vm1659, %v1635, %v1683
        %v1708 = vsel %vm1660, %v1636, %v1684
        %v1709 = vsel %vm1661, %v1637, %v1685
        %v1710 = vsel %vm1662, %v1638, %v1686
        %v1711 = vsel %vm1663, %v1639, %v1687
        %v1712 = vsel %vm1664, %v1640, %v1688
        %v1713 = vsel %vm1665, %v1641, %v1689
        %v1714 = vsel %vm1666, %v1642, %v1690
        %v1715 = vsel %vm1667, %v1643, %v1691
        %v1716 = vsel %vm1668, %v1644, %v1692
        %1717 = vmatpush.msra.mxu0 %v980
        %1718 = vmatpush.msra.mxu0 %v979
        %1719 = vmatpush.msra.mxu0 %v978
        %1720 = vmatpush.msra.mxu0 %v977
        %1721 = vmatpush.msra.mxu0 %v976
        %1722 = vmatpush.msra.mxu0 %v975
        %1723 = vmatpush.msra.mxu0 %v974
        %1724 = vmatpush.msra.mxu0 %v973
        %1725 = vmatpush.msra.mxu0 %v972
        %1726 = vmatpush.msra.mxu0 %v971
        %1727 = vmatpush.msra.mxu0 %v970
        %1728 = vmatpush.msra.mxu0 %v969
        %1729 = vmatpush.msra.mxu0 %v968
        %1730 = vmatpush.msra.mxu0 %v967
        %1731 = vmatpush.msra.mxu0 %v966
        %1732 = vmatpush.msra.mxu0 %v965
        %1733 = vmatmul.f32.gmra.mxu0 %v1693
        %v1734 = vpop.f32.mrf.mxu0
        %v1735 = vadd.f32 0.0, %v1734
        %1736 = vmatmul.f32.gmra.mxu0 %v1694
        %v1737 = vpop.f32.mrf.mxu0
        %v1738 = vadd.f32 0.0, %v1737
        %1739 = vmatmul.f32.gmra.mxu0 %v1695
        %v1740 = vpop.f32.mrf.mxu0
        %v1741 = vadd.f32 0.0, %v1740
        %1742 = vmatmul.f32.gmra.mxu0 %v1696
        %v1743 = vpop.f32.mrf.mxu0
        %v1744 = vadd.f32 0.0, %v1743
        %1745 = vmatmul.f32.gmra.mxu0 %v1697
        %v1746 = vpop.f32.mrf.mxu0
        %v1747 = vadd.f32 0.0, %v1746
        %1748 = vmatmul.f32.gmra.mxu0 %v1698
        %v1749 = vpop.f32.mrf.mxu0
        %v1750 = vadd.f32 0.0, %v1749
        %1751 = vmatmul.f32.gmra.mxu0 %v1699
        %v1752 = vpop.f32.mrf.mxu0
        %v1753 = vadd.f32 0.0, %v1752
        %1754 = vmatmul.f32.gmra.mxu0 %v1700
        %v1755 = vpop.f32.mrf.mxu0
        %v1756 = vadd.f32 0.0, %v1755
        %1757 = vmatmul.f32.gmra.mxu0 %v1701
        %v1758 = vpop.f32.mrf.mxu0
        %v1759 = vadd.f32 0.0, %v1758
        %1760 = vmatmul.f32.gmra.mxu0 %v1702
        %v1761 = vpop.f32.mrf.mxu0
        %v1762 = vadd.f32 0.0, %v1761
        %1763 = vmatmul.f32.gmra.mxu0 %v1703
        %v1764 = vpop.f32.mrf.mxu0
        %v1765 = vadd.f32 0.0, %v1764
        %1766 = vmatmul.f32.gmra.mxu0 %v1704
        %v1767 = vpop.f32.mrf.mxu0
        %v1768 = vadd.f32 0.0, %v1767
        %1769 = vmatmul.f32.gmra.mxu0 %v1705
        %v1770 = vpop.f32.mrf.mxu0
        %v1771 = vadd.f32 0.0, %v1770
        %1772 = vmatmul.f32.gmra.mxu0 %v1706
        %v1773 = vpop.f32.mrf.mxu0
        %v1774 = vadd.f32 0.0, %v1773
        %1775 = vmatmul.f32.gmra.mxu0 %v1707
        %v1776 = vpop.f32.mrf.mxu0
        %v1777 = vadd.f32 0.0, %v1776
        %1778 = vmatmul.f32.gmra.mxu0 %v1708
        %v1779 = vpop.f32.mrf.mxu0
        %v1780 = vadd.f32 0.0, %v1779
        %1781 = vmatmul.f32.gmra.mxu0 %v1709
        %v1782 = vpop.f32.mrf.mxu0
        %v1783 = vadd.f32 0.0, %v1782
        %1784 = vmatmul.f32.gmra.mxu0 %v1710
        %v1785 = vpop.f32.mrf.mxu0
        %v1786 = vadd.f32 0.0, %v1785
        %1787 = vmatmul.f32.gmra.mxu0 %v1711
        %v1788 = vpop.f32.mrf.mxu0
        %v1789 = vadd.f32 0.0, %v1788
        %1790 = vmatmul.f32.gmra.mxu0 %v1712
        %v1791 = vpop.f32.mrf.mxu0
        %v1792 = vadd.f32 0.0, %v1791
        %1793 = vmatmul.f32.gmra.mxu0 %v1713
        %v1794 = vpop.f32.mrf.mxu0
        %v1795 = vadd.f32 0.0, %v1794
        %1796 = vmatmul.f32.gmra.mxu0 %v1714
        %v1797 = vpop.f32.mrf.mxu0
        %v1798 = vadd.f32 0.0, %v1797
        %1799 = vmatmul.f32.gmra.mxu0 %v1715
        %v1800 = vpop.f32.mrf.mxu0
        %v1801 = vadd.f32 0.0, %v1800
        %1802 = vmatmul.f32.gmra.mxu0 %v1716
        %v1803 = vpop.f32.mrf.mxu0
        %v1804 = vadd.f32 0.0, %v1803
        %1805 = vdwg.mxu0
        %1806 = vmax.xlane.f32.xlu0 %v1735
        %v1807 = vpop.xlane.xlu0 %1806
        %1808 = vmax.xlane.f32.xlu0 %v1738
        %v1809 = vpop.xlane.xlu0 %1808
        %1810 = vmax.xlane.f32.xlu0 %v1741
        %v1811 = vpop.xlane.xlu0 %1810
        %1812 = vmax.xlane.f32.xlu0 %v1744
        %v1813 = vpop.xlane.xlu0 %1812
        %1814 = vmax.xlane.f32.xlu0 %v1747
        %v1815 = vpop.xlane.xlu0 %1814
        %1816 = vmax.xlane.f32.xlu0 %v1750
        %v1817 = vpop.xlane.xlu0 %1816
        %1818 = vmax.xlane.f32.xlu0 %v1753
        %v1819 = vpop.xlane.xlu0 %1818
        %1820 = vmax.xlane.f32.xlu0 %v1756
        %v1821 = vpop.xlane.xlu0 %1820
        %1822 = vmax.xlane.f32.xlu0 %v1759
        %v1823 = vpop.xlane.xlu0 %1822
        %1824 = vmax.xlane.f32.xlu0 %v1762
        %v1825 = vpop.xlane.xlu0 %1824
        %1826 = vmax.xlane.f32.xlu0 %v1765
        %v1827 = vpop.xlane.xlu0 %1826
        %1828 = vmax.xlane.f32.xlu0 %v1768
        %v1829 = vpop.xlane.xlu0 %1828
        %1830 = vmax.xlane.f32.xlu0 %v1771
        %v1831 = vpop.xlane.xlu0 %1830
        %1832 = vmax.xlane.f32.xlu0 %v1774
        %v1833 = vpop.xlane.xlu0 %1832
        %1834 = vmax.xlane.f32.xlu0 %v1777
        %v1835 = vpop.xlane.xlu0 %1834
        %1836 = vmax.xlane.f32.xlu0 %v1780
        %v1837 = vpop.xlane.xlu0 %1836
        %1838 = vmax.xlane.f32.xlu0 %v1783
        %v1839 = vpop.xlane.xlu0 %1838
        %1840 = vmax.xlane.f32.xlu0 %v1786
        %v1841 = vpop.xlane.xlu0 %1840
        %1842 = vmax.xlane.f32.xlu0 %v1789
        %v1843 = vpop.xlane.xlu0 %1842
        %1844 = vmax.xlane.f32.xlu0 %v1792
        %v1845 = vpop.xlane.xlu0 %1844
        %1846 = vmax.xlane.f32.xlu0 %v1795
        %v1847 = vpop.xlane.xlu0 %1846
        %1848 = vmax.xlane.f32.xlu0 %v1798
        %v1849 = vpop.xlane.xlu0 %1848
        %1850 = vmax.xlane.f32.xlu0 %v1801
        %v1851 = vpop.xlane.xlu0 %1850
        %1852 = vmax.xlane.f32.xlu0 %v1804
        %v1853 = vpop.xlane.xlu0 %1852
        %v1854 = vmax.f32 %v1807, %v1809
        %v1855 = vmax.f32 %v1854, %v1811
        %v1856 = vrot.slane %v1855, 4
        %v1857 = vmax.f32 %v1855, %v1856
        %v1858 = vrot.slane %v1857, 2
        %v1859 = vmax.f32 %v1857, %v1858
        %v1860 = vrot.slane %v1859, 1
        %v1861 = vmax.f32 %v1859, %v1860
        %v1862 = vmax.f32 %v1813, %v1815
        %v1863 = vmax.f32 %v1862, %v1817
        %v1864 = vrot.slane %v1863, 4
        %v1865 = vmax.f32 %v1863, %v1864
        %v1866 = vrot.slane %v1865, 2
        %v1867 = vmax.f32 %v1865, %v1866
        %v1868 = vrot.slane %v1867, 1
        %v1869 = vmax.f32 %v1867, %v1868
        %v1870 = vmax.f32 %v1819, %v1821
        %v1871 = vmax.f32 %v1870, %v1823
        %v1872 = vrot.slane %v1871, 4
        %v1873 = vmax.f32 %v1871, %v1872
        %v1874 = vrot.slane %v1873, 2
        %v1875 = vmax.f32 %v1873, %v1874
        %v1876 = vrot.slane %v1875, 1
        %v1877 = vmax.f32 %v1875, %v1876
        %v1878 = vmax.f32 %v1825, %v1827
        %v1879 = vmax.f32 %v1878, %v1829
        %v1880 = vrot.slane %v1879, 4
        %v1881 = vmax.f32 %v1879, %v1880
        %v1882 = vrot.slane %v1881, 2
        %v1883 = vmax.f32 %v1881, %v1882
        %v1884 = vrot.slane %v1883, 1
        %v1885 = vmax.f32 %v1883, %v1884
        %v1886 = vmax.f32 %v1831, %v1833
        %v1887 = vmax.f32 %v1886, %v1835
        %v1888 = vrot.slane %v1887, 4
        %v1889 = vmax.f32 %v1887, %v1888
        %v1890 = vrot.slane %v1889, 2
        %v1891 = vmax.f32 %v1889, %v1890
        %v1892 = vrot.slane %v1891, 1
        %v1893 = vmax.f32 %v1891, %v1892
        %v1894 = vmax.f32 %v1837, %v1839
        %v1895 = vmax.f32 %v1894, %v1841
        %v1896 = vrot.slane %v1895, 4
        %v1897 = vmax.f32 %v1895, %v1896
        %v1898 = vrot.slane %v1897, 2
        %v1899 = vmax.f32 %v1897, %v1898
        %v1900 = vrot.slane %v1899, 1
        %v1901 = vmax.f32 %v1899, %v1900
        %v1902 = vmax.f32 %v1843, %v1845
        %v1903 = vmax.f32 %v1902, %v1847
        %v1904 = vrot.slane %v1903, 4
        %v1905 = vmax.f32 %v1903, %v1904
        %v1906 = vrot.slane %v1905, 2
        %v1907 = vmax.f32 %v1905, %v1906
        %v1908 = vrot.slane %v1907, 1
        %v1909 = vmax.f32 %v1907, %v1908
        %v1910 = vmax.f32 %v1849, %v1851
        %v1911 = vmax.f32 %v1910, %v1853
        %v1912 = vrot.slane %v1911, 4
        %v1913 = vmax.f32 %v1911, %v1912
        %v1914 = vrot.slane %v1913, 2
        %v1915 = vmax.f32 %v1913, %v1914
        %v1916 = vrot.slane %v1915, 1
        %v1917 = vmax.f32 %v1915, %v1916
        %v1918 = vsub.f32 %v1735, %v1861
        %v1919 = vsub.f32 %v1738, %v1861
        %v1920 = vsub.f32 %v1741, %v1861
        %v1921 = vsub.f32 %v1744, %v1869
        %v1922 = vsub.f32 %v1747, %v1869
        %v1923 = vsub.f32 %v1750, %v1869
        %v1924 = vsub.f32 %v1753, %v1877
        %v1925 = vsub.f32 %v1756, %v1877
        %v1926 = vsub.f32 %v1759, %v1877
        %v1927 = vsub.f32 %v1762, %v1885
        %v1928 = vsub.f32 %v1765, %v1885
        %v1929 = vsub.f32 %v1768, %v1885
        %v1930 = vsub.f32 %v1771, %v1893
        %v1931 = vsub.f32 %v1774, %v1893
        %v1932 = vsub.f32 %v1777, %v1893
        %v1933 = vsub.f32 %v1780, %v1901
        %v1934 = vsub.f32 %v1783, %v1901
        %v1935 = vsub.f32 %v1786, %v1901
        %v1936 = vsub.f32 %v1789, %v1909
        %v1937 = vsub.f32 %v1792, %v1909
        %v1938 = vsub.f32 %v1795, %v1909
        %v1939 = vsub.f32 %v1798, %v1917
        %v1940 = vsub.f32 %v1801, %v1917
        %v1941 = vsub.f32 %v1804, %v1917
        %v1942 = vmul.f32 %v1918, 1.442695
        %v1943 = vpow.pop %v1942
        %v1944 = vmul.f32 %v1919, 1.442695
        %v1945 = vpow.pop %v1944
        %v1946 = vmul.f32 %v1920, 1.442695
        %v1947 = vpow.pop %v1946
        %v1948 = vmul.f32 %v1921, 1.442695
        %v1949 = vpow.pop %v1948
        %v1950 = vmul.f32 %v1922, 1.442695
        %v1951 = vpow.pop %v1950
        %v1952 = vmul.f32 %v1923, 1.442695
        %v1953 = vpow.pop %v1952
        %v1954 = vmul.f32 %v1924, 1.442695
        %v1955 = vpow.pop %v1954
        %v1956 = vmul.f32 %v1925, 1.442695
        %v1957 = vpow.pop %v1956
        %v1958 = vmul.f32 %v1926, 1.442695
        %v1959 = vpow.pop %v1958
        %v1960 = vmul.f32 %v1927, 1.442695
        %v1961 = vpow.pop %v1960
        %v1962 = vmul.f32 %v1928, 1.442695
        %v1963 = vpow.pop %v1962
        %v1964 = vmul.f32 %v1929, 1.442695
        %v1965 = vpow.pop %v1964
        %v1966 = vmul.f32 %v1930, 1.442695
        %v1967 = vpow.pop %v1966
        %v1968 = vmul.f32 %v1931, 1.442695
        %v1969 = vpow.pop %v1968
        %v1970 = vmul.f32 %v1932, 1.442695
        %v1971 = vpow.pop %v1970
        %v1972 = vmul.f32 %v1933, 1.442695
        %v1973 = vpow.pop %v1972
        %v1974 = vmul.f32 %v1934, 1.442695
        %v1975 = vpow.pop %v1974
        %v1976 = vmul.f32 %v1935, 1.442695
        %v1977 = vpow.pop %v1976
        %v1978 = vmul.f32 %v1936, 1.442695
        %v1979 = vpow.pop %v1978
        %v1980 = vmul.f32 %v1937, 1.442695
        %v1981 = vpow.pop %v1980
        %v1982 = vmul.f32 %v1938, 1.442695
        %v1983 = vpow.pop %v1982
        %v1984 = vmul.f32 %v1939, 1.442695
        %v1985 = vpow.pop %v1984
        %v1986 = vmul.f32 %v1940, 1.442695
        %v1987 = vpow.pop %v1986
        %v1988 = vmul.f32 %v1941, 1.442695
        %v1989 = vpow.pop %v1988
        %v1990 = vld [vmem:[%s3 + $0xc0] sm:$0xff]
        %v1991 = vld [vmem:[%s3 + $0xc8] sm:$0xff]
        %v1992 = vld [vmem:[%s3 + $0xd0] sm:$0xff]
        %v1993 = vld [vmem:[%s3 + $0xd8] sm:$0xff]
        %v1994 = vld [vmem:[%s3 + $0xe0] sm:$0xff]
        %v1995 = vld [vmem:[%s3 + $0xe8] sm:$0xff]
        %v1996 = vld [vmem:[%s3 + $0xf0] sm:$0xff]
        %v1997 = vld [vmem:[%s3 + $0xf8] sm:$0xff]
        %v1998 = vld [vmem:[%s3 + $0x100] sm:$0xff]
        %v1999 = vld [vmem:[%s3 + $0x108] sm:$0xff]
        %v2000 = vld [vmem:[%s3 + $0x110] sm:$0xff]
        %v2001 = vld [vmem:[%s3 + $0x118] sm:$0xff]
        %v2002 = vld [vmem:[%s3 + $0x120] sm:$0xff]
        %v2003 = vld [vmem:[%s3 + $0x128] sm:$0xff]
        %v2004 = vld [vmem:[%s3 + $0x130] sm:$0xff]
        %v2005 = vld [vmem:[%s3 + $0x138] sm:$0xff]
        %v2006 = vld [vmem:[%s3 + $0x140] sm:$0xff]
        %v2007 = vld [vmem:[%s3 + $0x148] sm:$0xff]
        %v2008 = vld [vmem:[%s3 + $0x150] sm:$0xff]
        %v2009 = vld [vmem:[%s3 + $0x158] sm:$0xff]
        %v2010 = vld [vmem:[%s3 + $0x160] sm:$0xff]
        %v2011 = vld [vmem:[%s3 + $0x168] sm:$0xff]
        %v2012 = vld [vmem:[%s3 + $0x170] sm:$0xff]
        %v2013 = vld [vmem:[%s3 + $0x178] sm:$0xff]
        %v2014 = vmul.f32 %v1943, %v1990
        %v2015 = vmul.f32 %v1945, %v1991
        %v2016 = vmul.f32 %v1947, %v1992
        %v2017 = vmul.f32 %v1949, %v1993
        %v2018 = vmul.f32 %v1951, %v1994
        %v2019 = vmul.f32 %v1953, %v1995
        %v2020 = vmul.f32 %v1955, %v1996
        %v2021 = vmul.f32 %v1957, %v1997
        %v2022 = vmul.f32 %v1959, %v1998
        %v2023 = vmul.f32 %v1961, %v1999
        %v2024 = vmul.f32 %v1963, %v2000
        %v2025 = vmul.f32 %v1965, %v2001
        %v2026 = vmul.f32 %v1967, %v2002
        %v2027 = vmul.f32 %v1969, %v2003
        %v2028 = vmul.f32 %v1971, %v2004
        %v2029 = vmul.f32 %v1973, %v2005
        %v2030 = vmul.f32 %v1975, %v2006
        %v2031 = vmul.f32 %v1977, %v2007
        %v2032 = vmul.f32 %v1979, %v2008
        %v2033 = vmul.f32 %v1981, %v2009
        %v2034 = vmul.f32 %v1983, %v2010
        %v2035 = vmul.f32 %v1985, %v2011
        %v2036 = vmul.f32 %v1987, %v2012
        %v2037 = vmul.f32 %v1989, %v2013
        %2038 = vmatpush.msra.mxu0 %v2029
        %2039 = vmatpush.msra.mxu0 %v2028
        %2040 = vmatpush.msra.mxu0 %v2027
        %2041 = vmatpush.msra.mxu0 %v2026
        %2042 = vmatpush.msra.mxu0 %v2025
        %2043 = vmatpush.msra.mxu0 %v2024
        %2044 = vmatpush.msra.mxu0 %v2023
        %2045 = vmatpush.msra.mxu0 %v2022
        %2046 = vmatpush.msra.mxu0 %v2021
        %2047 = vmatpush.msra.mxu0 %v2020
        %2048 = vmatpush.msra.mxu0 %v2019
        %2049 = vmatpush.msra.mxu0 %v2018
        %2050 = vmatpush.msra.mxu0 %v2017
        %2051 = vmatpush.msra.mxu0 %v2016
        %2052 = vmatpush.msra.mxu0 %v2015
        %2053 = vmatpush.msra.mxu0 %v2014
        %2054 = vmatmul.f32.gmra.mxu0 %v939
        %v2055 = vpop.f32.mrf.mxu0
        %v2056 = vadd.f32 0.0, %v2055
        %2057 = vdwg.mxu0
        %2058 = vmatpush.msra.mxu0 0.0
        %2059 = vmatpush.msra.mxu0 0.0
        %2060 = vmatpush.msra.mxu0 0.0
        %2061 = vmatpush.msra.mxu0 0.0
        %2062 = vmatpush.msra.mxu0 0.0
        %2063 = vmatpush.msra.mxu0 0.0
        %2064 = vmatpush.msra.mxu0 0.0
        %2065 = vmatpush.msra.mxu0 0.0
        %2066 = vmatpush.msra.mxu0 %v2037
        %2067 = vmatpush.msra.mxu0 %v2036
        %2068 = vmatpush.msra.mxu0 %v2035
        %2069 = vmatpush.msra.mxu0 %v2034
        %2070 = vmatpush.msra.mxu0 %v2033
        %2071 = vmatpush.msra.mxu0 %v2032
        %2072 = vmatpush.msra.mxu0 %v2031
        %2073 = vmatpush.msra.mxu0 %v2030
        %2074 = vmatmul.f32.gmra.mxu0 %v1489
        %v2075 = vpop.f32.mrf.mxu0
        %v2076 = vadd.f32 %v2056, %v2075
        %2077 = vdwg.mxu0
        %v2078 = vmul.f32 %v2014, %v1013
        %v2079 = vmul.f32 %v2015, %v1016
        %v2080 = vmul.f32 %v2016, %v1019
        %v2081 = vmul.f32 %v2017, %v1013
        %v2082 = vmul.f32 %v2018, %v1016
        %v2083 = vmul.f32 %v2019, %v1019
        %v2084 = vmul.f32 %v2020, %v1013
        %v2085 = vmul.f32 %v2021, %v1016
        %v2086 = vmul.f32 %v2022, %v1019
        %v2087 = vmul.f32 %v2023, %v1013
        %v2088 = vmul.f32 %v2024, %v1016
        %v2089 = vmul.f32 %v2025, %v1019
        %v2090 = vmul.f32 %v2026, %v1013
        %v2091 = vmul.f32 %v2027, %v1016
        %v2092 = vmul.f32 %v2028, %v1019
        %v2093 = vmul.f32 %v2029, %v1013
        %v2094 = vmul.f32 %v2030, %v1016
        %v2095 = vmul.f32 %v2031, %v1019
        %v2096 = vmul.f32 %v2032, %v1013
        %v2097 = vmul.f32 %v2033, %v1016
        %v2098 = vmul.f32 %v2034, %v1019
        %v2099 = vmul.f32 %v2035, %v1013
        %v2100 = vmul.f32 %v2036, %v1016
        %v2101 = vmul.f32 %v2037, %v1019
        %2102 = vmatpush.msra.mxu0 %v2093
        %2103 = vmatpush.msra.mxu0 %v2092
        %2104 = vmatpush.msra.mxu0 %v2091
        %2105 = vmatpush.msra.mxu0 %v2090
        %2106 = vmatpush.msra.mxu0 %v2089
        %2107 = vmatpush.msra.mxu0 %v2088
        %2108 = vmatpush.msra.mxu0 %v2087
        %2109 = vmatpush.msra.mxu0 %v2086
        %2110 = vmatpush.msra.mxu0 %v2085
        %2111 = vmatpush.msra.mxu0 %v2084
        %2112 = vmatpush.msra.mxu0 %v2083
        %2113 = vmatpush.msra.mxu0 %v2082
        %2114 = vmatpush.msra.mxu0 %v2081
        %2115 = vmatpush.msra.mxu0 %v2080
        %2116 = vmatpush.msra.mxu0 %v2079
        %2117 = vmatpush.msra.mxu0 %v2078
        %2118 = vmatmul.f32.gmra.mxu0 %v939
        %v2119 = vpop.f32.mrf.mxu0
        %v2120 = vadd.f32 0.0, %v2119
        %2121 = vdwg.mxu0
        %2122 = vmatpush.msra.mxu0 0.0
        %2123 = vmatpush.msra.mxu0 0.0
        %2124 = vmatpush.msra.mxu0 0.0
        %2125 = vmatpush.msra.mxu0 0.0
        %2126 = vmatpush.msra.mxu0 0.0
        %2127 = vmatpush.msra.mxu0 0.0
        %2128 = vmatpush.msra.mxu0 0.0
        %2129 = vmatpush.msra.mxu0 0.0
        %2130 = vmatpush.msra.mxu0 %v2101
        %2131 = vmatpush.msra.mxu0 %v2100
        %2132 = vmatpush.msra.mxu0 %v2099
        %2133 = vmatpush.msra.mxu0 %v2098
        %2134 = vmatpush.msra.mxu0 %v2097
        %2135 = vmatpush.msra.mxu0 %v2096
        %2136 = vmatpush.msra.mxu0 %v2095
        %2137 = vmatpush.msra.mxu0 %v2094
        %2138 = vmatmul.f32.gmra.mxu0 %v1489
        %v2139 = vpop.f32.mrf.mxu0
        %v2140 = vadd.f32 %v2120, %v2139
        %2141 = vdwg.mxu0
        %v2142 = vrcp.pop %v2076
        %v2143 = vmul.f32 %v2140, %v2142
        %v2145 = vrot.slane %v1045, 1
        %v2146 = vrot.slane %v1045, 2
        %v2147 = vrot.slane %v1045, 3
        %v2148 = vrot.slane %v1045, 4
        %v2149 = vrot.slane %v1045, 5
        %v2150 = vrot.slane %v1045, 6
        %v2151 = vrot.slane %v1045, 7
        %v2152 = vperm.slane %v1045, 0
        %v2153 = vperm.slane %v2145, 0
        %v2154 = vperm.slane %v2146, 0
        %v2155 = vperm.slane %v2147, 0
        %v2156 = vperm.slane %v2148, 0
        %v2157 = vperm.slane %v2149, 0
        %v2158 = vperm.slane %v2150, 0
        %v2159 = vperm.slane %v2151, 0
        %v2168 = vadd.f32 %v2152, %v1013
        %v2169 = vadd.f32 %v2152, %v1016
        %v2170 = vadd.f32 %v2152, %v1019
        %v2171 = vadd.f32 %v2153, %v1013
        %v2172 = vadd.f32 %v2153, %v1016
        %v2173 = vadd.f32 %v2153, %v1019
        %v2174 = vadd.f32 %v2154, %v1013
        %v2175 = vadd.f32 %v2154, %v1016
        %v2176 = vadd.f32 %v2154, %v1019
        %v2177 = vadd.f32 %v2155, %v1013
        %v2178 = vadd.f32 %v2155, %v1016
        %v2179 = vadd.f32 %v2155, %v1019
        %v2180 = vadd.f32 %v2156, %v1013
        %v2181 = vadd.f32 %v2156, %v1016
        %v2182 = vadd.f32 %v2156, %v1019
        %v2183 = vadd.f32 %v2157, %v1013
        %v2184 = vadd.f32 %v2157, %v1016
        %v2185 = vadd.f32 %v2157, %v1019
        %v2186 = vadd.f32 %v2158, %v1013
        %v2187 = vadd.f32 %v2158, %v1016
        %v2188 = vadd.f32 %v2158, %v1019
        %v2189 = vadd.f32 %v2159, %v1013
        %v2190 = vadd.f32 %v2159, %v1016
        %v2191 = vadd.f32 %v2159, %v1019
        %vm2192 = vcmp.ge.f32.partialorder %v2168, 0.0
        %vm2193 = vcmp.ge.f32.partialorder %v2169, 0.0
        %vm2194 = vcmp.ge.f32.partialorder %v2170, 0.0
        %vm2195 = vcmp.ge.f32.partialorder %v2171, 0.0
        %vm2196 = vcmp.ge.f32.partialorder %v2172, 0.0
        %vm2197 = vcmp.ge.f32.partialorder %v2173, 0.0
        %vm2198 = vcmp.ge.f32.partialorder %v2174, 0.0
        %vm2199 = vcmp.ge.f32.partialorder %v2175, 0.0
        %vm2200 = vcmp.ge.f32.partialorder %v2176, 0.0
        %vm2201 = vcmp.ge.f32.partialorder %v2177, 0.0
        %vm2202 = vcmp.ge.f32.partialorder %v2178, 0.0
        %vm2203 = vcmp.ge.f32.partialorder %v2179, 0.0
        %vm2204 = vcmp.ge.f32.partialorder %v2180, 0.0
        %vm2205 = vcmp.ge.f32.partialorder %v2181, 0.0
        %vm2206 = vcmp.ge.f32.partialorder %v2182, 0.0
        %vm2207 = vcmp.ge.f32.partialorder %v2183, 0.0
        %vm2208 = vcmp.ge.f32.partialorder %v2184, 0.0
        %vm2209 = vcmp.ge.f32.partialorder %v2185, 0.0
        %vm2210 = vcmp.ge.f32.partialorder %v2186, 0.0
        %vm2211 = vcmp.ge.f32.partialorder %v2187, 0.0
        %vm2212 = vcmp.ge.f32.partialorder %v2188, 0.0
        %vm2213 = vcmp.ge.f32.partialorder %v2189, 0.0
        %vm2214 = vcmp.ge.f32.partialorder %v2190, 0.0
        %vm2215 = vcmp.ge.f32.partialorder %v2191, 0.0
        %v2216 = vmul.f32 %v2168, 0.2
        %v2217 = vmul.f32 %v2169, 0.2
        %v2218 = vmul.f32 %v2170, 0.2
        %v2219 = vmul.f32 %v2171, 0.2
        %v2220 = vmul.f32 %v2172, 0.2
        %v2221 = vmul.f32 %v2173, 0.2
        %v2222 = vmul.f32 %v2174, 0.2
        %v2223 = vmul.f32 %v2175, 0.2
        %v2224 = vmul.f32 %v2176, 0.2
        %v2225 = vmul.f32 %v2177, 0.2
        %v2226 = vmul.f32 %v2178, 0.2
        %v2227 = vmul.f32 %v2179, 0.2
        %v2228 = vmul.f32 %v2180, 0.2
        %v2229 = vmul.f32 %v2181, 0.2
        %v2230 = vmul.f32 %v2182, 0.2
        %v2231 = vmul.f32 %v2183, 0.2
        %v2232 = vmul.f32 %v2184, 0.2
        %v2233 = vmul.f32 %v2185, 0.2
        %v2234 = vmul.f32 %v2186, 0.2
        %v2235 = vmul.f32 %v2187, 0.2
        %v2236 = vmul.f32 %v2188, 0.2
        %v2237 = vmul.f32 %v2189, 0.2
        %v2238 = vmul.f32 %v2190, 0.2
        %v2239 = vmul.f32 %v2191, 0.2
        %v2240 = vsel %vm2192, %v2168, %v2216
        %v2241 = vsel %vm2193, %v2169, %v2217
        %v2242 = vsel %vm2194, %v2170, %v2218
        %v2243 = vsel %vm2195, %v2171, %v2219
        %v2244 = vsel %vm2196, %v2172, %v2220
        %v2245 = vsel %vm2197, %v2173, %v2221
        %v2246 = vsel %vm2198, %v2174, %v2222
        %v2247 = vsel %vm2199, %v2175, %v2223
        %v2248 = vsel %vm2200, %v2176, %v2224
        %v2249 = vsel %vm2201, %v2177, %v2225
        %v2250 = vsel %vm2202, %v2178, %v2226
        %v2251 = vsel %vm2203, %v2179, %v2227
        %v2252 = vsel %vm2204, %v2180, %v2228
        %v2253 = vsel %vm2205, %v2181, %v2229
        %v2254 = vsel %vm2206, %v2182, %v2230
        %v2255 = vsel %vm2207, %v2183, %v2231
        %v2256 = vsel %vm2208, %v2184, %v2232
        %v2257 = vsel %vm2209, %v2185, %v2233
        %v2258 = vsel %vm2210, %v2186, %v2234
        %v2259 = vsel %vm2211, %v2187, %v2235
        %v2260 = vsel %vm2212, %v2188, %v2236
        %v2261 = vsel %vm2213, %v2189, %v2237
        %v2262 = vsel %vm2214, %v2190, %v2238
        %v2263 = vsel %vm2215, %v2191, %v2239
        %2264 = vmatpush.msra.mxu0 %v980
        %2265 = vmatpush.msra.mxu0 %v979
        %2266 = vmatpush.msra.mxu0 %v978
        %2267 = vmatpush.msra.mxu0 %v977
        %2268 = vmatpush.msra.mxu0 %v976
        %2269 = vmatpush.msra.mxu0 %v975
        %2270 = vmatpush.msra.mxu0 %v974
        %2271 = vmatpush.msra.mxu0 %v973
        %2272 = vmatpush.msra.mxu0 %v972
        %2273 = vmatpush.msra.mxu0 %v971
        %2274 = vmatpush.msra.mxu0 %v970
        %2275 = vmatpush.msra.mxu0 %v969
        %2276 = vmatpush.msra.mxu0 %v968
        %2277 = vmatpush.msra.mxu0 %v967
        %2278 = vmatpush.msra.mxu0 %v966
        %2279 = vmatpush.msra.mxu0 %v965
        %2280 = vmatmul.f32.gmra.mxu0 %v2240
        %v2281 = vpop.f32.mrf.mxu0
        %v2282 = vadd.f32 0.0, %v2281
        %2283 = vmatmul.f32.gmra.mxu0 %v2241
        %v2284 = vpop.f32.mrf.mxu0
        %v2285 = vadd.f32 0.0, %v2284
        %2286 = vmatmul.f32.gmra.mxu0 %v2242
        %v2287 = vpop.f32.mrf.mxu0
        %v2288 = vadd.f32 0.0, %v2287
        %2289 = vmatmul.f32.gmra.mxu0 %v2243
        %v2290 = vpop.f32.mrf.mxu0
        %v2291 = vadd.f32 0.0, %v2290
        %2292 = vmatmul.f32.gmra.mxu0 %v2244
        %v2293 = vpop.f32.mrf.mxu0
        %v2294 = vadd.f32 0.0, %v2293
        %2295 = vmatmul.f32.gmra.mxu0 %v2245
        %v2296 = vpop.f32.mrf.mxu0
        %v2297 = vadd.f32 0.0, %v2296
        %2298 = vmatmul.f32.gmra.mxu0 %v2246
        %v2299 = vpop.f32.mrf.mxu0
        %v2300 = vadd.f32 0.0, %v2299
        %2301 = vmatmul.f32.gmra.mxu0 %v2247
        %v2302 = vpop.f32.mrf.mxu0
        %v2303 = vadd.f32 0.0, %v2302
        %2304 = vmatmul.f32.gmra.mxu0 %v2248
        %v2305 = vpop.f32.mrf.mxu0
        %v2306 = vadd.f32 0.0, %v2305
        %2307 = vmatmul.f32.gmra.mxu0 %v2249
        %v2308 = vpop.f32.mrf.mxu0
        %v2309 = vadd.f32 0.0, %v2308
        %2310 = vmatmul.f32.gmra.mxu0 %v2250
        %v2311 = vpop.f32.mrf.mxu0
        %v2312 = vadd.f32 0.0, %v2311
        %2313 = vmatmul.f32.gmra.mxu0 %v2251
        %v2314 = vpop.f32.mrf.mxu0
        %v2315 = vadd.f32 0.0, %v2314
        %2316 = vmatmul.f32.gmra.mxu0 %v2252
        %v2317 = vpop.f32.mrf.mxu0
        %v2318 = vadd.f32 0.0, %v2317
        %2319 = vmatmul.f32.gmra.mxu0 %v2253
        %v2320 = vpop.f32.mrf.mxu0
        %v2321 = vadd.f32 0.0, %v2320
        %2322 = vmatmul.f32.gmra.mxu0 %v2254
        %v2323 = vpop.f32.mrf.mxu0
        %v2324 = vadd.f32 0.0, %v2323
        %2325 = vmatmul.f32.gmra.mxu0 %v2255
        %v2326 = vpop.f32.mrf.mxu0
        %v2327 = vadd.f32 0.0, %v2326
        %2328 = vmatmul.f32.gmra.mxu0 %v2256
        %v2329 = vpop.f32.mrf.mxu0
        %v2330 = vadd.f32 0.0, %v2329
        %2331 = vmatmul.f32.gmra.mxu0 %v2257
        %v2332 = vpop.f32.mrf.mxu0
        %v2333 = vadd.f32 0.0, %v2332
        %2334 = vmatmul.f32.gmra.mxu0 %v2258
        %v2335 = vpop.f32.mrf.mxu0
        %v2336 = vadd.f32 0.0, %v2335
        %2337 = vmatmul.f32.gmra.mxu0 %v2259
        %v2338 = vpop.f32.mrf.mxu0
        %v2339 = vadd.f32 0.0, %v2338
        %2340 = vmatmul.f32.gmra.mxu0 %v2260
        %v2341 = vpop.f32.mrf.mxu0
        %v2342 = vadd.f32 0.0, %v2341
        %2343 = vmatmul.f32.gmra.mxu0 %v2261
        %v2344 = vpop.f32.mrf.mxu0
        %v2345 = vadd.f32 0.0, %v2344
        %2346 = vmatmul.f32.gmra.mxu0 %v2262
        %v2347 = vpop.f32.mrf.mxu0
        %v2348 = vadd.f32 0.0, %v2347
        %2349 = vmatmul.f32.gmra.mxu0 %v2263
        %v2350 = vpop.f32.mrf.mxu0
        %v2351 = vadd.f32 0.0, %v2350
        %2352 = vdwg.mxu0
        %2353 = vmax.xlane.f32.xlu0 %v2282
        %v2354 = vpop.xlane.xlu0 %2353
        %2355 = vmax.xlane.f32.xlu0 %v2285
        %v2356 = vpop.xlane.xlu0 %2355
        %2357 = vmax.xlane.f32.xlu0 %v2288
        %v2358 = vpop.xlane.xlu0 %2357
        %2359 = vmax.xlane.f32.xlu0 %v2291
        %v2360 = vpop.xlane.xlu0 %2359
        %2361 = vmax.xlane.f32.xlu0 %v2294
        %v2362 = vpop.xlane.xlu0 %2361
        %2363 = vmax.xlane.f32.xlu0 %v2297
        %v2364 = vpop.xlane.xlu0 %2363
        %2365 = vmax.xlane.f32.xlu0 %v2300
        %v2366 = vpop.xlane.xlu0 %2365
        %2367 = vmax.xlane.f32.xlu0 %v2303
        %v2368 = vpop.xlane.xlu0 %2367
        %2369 = vmax.xlane.f32.xlu0 %v2306
        %v2370 = vpop.xlane.xlu0 %2369
        %2371 = vmax.xlane.f32.xlu0 %v2309
        %v2372 = vpop.xlane.xlu0 %2371
        %2373 = vmax.xlane.f32.xlu0 %v2312
        %v2374 = vpop.xlane.xlu0 %2373
        %2375 = vmax.xlane.f32.xlu0 %v2315
        %v2376 = vpop.xlane.xlu0 %2375
        %2377 = vmax.xlane.f32.xlu0 %v2318
        %v2378 = vpop.xlane.xlu0 %2377
        %2379 = vmax.xlane.f32.xlu0 %v2321
        %v2380 = vpop.xlane.xlu0 %2379
        %2381 = vmax.xlane.f32.xlu0 %v2324
        %v2382 = vpop.xlane.xlu0 %2381
        %2383 = vmax.xlane.f32.xlu0 %v2327
        %v2384 = vpop.xlane.xlu0 %2383
        %2385 = vmax.xlane.f32.xlu0 %v2330
        %v2386 = vpop.xlane.xlu0 %2385
        %2387 = vmax.xlane.f32.xlu0 %v2333
        %v2388 = vpop.xlane.xlu0 %2387
        %2389 = vmax.xlane.f32.xlu0 %v2336
        %v2390 = vpop.xlane.xlu0 %2389
        %2391 = vmax.xlane.f32.xlu0 %v2339
        %v2392 = vpop.xlane.xlu0 %2391
        %2393 = vmax.xlane.f32.xlu0 %v2342
        %v2394 = vpop.xlane.xlu0 %2393
        %2395 = vmax.xlane.f32.xlu0 %v2345
        %v2396 = vpop.xlane.xlu0 %2395
        %2397 = vmax.xlane.f32.xlu0 %v2348
        %v2398 = vpop.xlane.xlu0 %2397
        %2399 = vmax.xlane.f32.xlu0 %v2351
        %v2400 = vpop.xlane.xlu0 %2399
        %v2401 = vmax.f32 %v2354, %v2356
        %v2402 = vmax.f32 %v2401, %v2358
        %v2403 = vrot.slane %v2402, 4
        %v2404 = vmax.f32 %v2402, %v2403
        %v2405 = vrot.slane %v2404, 2
        %v2406 = vmax.f32 %v2404, %v2405
        %v2407 = vrot.slane %v2406, 1
        %v2408 = vmax.f32 %v2406, %v2407
        %v2409 = vmax.f32 %v2360, %v2362
        %v2410 = vmax.f32 %v2409, %v2364
        %v2411 = vrot.slane %v2410, 4
        %v2412 = vmax.f32 %v2410, %v2411
        %v2413 = vrot.slane %v2412, 2
        %v2414 = vmax.f32 %v2412, %v2413
        %v2415 = vrot.slane %v2414, 1
        %v2416 = vmax.f32 %v2414, %v2415
        %v2417 = vmax.f32 %v2366, %v2368
        %v2418 = vmax.f32 %v2417, %v2370
        %v2419 = vrot.slane %v2418, 4
        %v2420 = vmax.f32 %v2418, %v2419
        %v2421 = vrot.slane %v2420, 2
        %v2422 = vmax.f32 %v2420, %v2421
        %v2423 = vrot.slane %v2422, 1
        %v2424 = vmax.f32 %v2422, %v2423
        %v2425 = vmax.f32 %v2372, %v2374
        %v2426 = vmax.f32 %v2425, %v2376
        %v2427 = vrot.slane %v2426, 4
        %v2428 = vmax.f32 %v2426, %v2427
        %v2429 = vrot.slane %v2428, 2
        %v2430 = vmax.f32 %v2428, %v2429
        %v2431 = vrot.slane %v2430, 1
        %v2432 = vmax.f32 %v2430, %v2431
        %v2433 = vmax.f32 %v2378, %v2380
        %v2434 = vmax.f32 %v2433, %v2382
        %v2435 = vrot.slane %v2434, 4
        %v2436 = vmax.f32 %v2434, %v2435
        %v2437 = vrot.slane %v2436, 2
        %v2438 = vmax.f32 %v2436, %v2437
        %v2439 = vrot.slane %v2438, 1
        %v2440 = vmax.f32 %v2438, %v2439
        %v2441 = vmax.f32 %v2384, %v2386
        %v2442 = vmax.f32 %v2441, %v2388
        %v2443 = vrot.slane %v2442, 4
        %v2444 = vmax.f32 %v2442, %v2443
        %v2445 = vrot.slane %v2444, 2
        %v2446 = vmax.f32 %v2444, %v2445
        %v2447 = vrot.slane %v2446, 1
        %v2448 = vmax.f32 %v2446, %v2447
        %v2449 = vmax.f32 %v2390, %v2392
        %v2450 = vmax.f32 %v2449, %v2394
        %v2451 = vrot.slane %v2450, 4
        %v2452 = vmax.f32 %v2450, %v2451
        %v2453 = vrot.slane %v2452, 2
        %v2454 = vmax.f32 %v2452, %v2453
        %v2455 = vrot.slane %v2454, 1
        %v2456 = vmax.f32 %v2454, %v2455
        %v2457 = vmax.f32 %v2396, %v2398
        %v2458 = vmax.f32 %v2457, %v2400
        %v2459 = vrot.slane %v2458, 4
        %v2460 = vmax.f32 %v2458, %v2459
        %v2461 = vrot.slane %v2460, 2
        %v2462 = vmax.f32 %v2460, %v2461
        %v2463 = vrot.slane %v2462, 1
        %v2464 = vmax.f32 %v2462, %v2463
        %v2465 = vsub.f32 %v2282, %v2408
        %v2466 = vsub.f32 %v2285, %v2408
        %v2467 = vsub.f32 %v2288, %v2408
        %v2468 = vsub.f32 %v2291, %v2416
        %v2469 = vsub.f32 %v2294, %v2416
        %v2470 = vsub.f32 %v2297, %v2416
        %v2471 = vsub.f32 %v2300, %v2424
        %v2472 = vsub.f32 %v2303, %v2424
        %v2473 = vsub.f32 %v2306, %v2424
        %v2474 = vsub.f32 %v2309, %v2432
        %v2475 = vsub.f32 %v2312, %v2432
        %v2476 = vsub.f32 %v2315, %v2432
        %v2477 = vsub.f32 %v2318, %v2440
        %v2478 = vsub.f32 %v2321, %v2440
        %v2479 = vsub.f32 %v2324, %v2440
        %v2480 = vsub.f32 %v2327, %v2448
        %v2481 = vsub.f32 %v2330, %v2448
        %v2482 = vsub.f32 %v2333, %v2448
        %v2483 = vsub.f32 %v2336, %v2456
        %v2484 = vsub.f32 %v2339, %v2456
        %v2485 = vsub.f32 %v2342, %v2456
        %v2486 = vsub.f32 %v2345, %v2464
        %v2487 = vsub.f32 %v2348, %v2464
        %v2488 = vsub.f32 %v2351, %v2464
        %v2489 = vmul.f32 %v2465, 1.442695
        %v2490 = vpow.pop %v2489
        %v2491 = vmul.f32 %v2466, 1.442695
        %v2492 = vpow.pop %v2491
        %v2493 = vmul.f32 %v2467, 1.442695
        %v2494 = vpow.pop %v2493
        %v2495 = vmul.f32 %v2468, 1.442695
        %v2496 = vpow.pop %v2495
        %v2497 = vmul.f32 %v2469, 1.442695
        %v2498 = vpow.pop %v2497
        %v2499 = vmul.f32 %v2470, 1.442695
        %v2500 = vpow.pop %v2499
        %v2501 = vmul.f32 %v2471, 1.442695
        %v2502 = vpow.pop %v2501
        %v2503 = vmul.f32 %v2472, 1.442695
        %v2504 = vpow.pop %v2503
        %v2505 = vmul.f32 %v2473, 1.442695
        %v2506 = vpow.pop %v2505
        %v2507 = vmul.f32 %v2474, 1.442695
        %v2508 = vpow.pop %v2507
        %v2509 = vmul.f32 %v2475, 1.442695
        %v2510 = vpow.pop %v2509
        %v2511 = vmul.f32 %v2476, 1.442695
        %v2512 = vpow.pop %v2511
        %v2513 = vmul.f32 %v2477, 1.442695
        %v2514 = vpow.pop %v2513
        %v2515 = vmul.f32 %v2478, 1.442695
        %v2516 = vpow.pop %v2515
        %v2517 = vmul.f32 %v2479, 1.442695
        %v2518 = vpow.pop %v2517
        %v2519 = vmul.f32 %v2480, 1.442695
        %v2520 = vpow.pop %v2519
        %v2521 = vmul.f32 %v2481, 1.442695
        %v2522 = vpow.pop %v2521
        %v2523 = vmul.f32 %v2482, 1.442695
        %v2524 = vpow.pop %v2523
        %v2525 = vmul.f32 %v2483, 1.442695
        %v2526 = vpow.pop %v2525
        %v2527 = vmul.f32 %v2484, 1.442695
        %v2528 = vpow.pop %v2527
        %v2529 = vmul.f32 %v2485, 1.442695
        %v2530 = vpow.pop %v2529
        %v2531 = vmul.f32 %v2486, 1.442695
        %v2532 = vpow.pop %v2531
        %v2533 = vmul.f32 %v2487, 1.442695
        %v2534 = vpow.pop %v2533
        %v2535 = vmul.f32 %v2488, 1.442695
        %v2536 = vpow.pop %v2535
        %v2537 = vld [vmem:[%s3 + $0x180] sm:$0xff]
        %v2538 = vld [vmem:[%s3 + $0x188] sm:$0xff]
        %v2539 = vld [vmem:[%s3 + $0x190] sm:$0xff]
        %v2540 = vld [vmem:[%s3 + $0x198] sm:$0xff]
        %v2541 = vld [vmem:[%s3 + $0x1a0] sm:$0xff]
        %v2542 = vld [vmem:[%s3 + $0x1a8] sm:$0xff]
        %v2543 = vld [vmem:[%s3 + $0x1b0] sm:$0xff]
        %v2544 = vld [vmem:[%s3 + $0x1b8] sm:$0xff]
        %v2545 = vld [vmem:[%s3 + $0x1c0] sm:$0xff]
        %v2546 = vld [vmem:[%s3 + $0x1c8] sm:$0xff]
        %v2547 = vld [vmem:[%s3 + $0x1d0] sm:$0xff]
        %v2548 = vld [vmem:[%s3 + $0x1d8] sm:$0xff]
        %v2549 = vld [vmem:[%s3 + $0x1e0] sm:$0xff]
        %v2550 = vld [vmem:[%s3 + $0x1e8] sm:$0xff]
        %v2551 = vld [vmem:[%s3 + $0x1f0] sm:$0xff]
        %v2552 = vld [vmem:[%s3 + $0x1f8] sm:$0xff]
        %v2553 = vld [vmem:[%s3 + $0x200] sm:$0xff]
        %v2554 = vld [vmem:[%s3 + $0x208] sm:$0xff]
        %v2555 = vld [vmem:[%s3 + $0x210] sm:$0xff]
        %v2556 = vld [vmem:[%s3 + $0x218] sm:$0xff]
        %v2557 = vld [vmem:[%s3 + $0x220] sm:$0xff]
        %v2558 = vld [vmem:[%s3 + $0x228] sm:$0xff]
        %v2559 = vld [vmem:[%s3 + $0x230] sm:$0xff]
        %v2560 = vld [vmem:[%s3 + $0x238] sm:$0xff]
        %v2561 = vmul.f32 %v2490, %v2537
        %v2562 = vmul.f32 %v2492, %v2538
        %v2563 = vmul.f32 %v2494, %v2539
        %v2564 = vmul.f32 %v2496, %v2540
        %v2565 = vmul.f32 %v2498, %v2541
        %v2566 = vmul.f32 %v2500, %v2542
        %v2567 = vmul.f32 %v2502, %v2543
        %v2568 = vmul.f32 %v2504, %v2544
        %v2569 = vmul.f32 %v2506, %v2545
        %v2570 = vmul.f32 %v2508, %v2546
        %v2571 = vmul.f32 %v2510, %v2547
        %v2572 = vmul.f32 %v2512, %v2548
        %v2573 = vmul.f32 %v2514, %v2549
        %v2574 = vmul.f32 %v2516, %v2550
        %v2575 = vmul.f32 %v2518, %v2551
        %v2576 = vmul.f32 %v2520, %v2552
        %v2577 = vmul.f32 %v2522, %v2553
        %v2578 = vmul.f32 %v2524, %v2554
        %v2579 = vmul.f32 %v2526, %v2555
        %v2580 = vmul.f32 %v2528, %v2556
        %v2581 = vmul.f32 %v2530, %v2557
        %v2582 = vmul.f32 %v2532, %v2558
        %v2583 = vmul.f32 %v2534, %v2559
        %v2584 = vmul.f32 %v2536, %v2560
        %2585 = vmatpush.msra.mxu0 %v2576
        %2586 = vmatpush.msra.mxu0 %v2575
        %2587 = vmatpush.msra.mxu0 %v2574
        %2588 = vmatpush.msra.mxu0 %v2573
        %2589 = vmatpush.msra.mxu0 %v2572
        %2590 = vmatpush.msra.mxu0 %v2571
        %2591 = vmatpush.msra.mxu0 %v2570
        %2592 = vmatpush.msra.mxu0 %v2569
        %2593 = vmatpush.msra.mxu0 %v2568
        %2594 = vmatpush.msra.mxu0 %v2567
        %2595 = vmatpush.msra.mxu0 %v2566
        %2596 = vmatpush.msra.mxu0 %v2565
        %2597 = vmatpush.msra.mxu0 %v2564
        %2598 = vmatpush.msra.mxu0 %v2563
        %2599 = vmatpush.msra.mxu0 %v2562
        %2600 = vmatpush.msra.mxu0 %v2561
        %2601 = vmatmul.f32.gmra.mxu0 %v939
        %v2602 = vpop.f32.mrf.mxu0
        %v2603 = vadd.f32 0.0, %v2602
        %2604 = vdwg.mxu0
        %2605 = vmatpush.msra.mxu0 0.0
        %2606 = vmatpush.msra.mxu0 0.0
        %2607 = vmatpush.msra.mxu0 0.0
        %2608 = vmatpush.msra.mxu0 0.0
        %2609 = vmatpush.msra.mxu0 0.0
        %2610 = vmatpush.msra.mxu0 0.0
        %2611 = vmatpush.msra.mxu0 0.0
        %2612 = vmatpush.msra.mxu0 0.0
        %2613 = vmatpush.msra.mxu0 %v2584
        %2614 = vmatpush.msra.mxu0 %v2583
        %2615 = vmatpush.msra.mxu0 %v2582
        %2616 = vmatpush.msra.mxu0 %v2581
        %2617 = vmatpush.msra.mxu0 %v2580
        %2618 = vmatpush.msra.mxu0 %v2579
        %2619 = vmatpush.msra.mxu0 %v2578
        %2620 = vmatpush.msra.mxu0 %v2577
        %2621 = vmatmul.f32.gmra.mxu0 %v1489
        %v2622 = vpop.f32.mrf.mxu0
        %v2623 = vadd.f32 %v2603, %v2622
        %2624 = vdwg.mxu0
        %v2625 = vmul.f32 %v2561, %v1013
        %v2626 = vmul.f32 %v2562, %v1016
        %v2627 = vmul.f32 %v2563, %v1019
        %v2628 = vmul.f32 %v2564, %v1013
        %v2629 = vmul.f32 %v2565, %v1016
        %v2630 = vmul.f32 %v2566, %v1019
        %v2631 = vmul.f32 %v2567, %v1013
        %v2632 = vmul.f32 %v2568, %v1016
        %v2633 = vmul.f32 %v2569, %v1019
        %v2634 = vmul.f32 %v2570, %v1013
        %v2635 = vmul.f32 %v2571, %v1016
        %v2636 = vmul.f32 %v2572, %v1019
        %v2637 = vmul.f32 %v2573, %v1013
        %v2638 = vmul.f32 %v2574, %v1016
        %v2639 = vmul.f32 %v2575, %v1019
        %v2640 = vmul.f32 %v2576, %v1013
        %v2641 = vmul.f32 %v2577, %v1016
        %v2642 = vmul.f32 %v2578, %v1019
        %v2643 = vmul.f32 %v2579, %v1013
        %v2644 = vmul.f32 %v2580, %v1016
        %v2645 = vmul.f32 %v2581, %v1019
        %v2646 = vmul.f32 %v2582, %v1013
        %v2647 = vmul.f32 %v2583, %v1016
        %v2648 = vmul.f32 %v2584, %v1019
        %2649 = vmatpush.msra.mxu0 %v2640
        %2650 = vmatpush.msra.mxu0 %v2639
        %2651 = vmatpush.msra.mxu0 %v2638
        %2652 = vmatpush.msra.mxu0 %v2637
        %2653 = vmatpush.msra.mxu0 %v2636
        %2654 = vmatpush.msra.mxu0 %v2635
        %2655 = vmatpush.msra.mxu0 %v2634
        %2656 = vmatpush.msra.mxu0 %v2633
        %2657 = vmatpush.msra.mxu0 %v2632
        %2658 = vmatpush.msra.mxu0 %v2631
        %2659 = vmatpush.msra.mxu0 %v2630
        %2660 = vmatpush.msra.mxu0 %v2629
        %2661 = vmatpush.msra.mxu0 %v2628
        %2662 = vmatpush.msra.mxu0 %v2627
        %2663 = vmatpush.msra.mxu0 %v2626
        %2664 = vmatpush.msra.mxu0 %v2625
        %2665 = vmatmul.f32.gmra.mxu0 %v939
        %v2666 = vpop.f32.mrf.mxu0
        %v2667 = vadd.f32 0.0, %v2666
        %2668 = vdwg.mxu0
        %2669 = vmatpush.msra.mxu0 0.0
        %2670 = vmatpush.msra.mxu0 0.0
        %2671 = vmatpush.msra.mxu0 0.0
        %2672 = vmatpush.msra.mxu0 0.0
        %2673 = vmatpush.msra.mxu0 0.0
        %2674 = vmatpush.msra.mxu0 0.0
        %2675 = vmatpush.msra.mxu0 0.0
        %2676 = vmatpush.msra.mxu0 0.0
        %2677 = vmatpush.msra.mxu0 %v2648
        %2678 = vmatpush.msra.mxu0 %v2647
        %2679 = vmatpush.msra.mxu0 %v2646
        %2680 = vmatpush.msra.mxu0 %v2645
        %2681 = vmatpush.msra.mxu0 %v2644
        %2682 = vmatpush.msra.mxu0 %v2643
        %2683 = vmatpush.msra.mxu0 %v2642
        %2684 = vmatpush.msra.mxu0 %v2641
        %2685 = vmatmul.f32.gmra.mxu0 %v1489
        %v2686 = vpop.f32.mrf.mxu0
        %v2687 = vadd.f32 %v2667, %v2686
        %2688 = vdwg.mxu0
        %v2689 = vrcp.pop %v2623
        %v2690 = vmul.f32 %v2687, %v2689
        %v2691 = vperm.slane %v981, 1
        %2692 = vmatpush.msra.mxu0 %v956
        %2693 = vmatpush.msra.mxu0 %v955
        %2694 = vmatpush.msra.mxu0 %v954
        %2695 = vmatpush.msra.mxu0 %v953
        %2696 = vmatpush.msra.mxu0 %v952
        %2697 = vmatpush.msra.mxu0 %v951
        %2698 = vmatpush.msra.mxu0 %v950
        %2699 = vmatpush.msra.mxu0 %v949
        %2700 = vmatpush.msra.mxu0 %v948
        %2701 = vmatpush.msra.mxu0 %v947
        %2702 = vmatpush.msra.mxu0 %v946
        %2703 = vmatpush.msra.mxu0 %v945
        %2704 = vmatpush.msra.mxu0 %v944
        %2705 = vmatpush.msra.mxu0 %v943
        %2706 = vmatpush.msra.mxu0 %v942
        %2707 = vmatpush.msra.mxu0 %v941
        %2708 = vmatmul.f32.gmra.mxu0 %v1596
        %v2709 = vpop.f32.mrf.mxu0
        %v2710 = vadd.f32 %v2691, %v2709
        %2711 = vmatmul.f32.gmra.mxu0 %v2143
        %v2712 = vpop.f32.mrf.mxu0
        %v2713 = vadd.f32 %v2691, %v2712
        %2714 = vmatmul.f32.gmra.mxu0 %v2690
        %v2715 = vpop.f32.mrf.mxu0
        %v2716 = vadd.f32 %v2691, %v2715
        %2717 = vdwg.mxu0
        %v2718 = vmul.f32 %v2710, %v936
        %v2719 = vmul.f32 %v2713, %v937
        %v2720 = vmul.f32 %v2716, %v938
        %v2721 = vsel %vm985, %v2718, 0.0
        %v2722 = vsel %vm985, %v2719, 0.0
        %v2723 = vadd.f32 %v2721, %v2722
        %v2724 = vsel %vm985, %v2720, 0.0
        %v2725 = vadd.f32 %v2723, %v2724
        %v2726 = vrot.slane %v2725, 4
        %v2727 = vadd.f32 %v2725, %v2726
        %v2728 = vrot.slane %v2727, 2
        %v2729 = vadd.f32 %v2727, %v2728
        %v2730 = vrot.slane %v2729, 1
        %v2731 = vadd.f32 %v2729, %v2730
        %v2732 = vmul.f32 %v2731, 0.05
        %v2733 = vmul.f32 %v981, %v2732
        %v2734 = vperm.slane %v2733, 4
        %v2735 = vsub.f32 %v2710, %v2734
        %v2736 = vsub.f32 %v2713, %v2734
        %v2737 = vsub.f32 %v2716, %v2734
        %v2738 = vmul.f32 %v2735, %v2735
        %v2739 = vmul.f32 %v2736, %v2736
        %v2740 = vmul.f32 %v2737, %v2737
        %v2741 = vmul.f32 %v2738, %v936
        %v2742 = vmul.f32 %v2739, %v937
        %v2743 = vmul.f32 %v2740, %v938
        %v2744 = vsel %vm985, %v2741, 0.0
        %v2745 = vsel %vm985, %v2742, 0.0
        %v2746 = vadd.f32 %v2744, %v2745
        %v2747 = vsel %vm985, %v2743, 0.0
        %v2748 = vadd.f32 %v2746, %v2747
        %v2749 = vrot.slane %v2748, 4
        %v2750 = vadd.f32 %v2748, %v2749
        %v2751 = vrot.slane %v2750, 2
        %v2752 = vadd.f32 %v2750, %v2751
        %v2753 = vrot.slane %v2752, 1
        %v2754 = vadd.f32 %v2752, %v2753
        %v2755 = vmul.f32 %v2754, 0.05
        %v2756 = vadd.f32 %v2755, 1e-05
        %v2757 = vrsqrt.pop %v2756
        %v2758 = vmul.f32 %v2757, %v2756
        %v2759 = vmul.f32 %v2758, %v2757
        %v2760 = vmul.f32 0.5, %v2759
        %v2761 = vsub.f32 1.5, %v2760
        %v2762 = vmul.f32 %v2757, %v2761
        %vm2763 = vweird.f32 %v2756
        %vm2764 = vweird.f32 %v2757
        %vm2765 = vmor %vm2763, %vm2764
        %v2766 = vsel %vm2765, %v2757, %v2762
        %v2767 = vmul.f32 %v2735, %v2766
        %v2768 = vmul.f32 %v2736, %v2766
        %v2769 = vmul.f32 %v2737, %v2766
        %v2770 = vperm.slane %v981, 2
        %v2771 = vmul.f32 %v2767, %v2770
        %v2772 = vmul.f32 %v2768, %v2770
        %v2773 = vmul.f32 %v2769, %v2770
        %v2774 = vperm.slane %v981, 3
        %v2775 = vadd.f32 %v2771, %v2774
        %v2776 = vadd.f32 %v2772, %v2774
        %v2777 = vadd.f32 %v2773, %v2774
        %s2778 = scalar_lea.vmem [#allocation8], 64
        %v2779 = vld [vmem:[%s2778] sm:$0xff]
        %v2780 = vld [vmem:[%s2778 + $0x8] sm:$0xff]
        %v2781 = vld [vmem:[%s2778 + $0x10] sm:$0xff]
        %v2782 = vld [vmem:[%s2778 + $0x18] sm:$0xff]
        %v2783 = vld [vmem:[%s2778 + $0x20] sm:$0xff]
        %v2784 = vld [vmem:[%s2778 + $0x28] sm:$0xff]
        %v2785 = vld [vmem:[%s2778 + $0x30] sm:$0xff]
        %v2786 = vld [vmem:[%s2778 + $0x38] sm:$0xff]
        %s2787 = scalar_lea.vmem [#allocation10], 128
        %v2788 = vld [vmem:[%s2787] sm:$0xff]
        %v2789 = vld [vmem:[%s2787 + $0x8] sm:$0xff]
        %v2790 = vld [vmem:[%s2787 + $0x10] sm:$0xff]
        %v2791 = vld [vmem:[%s2787 + $0x18] sm:$0xff]
        %v2792 = vld [vmem:[%s2787 + $0x20] sm:$0xff]
        %v2793 = vld [vmem:[%s2787 + $0x28] sm:$0xff]
        %v2794 = vld [vmem:[%s2787 + $0x30] sm:$0xff]
        %v2795 = vld [vmem:[%s2787 + $0x38] sm:$0xff]
        %v2796 = vld [vmem:[%s2787 + $0x40] sm:$0xff]
        %v2797 = vld [vmem:[%s2787 + $0x48] sm:$0xff]
        %v2798 = vld [vmem:[%s2787 + $0x50] sm:$0xff]
        %v2799 = vld [vmem:[%s2787 + $0x58] sm:$0xff]
        %v2800 = vld [vmem:[%s2787 + $0x60] sm:$0xff]
        %v2801 = vld [vmem:[%s2787 + $0x68] sm:$0xff]
        %v2802 = vld [vmem:[%s2787 + $0x70] sm:$0xff]
        %v2803 = vld [vmem:[%s2787 + $0x78] sm:$0xff]
        %s2804 = scalar_lea.vmem %s10, 16
        %v2805 = vld [vmem:[%s2804] sm:$0x1f]
        %v2806 = vld [vmem:[%s2804 + $0x8] sm:$0x1f]
        %v2807 = vperm.slane %v2805, 0
        %v2808 = vperm.slane %v2806, 0
        %v2810 = vsel %vm985, %v2775, 0
        %v2813 = vsel %vm985, %v2776, 0
        %v2816 = vsel %vm985, %v2777, 0
        %2818 = vmatpush.msra.mxu0 0.0
        %2819 = vmatpush.msra.mxu0 0.0
        %2820 = vmatpush.msra.mxu0 0.0
        %2821 = vmatpush.msra.mxu0 0.0
        %2822 = vmatpush.msra.mxu0 0.0
        %2823 = vmatpush.msra.mxu0 0.0
        %2824 = vmatpush.msra.mxu0 0.0
        %2825 = vmatpush.msra.mxu0 0.0
        %2826 = vmatpush.msra.mxu0 0.0
        %2827 = vmatpush.msra.mxu0 0.0
        %2828 = vmatpush.msra.mxu0 0.0
        %2829 = vmatpush.msra.mxu0 0.0
        %2830 = vmatpush.msra.mxu0 %v2785
        %2831 = vmatpush.msra.mxu0 %v2783
        %2832 = vmatpush.msra.mxu0 %v2781
        %2833 = vmatpush.msra.mxu0 %v2779
        %2834 = vmatmul.f32.gmra.mxu0 %v2810
        %v2835 = vpop.f32.mrf.mxu0
        %v2836 = vadd.f32 %v2807, %v2835
        %2837 = vmatmul.f32.gmra.mxu0 %v2813
        %v2838 = vpop.f32.mrf.mxu0
        %v2839 = vadd.f32 %v2807, %v2838
        %2840 = vmatmul.f32.gmra.mxu0 %v2816
        %v2841 = vpop.f32.mrf.mxu0
        %v2842 = vadd.f32 %v2807, %v2841
        %2843 = vdwg.mxu0
        %2844 = vmatpush.msra.mxu0 0.0
        %2845 = vmatpush.msra.mxu0 0.0
        %2846 = vmatpush.msra.mxu0 0.0
        %2847 = vmatpush.msra.mxu0 0.0
        %2848 = vmatpush.msra.mxu0 0.0
        %2849 = vmatpush.msra.mxu0 0.0
        %2850 = vmatpush.msra.mxu0 0.0
        %2851 = vmatpush.msra.mxu0 0.0
        %2852 = vmatpush.msra.mxu0 0.0
        %2853 = vmatpush.msra.mxu0 0.0
        %2854 = vmatpush.msra.mxu0 0.0
        %2855 = vmatpush.msra.mxu0 0.0
        %2856 = vmatpush.msra.mxu0 %v2786
        %2857 = vmatpush.msra.mxu0 %v2784
        %2858 = vmatpush.msra.mxu0 %v2782
        %2859 = vmatpush.msra.mxu0 %v2780
        %2860 = vmatmul.f32.gmra.mxu0 %v2810
        %v2861 = vpop.f32.mrf.mxu0
        %v2862 = vadd.f32 %v2808, %v2861
        %2863 = vmatmul.f32.gmra.mxu0 %v2813
        %v2864 = vpop.f32.mrf.mxu0
        %v2865 = vadd.f32 %v2808, %v2864
        %2866 = vmatmul.f32.gmra.mxu0 %v2816
        %v2867 = vpop.f32.mrf.mxu0
        %v2868 = vadd.f32 %v2808, %v2867
        %2869 = vdwg.mxu0
        %v2871 = vrot.slane %v2862, 1
        %v2872 = vrot.slane %v2862, 2
        %v2873 = vrot.slane %v2862, 3
        %v2874 = vrot.slane %v2862, 4
        %v2875 = vrot.slane %v2862, 5
        %v2876 = vrot.slane %v2862, 6
        %v2877 = vrot.slane %v2862, 7
        %v2878 = vperm.slane %v2862, 0
        %v2879 = vperm.slane %v2871, 0
        %v2880 = vperm.slane %v2872, 0
        %v2881 = vperm.slane %v2873, 0
        %v2882 = vperm.slane %v2874, 0
        %v2883 = vperm.slane %v2875, 0
        %v2884 = vperm.slane %v2876, 0
        %v2885 = vperm.slane %v2877, 0
        %v2894 = vadd.f32 %v2878, %v2836
        %v2895 = vadd.f32 %v2878, %v2839
        %v2896 = vadd.f32 %v2878, %v2842
        %v2897 = vadd.f32 %v2879, %v2836
        %v2898 = vadd.f32 %v2879, %v2839
        %v2899 = vadd.f32 %v2879, %v2842
        %v2900 = vadd.f32 %v2880, %v2836
        %v2901 = vadd.f32 %v2880, %v2839
        %v2902 = vadd.f32 %v2880, %v2842
        %v2903 = vadd.f32 %v2881, %v2836
        %v2904 = vadd.f32 %v2881, %v2839
        %v2905 = vadd.f32 %v2881, %v2842
        %v2906 = vadd.f32 %v2882, %v2836
        %v2907 = vadd.f32 %v2882, %v2839
        %v2908 = vadd.f32 %v2882, %v2842
        %v2909 = vadd.f32 %v2883, %v2836
        %v2910 = vadd.f32 %v2883, %v2839
        %v2911 = vadd.f32 %v2883, %v2842
        %v2912 = vadd.f32 %v2884, %v2836
        %v2913 = vadd.f32 %v2884, %v2839
        %v2914 = vadd.f32 %v2884, %v2842
        %v2915 = vadd.f32 %v2885, %v2836
        %v2916 = vadd.f32 %v2885, %v2839
        %v2917 = vadd.f32 %v2885, %v2842
        %vm2918 = vcmp.ge.f32.partialorder %v2894, 0.0
        %vm2919 = vcmp.ge.f32.partialorder %v2895, 0.0
        %vm2920 = vcmp.ge.f32.partialorder %v2896, 0.0
        %vm2921 = vcmp.ge.f32.partialorder %v2897, 0.0
        %vm2922 = vcmp.ge.f32.partialorder %v2898, 0.0
        %vm2923 = vcmp.ge.f32.partialorder %v2899, 0.0
        %vm2924 = vcmp.ge.f32.partialorder %v2900, 0.0
        %vm2925 = vcmp.ge.f32.partialorder %v2901, 0.0
        %vm2926 = vcmp.ge.f32.partialorder %v2902, 0.0
        %vm2927 = vcmp.ge.f32.partialorder %v2903, 0.0
        %vm2928 = vcmp.ge.f32.partialorder %v2904, 0.0
        %vm2929 = vcmp.ge.f32.partialorder %v2905, 0.0
        %vm2930 = vcmp.ge.f32.partialorder %v2906, 0.0
        %vm2931 = vcmp.ge.f32.partialorder %v2907, 0.0
        %vm2932 = vcmp.ge.f32.partialorder %v2908, 0.0
        %vm2933 = vcmp.ge.f32.partialorder %v2909, 0.0
        %vm2934 = vcmp.ge.f32.partialorder %v2910, 0.0
        %vm2935 = vcmp.ge.f32.partialorder %v2911, 0.0
        %vm2936 = vcmp.ge.f32.partialorder %v2912, 0.0
        %vm2937 = vcmp.ge.f32.partialorder %v2913, 0.0
        %vm2938 = vcmp.ge.f32.partialorder %v2914, 0.0
        %vm2939 = vcmp.ge.f32.partialorder %v2915, 0.0
        %vm2940 = vcmp.ge.f32.partialorder %v2916, 0.0
        %vm2941 = vcmp.ge.f32.partialorder %v2917, 0.0
        %v2942 = vmul.f32 %v2894, 0.2
        %v2943 = vmul.f32 %v2895, 0.2
        %v2944 = vmul.f32 %v2896, 0.2
        %v2945 = vmul.f32 %v2897, 0.2
        %v2946 = vmul.f32 %v2898, 0.2
        %v2947 = vmul.f32 %v2899, 0.2
        %v2948 = vmul.f32 %v2900, 0.2
        %v2949 = vmul.f32 %v2901, 0.2
        %v2950 = vmul.f32 %v2902, 0.2
        %v2951 = vmul.f32 %v2903, 0.2
        %v2952 = vmul.f32 %v2904, 0.2
        %v2953 = vmul.f32 %v2905, 0.2
        %v2954 = vmul.f32 %v2906, 0.2
        %v2955 = vmul.f32 %v2907, 0.2
        %v2956 = vmul.f32 %v2908, 0.2
        %v2957 = vmul.f32 %v2909, 0.2
        %v2958 = vmul.f32 %v2910, 0.2
        %v2959 = vmul.f32 %v2911, 0.2
        %v2960 = vmul.f32 %v2912, 0.2
        %v2961 = vmul.f32 %v2913, 0.2
        %v2962 = vmul.f32 %v2914, 0.2
        %v2963 = vmul.f32 %v2915, 0.2
        %v2964 = vmul.f32 %v2916, 0.2
        %v2965 = vmul.f32 %v2917, 0.2
        %v2966 = vsel %vm2918, %v2894, %v2942
        %v2967 = vsel %vm2919, %v2895, %v2943
        %v2968 = vsel %vm2920, %v2896, %v2944
        %v2969 = vsel %vm2921, %v2897, %v2945
        %v2970 = vsel %vm2922, %v2898, %v2946
        %v2971 = vsel %vm2923, %v2899, %v2947
        %v2972 = vsel %vm2924, %v2900, %v2948
        %v2973 = vsel %vm2925, %v2901, %v2949
        %v2974 = vsel %vm2926, %v2902, %v2950
        %v2975 = vsel %vm2927, %v2903, %v2951
        %v2976 = vsel %vm2928, %v2904, %v2952
        %v2977 = vsel %vm2929, %v2905, %v2953
        %v2978 = vsel %vm2930, %v2906, %v2954
        %v2979 = vsel %vm2931, %v2907, %v2955
        %v2980 = vsel %vm2932, %v2908, %v2956
        %v2981 = vsel %vm2933, %v2909, %v2957
        %v2982 = vsel %vm2934, %v2910, %v2958
        %v2983 = vsel %vm2935, %v2911, %v2959
        %v2984 = vsel %vm2936, %v2912, %v2960
        %v2985 = vsel %vm2937, %v2913, %v2961
        %v2986 = vsel %vm2938, %v2914, %v2962
        %v2987 = vsel %vm2939, %v2915, %v2963
        %v2988 = vsel %vm2940, %v2916, %v2964
        %v2989 = vsel %vm2941, %v2917, %v2965
        %2990 = vmatpush.msra.mxu0 %v2803
        %2991 = vmatpush.msra.mxu0 %v2802
        %2992 = vmatpush.msra.mxu0 %v2801
        %2993 = vmatpush.msra.mxu0 %v2800
        %2994 = vmatpush.msra.mxu0 %v2799
        %2995 = vmatpush.msra.mxu0 %v2798
        %2996 = vmatpush.msra.mxu0 %v2797
        %2997 = vmatpush.msra.mxu0 %v2796
        %2998 = vmatpush.msra.mxu0 %v2795
        %2999 = vmatpush.msra.mxu0 %v2794
        %3000 = vmatpush.msra.mxu0 %v2793
        %3001 = vmatpush.msra.mxu0 %v2792
        %3002 = vmatpush.msra.mxu0 %v2791
        %3003 = vmatpush.msra.mxu0 %v2790
        %3004 = vmatpush.msra.mxu0 %v2789
        %3005 = vmatpush.msra.mxu0 %v2788
        %3006 = vmatmul.f32.gmra.mxu0 %v2966
        %v3007 = vpop.f32.mrf.mxu0
        %v3008 = vadd.f32 0.0, %v3007
        %3009 = vmatmul.f32.gmra.mxu0 %v2967
        %v3010 = vpop.f32.mrf.mxu0
        %v3011 = vadd.f32 0.0, %v3010
        %3012 = vmatmul.f32.gmra.mxu0 %v2968
        %v3013 = vpop.f32.mrf.mxu0
        %v3014 = vadd.f32 0.0, %v3013
        %3015 = vmatmul.f32.gmra.mxu0 %v2969
        %v3016 = vpop.f32.mrf.mxu0
        %v3017 = vadd.f32 0.0, %v3016
        %3018 = vmatmul.f32.gmra.mxu0 %v2970
        %v3019 = vpop.f32.mrf.mxu0
        %v3020 = vadd.f32 0.0, %v3019
        %3021 = vmatmul.f32.gmra.mxu0 %v2971
        %v3022 = vpop.f32.mrf.mxu0
        %v3023 = vadd.f32 0.0, %v3022
        %3024 = vmatmul.f32.gmra.mxu0 %v2972
        %v3025 = vpop.f32.mrf.mxu0
        %v3026 = vadd.f32 0.0, %v3025
        %3027 = vmatmul.f32.gmra.mxu0 %v2973
        %v3028 = vpop.f32.mrf.mxu0
        %v3029 = vadd.f32 0.0, %v3028
        %3030 = vmatmul.f32.gmra.mxu0 %v2974
        %v3031 = vpop.f32.mrf.mxu0
        %v3032 = vadd.f32 0.0, %v3031
        %3033 = vmatmul.f32.gmra.mxu0 %v2975
        %v3034 = vpop.f32.mrf.mxu0
        %v3035 = vadd.f32 0.0, %v3034
        %3036 = vmatmul.f32.gmra.mxu0 %v2976
        %v3037 = vpop.f32.mrf.mxu0
        %v3038 = vadd.f32 0.0, %v3037
        %3039 = vmatmul.f32.gmra.mxu0 %v2977
        %v3040 = vpop.f32.mrf.mxu0
        %v3041 = vadd.f32 0.0, %v3040
        %3042 = vmatmul.f32.gmra.mxu0 %v2978
        %v3043 = vpop.f32.mrf.mxu0
        %v3044 = vadd.f32 0.0, %v3043
        %3045 = vmatmul.f32.gmra.mxu0 %v2979
        %v3046 = vpop.f32.mrf.mxu0
        %v3047 = vadd.f32 0.0, %v3046
        %3048 = vmatmul.f32.gmra.mxu0 %v2980
        %v3049 = vpop.f32.mrf.mxu0
        %v3050 = vadd.f32 0.0, %v3049
        %3051 = vmatmul.f32.gmra.mxu0 %v2981
        %v3052 = vpop.f32.mrf.mxu0
        %v3053 = vadd.f32 0.0, %v3052
        %3054 = vmatmul.f32.gmra.mxu0 %v2982
        %v3055 = vpop.f32.mrf.mxu0
        %v3056 = vadd.f32 0.0, %v3055
        %3057 = vmatmul.f32.gmra.mxu0 %v2983
        %v3058 = vpop.f32.mrf.mxu0
        %v3059 = vadd.f32 0.0, %v3058
        %3060 = vmatmul.f32.gmra.mxu0 %v2984
        %v3061 = vpop.f32.mrf.mxu0
        %v3062 = vadd.f32 0.0, %v3061
        %3063 = vmatmul.f32.gmra.mxu0 %v2985
        %v3064 = vpop.f32.mrf.mxu0
        %v3065 = vadd.f32 0.0, %v3064
        %3066 = vmatmul.f32.gmra.mxu0 %v2986
        %v3067 = vpop.f32.mrf.mxu0
        %v3068 = vadd.f32 0.0, %v3067
        %3069 = vmatmul.f32.gmra.mxu0 %v2987
        %v3070 = vpop.f32.mrf.mxu0
        %v3071 = vadd.f32 0.0, %v3070
        %3072 = vmatmul.f32.gmra.mxu0 %v2988
        %v3073 = vpop.f32.mrf.mxu0
        %v3074 = vadd.f32 0.0, %v3073
        %3075 = vmatmul.f32.gmra.mxu0 %v2989
        %v3076 = vpop.f32.mrf.mxu0
        %v3077 = vadd.f32 0.0, %v3076
        %3078 = vdwg.mxu0
        %3079 = vmax.xlane.f32.xlu0 %v3008
        %v3080 = vpop.xlane.xlu0 %3079
        %3081 = vmax.xlane.f32.xlu0 %v3011
        %v3082 = vpop.xlane.xlu0 %3081
        %3083 = vmax.xlane.f32.xlu0 %v3014
        %v3084 = vpop.xlane.xlu0 %3083
        %3085 = vmax.xlane.f32.xlu0 %v3017
        %v3086 = vpop.xlane.xlu0 %3085
        %3087 = vmax.xlane.f32.xlu0 %v3020
        %v3088 = vpop.xlane.xlu0 %3087
        %3089 = vmax.xlane.f32.xlu0 %v3023
        %v3090 = vpop.xlane.xlu0 %3089
        %3091 = vmax.xlane.f32.xlu0 %v3026
        %v3092 = vpop.xlane.xlu0 %3091
        %3093 = vmax.xlane.f32.xlu0 %v3029
        %v3094 = vpop.xlane.xlu0 %3093
        %3095 = vmax.xlane.f32.xlu0 %v3032
        %v3096 = vpop.xlane.xlu0 %3095
        %3097 = vmax.xlane.f32.xlu0 %v3035
        %v3098 = vpop.xlane.xlu0 %3097
        %3099 = vmax.xlane.f32.xlu0 %v3038
        %v3100 = vpop.xlane.xlu0 %3099
        %3101 = vmax.xlane.f32.xlu0 %v3041
        %v3102 = vpop.xlane.xlu0 %3101
        %3103 = vmax.xlane.f32.xlu0 %v3044
        %v3104 = vpop.xlane.xlu0 %3103
        %3105 = vmax.xlane.f32.xlu0 %v3047
        %v3106 = vpop.xlane.xlu0 %3105
        %3107 = vmax.xlane.f32.xlu0 %v3050
        %v3108 = vpop.xlane.xlu0 %3107
        %3109 = vmax.xlane.f32.xlu0 %v3053
        %v3110 = vpop.xlane.xlu0 %3109
        %3111 = vmax.xlane.f32.xlu0 %v3056
        %v3112 = vpop.xlane.xlu0 %3111
        %3113 = vmax.xlane.f32.xlu0 %v3059
        %v3114 = vpop.xlane.xlu0 %3113
        %3115 = vmax.xlane.f32.xlu0 %v3062
        %v3116 = vpop.xlane.xlu0 %3115
        %3117 = vmax.xlane.f32.xlu0 %v3065
        %v3118 = vpop.xlane.xlu0 %3117
        %3119 = vmax.xlane.f32.xlu0 %v3068
        %v3120 = vpop.xlane.xlu0 %3119
        %3121 = vmax.xlane.f32.xlu0 %v3071
        %v3122 = vpop.xlane.xlu0 %3121
        %3123 = vmax.xlane.f32.xlu0 %v3074
        %v3124 = vpop.xlane.xlu0 %3123
        %3125 = vmax.xlane.f32.xlu0 %v3077
        %v3126 = vpop.xlane.xlu0 %3125
        %v3127 = vmax.f32 %v3080, %v3082
        %v3128 = vmax.f32 %v3127, %v3084
        %v3129 = vrot.slane %v3128, 4
        %v3130 = vmax.f32 %v3128, %v3129
        %v3131 = vrot.slane %v3130, 2
        %v3132 = vmax.f32 %v3130, %v3131
        %v3133 = vrot.slane %v3132, 1
        %v3134 = vmax.f32 %v3132, %v3133
        %v3135 = vmax.f32 %v3086, %v3088
        %v3136 = vmax.f32 %v3135, %v3090
        %v3137 = vrot.slane %v3136, 4
        %v3138 = vmax.f32 %v3136, %v3137
        %v3139 = vrot.slane %v3138, 2
        %v3140 = vmax.f32 %v3138, %v3139
        %v3141 = vrot.slane %v3140, 1
        %v3142 = vmax.f32 %v3140, %v3141
        %v3143 = vmax.f32 %v3092, %v3094
        %v3144 = vmax.f32 %v3143, %v3096
        %v3145 = vrot.slane %v3144, 4
        %v3146 = vmax.f32 %v3144, %v3145
        %v3147 = vrot.slane %v3146, 2
        %v3148 = vmax.f32 %v3146, %v3147
        %v3149 = vrot.slane %v3148, 1
        %v3150 = vmax.f32 %v3148, %v3149
        %v3151 = vmax.f32 %v3098, %v3100
        %v3152 = vmax.f32 %v3151, %v3102
        %v3153 = vrot.slane %v3152, 4
        %v3154 = vmax.f32 %v3152, %v3153
        %v3155 = vrot.slane %v3154, 2
        %v3156 = vmax.f32 %v3154, %v3155
        %v3157 = vrot.slane %v3156, 1
        %v3158 = vmax.f32 %v3156, %v3157
        %v3159 = vmax.f32 %v3104, %v3106
        %v3160 = vmax.f32 %v3159, %v3108
        %v3161 = vrot.slane %v3160, 4
        %v3162 = vmax.f32 %v3160, %v3161
        %v3163 = vrot.slane %v3162, 2
        %v3164 = vmax.f32 %v3162, %v3163
        %v3165 = vrot.slane %v3164, 1
        %v3166 = vmax.f32 %v3164, %v3165
        %v3167 = vmax.f32 %v3110, %v3112
        %v3168 = vmax.f32 %v3167, %v3114
        %v3169 = vrot.slane %v3168, 4
        %v3170 = vmax.f32 %v3168, %v3169
        %v3171 = vrot.slane %v3170, 2
        %v3172 = vmax.f32 %v3170, %v3171
        %v3173 = vrot.slane %v3172, 1
        %v3174 = vmax.f32 %v3172, %v3173
        %v3175 = vmax.f32 %v3116, %v3118
        %v3176 = vmax.f32 %v3175, %v3120
        %v3177 = vrot.slane %v3176, 4
        %v3178 = vmax.f32 %v3176, %v3177
        %v3179 = vrot.slane %v3178, 2
        %v3180 = vmax.f32 %v3178, %v3179
        %v3181 = vrot.slane %v3180, 1
        %v3182 = vmax.f32 %v3180, %v3181
        %v3183 = vmax.f32 %v3122, %v3124
        %v3184 = vmax.f32 %v3183, %v3126
        %v3185 = vrot.slane %v3184, 4
        %v3186 = vmax.f32 %v3184, %v3185
        %v3187 = vrot.slane %v3186, 2
        %v3188 = vmax.f32 %v3186, %v3187
        %v3189 = vrot.slane %v3188, 1
        %v3190 = vmax.f32 %v3188, %v3189
        %v3191 = vsub.f32 %v3008, %v3134
        %v3192 = vsub.f32 %v3011, %v3134
        %v3193 = vsub.f32 %v3014, %v3134
        %v3194 = vsub.f32 %v3017, %v3142
        %v3195 = vsub.f32 %v3020, %v3142
        %v3196 = vsub.f32 %v3023, %v3142
        %v3197 = vsub.f32 %v3026, %v3150
        %v3198 = vsub.f32 %v3029, %v3150
        %v3199 = vsub.f32 %v3032, %v3150
        %v3200 = vsub.f32 %v3035, %v3158
        %v3201 = vsub.f32 %v3038, %v3158
        %v3202 = vsub.f32 %v3041, %v3158
        %v3203 = vsub.f32 %v3044, %v3166
        %v3204 = vsub.f32 %v3047, %v3166
        %v3205 = vsub.f32 %v3050, %v3166
        %v3206 = vsub.f32 %v3053, %v3174
        %v3207 = vsub.f32 %v3056, %v3174
        %v3208 = vsub.f32 %v3059, %v3174
        %v3209 = vsub.f32 %v3062, %v3182
        %v3210 = vsub.f32 %v3065, %v3182
        %v3211 = vsub.f32 %v3068, %v3182
        %v3212 = vsub.f32 %v3071, %v3190
        %v3213 = vsub.f32 %v3074, %v3190
        %v3214 = vsub.f32 %v3077, %v3190
        %v3215 = vmul.f32 %v3191, 1.442695
        %v3216 = vpow.pop %v3215
        %v3217 = vmul.f32 %v3192, 1.442695
        %v3218 = vpow.pop %v3217
        %v3219 = vmul.f32 %v3193, 1.442695
        %v3220 = vpow.pop %v3219
        %v3221 = vmul.f32 %v3194, 1.442695
        %v3222 = vpow.pop %v3221
        %v3223 = vmul.f32 %v3195, 1.442695
        %v3224 = vpow.pop %v3223
        %v3225 = vmul.f32 %v3196, 1.442695
        %v3226 = vpow.pop %v3225
        %v3227 = vmul.f32 %v3197, 1.442695
        %v3228 = vpow.pop %v3227
        %v3229 = vmul.f32 %v3198, 1.442695
        %v3230 = vpow.pop %v3229
        %v3231 = vmul.f32 %v3199, 1.442695
        %v3232 = vpow.pop %v3231
        %v3233 = vmul.f32 %v3200, 1.442695
        %v3234 = vpow.pop %v3233
        %v3235 = vmul.f32 %v3201, 1.442695
        %v3236 = vpow.pop %v3235
        %v3237 = vmul.f32 %v3202, 1.442695
        %v3238 = vpow.pop %v3237
        %v3239 = vmul.f32 %v3203, 1.442695
        %v3240 = vpow.pop %v3239
        %v3241 = vmul.f32 %v3204, 1.442695
        %v3242 = vpow.pop %v3241
        %v3243 = vmul.f32 %v3205, 1.442695
        %v3244 = vpow.pop %v3243
        %v3245 = vmul.f32 %v3206, 1.442695
        %v3246 = vpow.pop %v3245
        %v3247 = vmul.f32 %v3207, 1.442695
        %v3248 = vpow.pop %v3247
        %v3249 = vmul.f32 %v3208, 1.442695
        %v3250 = vpow.pop %v3249
        %v3251 = vmul.f32 %v3209, 1.442695
        %v3252 = vpow.pop %v3251
        %v3253 = vmul.f32 %v3210, 1.442695
        %v3254 = vpow.pop %v3253
        %v3255 = vmul.f32 %v3211, 1.442695
        %v3256 = vpow.pop %v3255
        %v3257 = vmul.f32 %v3212, 1.442695
        %v3258 = vpow.pop %v3257
        %v3259 = vmul.f32 %v3213, 1.442695
        %v3260 = vpow.pop %v3259
        %v3261 = vmul.f32 %v3214, 1.442695
        %v3262 = vpow.pop %v3261
        %v3263 = vmul.f32 %v3216, %v1440
        %v3264 = vmul.f32 %v3218, %v1441
        %v3265 = vmul.f32 %v3220, %v1442
        %v3266 = vmul.f32 %v3222, %v1443
        %v3267 = vmul.f32 %v3224, %v1444
        %v3268 = vmul.f32 %v3226, %v1445
        %v3269 = vmul.f32 %v3228, %v1446
        %v3270 = vmul.f32 %v3230, %v1447
        %v3271 = vmul.f32 %v3232, %v1448
        %v3272 = vmul.f32 %v3234, %v1449
        %v3273 = vmul.f32 %v3236, %v1450
        %v3274 = vmul.f32 %v3238, %v1451
        %v3275 = vmul.f32 %v3240, %v1452
        %v3276 = vmul.f32 %v3242, %v1453
        %v3277 = vmul.f32 %v3244, %v1454
        %v3278 = vmul.f32 %v3246, %v1455
        %v3279 = vmul.f32 %v3248, %v1456
        %v3280 = vmul.f32 %v3250, %v1457
        %v3281 = vmul.f32 %v3252, %v1458
        %v3282 = vmul.f32 %v3254, %v1459
        %v3283 = vmul.f32 %v3256, %v1460
        %v3284 = vmul.f32 %v3258, %v1461
        %v3285 = vmul.f32 %v3260, %v1462
        %v3286 = vmul.f32 %v3262, %v1463
        %3287 = vmatpush.msra.mxu0 %v3278
        %3288 = vmatpush.msra.mxu0 %v3277
        %3289 = vmatpush.msra.mxu0 %v3276
        %3290 = vmatpush.msra.mxu0 %v3275
        %3291 = vmatpush.msra.mxu0 %v3274
        %3292 = vmatpush.msra.mxu0 %v3273
        %3293 = vmatpush.msra.mxu0 %v3272
        %3294 = vmatpush.msra.mxu0 %v3271
        %3295 = vmatpush.msra.mxu0 %v3270
        %3296 = vmatpush.msra.mxu0 %v3269
        %3297 = vmatpush.msra.mxu0 %v3268
        %3298 = vmatpush.msra.mxu0 %v3267
        %3299 = vmatpush.msra.mxu0 %v3266
        %3300 = vmatpush.msra.mxu0 %v3265
        %3301 = vmatpush.msra.mxu0 %v3264
        %3302 = vmatpush.msra.mxu0 %v3263
        %3303 = vmatmul.f32.gmra.mxu0 %v939
        %v3304 = vpop.f32.mrf.mxu0
        %v3305 = vadd.f32 0.0, %v3304
        %3306 = vdwg.mxu0
        %3307 = vmatpush.msra.mxu0 0.0
        %3308 = vmatpush.msra.mxu0 0.0
        %3309 = vmatpush.msra.mxu0 0.0
        %3310 = vmatpush.msra.mxu0 0.0
        %3311 = vmatpush.msra.mxu0 0.0
        %3312 = vmatpush.msra.mxu0 0.0
        %3313 = vmatpush.msra.mxu0 0.0
        %3314 = vmatpush.msra.mxu0 0.0
        %3315 = vmatpush.msra.mxu0 %v3286
        %3316 = vmatpush.msra.mxu0 %v3285
        %3317 = vmatpush.msra.mxu0 %v3284
        %3318 = vmatpush.msra.mxu0 %v3283
        %3319 = vmatpush.msra.mxu0 %v3282
        %3320 = vmatpush.msra.mxu0 %v3281
        %3321 = vmatpush.msra.mxu0 %v3280
        %3322 = vmatpush.msra.mxu0 %v3279
        %3323 = vmatmul.f32.gmra.mxu0 %v1489
        %v3324 = vpop.f32.mrf.mxu0
        %v3325 = vadd.f32 %v3305, %v3324
        %3326 = vdwg.mxu0
        %v3327 = vmul.f32 %v3263, %v2836
        %v3328 = vmul.f32 %v3264, %v2839
        %v3329 = vmul.f32 %v3265, %v2842
        %v3330 = vmul.f32 %v3266, %v2836
        %v3331 = vmul.f32 %v3267, %v2839
        %v3332 = vmul.f32 %v3268, %v2842
        %v3333 = vmul.f32 %v3269, %v2836
        %v3334 = vmul.f32 %v3270, %v2839
        %v3335 = vmul.f32 %v3271, %v2842
        %v3336 = vmul.f32 %v3272, %v2836
        %v3337 = vmul.f32 %v3273, %v2839
        %v3338 = vmul.f32 %v3274, %v2842
        %v3339 = vmul.f32 %v3275, %v2836
        %v3340 = vmul.f32 %v3276, %v2839
        %v3341 = vmul.f32 %v3277, %v2842
        %v3342 = vmul.f32 %v3278, %v2836
        %v3343 = vmul.f32 %v3279, %v2839
        %v3344 = vmul.f32 %v3280, %v2842
        %v3345 = vmul.f32 %v3281, %v2836
        %v3346 = vmul.f32 %v3282, %v2839
        %v3347 = vmul.f32 %v3283, %v2842
        %v3348 = vmul.f32 %v3284, %v2836
        %v3349 = vmul.f32 %v3285, %v2839
        %v3350 = vmul.f32 %v3286, %v2842
        %3351 = vmatpush.msra.mxu0 %v3342
        %3352 = vmatpush.msra.mxu0 %v3341
        %3353 = vmatpush.msra.mxu0 %v3340
        %3354 = vmatpush.msra.mxu0 %v3339
        %3355 = vmatpush.msra.mxu0 %v3338
        %3356 = vmatpush.msra.mxu0 %v3337
        %3357 = vmatpush.msra.mxu0 %v3336
        %3358 = vmatpush.msra.mxu0 %v3335
        %3359 = vmatpush.msra.mxu0 %v3334
        %3360 = vmatpush.msra.mxu0 %v3333
        %3361 = vmatpush.msra.mxu0 %v3332
        %3362 = vmatpush.msra.mxu0 %v3331
        %3363 = vmatpush.msra.mxu0 %v3330
        %3364 = vmatpush.msra.mxu0 %v3329
        %3365 = vmatpush.msra.mxu0 %v3328
        %3366 = vmatpush.msra.mxu0 %v3327
        %3367 = vmatmul.f32.gmra.mxu0 %v939
        %v3368 = vpop.f32.mrf.mxu0
        %v3369 = vadd.f32 0.0, %v3368
        %3370 = vdwg.mxu0
        %3371 = vmatpush.msra.mxu0 0.0
        %3372 = vmatpush.msra.mxu0 0.0
        %3373 = vmatpush.msra.mxu0 0.0
        %3374 = vmatpush.msra.mxu0 0.0
        %3375 = vmatpush.msra.mxu0 0.0
        %3376 = vmatpush.msra.mxu0 0.0
        %3377 = vmatpush.msra.mxu0 0.0
        %3378 = vmatpush.msra.mxu0 0.0
        %3379 = vmatpush.msra.mxu0 %v3350
        %3380 = vmatpush.msra.mxu0 %v3349
        %3381 = vmatpush.msra.mxu0 %v3348
        %3382 = vmatpush.msra.mxu0 %v3347
        %3383 = vmatpush.msra.mxu0 %v3346
        %3384 = vmatpush.msra.mxu0 %v3345
        %3385 = vmatpush.msra.mxu0 %v3344
        %3386 = vmatpush.msra.mxu0 %v3343
        %3387 = vmatmul.f32.gmra.mxu0 %v1489
        %v3388 = vpop.f32.mrf.mxu0
        %v3389 = vadd.f32 %v3369, %v3388
        %3390 = vdwg.mxu0
        %v3391 = vrcp.pop %v3325
        %v3392 = vmul.f32 %v3389, %v3391
        %v3394 = vrot.slane %v2865, 1
        %v3395 = vrot.slane %v2865, 2
        %v3396 = vrot.slane %v2865, 3
        %v3397 = vrot.slane %v2865, 4
        %v3398 = vrot.slane %v2865, 5
        %v3399 = vrot.slane %v2865, 6
        %v3400 = vrot.slane %v2865, 7
        %v3401 = vperm.slane %v2865, 0
        %v3402 = vperm.slane %v3394, 0
        %v3403 = vperm.slane %v3395, 0
        %v3404 = vperm.slane %v3396, 0
        %v3405 = vperm.slane %v3397, 0
        %v3406 = vperm.slane %v3398, 0
        %v3407 = vperm.slane %v3399, 0
        %v3408 = vperm.slane %v3400, 0
        %v3417 = vadd.f32 %v3401, %v2836
        %v3418 = vadd.f32 %v3401, %v2839
        %v3419 = vadd.f32 %v3401, %v2842
        %v3420 = vadd.f32 %v3402, %v2836
        %v3421 = vadd.f32 %v3402, %v2839
        %v3422 = vadd.f32 %v3402, %v2842
        %v3423 = vadd.f32 %v3403, %v2836
        %v3424 = vadd.f32 %v3403, %v2839
        %v3425 = vadd.f32 %v3403, %v2842
        %v3426 = vadd.f32 %v3404, %v2836
        %v3427 = vadd.f32 %v3404, %v2839
        %v3428 = vadd.f32 %v3404, %v2842
        %v3429 = vadd.f32 %v3405, %v2836
        %v3430 = vadd.f32 %v3405, %v2839
        %v3431 = vadd.f32 %v3405, %v2842
        %v3432 = vadd.f32 %v3406, %v2836
        %v3433 = vadd.f32 %v3406, %v2839
        %v3434 = vadd.f32 %v3406, %v2842
        %v3435 = vadd.f32 %v3407, %v2836
        %v3436 = vadd.f32 %v3407, %v2839
        %v3437 = vadd.f32 %v3407, %v2842
        %v3438 = vadd.f32 %v3408, %v2836
        %v3439 = vadd.f32 %v3408, %v2839
        %v3440 = vadd.f32 %v3408, %v2842
        %vm3441 = vcmp.ge.f32.partialorder %v3417, 0.0
        %vm3442 = vcmp.ge.f32.partialorder %v3418, 0.0
        %vm3443 = vcmp.ge.f32.partialorder %v3419, 0.0
        %vm3444 = vcmp.ge.f32.partialorder %v3420, 0.0
        %vm3445 = vcmp.ge.f32.partialorder %v3421, 0.0
        %vm3446 = vcmp.ge.f32.partialorder %v3422, 0.0
        %vm3447 = vcmp.ge.f32.partialorder %v3423, 0.0
        %vm3448 = vcmp.ge.f32.partialorder %v3424, 0.0
        %vm3449 = vcmp.ge.f32.partialorder %v3425, 0.0
        %vm3450 = vcmp.ge.f32.partialorder %v3426, 0.0
        %vm3451 = vcmp.ge.f32.partialorder %v3427, 0.0
        %vm3452 = vcmp.ge.f32.partialorder %v3428, 0.0
        %vm3453 = vcmp.ge.f32.partialorder %v3429, 0.0
        %vm3454 = vcmp.ge.f32.partialorder %v3430, 0.0
        %vm3455 = vcmp.ge.f32.partialorder %v3431, 0.0
        %vm3456 = vcmp.ge.f32.partialorder %v3432, 0.0
        %vm3457 = vcmp.ge.f32.partialorder %v3433, 0.0
        %vm3458 = vcmp.ge.f32.partialorder %v3434, 0.0
        %vm3459 = vcmp.ge.f32.partialorder %v3435, 0.0
        %vm3460 = vcmp.ge.f32.partialorder %v3436, 0.0
        %vm3461 = vcmp.ge.f32.partialorder %v3437, 0.0
        %vm3462 = vcmp.ge.f32.partialorder %v3438, 0.0
        %vm3463 = vcmp.ge.f32.partialorder %v3439, 0.0
        %vm3464 = vcmp.ge.f32.partialorder %v3440, 0.0
        %v3465 = vmul.f32 %v3417, 0.2
        %v3466 = vmul.f32 %v3418, 0.2
        %v3467 = vmul.f32 %v3419, 0.2
        %v3468 = vmul.f32 %v3420, 0.2
        %v3469 = vmul.f32 %v3421, 0.2
        %v3470 = vmul.f32 %v3422, 0.2
        %v3471 = vmul.f32 %v3423, 0.2
        %v3472 = vmul.f32 %v3424, 0.2
        %v3473 = vmul.f32 %v3425, 0.2
        %v3474 = vmul.f32 %v3426, 0.2
        %v3475 = vmul.f32 %v3427, 0.2
        %v3476 = vmul.f32 %v3428, 0.2
        %v3477 = vmul.f32 %v3429, 0.2
        %v3478 = vmul.f32 %v3430, 0.2
        %v3479 = vmul.f32 %v3431, 0.2
        %v3480 = vmul.f32 %v3432, 0.2
        %v3481 = vmul.f32 %v3433, 0.2
        %v3482 = vmul.f32 %v3434, 0.2
        %v3483 = vmul.f32 %v3435, 0.2
        %v3484 = vmul.f32 %v3436, 0.2
        %v3485 = vmul.f32 %v3437, 0.2
        %v3486 = vmul.f32 %v3438, 0.2
        %v3487 = vmul.f32 %v3439, 0.2
        %v3488 = vmul.f32 %v3440, 0.2
        %v3489 = vsel %vm3441, %v3417, %v3465
        %v3490 = vsel %vm3442, %v3418, %v3466
        %v3491 = vsel %vm3443, %v3419, %v3467
        %v3492 = vsel %vm3444, %v3420, %v3468
        %v3493 = vsel %vm3445, %v3421, %v3469
        %v3494 = vsel %vm3446, %v3422, %v3470
        %v3495 = vsel %vm3447, %v3423, %v3471
        %v3496 = vsel %vm3448, %v3424, %v3472
        %v3497 = vsel %vm3449, %v3425, %v3473
        %v3498 = vsel %vm3450, %v3426, %v3474
        %v3499 = vsel %vm3451, %v3427, %v3475
        %v3500 = vsel %vm3452, %v3428, %v3476
        %v3501 = vsel %vm3453, %v3429, %v3477
        %v3502 = vsel %vm3454, %v3430, %v3478
        %v3503 = vsel %vm3455, %v3431, %v3479
        %v3504 = vsel %vm3456, %v3432, %v3480
        %v3505 = vsel %vm3457, %v3433, %v3481
        %v3506 = vsel %vm3458, %v3434, %v3482
        %v3507 = vsel %vm3459, %v3435, %v3483
        %v3508 = vsel %vm3460, %v3436, %v3484
        %v3509 = vsel %vm3461, %v3437, %v3485
        %v3510 = vsel %vm3462, %v3438, %v3486
        %v3511 = vsel %vm3463, %v3439, %v3487
        %v3512 = vsel %vm3464, %v3440, %v3488
        %3513 = vmatpush.msra.mxu0 %v2803
        %3514 = vmatpush.msra.mxu0 %v2802
        %3515 = vmatpush.msra.mxu0 %v2801
        %3516 = vmatpush.msra.mxu0 %v2800
        %3517 = vmatpush.msra.mxu0 %v2799
        %3518 = vmatpush.msra.mxu0 %v2798
        %3519 = vmatpush.msra.mxu0 %v2797
        %3520 = vmatpush.msra.mxu0 %v2796
        %3521 = vmatpush.msra.mxu0 %v2795
        %3522 = vmatpush.msra.mxu0 %v2794
        %3523 = vmatpush.msra.mxu0 %v2793
        %3524 = vmatpush.msra.mxu0 %v2792
        %3525 = vmatpush.msra.mxu0 %v2791
        %3526 = vmatpush.msra.mxu0 %v2790
        %3527 = vmatpush.msra.mxu0 %v2789
        %3528 = vmatpush.msra.mxu0 %v2788
        %3529 = vmatmul.f32.gmra.mxu0 %v3489
        %v3530 = vpop.f32.mrf.mxu0
        %v3531 = vadd.f32 0.0, %v3530
        %3532 = vmatmul.f32.gmra.mxu0 %v3490
        %v3533 = vpop.f32.mrf.mxu0
        %v3534 = vadd.f32 0.0, %v3533
        %3535 = vmatmul.f32.gmra.mxu0 %v3491
        %v3536 = vpop.f32.mrf.mxu0
        %v3537 = vadd.f32 0.0, %v3536
        %3538 = vmatmul.f32.gmra.mxu0 %v3492
        %v3539 = vpop.f32.mrf.mxu0
        %v3540 = vadd.f32 0.0, %v3539
        %3541 = vmatmul.f32.gmra.mxu0 %v3493
        %v3542 = vpop.f32.mrf.mxu0
        %v3543 = vadd.f32 0.0, %v3542
        %3544 = vmatmul.f32.gmra.mxu0 %v3494
        %v3545 = vpop.f32.mrf.mxu0
        %v3546 = vadd.f32 0.0, %v3545
        %3547 = vmatmul.f32.gmra.mxu0 %v3495
        %v3548 = vpop.f32.mrf.mxu0
        %v3549 = vadd.f32 0.0, %v3548
        %3550 = vmatmul.f32.gmra.mxu0 %v3496
        %v3551 = vpop.f32.mrf.mxu0
        %v3552 = vadd.f32 0.0, %v3551
        %3553 = vmatmul.f32.gmra.mxu0 %v3497
        %v3554 = vpop.f32.mrf.mxu0
        %v3555 = vadd.f32 0.0, %v3554
        %3556 = vmatmul.f32.gmra.mxu0 %v3498
        %v3557 = vpop.f32.mrf.mxu0
        %v3558 = vadd.f32 0.0, %v3557
        %3559 = vmatmul.f32.gmra.mxu0 %v3499
        %v3560 = vpop.f32.mrf.mxu0
        %v3561 = vadd.f32 0.0, %v3560
        %3562 = vmatmul.f32.gmra.mxu0 %v3500
        %v3563 = vpop.f32.mrf.mxu0
        %v3564 = vadd.f32 0.0, %v3563
        %3565 = vmatmul.f32.gmra.mxu0 %v3501
        %v3566 = vpop.f32.mrf.mxu0
        %v3567 = vadd.f32 0.0, %v3566
        %3568 = vmatmul.f32.gmra.mxu0 %v3502
        %v3569 = vpop.f32.mrf.mxu0
        %v3570 = vadd.f32 0.0, %v3569
        %3571 = vmatmul.f32.gmra.mxu0 %v3503
        %v3572 = vpop.f32.mrf.mxu0
        %v3573 = vadd.f32 0.0, %v3572
        %3574 = vmatmul.f32.gmra.mxu0 %v3504
        %v3575 = vpop.f32.mrf.mxu0
        %v3576 = vadd.f32 0.0, %v3575
        %3577 = vmatmul.f32.gmra.mxu0 %v3505
        %v3578 = vpop.f32.mrf.mxu0
        %v3579 = vadd.f32 0.0, %v3578
        %3580 = vmatmul.f32.gmra.mxu0 %v3506
        %v3581 = vpop.f32.mrf.mxu0
        %v3582 = vadd.f32 0.0, %v3581
        %3583 = vmatmul.f32.gmra.mxu0 %v3507
        %v3584 = vpop.f32.mrf.mxu0
        %v3585 = vadd.f32 0.0, %v3584
        %3586 = vmatmul.f32.gmra.mxu0 %v3508
        %v3587 = vpop.f32.mrf.mxu0
        %v3588 = vadd.f32 0.0, %v3587
        %3589 = vmatmul.f32.gmra.mxu0 %v3509
        %v3590 = vpop.f32.mrf.mxu0
        %v3591 = vadd.f32 0.0, %v3590
        %3592 = vmatmul.f32.gmra.mxu0 %v3510
        %v3593 = vpop.f32.mrf.mxu0
        %v3594 = vadd.f32 0.0, %v3593
        %3595 = vmatmul.f32.gmra.mxu0 %v3511
        %v3596 = vpop.f32.mrf.mxu0
        %v3597 = vadd.f32 0.0, %v3596
        %3598 = vmatmul.f32.gmra.mxu0 %v3512
        %v3599 = vpop.f32.mrf.mxu0
        %v3600 = vadd.f32 0.0, %v3599
        %3601 = vdwg.mxu0
        %3602 = vmax.xlane.f32.xlu0 %v3531
        %v3603 = vpop.xlane.xlu0 %3602
        %3604 = vmax.xlane.f32.xlu0 %v3534
        %v3605 = vpop.xlane.xlu0 %3604
        %3606 = vmax.xlane.f32.xlu0 %v3537
        %v3607 = vpop.xlane.xlu0 %3606
        %3608 = vmax.xlane.f32.xlu0 %v3540
        %v3609 = vpop.xlane.xlu0 %3608
        %3610 = vmax.xlane.f32.xlu0 %v3543
        %v3611 = vpop.xlane.xlu0 %3610
        %3612 = vmax.xlane.f32.xlu0 %v3546
        %v3613 = vpop.xlane.xlu0 %3612
        %3614 = vmax.xlane.f32.xlu0 %v3549
        %v3615 = vpop.xlane.xlu0 %3614
        %3616 = vmax.xlane.f32.xlu0 %v3552
        %v3617 = vpop.xlane.xlu0 %3616
        %3618 = vmax.xlane.f32.xlu0 %v3555
        %v3619 = vpop.xlane.xlu0 %3618
        %3620 = vmax.xlane.f32.xlu0 %v3558
        %v3621 = vpop.xlane.xlu0 %3620
        %3622 = vmax.xlane.f32.xlu0 %v3561
        %v3623 = vpop.xlane.xlu0 %3622
        %3624 = vmax.xlane.f32.xlu0 %v3564
        %v3625 = vpop.xlane.xlu0 %3624
        %3626 = vmax.xlane.f32.xlu0 %v3567
        %v3627 = vpop.xlane.xlu0 %3626
        %3628 = vmax.xlane.f32.xlu0 %v3570
        %v3629 = vpop.xlane.xlu0 %3628
        %3630 = vmax.xlane.f32.xlu0 %v3573
        %v3631 = vpop.xlane.xlu0 %3630
        %3632 = vmax.xlane.f32.xlu0 %v3576
        %v3633 = vpop.xlane.xlu0 %3632
        %3634 = vmax.xlane.f32.xlu0 %v3579
        %v3635 = vpop.xlane.xlu0 %3634
        %3636 = vmax.xlane.f32.xlu0 %v3582
        %v3637 = vpop.xlane.xlu0 %3636
        %3638 = vmax.xlane.f32.xlu0 %v3585
        %v3639 = vpop.xlane.xlu0 %3638
        %3640 = vmax.xlane.f32.xlu0 %v3588
        %v3641 = vpop.xlane.xlu0 %3640
        %3642 = vmax.xlane.f32.xlu0 %v3591
        %v3643 = vpop.xlane.xlu0 %3642
        %3644 = vmax.xlane.f32.xlu0 %v3594
        %v3645 = vpop.xlane.xlu0 %3644
        %3646 = vmax.xlane.f32.xlu0 %v3597
        %v3647 = vpop.xlane.xlu0 %3646
        %3648 = vmax.xlane.f32.xlu0 %v3600
        %v3649 = vpop.xlane.xlu0 %3648
        %v3650 = vmax.f32 %v3603, %v3605
        %v3651 = vmax.f32 %v3650, %v3607
        %v3652 = vrot.slane %v3651, 4
        %v3653 = vmax.f32 %v3651, %v3652
        %v3654 = vrot.slane %v3653, 2
        %v3655 = vmax.f32 %v3653, %v3654
        %v3656 = vrot.slane %v3655, 1
        %v3657 = vmax.f32 %v3655, %v3656
        %v3658 = vmax.f32 %v3609, %v3611
        %v3659 = vmax.f32 %v3658, %v3613
        %v3660 = vrot.slane %v3659, 4
        %v3661 = vmax.f32 %v3659, %v3660
        %v3662 = vrot.slane %v3661, 2
        %v3663 = vmax.f32 %v3661, %v3662
        %v3664 = vrot.slane %v3663, 1
        %v3665 = vmax.f32 %v3663, %v3664
        %v3666 = vmax.f32 %v3615, %v3617
        %v3667 = vmax.f32 %v3666, %v3619
        %v3668 = vrot.slane %v3667, 4
        %v3669 = vmax.f32 %v3667, %v3668
        %v3670 = vrot.slane %v3669, 2
        %v3671 = vmax.f32 %v3669, %v3670
        %v3672 = vrot.slane %v3671, 1
        %v3673 = vmax.f32 %v3671, %v3672
        %v3674 = vmax.f32 %v3621, %v3623
        %v3675 = vmax.f32 %v3674, %v3625
        %v3676 = vrot.slane %v3675, 4
        %v3677 = vmax.f32 %v3675, %v3676
        %v3678 = vrot.slane %v3677, 2
        %v3679 = vmax.f32 %v3677, %v3678
        %v3680 = vrot.slane %v3679, 1
        %v3681 = vmax.f32 %v3679, %v3680
        %v3682 = vmax.f32 %v3627, %v3629
        %v3683 = vmax.f32 %v3682, %v3631
        %v3684 = vrot.slane %v3683, 4
        %v3685 = vmax.f32 %v3683, %v3684
        %v3686 = vrot.slane %v3685, 2
        %v3687 = vmax.f32 %v3685, %v3686
        %v3688 = vrot.slane %v3687, 1
        %v3689 = vmax.f32 %v3687, %v3688
        %v3690 = vmax.f32 %v3633, %v3635
        %v3691 = vmax.f32 %v3690, %v3637
        %v3692 = vrot.slane %v3691, 4
        %v3693 = vmax.f32 %v3691, %v3692
        %v3694 = vrot.slane %v3693, 2
        %v3695 = vmax.f32 %v3693, %v3694
        %v3696 = vrot.slane %v3695, 1
        %v3697 = vmax.f32 %v3695, %v3696
        %v3698 = vmax.f32 %v3639, %v3641
        %v3699 = vmax.f32 %v3698, %v3643
        %v3700 = vrot.slane %v3699, 4
        %v3701 = vmax.f32 %v3699, %v3700
        %v3702 = vrot.slane %v3701, 2
        %v3703 = vmax.f32 %v3701, %v3702
        %v3704 = vrot.slane %v3703, 1
        %v3705 = vmax.f32 %v3703, %v3704
        %v3706 = vmax.f32 %v3645, %v3647
        %v3707 = vmax.f32 %v3706, %v3649
        %v3708 = vrot.slane %v3707, 4
        %v3709 = vmax.f32 %v3707, %v3708
        %v3710 = vrot.slane %v3709, 2
        %v3711 = vmax.f32 %v3709, %v3710
        %v3712 = vrot.slane %v3711, 1
        %v3713 = vmax.f32 %v3711, %v3712
        %v3714 = vsub.f32 %v3531, %v3657
        %v3715 = vsub.f32 %v3534, %v3657
        %v3716 = vsub.f32 %v3537, %v3657
        %v3717 = vsub.f32 %v3540, %v3665
        %v3718 = vsub.f32 %v3543, %v3665
        %v3719 = vsub.f32 %v3546, %v3665
        %v3720 = vsub.f32 %v3549, %v3673
        %v3721 = vsub.f32 %v3552, %v3673
        %v3722 = vsub.f32 %v3555, %v3673
        %v3723 = vsub.f32 %v3558, %v3681
        %v3724 = vsub.f32 %v3561, %v3681
        %v3725 = vsub.f32 %v3564, %v3681
        %v3726 = vsub.f32 %v3567, %v3689
        %v3727 = vsub.f32 %v3570, %v3689
        %v3728 = vsub.f32 %v3573, %v3689
        %v3729 = vsub.f32 %v3576, %v3697
        %v3730 = vsub.f32 %v3579, %v3697
        %v3731 = vsub.f32 %v3582, %v3697
        %v3732 = vsub.f32 %v3585, %v3705
        %v3733 = vsub.f32 %v3588, %v3705
        %v3734 = vsub.f32 %v3591, %v3705
        %v3735 = vsub.f32 %v3594, %v3713
        %v3736 = vsub.f32 %v3597, %v3713
        %v3737 = vsub.f32 %v3600, %v3713
        %v3738 = vmul.f32 %v3714, 1.442695
        %v3739 = vpow.pop %v3738
        %v3740 = vmul.f32 %v3715, 1.442695
        %v3741 = vpow.pop %v3740
        %v3742 = vmul.f32 %v3716, 1.442695
        %v3743 = vpow.pop %v3742
        %v3744 = vmul.f32 %v3717, 1.442695
        %v3745 = vpow.pop %v3744
        %v3746 = vmul.f32 %v3718, 1.442695
        %v3747 = vpow.pop %v3746
        %v3748 = vmul.f32 %v3719, 1.442695
        %v3749 = vpow.pop %v3748
        %v3750 = vmul.f32 %v3720, 1.442695
        %v3751 = vpow.pop %v3750
        %v3752 = vmul.f32 %v3721, 1.442695
        %v3753 = vpow.pop %v3752
        %v3754 = vmul.f32 %v3722, 1.442695
        %v3755 = vpow.pop %v3754
        %v3756 = vmul.f32 %v3723, 1.442695
        %v3757 = vpow.pop %v3756
        %v3758 = vmul.f32 %v3724, 1.442695
        %v3759 = vpow.pop %v3758
        %v3760 = vmul.f32 %v3725, 1.442695
        %v3761 = vpow.pop %v3760
        %v3762 = vmul.f32 %v3726, 1.442695
        %v3763 = vpow.pop %v3762
        %v3764 = vmul.f32 %v3727, 1.442695
        %v3765 = vpow.pop %v3764
        %v3766 = vmul.f32 %v3728, 1.442695
        %v3767 = vpow.pop %v3766
        %v3768 = vmul.f32 %v3729, 1.442695
        %v3769 = vpow.pop %v3768
        %v3770 = vmul.f32 %v3730, 1.442695
        %v3771 = vpow.pop %v3770
        %v3772 = vmul.f32 %v3731, 1.442695
        %v3773 = vpow.pop %v3772
        %v3774 = vmul.f32 %v3732, 1.442695
        %v3775 = vpow.pop %v3774
        %v3776 = vmul.f32 %v3733, 1.442695
        %v3777 = vpow.pop %v3776
        %v3778 = vmul.f32 %v3734, 1.442695
        %v3779 = vpow.pop %v3778
        %v3780 = vmul.f32 %v3735, 1.442695
        %v3781 = vpow.pop %v3780
        %v3782 = vmul.f32 %v3736, 1.442695
        %v3783 = vpow.pop %v3782
        %v3784 = vmul.f32 %v3737, 1.442695
        %v3785 = vpow.pop %v3784
        %v3786 = vmul.f32 %v3739, %v1990
        %v3787 = vmul.f32 %v3741, %v1991
        %v3788 = vmul.f32 %v3743, %v1992
        %v3789 = vmul.f32 %v3745, %v1993
        %v3790 = vmul.f32 %v3747, %v1994
        %v3791 = vmul.f32 %v3749, %v1995
        %v3792 = vmul.f32 %v3751, %v1996
        %v3793 = vmul.f32 %v3753, %v1997
        %v3794 = vmul.f32 %v3755, %v1998
        %v3795 = vmul.f32 %v3757, %v1999
        %v3796 = vmul.f32 %v3759, %v2000
        %v3797 = vmul.f32 %v3761, %v2001
        %v3798 = vmul.f32 %v3763, %v2002
        %v3799 = vmul.f32 %v3765, %v2003
        %v3800 = vmul.f32 %v3767, %v2004
        %v3801 = vmul.f32 %v3769, %v2005
        %v3802 = vmul.f32 %v3771, %v2006
        %v3803 = vmul.f32 %v3773, %v2007
        %v3804 = vmul.f32 %v3775, %v2008
        %v3805 = vmul.f32 %v3777, %v2009
        %v3806 = vmul.f32 %v3779, %v2010
        %v3807 = vmul.f32 %v3781, %v2011
        %v3808 = vmul.f32 %v3783, %v2012
        %v3809 = vmul.f32 %v3785, %v2013
        %3810 = vmatpush.msra.mxu0 %v3801
        %3811 = vmatpush.msra.mxu0 %v3800
        %3812 = vmatpush.msra.mxu0 %v3799
        %3813 = vmatpush.msra.mxu0 %v3798
        %3814 = vmatpush.msra.mxu0 %v3797
        %3815 = vmatpush.msra.mxu0 %v3796
        %3816 = vmatpush.msra.mxu0 %v3795
        %3817 = vmatpush.msra.mxu0 %v3794
        %3818 = vmatpush.msra.mxu0 %v3793
        %3819 = vmatpush.msra.mxu0 %v3792
        %3820 = vmatpush.msra.mxu0 %v3791
        %3821 = vmatpush.msra.mxu0 %v3790
        %3822 = vmatpush.msra.mxu0 %v3789
        %3823 = vmatpush.msra.mxu0 %v3788
        %3824 = vmatpush.msra.mxu0 %v3787
        %3825 = vmatpush.msra.mxu0 %v3786
        %3826 = vmatmul.f32.gmra.mxu0 %v939
        %v3827 = vpop.f32.mrf.mxu0
        %v3828 = vadd.f32 0.0, %v3827
        %3829 = vdwg.mxu0
        %3830 = vmatpush.msra.mxu0 0.0
        %3831 = vmatpush.msra.mxu0 0.0
        %3832 = vmatpush.msra.mxu0 0.0
        %3833 = vmatpush.msra.mxu0 0.0
        %3834 = vmatpush.msra.mxu0 0.0
        %3835 = vmatpush.msra.mxu0 0.0
        %3836 = vmatpush.msra.mxu0 0.0
        %3837 = vmatpush.msra.mxu0 0.0
        %3838 = vmatpush.msra.mxu0 %v3809
        %3839 = vmatpush.msra.mxu0 %v3808
        %3840 = vmatpush.msra.mxu0 %v3807
        %3841 = vmatpush.msra.mxu0 %v3806
        %3842 = vmatpush.msra.mxu0 %v3805
        %3843 = vmatpush.msra.mxu0 %v3804
        %3844 = vmatpush.msra.mxu0 %v3803
        %3845 = vmatpush.msra.mxu0 %v3802
        %3846 = vmatmul.f32.gmra.mxu0 %v1489
        %v3847 = vpop.f32.mrf.mxu0
        %v3848 = vadd.f32 %v3828, %v3847
        %3849 = vdwg.mxu0
        %v3850 = vmul.f32 %v3786, %v2836
        %v3851 = vmul.f32 %v3787, %v2839
        %v3852 = vmul.f32 %v3788, %v2842
        %v3853 = vmul.f32 %v3789, %v2836
        %v3854 = vmul.f32 %v3790, %v2839
        %v3855 = vmul.f32 %v3791, %v2842
        %v3856 = vmul.f32 %v3792, %v2836
        %v3857 = vmul.f32 %v3793, %v2839
        %v3858 = vmul.f32 %v3794, %v2842
        %v3859 = vmul.f32 %v3795, %v2836
        %v3860 = vmul.f32 %v3796, %v2839
        %v3861 = vmul.f32 %v3797, %v2842
        %v3862 = vmul.f32 %v3798, %v2836
        %v3863 = vmul.f32 %v3799, %v2839
        %v3864 = vmul.f32 %v3800, %v2842
        %v3865 = vmul.f32 %v3801, %v2836
        %v3866 = vmul.f32 %v3802, %v2839
        %v3867 = vmul.f32 %v3803, %v2842
        %v3868 = vmul.f32 %v3804, %v2836
        %v3869 = vmul.f32 %v3805, %v2839
        %v3870 = vmul.f32 %v3806, %v2842
        %v3871 = vmul.f32 %v3807, %v2836
        %v3872 = vmul.f32 %v3808, %v2839
        %v3873 = vmul.f32 %v3809, %v2842
        %3874 = vmatpush.msra.mxu0 %v3865
        %3875 = vmatpush.msra.mxu0 %v3864
        %3876 = vmatpush.msra.mxu0 %v3863
        %3877 = vmatpush.msra.mxu0 %v3862
        %3878 = vmatpush.msra.mxu0 %v3861
        %3879 = vmatpush.msra.mxu0 %v3860
        %3880 = vmatpush.msra.mxu0 %v3859
        %3881 = vmatpush.msra.mxu0 %v3858
        %3882 = vmatpush.msra.mxu0 %v3857
        %3883 = vmatpush.msra.mxu0 %v3856
        %3884 = vmatpush.msra.mxu0 %v3855
        %3885 = vmatpush.msra.mxu0 %v3854
        %3886 = vmatpush.msra.mxu0 %v3853
        %3887 = vmatpush.msra.mxu0 %v3852
        %3888 = vmatpush.msra.mxu0 %v3851
        %3889 = vmatpush.msra.mxu0 %v3850
        %3890 = vmatmul.f32.gmra.mxu0 %v939
        %v3891 = vpop.f32.mrf.mxu0
        %v3892 = vadd.f32 0.0, %v3891
        %3893 = vdwg.mxu0
        %3894 = vmatpush.msra.mxu0 0.0
        %3895 = vmatpush.msra.mxu0 0.0
        %3896 = vmatpush.msra.mxu0 0.0
        %3897 = vmatpush.msra.mxu0 0.0
        %3898 = vmatpush.msra.mxu0 0.0
        %3899 = vmatpush.msra.mxu0 0.0
        %3900 = vmatpush.msra.mxu0 0.0
        %3901 = vmatpush.msra.mxu0 0.0
        %3902 = vmatpush.msra.mxu0 %v3873
        %3903 = vmatpush.msra.mxu0 %v3872
        %3904 = vmatpush.msra.mxu0 %v3871
        %3905 = vmatpush.msra.mxu0 %v3870
        %3906 = vmatpush.msra.mxu0 %v3869
        %3907 = vmatpush.msra.mxu0 %v3868
        %3908 = vmatpush.msra.mxu0 %v3867
        %3909 = vmatpush.msra.mxu0 %v3866
        %3910 = vmatmul.f32.gmra.mxu0 %v1489
        %v3911 = vpop.f32.mrf.mxu0
        %v3912 = vadd.f32 %v3892, %v3911
        %3913 = vdwg.mxu0
        %v3914 = vrcp.pop %v3848
        %v3915 = vmul.f32 %v3912, %v3914
        %v3917 = vrot.slane %v2868, 1
        %v3918 = vrot.slane %v2868, 2
        %v3919 = vrot.slane %v2868, 3
        %v3920 = vrot.slane %v2868, 4
        %v3921 = vrot.slane %v2868, 5
        %v3922 = vrot.slane %v2868, 6
        %v3923 = vrot.slane %v2868, 7
        %v3924 = vperm.slane %v2868, 0
        %v3925 = vperm.slane %v3917, 0
        %v3926 = vperm.slane %v3918, 0
        %v3927 = vperm.slane %v3919, 0
        %v3928 = vperm.slane %v3920, 0
        %v3929 = vperm.slane %v3921, 0
        %v3930 = vperm.slane %v3922, 0
        %v3931 = vperm.slane %v3923, 0
        %v3940 = vadd.f32 %v3924, %v2836
        %v3941 = vadd.f32 %v3924, %v2839
        %v3942 = vadd.f32 %v3924, %v2842
        %v3943 = vadd.f32 %v3925, %v2836
        %v3944 = vadd.f32 %v3925, %v2839
        %v3945 = vadd.f32 %v3925, %v2842
        %v3946 = vadd.f32 %v3926, %v2836
        %v3947 = vadd.f32 %v3926, %v2839
        %v3948 = vadd.f32 %v3926, %v2842
        %v3949 = vadd.f32 %v3927, %v2836
        %v3950 = vadd.f32 %v3927, %v2839
        %v3951 = vadd.f32 %v3927, %v2842
        %v3952 = vadd.f32 %v3928, %v2836
        %v3953 = vadd.f32 %v3928, %v2839
        %v3954 = vadd.f32 %v3928, %v2842
        %v3955 = vadd.f32 %v3929, %v2836
        %v3956 = vadd.f32 %v3929, %v2839
        %v3957 = vadd.f32 %v3929, %v2842
        %v3958 = vadd.f32 %v3930, %v2836
        %v3959 = vadd.f32 %v3930, %v2839
        %v3960 = vadd.f32 %v3930, %v2842
        %v3961 = vadd.f32 %v3931, %v2836
        %v3962 = vadd.f32 %v3931, %v2839
        %v3963 = vadd.f32 %v3931, %v2842
        %vm3964 = vcmp.ge.f32.partialorder %v3940, 0.0
        %vm3965 = vcmp.ge.f32.partialorder %v3941, 0.0
        %vm3966 = vcmp.ge.f32.partialorder %v3942, 0.0
        %vm3967 = vcmp.ge.f32.partialorder %v3943, 0.0
        %vm3968 = vcmp.ge.f32.partialorder %v3944, 0.0
        %vm3969 = vcmp.ge.f32.partialorder %v3945, 0.0
        %vm3970 = vcmp.ge.f32.partialorder %v3946, 0.0
        %vm3971 = vcmp.ge.f32.partialorder %v3947, 0.0
        %vm3972 = vcmp.ge.f32.partialorder %v3948, 0.0
        %vm3973 = vcmp.ge.f32.partialorder %v3949, 0.0
        %vm3974 = vcmp.ge.f32.partialorder %v3950, 0.0
        %vm3975 = vcmp.ge.f32.partialorder %v3951, 0.0
        %vm3976 = vcmp.ge.f32.partialorder %v3952, 0.0
        %vm3977 = vcmp.ge.f32.partialorder %v3953, 0.0
        %vm3978 = vcmp.ge.f32.partialorder %v3954, 0.0
        %vm3979 = vcmp.ge.f32.partialorder %v3955, 0.0
        %vm3980 = vcmp.ge.f32.partialorder %v3956, 0.0
        %vm3981 = vcmp.ge.f32.partialorder %v3957, 0.0
        %vm3982 = vcmp.ge.f32.partialorder %v3958, 0.0
        %vm3983 = vcmp.ge.f32.partialorder %v3959, 0.0
        %vm3984 = vcmp.ge.f32.partialorder %v3960, 0.0
        %vm3985 = vcmp.ge.f32.partialorder %v3961, 0.0
        %vm3986 = vcmp.ge.f32.partialorder %v3962, 0.0
        %vm3987 = vcmp.ge.f32.partialorder %v3963, 0.0
        %v3988 = vmul.f32 %v3940, 0.2
        %v3989 = vmul.f32 %v3941, 0.2
        %v3990 = vmul.f32 %v3942, 0.2
        %v3991 = vmul.f32 %v3943, 0.2
        %v3992 = vmul.f32 %v3944, 0.2
        %v3993 = vmul.f32 %v3945, 0.2
        %v3994 = vmul.f32 %v3946, 0.2
        %v3995 = vmul.f32 %v3947, 0.2
        %v3996 = vmul.f32 %v3948, 0.2
        %v3997 = vmul.f32 %v3949, 0.2
        %v3998 = vmul.f32 %v3950, 0.2
        %v3999 = vmul.f32 %v3951, 0.2
        %v4000 = vmul.f32 %v3952, 0.2
        %v4001 = vmul.f32 %v3953, 0.2
        %v4002 = vmul.f32 %v3954, 0.2
        %v4003 = vmul.f32 %v3955, 0.2
        %v4004 = vmul.f32 %v3956, 0.2
        %v4005 = vmul.f32 %v3957, 0.2
        %v4006 = vmul.f32 %v3958, 0.2
        %v4007 = vmul.f32 %v3959, 0.2
        %v4008 = vmul.f32 %v3960, 0.2
        %v4009 = vmul.f32 %v3961, 0.2
        %v4010 = vmul.f32 %v3962, 0.2
        %v4011 = vmul.f32 %v3963, 0.2
        %v4012 = vsel %vm3964, %v3940, %v3988
        %v4013 = vsel %vm3965, %v3941, %v3989
        %v4014 = vsel %vm3966, %v3942, %v3990
        %v4015 = vsel %vm3967, %v3943, %v3991
        %v4016 = vsel %vm3968, %v3944, %v3992
        %v4017 = vsel %vm3969, %v3945, %v3993
        %v4018 = vsel %vm3970, %v3946, %v3994
        %v4019 = vsel %vm3971, %v3947, %v3995
        %v4020 = vsel %vm3972, %v3948, %v3996
        %v4021 = vsel %vm3973, %v3949, %v3997
        %v4022 = vsel %vm3974, %v3950, %v3998
        %v4023 = vsel %vm3975, %v3951, %v3999
        %v4024 = vsel %vm3976, %v3952, %v4000
        %v4025 = vsel %vm3977, %v3953, %v4001
        %v4026 = vsel %vm3978, %v3954, %v4002
        %v4027 = vsel %vm3979, %v3955, %v4003
        %v4028 = vsel %vm3980, %v3956, %v4004
        %v4029 = vsel %vm3981, %v3957, %v4005
        %v4030 = vsel %vm3982, %v3958, %v4006
        %v4031 = vsel %vm3983, %v3959, %v4007
        %v4032 = vsel %vm3984, %v3960, %v4008
        %v4033 = vsel %vm3985, %v3961, %v4009
        %v4034 = vsel %vm3986, %v3962, %v4010
        %v4035 = vsel %vm3987, %v3963, %v4011
        %4036 = vmatpush.msra.mxu0 %v2803
        %4037 = vmatpush.msra.mxu0 %v2802
        %4038 = vmatpush.msra.mxu0 %v2801
        %4039 = vmatpush.msra.mxu0 %v2800
        %4040 = vmatpush.msra.mxu0 %v2799
        %4041 = vmatpush.msra.mxu0 %v2798
        %4042 = vmatpush.msra.mxu0 %v2797
        %4043 = vmatpush.msra.mxu0 %v2796
        %4044 = vmatpush.msra.mxu0 %v2795
        %4045 = vmatpush.msra.mxu0 %v2794
        %4046 = vmatpush.msra.mxu0 %v2793
        %4047 = vmatpush.msra.mxu0 %v2792
        %4048 = vmatpush.msra.mxu0 %v2791
        %4049 = vmatpush.msra.mxu0 %v2790
        %4050 = vmatpush.msra.mxu0 %v2789
        %4051 = vmatpush.msra.mxu0 %v2788
        %4052 = vmatmul.f32.gmra.mxu0 %v4012
        %v4053 = vpop.f32.mrf.mxu0
        %v4054 = vadd.f32 0.0, %v4053
        %4055 = vmatmul.f32.gmra.mxu0 %v4013
        %v4056 = vpop.f32.mrf.mxu0
        %v4057 = vadd.f32 0.0, %v4056
        %4058 = vmatmul.f32.gmra.mxu0 %v4014
        %v4059 = vpop.f32.mrf.mxu0
        %v4060 = vadd.f32 0.0, %v4059
        %4061 = vmatmul.f32.gmra.mxu0 %v4015
        %v4062 = vpop.f32.mrf.mxu0
        %v4063 = vadd.f32 0.0, %v4062
        %4064 = vmatmul.f32.gmra.mxu0 %v4016
        %v4065 = vpop.f32.mrf.mxu0
        %v4066 = vadd.f32 0.0, %v4065
        %4067 = vmatmul.f32.gmra.mxu0 %v4017
        %v4068 = vpop.f32.mrf.mxu0
        %v4069 = vadd.f32 0.0, %v4068
        %4070 = vmatmul.f32.gmra.mxu0 %v4018
        %v4071 = vpop.f32.mrf.mxu0
        %v4072 = vadd.f32 0.0, %v4071
        %4073 = vmatmul.f32.gmra.mxu0 %v4019
        %v4074 = vpop.f32.mrf.mxu0
        %v4075 = vadd.f32 0.0, %v4074
        %4076 = vmatmul.f32.gmra.mxu0 %v4020
        %v4077 = vpop.f32.mrf.mxu0
        %v4078 = vadd.f32 0.0, %v4077
        %4079 = vmatmul.f32.gmra.mxu0 %v4021
        %v4080 = vpop.f32.mrf.mxu0
        %v4081 = vadd.f32 0.0, %v4080
        %4082 = vmatmul.f32.gmra.mxu0 %v4022
        %v4083 = vpop.f32.mrf.mxu0
        %v4084 = vadd.f32 0.0, %v4083
        %4085 = vmatmul.f32.gmra.mxu0 %v4023
        %v4086 = vpop.f32.mrf.mxu0
        %v4087 = vadd.f32 0.0, %v4086
        %4088 = vmatmul.f32.gmra.mxu0 %v4024
        %v4089 = vpop.f32.mrf.mxu0
        %v4090 = vadd.f32 0.0, %v4089
        %4091 = vmatmul.f32.gmra.mxu0 %v4025
        %v4092 = vpop.f32.mrf.mxu0
        %v4093 = vadd.f32 0.0, %v4092
        %4094 = vmatmul.f32.gmra.mxu0 %v4026
        %v4095 = vpop.f32.mrf.mxu0
        %v4096 = vadd.f32 0.0, %v4095
        %4097 = vmatmul.f32.gmra.mxu0 %v4027
        %v4098 = vpop.f32.mrf.mxu0
        %v4099 = vadd.f32 0.0, %v4098
        %4100 = vmatmul.f32.gmra.mxu0 %v4028
        %v4101 = vpop.f32.mrf.mxu0
        %v4102 = vadd.f32 0.0, %v4101
        %4103 = vmatmul.f32.gmra.mxu0 %v4029
        %v4104 = vpop.f32.mrf.mxu0
        %v4105 = vadd.f32 0.0, %v4104
        %4106 = vmatmul.f32.gmra.mxu0 %v4030
        %v4107 = vpop.f32.mrf.mxu0
        %v4108 = vadd.f32 0.0, %v4107
        %4109 = vmatmul.f32.gmra.mxu0 %v4031
        %v4110 = vpop.f32.mrf.mxu0
        %v4111 = vadd.f32 0.0, %v4110
        %4112 = vmatmul.f32.gmra.mxu0 %v4032
        %v4113 = vpop.f32.mrf.mxu0
        %v4114 = vadd.f32 0.0, %v4113
        %4115 = vmatmul.f32.gmra.mxu0 %v4033
        %v4116 = vpop.f32.mrf.mxu0
        %v4117 = vadd.f32 0.0, %v4116
        %4118 = vmatmul.f32.gmra.mxu0 %v4034
        %v4119 = vpop.f32.mrf.mxu0
        %v4120 = vadd.f32 0.0, %v4119
        %4121 = vmatmul.f32.gmra.mxu0 %v4035
        %v4122 = vpop.f32.mrf.mxu0
        %v4123 = vadd.f32 0.0, %v4122
        %4124 = vdwg.mxu0
        %4125 = vmax.xlane.f32.xlu0 %v4054
        %v4126 = vpop.xlane.xlu0 %4125
        %4127 = vmax.xlane.f32.xlu0 %v4057
        %v4128 = vpop.xlane.xlu0 %4127
        %4129 = vmax.xlane.f32.xlu0 %v4060
        %v4130 = vpop.xlane.xlu0 %4129
        %4131 = vmax.xlane.f32.xlu0 %v4063
        %v4132 = vpop.xlane.xlu0 %4131
        %4133 = vmax.xlane.f32.xlu0 %v4066
        %v4134 = vpop.xlane.xlu0 %4133
        %4135 = vmax.xlane.f32.xlu0 %v4069
        %v4136 = vpop.xlane.xlu0 %4135
        %4137 = vmax.xlane.f32.xlu0 %v4072
        %v4138 = vpop.xlane.xlu0 %4137
        %4139 = vmax.xlane.f32.xlu0 %v4075
        %v4140 = vpop.xlane.xlu0 %4139
        %4141 = vmax.xlane.f32.xlu0 %v4078
        %v4142 = vpop.xlane.xlu0 %4141
        %4143 = vmax.xlane.f32.xlu0 %v4081
        %v4144 = vpop.xlane.xlu0 %4143
        %4145 = vmax.xlane.f32.xlu0 %v4084
        %v4146 = vpop.xlane.xlu0 %4145
        %4147 = vmax.xlane.f32.xlu0 %v4087
        %v4148 = vpop.xlane.xlu0 %4147
        %4149 = vmax.xlane.f32.xlu0 %v4090
        %v4150 = vpop.xlane.xlu0 %4149
        %4151 = vmax.xlane.f32.xlu0 %v4093
        %v4152 = vpop.xlane.xlu0 %4151
        %4153 = vmax.xlane.f32.xlu0 %v4096
        %v4154 = vpop.xlane.xlu0 %4153
        %4155 = vmax.xlane.f32.xlu0 %v4099
        %v4156 = vpop.xlane.xlu0 %4155
        %4157 = vmax.xlane.f32.xlu0 %v4102
        %v4158 = vpop.xlane.xlu0 %4157
        %4159 = vmax.xlane.f32.xlu0 %v4105
        %v4160 = vpop.xlane.xlu0 %4159
        %4161 = vmax.xlane.f32.xlu0 %v4108
        %v4162 = vpop.xlane.xlu0 %4161
        %4163 = vmax.xlane.f32.xlu0 %v4111
        %v4164 = vpop.xlane.xlu0 %4163
        %4165 = vmax.xlane.f32.xlu0 %v4114
        %v4166 = vpop.xlane.xlu0 %4165
        %4167 = vmax.xlane.f32.xlu0 %v4117
        %v4168 = vpop.xlane.xlu0 %4167
        %4169 = vmax.xlane.f32.xlu0 %v4120
        %v4170 = vpop.xlane.xlu0 %4169
        %4171 = vmax.xlane.f32.xlu0 %v4123
        %v4172 = vpop.xlane.xlu0 %4171
        %v4173 = vmax.f32 %v4126, %v4128
        %v4174 = vmax.f32 %v4173, %v4130
        %v4175 = vrot.slane %v4174, 4
        %v4176 = vmax.f32 %v4174, %v4175
        %v4177 = vrot.slane %v4176, 2
        %v4178 = vmax.f32 %v4176, %v4177
        %v4179 = vrot.slane %v4178, 1
        %v4180 = vmax.f32 %v4178, %v4179
        %v4181 = vmax.f32 %v4132, %v4134
        %v4182 = vmax.f32 %v4181, %v4136
        %v4183 = vrot.slane %v4182, 4
        %v4184 = vmax.f32 %v4182, %v4183
        %v4185 = vrot.slane %v4184, 2
        %v4186 = vmax.f32 %v4184, %v4185
        %v4187 = vrot.slane %v4186, 1
        %v4188 = vmax.f32 %v4186, %v4187
        %v4189 = vmax.f32 %v4138, %v4140
        %v4190 = vmax.f32 %v4189, %v4142
        %v4191 = vrot.slane %v4190, 4
        %v4192 = vmax.f32 %v4190, %v4191
        %v4193 = vrot.slane %v4192, 2
        %v4194 = vmax.f32 %v4192, %v4193
        %v4195 = vrot.slane %v4194, 1
        %v4196 = vmax.f32 %v4194, %v4195
        %v4197 = vmax.f32 %v4144, %v4146
        %v4198 = vmax.f32 %v4197, %v4148
        %v4199 = vrot.slane %v4198, 4
        %v4200 = vmax.f32 %v4198, %v4199
        %v4201 = vrot.slane %v4200, 2
        %v4202 = vmax.f32 %v4200, %v4201
        %v4203 = vrot.slane %v4202, 1
        %v4204 = vmax.f32 %v4202, %v4203
        %v4205 = vmax.f32 %v4150, %v4152
        %v4206 = vmax.f32 %v4205, %v4154
        %v4207 = vrot.slane %v4206, 4
        %v4208 = vmax.f32 %v4206, %v4207
        %v4209 = vrot.slane %v4208, 2
        %v4210 = vmax.f32 %v4208, %v4209
        %v4211 = vrot.slane %v4210, 1
        %v4212 = vmax.f32 %v4210, %v4211
        %v4213 = vmax.f32 %v4156, %v4158
        %v4214 = vmax.f32 %v4213, %v4160
        %v4215 = vrot.slane %v4214, 4
        %v4216 = vmax.f32 %v4214, %v4215
        %v4217 = vrot.slane %v4216, 2
        %v4218 = vmax.f32 %v4216, %v4217
        %v4219 = vrot.slane %v4218, 1
        %v4220 = vmax.f32 %v4218, %v4219
        %v4221 = vmax.f32 %v4162, %v4164
        %v4222 = vmax.f32 %v4221, %v4166
        %v4223 = vrot.slane %v4222, 4
        %v4224 = vmax.f32 %v4222, %v4223
        %v4225 = vrot.slane %v4224, 2
        %v4226 = vmax.f32 %v4224, %v4225
        %v4227 = vrot.slane %v4226, 1
        %v4228 = vmax.f32 %v4226, %v4227
        %v4229 = vmax.f32 %v4168, %v4170
        %v4230 = vmax.f32 %v4229, %v4172
        %v4231 = vrot.slane %v4230, 4
        %v4232 = vmax.f32 %v4230, %v4231
        %v4233 = vrot.slane %v4232, 2
        %v4234 = vmax.f32 %v4232, %v4233
        %v4235 = vrot.slane %v4234, 1
        %v4236 = vmax.f32 %v4234, %v4235
        %v4237 = vsub.f32 %v4054, %v4180
        %v4238 = vsub.f32 %v4057, %v4180
        %v4239 = vsub.f32 %v4060, %v4180
        %v4240 = vsub.f32 %v4063, %v4188
        %v4241 = vsub.f32 %v4066, %v4188
        %v4242 = vsub.f32 %v4069, %v4188
        %v4243 = vsub.f32 %v4072, %v4196
        %v4244 = vsub.f32 %v4075, %v4196
        %v4245 = vsub.f32 %v4078, %v4196
        %v4246 = vsub.f32 %v4081, %v4204
        %v4247 = vsub.f32 %v4084, %v4204
        %v4248 = vsub.f32 %v4087, %v4204
        %v4249 = vsub.f32 %v4090, %v4212
        %v4250 = vsub.f32 %v4093, %v4212
        %v4251 = vsub.f32 %v4096, %v4212
        %v4252 = vsub.f32 %v4099, %v4220
        %v4253 = vsub.f32 %v4102, %v4220
        %v4254 = vsub.f32 %v4105, %v4220
        %v4255 = vsub.f32 %v4108, %v4228
        %v4256 = vsub.f32 %v4111, %v4228
        %v4257 = vsub.f32 %v4114, %v4228
        %v4258 = vsub.f32 %v4117, %v4236
        %v4259 = vsub.f32 %v4120, %v4236
        %v4260 = vsub.f32 %v4123, %v4236
        %v4261 = vmul.f32 %v4237, 1.442695
        %v4262 = vpow.pop %v4261
        %v4263 = vmul.f32 %v4238, 1.442695
        %v4264 = vpow.pop %v4263
        %v4265 = vmul.f32 %v4239, 1.442695
        %v4266 = vpow.pop %v4265
        %v4267 = vmul.f32 %v4240, 1.442695
        %v4268 = vpow.pop %v4267
        %v4269 = vmul.f32 %v4241, 1.442695
        %v4270 = vpow.pop %v4269
        %v4271 = vmul.f32 %v4242, 1.442695
        %v4272 = vpow.pop %v4271
        %v4273 = vmul.f32 %v4243, 1.442695
        %v4274 = vpow.pop %v4273
        %v4275 = vmul.f32 %v4244, 1.442695
        %v4276 = vpow.pop %v4275
        %v4277 = vmul.f32 %v4245, 1.442695
        %v4278 = vpow.pop %v4277
        %v4279 = vmul.f32 %v4246, 1.442695
        %v4280 = vpow.pop %v4279
        %v4281 = vmul.f32 %v4247, 1.442695
        %v4282 = vpow.pop %v4281
        %v4283 = vmul.f32 %v4248, 1.442695
        %v4284 = vpow.pop %v4283
        %v4285 = vmul.f32 %v4249, 1.442695
        %v4286 = vpow.pop %v4285
        %v4287 = vmul.f32 %v4250, 1.442695
        %v4288 = vpow.pop %v4287
        %v4289 = vmul.f32 %v4251, 1.442695
        %v4290 = vpow.pop %v4289
        %v4291 = vmul.f32 %v4252, 1.442695
        %v4292 = vpow.pop %v4291
        %v4293 = vmul.f32 %v4253, 1.442695
        %v4294 = vpow.pop %v4293
        %v4295 = vmul.f32 %v4254, 1.442695
        %v4296 = vpow.pop %v4295
        %v4297 = vmul.f32 %v4255, 1.442695
        %v4298 = vpow.pop %v4297
        %v4299 = vmul.f32 %v4256, 1.442695
        %v4300 = vpow.pop %v4299
        %v4301 = vmul.f32 %v4257, 1.442695
        %v4302 = vpow.pop %v4301
        %v4303 = vmul.f32 %v4258, 1.442695
        %v4304 = vpow.pop %v4303
        %v4305 = vmul.f32 %v4259, 1.442695
        %v4306 = vpow.pop %v4305
        %v4307 = vmul.f32 %v4260, 1.442695
        %v4308 = vpow.pop %v4307
        %v4309 = vmul.f32 %v4262, %v2537
        %v4310 = vmul.f32 %v4264, %v2538
        %v4311 = vmul.f32 %v4266, %v2539
        %v4312 = vmul.f32 %v4268, %v2540
        %v4313 = vmul.f32 %v4270, %v2541
        %v4314 = vmul.f32 %v4272, %v2542
        %v4315 = vmul.f32 %v4274, %v2543
        %v4316 = vmul.f32 %v4276, %v2544
        %v4317 = vmul.f32 %v4278, %v2545
        %v4318 = vmul.f32 %v4280, %v2546
        %v4319 = vmul.f32 %v4282, %v2547
        %v4320 = vmul.f32 %v4284, %v2548
        %v4321 = vmul.f32 %v4286, %v2549
        %v4322 = vmul.f32 %v4288, %v2550
        %v4323 = vmul.f32 %v4290, %v2551
        %v4324 = vmul.f32 %v4292, %v2552
        %v4325 = vmul.f32 %v4294, %v2553
        %v4326 = vmul.f32 %v4296, %v2554
        %v4327 = vmul.f32 %v4298, %v2555
        %v4328 = vmul.f32 %v4300, %v2556
        %v4329 = vmul.f32 %v4302, %v2557
        %v4330 = vmul.f32 %v4304, %v2558
        %v4331 = vmul.f32 %v4306, %v2559
        %v4332 = vmul.f32 %v4308, %v2560
        %4333 = vmatpush.msra.mxu0 %v4324
        %4334 = vmatpush.msra.mxu0 %v4323
        %4335 = vmatpush.msra.mxu0 %v4322
        %4336 = vmatpush.msra.mxu0 %v4321
        %4337 = vmatpush.msra.mxu0 %v4320
        %4338 = vmatpush.msra.mxu0 %v4319
        %4339 = vmatpush.msra.mxu0 %v4318
        %4340 = vmatpush.msra.mxu0 %v4317
        %4341 = vmatpush.msra.mxu0 %v4316
        %4342 = vmatpush.msra.mxu0 %v4315
        %4343 = vmatpush.msra.mxu0 %v4314
        %4344 = vmatpush.msra.mxu0 %v4313
        %4345 = vmatpush.msra.mxu0 %v4312
        %4346 = vmatpush.msra.mxu0 %v4311
        %4347 = vmatpush.msra.mxu0 %v4310
        %4348 = vmatpush.msra.mxu0 %v4309
        %4349 = vmatmul.f32.gmra.mxu0 %v939
        %v4350 = vpop.f32.mrf.mxu0
        %v4351 = vadd.f32 0.0, %v4350
        %4352 = vdwg.mxu0
        %4353 = vmatpush.msra.mxu0 0.0
        %4354 = vmatpush.msra.mxu0 0.0
        %4355 = vmatpush.msra.mxu0 0.0
        %4356 = vmatpush.msra.mxu0 0.0
        %4357 = vmatpush.msra.mxu0 0.0
        %4358 = vmatpush.msra.mxu0 0.0
        %4359 = vmatpush.msra.mxu0 0.0
        %4360 = vmatpush.msra.mxu0 0.0
        %4361 = vmatpush.msra.mxu0 %v4332
        %4362 = vmatpush.msra.mxu0 %v4331
        %4363 = vmatpush.msra.mxu0 %v4330
        %4364 = vmatpush.msra.mxu0 %v4329
        %4365 = vmatpush.msra.mxu0 %v4328
        %4366 = vmatpush.msra.mxu0 %v4327
        %4367 = vmatpush.msra.mxu0 %v4326
        %4368 = vmatpush.msra.mxu0 %v4325
        %4369 = vmatmul.f32.gmra.mxu0 %v1489
        %v4370 = vpop.f32.mrf.mxu0
        %v4371 = vadd.f32 %v4351, %v4370
        %4372 = vdwg.mxu0
        %v4373 = vmul.f32 %v4309, %v2836
        %v4374 = vmul.f32 %v4310, %v2839
        %v4375 = vmul.f32 %v4311, %v2842
        %v4376 = vmul.f32 %v4312, %v2836
        %v4377 = vmul.f32 %v4313, %v2839
        %v4378 = vmul.f32 %v4314, %v2842
        %v4379 = vmul.f32 %v4315, %v2836
        %v4380 = vmul.f32 %v4316, %v2839
        %v4381 = vmul.f32 %v4317, %v2842
        %v4382 = vmul.f32 %v4318, %v2836
        %v4383 = vmul.f32 %v4319, %v2839
        %v4384 = vmul.f32 %v4320, %v2842
        %v4385 = vmul.f32 %v4321, %v2836
        %v4386 = vmul.f32 %v4322, %v2839
        %v4387 = vmul.f32 %v4323, %v2842
        %v4388 = vmul.f32 %v4324, %v2836
        %v4389 = vmul.f32 %v4325, %v2839
        %v4390 = vmul.f32 %v4326, %v2842
        %v4391 = vmul.f32 %v4327, %v2836
        %v4392 = vmul.f32 %v4328, %v2839
        %v4393 = vmul.f32 %v4329, %v2842
        %v4394 = vmul.f32 %v4330, %v2836
        %v4395 = vmul.f32 %v4331, %v2839
        %v4396 = vmul.f32 %v4332, %v2842
        %4397 = vmatpush.msra.mxu0 %v4388
        %4398 = vmatpush.msra.mxu0 %v4387
        %4399 = vmatpush.msra.mxu0 %v4386
        %4400 = vmatpush.msra.mxu0 %v4385
        %4401 = vmatpush.msra.mxu0 %v4384
        %4402 = vmatpush.msra.mxu0 %v4383
        %4403 = vmatpush.msra.mxu0 %v4382
        %4404 = vmatpush.msra.mxu0 %v4381
        %4405 = vmatpush.msra.mxu0 %v4380
        %4406 = vmatpush.msra.mxu0 %v4379
        %4407 = vmatpush.msra.mxu0 %v4378
        %4408 = vmatpush.msra.mxu0 %v4377
        %4409 = vmatpush.msra.mxu0 %v4376
        %4410 = vmatpush.msra.mxu0 %v4375
        %4411 = vmatpush.msra.mxu0 %v4374
        %4412 = vmatpush.msra.mxu0 %v4373
        %4413 = vmatmul.f32.gmra.mxu0 %v939
        %v4414 = vpop.f32.mrf.mxu0
        %v4415 = vadd.f32 0.0, %v4414
        %4416 = vdwg.mxu0
        %4417 = vmatpush.msra.mxu0 0.0
        %4418 = vmatpush.msra.mxu0 0.0
        %4419 = vmatpush.msra.mxu0 0.0
        %4420 = vmatpush.msra.mxu0 0.0
        %4421 = vmatpush.msra.mxu0 0.0
        %4422 = vmatpush.msra.mxu0 0.0
        %4423 = vmatpush.msra.mxu0 0.0
        %4424 = vmatpush.msra.mxu0 0.0
        %4425 = vmatpush.msra.mxu0 %v4396
        %4426 = vmatpush.msra.mxu0 %v4395
        %4427 = vmatpush.msra.mxu0 %v4394
        %4428 = vmatpush.msra.mxu0 %v4393
        %4429 = vmatpush.msra.mxu0 %v4392
        %4430 = vmatpush.msra.mxu0 %v4391
        %4431 = vmatpush.msra.mxu0 %v4390
        %4432 = vmatpush.msra.mxu0 %v4389
        %4433 = vmatmul.f32.gmra.mxu0 %v1489
        %v4434 = vpop.f32.mrf.mxu0
        %v4435 = vadd.f32 %v4415, %v4434
        %4436 = vdwg.mxu0
        %v4437 = vrcp.pop %v4371
        %v4438 = vmul.f32 %v4435, %v4437
        %v4439 = vperm.slane %v2805, 1
        %4440 = vmatpush.msra.mxu0 %v956
        %4441 = vmatpush.msra.mxu0 %v955
        %4442 = vmatpush.msra.mxu0 %v954
        %4443 = vmatpush.msra.mxu0 %v953
        %4444 = vmatpush.msra.mxu0 %v952
        %4445 = vmatpush.msra.mxu0 %v951
        %4446 = vmatpush.msra.mxu0 %v950
        %4447 = vmatpush.msra.mxu0 %v949
        %4448 = vmatpush.msra.mxu0 %v948
        %4449 = vmatpush.msra.mxu0 %v947
        %4450 = vmatpush.msra.mxu0 %v946
        %4451 = vmatpush.msra.mxu0 %v945
        %4452 = vmatpush.msra.mxu0 %v944
        %4453 = vmatpush.msra.mxu0 %v943
        %4454 = vmatpush.msra.mxu0 %v942
        %4455 = vmatpush.msra.mxu0 %v941
        %4456 = vmatmul.f32.gmra.mxu0 %v3392
        %v4457 = vpop.f32.mrf.mxu0
        %v4458 = vadd.f32 %v4439, %v4457
        %4459 = vmatmul.f32.gmra.mxu0 %v3915
        %v4460 = vpop.f32.mrf.mxu0
        %v4461 = vadd.f32 %v4439, %v4460
        %4462 = vmatmul.f32.gmra.mxu0 %v4438
        %v4463 = vpop.f32.mrf.mxu0
        %v4464 = vadd.f32 %v4439, %v4463
        %4465 = vdwg.mxu0
        %v4466 = vmul.f32 %v4458, %v936
        %v4467 = vmul.f32 %v4461, %v937
        %v4468 = vmul.f32 %v4464, %v938
        %v4469 = vsel %vm985, %v4466, 0.0
        %v4470 = vsel %vm985, %v4467, 0.0
        %v4471 = vadd.f32 %v4469, %v4470
        %v4472 = vsel %vm985, %v4468, 0.0
        %v4473 = vadd.f32 %v4471, %v4472
        %v4474 = vrot.slane %v4473, 4
        %v4475 = vadd.f32 %v4473, %v4474
        %v4476 = vrot.slane %v4475, 2
        %v4477 = vadd.f32 %v4475, %v4476
        %v4478 = vrot.slane %v4477, 1
        %v4479 = vadd.f32 %v4477, %v4478
        %v4480 = vmul.f32 %v4479, 0.05
        %v4481 = vmul.f32 %v2805, %v4480
        %v4482 = vperm.slane %v4481, 4
        %v4483 = vsub.f32 %v4458, %v4482
        %v4484 = vsub.f32 %v4461, %v4482
        %v4485 = vsub.f32 %v4464, %v4482
        %v4486 = vmul.f32 %v4483, %v4483
        %v4487 = vmul.f32 %v4484, %v4484
        %v4488 = vmul.f32 %v4485, %v4485
        %v4489 = vmul.f32 %v4486, %v936
        %v4490 = vmul.f32 %v4487, %v937
        %v4491 = vmul.f32 %v4488, %v938
        %v4492 = vsel %vm985, %v4489, 0.0
        %v4493 = vsel %vm985, %v4490, 0.0
        %v4494 = vadd.f32 %v4492, %v4493
        %v4495 = vsel %vm985, %v4491, 0.0
        %v4496 = vadd.f32 %v4494, %v4495
        %v4497 = vrot.slane %v4496, 4
        %v4498 = vadd.f32 %v4496, %v4497
        %v4499 = vrot.slane %v4498, 2
        %v4500 = vadd.f32 %v4498, %v4499
        %v4501 = vrot.slane %v4500, 1
        %v4502 = vadd.f32 %v4500, %v4501
        %v4503 = vmul.f32 %v4502, 0.05
        %v4504 = vadd.f32 %v4503, 1e-05
        %v4505 = vrsqrt.pop %v4504
        %v4506 = vmul.f32 %v4505, %v4504
        %v4507 = vmul.f32 %v4506, %v4505
        %v4508 = vmul.f32 0.5, %v4507
        %v4509 = vsub.f32 1.5, %v4508
        %v4510 = vmul.f32 %v4505, %v4509
        %vm4511 = vweird.f32 %v4504
        %vm4512 = vweird.f32 %v4505
        %vm4513 = vmor %vm4511, %vm4512
        %v4514 = vsel %vm4513, %v4505, %v4510
        %v4515 = vmul.f32 %v4483, %v4514
        %v4516 = vmul.f32 %v4484, %v4514
        %v4517 = vmul.f32 %v4485, %v4514
        %v4518 = vperm.slane %v2805, 2
        %v4519 = vmul.f32 %v4515, %v4518
        %v4520 = vmul.f32 %v4516, %v4518
        %v4521 = vmul.f32 %v4517, %v4518
        %v4522 = vperm.slane %v2805, 3
        %v4523 = vadd.f32 %v4519, %v4522
        %v4524 = vadd.f32 %v4520, %v4522
        %v4525 = vadd.f32 %v4521, %v4522
        %s4526 = scalar_lea.vmem [#allocation8], 128
        %v4527 = vld [vmem:[%s4526] sm:$0xff]
        %v4528 = vld [vmem:[%s4526 + $0x8] sm:$0xff]
        %v4529 = vld [vmem:[%s4526 + $0x10] sm:$0xff]
        %v4530 = vld [vmem:[%s4526 + $0x18] sm:$0xff]
        %v4531 = vld [vmem:[%s4526 + $0x20] sm:$0xff]
        %v4532 = vld [vmem:[%s4526 + $0x28] sm:$0xff]
        %v4533 = vld [vmem:[%s4526 + $0x30] sm:$0xff]
        %v4534 = vld [vmem:[%s4526 + $0x38] sm:$0xff]
        %s4535 = scalar_lea.vmem [#allocation10], 256
        %v4536 = vld [vmem:[%s4535] sm:$0xff]
        %v4537 = vld [vmem:[%s4535 + $0x8] sm:$0xff]
        %v4538 = vld [vmem:[%s4535 + $0x10] sm:$0xff]
        %v4539 = vld [vmem:[%s4535 + $0x18] sm:$0xff]
        %v4540 = vld [vmem:[%s4535 + $0x20] sm:$0xff]
        %v4541 = vld [vmem:[%s4535 + $0x28] sm:$0xff]
        %v4542 = vld [vmem:[%s4535 + $0x30] sm:$0xff]
        %v4543 = vld [vmem:[%s4535 + $0x38] sm:$0xff]
        %v4544 = vld [vmem:[%s4535 + $0x40] sm:$0xff]
        %v4545 = vld [vmem:[%s4535 + $0x48] sm:$0xff]
        %v4546 = vld [vmem:[%s4535 + $0x50] sm:$0xff]
        %v4547 = vld [vmem:[%s4535 + $0x58] sm:$0xff]
        %v4548 = vld [vmem:[%s4535 + $0x60] sm:$0xff]
        %v4549 = vld [vmem:[%s4535 + $0x68] sm:$0xff]
        %v4550 = vld [vmem:[%s4535 + $0x70] sm:$0xff]
        %v4551 = vld [vmem:[%s4535 + $0x78] sm:$0xff]
        %s4552 = scalar_lea.vmem %s10, 32
        %v4553 = vld [vmem:[%s4552] sm:$0x1f]
        %v4554 = vld [vmem:[%s4552 + $0x8] sm:$0x1f]
        %v4555 = vperm.slane %v4553, 0
        %v4556 = vperm.slane %v4554, 0
        %v4558 = vsel %vm985, %v4523, 0
        %v4561 = vsel %vm985, %v4524, 0
        %v4564 = vsel %vm985, %v4525, 0
        %4566 = vmatpush.msra.mxu0 0.0
        %4567 = vmatpush.msra.mxu0 0.0
        %4568 = vmatpush.msra.mxu0 0.0
        %4569 = vmatpush.msra.mxu0 0.0
        %4570 = vmatpush.msra.mxu0 0.0
        %4571 = vmatpush.msra.mxu0 0.0
        %4572 = vmatpush.msra.mxu0 0.0
        %4573 = vmatpush.msra.mxu0 0.0
        %4574 = vmatpush.msra.mxu0 0.0
        %4575 = vmatpush.msra.mxu0 0.0
        %4576 = vmatpush.msra.mxu0 0.0
        %4577 = vmatpush.msra.mxu0 0.0
        %4578 = vmatpush.msra.mxu0 %v4533
        %4579 = vmatpush.msra.mxu0 %v4531
        %4580 = vmatpush.msra.mxu0 %v4529
        %4581 = vmatpush.msra.mxu0 %v4527
        %4582 = vmatmul.f32.gmra.mxu0 %v4558
        %v4583 = vpop.f32.mrf.mxu0
        %v4584 = vadd.f32 %v4555, %v4583
        %4585 = vmatmul.f32.gmra.mxu0 %v4561
        %v4586 = vpop.f32.mrf.mxu0
        %v4587 = vadd.f32 %v4555, %v4586
        %4588 = vmatmul.f32.gmra.mxu0 %v4564
        %v4589 = vpop.f32.mrf.mxu0
        %v4590 = vadd.f32 %v4555, %v4589
        %4591 = vdwg.mxu0
        %4592 = vmatpush.msra.mxu0 0.0
        %4593 = vmatpush.msra.mxu0 0.0
        %4594 = vmatpush.msra.mxu0 0.0
        %4595 = vmatpush.msra.mxu0 0.0
        %4596 = vmatpush.msra.mxu0 0.0
        %4597 = vmatpush.msra.mxu0 0.0
        %4598 = vmatpush.msra.mxu0 0.0
        %4599 = vmatpush.msra.mxu0 0.0
        %4600 = vmatpush.msra.mxu0 0.0
        %4601 = vmatpush.msra.mxu0 0.0
        %4602 = vmatpush.msra.mxu0 0.0
        %4603 = vmatpush.msra.mxu0 0.0
        %4604 = vmatpush.msra.mxu0 %v4534
        %4605 = vmatpush.msra.mxu0 %v4532
        %4606 = vmatpush.msra.mxu0 %v4530
        %4607 = vmatpush.msra.mxu0 %v4528
        %4608 = vmatmul.f32.gmra.mxu0 %v4558
        %v4609 = vpop.f32.mrf.mxu0
        %v4610 = vadd.f32 %v4556, %v4609
        %4611 = vmatmul.f32.gmra.mxu0 %v4561
        %v4612 = vpop.f32.mrf.mxu0
        %v4613 = vadd.f32 %v4556, %v4612
        %4614 = vmatmul.f32.gmra.mxu0 %v4564
        %v4615 = vpop.f32.mrf.mxu0
        %v4616 = vadd.f32 %v4556, %v4615
        %4617 = vdwg.mxu0
        %v4619 = vrot.slane %v4610, 1
        %v4620 = vrot.slane %v4610, 2
        %v4621 = vrot.slane %v4610, 3
        %v4622 = vrot.slane %v4610, 4
        %v4623 = vrot.slane %v4610, 5
        %v4624 = vrot.slane %v4610, 6
        %v4625 = vrot.slane %v4610, 7
        %v4626 = vperm.slane %v4610, 0
        %v4627 = vperm.slane %v4619, 0
        %v4628 = vperm.slane %v4620, 0
        %v4629 = vperm.slane %v4621, 0
        %v4630 = vperm.slane %v4622, 0
        %v4631 = vperm.slane %v4623, 0
        %v4632 = vperm.slane %v4624, 0
        %v4633 = vperm.slane %v4625, 0
        %v4642 = vadd.f32 %v4626, %v4584
        %v4643 = vadd.f32 %v4626, %v4587
        %v4644 = vadd.f32 %v4626, %v4590
        %v4645 = vadd.f32 %v4627, %v4584
        %v4646 = vadd.f32 %v4627, %v4587
        %v4647 = vadd.f32 %v4627, %v4590
        %v4648 = vadd.f32 %v4628, %v4584
        %v4649 = vadd.f32 %v4628, %v4587
        %v4650 = vadd.f32 %v4628, %v4590
        %v4651 = vadd.f32 %v4629, %v4584
        %v4652 = vadd.f32 %v4629, %v4587
        %v4653 = vadd.f32 %v4629, %v4590
        %v4654 = vadd.f32 %v4630, %v4584
        %v4655 = vadd.f32 %v4630, %v4587
        %v4656 = vadd.f32 %v4630, %v4590
        %v4657 = vadd.f32 %v4631, %v4584
        %v4658 = vadd.f32 %v4631, %v4587
        %v4659 = vadd.f32 %v4631, %v4590
        %v4660 = vadd.f32 %v4632, %v4584
        %v4661 = vadd.f32 %v4632, %v4587
        %v4662 = vadd.f32 %v4632, %v4590
        %v4663 = vadd.f32 %v4633, %v4584
        %v4664 = vadd.f32 %v4633, %v4587
        %v4665 = vadd.f32 %v4633, %v4590
        %vm4666 = vcmp.ge.f32.partialorder %v4642, 0.0
        %vm4667 = vcmp.ge.f32.partialorder %v4643, 0.0
        %vm4668 = vcmp.ge.f32.partialorder %v4644, 0.0
        %vm4669 = vcmp.ge.f32.partialorder %v4645, 0.0
        %vm4670 = vcmp.ge.f32.partialorder %v4646, 0.0
        %vm4671 = vcmp.ge.f32.partialorder %v4647, 0.0
        %vm4672 = vcmp.ge.f32.partialorder %v4648, 0.0
        %vm4673 = vcmp.ge.f32.partialorder %v4649, 0.0
        %vm4674 = vcmp.ge.f32.partialorder %v4650, 0.0
        %vm4675 = vcmp.ge.f32.partialorder %v4651, 0.0
        %vm4676 = vcmp.ge.f32.partialorder %v4652, 0.0
        %vm4677 = vcmp.ge.f32.partialorder %v4653, 0.0
        %vm4678 = vcmp.ge.f32.partialorder %v4654, 0.0
        %vm4679 = vcmp.ge.f32.partialorder %v4655, 0.0
        %vm4680 = vcmp.ge.f32.partialorder %v4656, 0.0
        %vm4681 = vcmp.ge.f32.partialorder %v4657, 0.0
        %vm4682 = vcmp.ge.f32.partialorder %v4658, 0.0
        %vm4683 = vcmp.ge.f32.partialorder %v4659, 0.0
        %vm4684 = vcmp.ge.f32.partialorder %v4660, 0.0
        %vm4685 = vcmp.ge.f32.partialorder %v4661, 0.0
        %vm4686 = vcmp.ge.f32.partialorder %v4662, 0.0
        %vm4687 = vcmp.ge.f32.partialorder %v4663, 0.0
        %vm4688 = vcmp.ge.f32.partialorder %v4664, 0.0
        %vm4689 = vcmp.ge.f32.partialorder %v4665, 0.0
        %v4690 = vmul.f32 %v4642, 0.2
        %v4691 = vmul.f32 %v4643, 0.2
        %v4692 = vmul.f32 %v4644, 0.2
        %v4693 = vmul.f32 %v4645, 0.2
        %v4694 = vmul.f32 %v4646, 0.2
        %v4695 = vmul.f32 %v4647, 0.2
        %v4696 = vmul.f32 %v4648, 0.2
        %v4697 = vmul.f32 %v4649, 0.2
        %v4698 = vmul.f32 %v4650, 0.2
        %v4699 = vmul.f32 %v4651, 0.2
        %v4700 = vmul.f32 %v4652, 0.2
        %v4701 = vmul.f32 %v4653, 0.2
        %v4702 = vmul.f32 %v4654, 0.2
        %v4703 = vmul.f32 %v4655, 0.2
        %v4704 = vmul.f32 %v4656, 0.2
        %v4705 = vmul.f32 %v4657, 0.2
        %v4706 = vmul.f32 %v4658, 0.2
        %v4707 = vmul.f32 %v4659, 0.2
        %v4708 = vmul.f32 %v4660, 0.2
        %v4709 = vmul.f32 %v4661, 0.2
        %v4710 = vmul.f32 %v4662, 0.2
        %v4711 = vmul.f32 %v4663, 0.2
        %v4712 = vmul.f32 %v4664, 0.2
        %v4713 = vmul.f32 %v4665, 0.2
        %v4714 = vsel %vm4666, %v4642, %v4690
        %v4715 = vsel %vm4667, %v4643, %v4691
        %v4716 = vsel %vm4668, %v4644, %v4692
        %v4717 = vsel %vm4669, %v4645, %v4693
        %v4718 = vsel %vm4670, %v4646, %v4694
        %v4719 = vsel %vm4671, %v4647, %v4695
        %v4720 = vsel %vm4672, %v4648, %v4696
        %v4721 = vsel %vm4673, %v4649, %v4697
        %v4722 = vsel %vm4674, %v4650, %v4698
        %v4723 = vsel %vm4675, %v4651, %v4699
        %v4724 = vsel %vm4676, %v4652, %v4700
        %v4725 = vsel %vm4677, %v4653, %v4701
        %v4726 = vsel %vm4678, %v4654, %v4702
        %v4727 = vsel %vm4679, %v4655, %v4703
        %v4728 = vsel %vm4680, %v4656, %v4704
        %v4729 = vsel %vm4681, %v4657, %v4705
        %v4730 = vsel %vm4682, %v4658, %v4706
        %v4731 = vsel %vm4683, %v4659, %v4707
        %v4732 = vsel %vm4684, %v4660, %v4708
        %v4733 = vsel %vm4685, %v4661, %v4709
        %v4734 = vsel %vm4686, %v4662, %v4710
        %v4735 = vsel %vm4687, %v4663, %v4711
        %v4736 = vsel %vm4688, %v4664, %v4712
        %v4737 = vsel %vm4689, %v4665, %v4713
        %4738 = vmatpush.msra.mxu0 %v4551
        %4739 = vmatpush.msra.mxu0 %v4550
        %4740 = vmatpush.msra.mxu0 %v4549
        %4741 = vmatpush.msra.mxu0 %v4548
        %4742 = vmatpush.msra.mxu0 %v4547
        %4743 = vmatpush.msra.mxu0 %v4546
        %4744 = vmatpush.msra.mxu0 %v4545
        %4745 = vmatpush.msra.mxu0 %v4544
        %4746 = vmatpush.msra.mxu0 %v4543
        %4747 = vmatpush.msra.mxu0 %v4542
        %4748 = vmatpush.msra.mxu0 %v4541
        %4749 = vmatpush.msra.mxu0 %v4540
        %4750 = vmatpush.msra.mxu0 %v4539
        %4751 = vmatpush.msra.mxu0 %v4538
        %4752 = vmatpush.msra.mxu0 %v4537
        %4753 = vmatpush.msra.mxu0 %v4536
        %4754 = vmatmul.f32.gmra.mxu0 %v4714
        %v4755 = vpop.f32.mrf.mxu0
        %v4756 = vadd.f32 0.0, %v4755
        %4757 = vmatmul.f32.gmra.mxu0 %v4715
        %v4758 = vpop.f32.mrf.mxu0
        %v4759 = vadd.f32 0.0, %v4758
        %4760 = vmatmul.f32.gmra.mxu0 %v4716
        %v4761 = vpop.f32.mrf.mxu0
        %v4762 = vadd.f32 0.0, %v4761
        %4763 = vmatmul.f32.gmra.mxu0 %v4717
        %v4764 = vpop.f32.mrf.mxu0
        %v4765 = vadd.f32 0.0, %v4764
        %4766 = vmatmul.f32.gmra.mxu0 %v4718
        %v4767 = vpop.f32.mrf.mxu0
        %v4768 = vadd.f32 0.0, %v4767
        %4769 = vmatmul.f32.gmra.mxu0 %v4719
        %v4770 = vpop.f32.mrf.mxu0
        %v4771 = vadd.f32 0.0, %v4770
        %4772 = vmatmul.f32.gmra.mxu0 %v4720
        %v4773 = vpop.f32.mrf.mxu0
        %v4774 = vadd.f32 0.0, %v4773
        %4775 = vmatmul.f32.gmra.mxu0 %v4721
        %v4776 = vpop.f32.mrf.mxu0
        %v4777 = vadd.f32 0.0, %v4776
        %4778 = vmatmul.f32.gmra.mxu0 %v4722
        %v4779 = vpop.f32.mrf.mxu0
        %v4780 = vadd.f32 0.0, %v4779
        %4781 = vmatmul.f32.gmra.mxu0 %v4723
        %v4782 = vpop.f32.mrf.mxu0
        %v4783 = vadd.f32 0.0, %v4782
        %4784 = vmatmul.f32.gmra.mxu0 %v4724
        %v4785 = vpop.f32.mrf.mxu0
        %v4786 = vadd.f32 0.0, %v4785
        %4787 = vmatmul.f32.gmra.mxu0 %v4725
        %v4788 = vpop.f32.mrf.mxu0
        %v4789 = vadd.f32 0.0, %v4788
        %4790 = vmatmul.f32.gmra.mxu0 %v4726
        %v4791 = vpop.f32.mrf.mxu0
        %v4792 = vadd.f32 0.0, %v4791
        %4793 = vmatmul.f32.gmra.mxu0 %v4727
        %v4794 = vpop.f32.mrf.mxu0
        %v4795 = vadd.f32 0.0, %v4794
        %4796 = vmatmul.f32.gmra.mxu0 %v4728
        %v4797 = vpop.f32.mrf.mxu0
        %v4798 = vadd.f32 0.0, %v4797
        %4799 = vmatmul.f32.gmra.mxu0 %v4729
        %v4800 = vpop.f32.mrf.mxu0
        %v4801 = vadd.f32 0.0, %v4800
        %4802 = vmatmul.f32.gmra.mxu0 %v4730
        %v4803 = vpop.f32.mrf.mxu0
        %v4804 = vadd.f32 0.0, %v4803
        %4805 = vmatmul.f32.gmra.mxu0 %v4731
        %v4806 = vpop.f32.mrf.mxu0
        %v4807 = vadd.f32 0.0, %v4806
        %4808 = vmatmul.f32.gmra.mxu0 %v4732
        %v4809 = vpop.f32.mrf.mxu0
        %v4810 = vadd.f32 0.0, %v4809
        %4811 = vmatmul.f32.gmra.mxu0 %v4733
        %v4812 = vpop.f32.mrf.mxu0
        %v4813 = vadd.f32 0.0, %v4812
        %4814 = vmatmul.f32.gmra.mxu0 %v4734
        %v4815 = vpop.f32.mrf.mxu0
        %v4816 = vadd.f32 0.0, %v4815
        %4817 = vmatmul.f32.gmra.mxu0 %v4735
        %v4818 = vpop.f32.mrf.mxu0
        %v4819 = vadd.f32 0.0, %v4818
        %4820 = vmatmul.f32.gmra.mxu0 %v4736
        %v4821 = vpop.f32.mrf.mxu0
        %v4822 = vadd.f32 0.0, %v4821
        %4823 = vmatmul.f32.gmra.mxu0 %v4737
        %v4824 = vpop.f32.mrf.mxu0
        %v4825 = vadd.f32 0.0, %v4824
        %4826 = vdwg.mxu0
        %4827 = vmax.xlane.f32.xlu0 %v4756
        %v4828 = vpop.xlane.xlu0 %4827
        %4829 = vmax.xlane.f32.xlu0 %v4759
        %v4830 = vpop.xlane.xlu0 %4829
        %4831 = vmax.xlane.f32.xlu0 %v4762
        %v4832 = vpop.xlane.xlu0 %4831
        %4833 = vmax.xlane.f32.xlu0 %v4765
        %v4834 = vpop.xlane.xlu0 %4833
        %4835 = vmax.xlane.f32.xlu0 %v4768
        %v4836 = vpop.xlane.xlu0 %4835
        %4837 = vmax.xlane.f32.xlu0 %v4771
        %v4838 = vpop.xlane.xlu0 %4837
        %4839 = vmax.xlane.f32.xlu0 %v4774
        %v4840 = vpop.xlane.xlu0 %4839
        %4841 = vmax.xlane.f32.xlu0 %v4777
        %v4842 = vpop.xlane.xlu0 %4841
        %4843 = vmax.xlane.f32.xlu0 %v4780
        %v4844 = vpop.xlane.xlu0 %4843
        %4845 = vmax.xlane.f32.xlu0 %v4783
        %v4846 = vpop.xlane.xlu0 %4845
        %4847 = vmax.xlane.f32.xlu0 %v4786
        %v4848 = vpop.xlane.xlu0 %4847
        %4849 = vmax.xlane.f32.xlu0 %v4789
        %v4850 = vpop.xlane.xlu0 %4849
        %4851 = vmax.xlane.f32.xlu0 %v4792
        %v4852 = vpop.xlane.xlu0 %4851
        %4853 = vmax.xlane.f32.xlu0 %v4795
        %v4854 = vpop.xlane.xlu0 %4853
        %4855 = vmax.xlane.f32.xlu0 %v4798
        %v4856 = vpop.xlane.xlu0 %4855
        %4857 = vmax.xlane.f32.xlu0 %v4801
        %v4858 = vpop.xlane.xlu0 %4857
        %4859 = vmax.xlane.f32.xlu0 %v4804
        %v4860 = vpop.xlane.xlu0 %4859
        %4861 = vmax.xlane.f32.xlu0 %v4807
        %v4862 = vpop.xlane.xlu0 %4861
        %4863 = vmax.xlane.f32.xlu0 %v4810
        %v4864 = vpop.xlane.xlu0 %4863
        %4865 = vmax.xlane.f32.xlu0 %v4813
        %v4866 = vpop.xlane.xlu0 %4865
        %4867 = vmax.xlane.f32.xlu0 %v4816
        %v4868 = vpop.xlane.xlu0 %4867
        %4869 = vmax.xlane.f32.xlu0 %v4819
        %v4870 = vpop.xlane.xlu0 %4869
        %4871 = vmax.xlane.f32.xlu0 %v4822
        %v4872 = vpop.xlane.xlu0 %4871
        %4873 = vmax.xlane.f32.xlu0 %v4825
        %v4874 = vpop.xlane.xlu0 %4873
        %v4875 = vmax.f32 %v4828, %v4830
        %v4876 = vmax.f32 %v4875, %v4832
        %v4877 = vrot.slane %v4876, 4
        %v4878 = vmax.f32 %v4876, %v4877
        %v4879 = vrot.slane %v4878, 2
        %v4880 = vmax.f32 %v4878, %v4879
        %v4881 = vrot.slane %v4880, 1
        %v4882 = vmax.f32 %v4880, %v4881
        %v4883 = vmax.f32 %v4834, %v4836
        %v4884 = vmax.f32 %v4883, %v4838
        %v4885 = vrot.slane %v4884, 4
        %v4886 = vmax.f32 %v4884, %v4885
        %v4887 = vrot.slane %v4886, 2
        %v4888 = vmax.f32 %v4886, %v4887
        %v4889 = vrot.slane %v4888, 1
        %v4890 = vmax.f32 %v4888, %v4889
        %v4891 = vmax.f32 %v4840, %v4842
        %v4892 = vmax.f32 %v4891, %v4844
        %v4893 = vrot.slane %v4892, 4
        %v4894 = vmax.f32 %v4892, %v4893
        %v4895 = vrot.slane %v4894, 2
        %v4896 = vmax.f32 %v4894, %v4895
        %v4897 = vrot.slane %v4896, 1
        %v4898 = vmax.f32 %v4896, %v4897
        %v4899 = vmax.f32 %v4846, %v4848
        %v4900 = vmax.f32 %v4899, %v4850
        %v4901 = vrot.slane %v4900, 4
        %v4902 = vmax.f32 %v4900, %v4901
        %v4903 = vrot.slane %v4902, 2
        %v4904 = vmax.f32 %v4902, %v4903
        %v4905 = vrot.slane %v4904, 1
        %v4906 = vmax.f32 %v4904, %v4905
        %v4907 = vmax.f32 %v4852, %v4854
        %v4908 = vmax.f32 %v4907, %v4856
        %v4909 = vrot.slane %v4908, 4
        %v4910 = vmax.f32 %v4908, %v4909
        %v4911 = vrot.slane %v4910, 2
        %v4912 = vmax.f32 %v4910, %v4911
        %v4913 = vrot.slane %v4912, 1
        %v4914 = vmax.f32 %v4912, %v4913
        %v4915 = vmax.f32 %v4858, %v4860
        %v4916 = vmax.f32 %v4915, %v4862
        %v4917 = vrot.slane %v4916, 4
        %v4918 = vmax.f32 %v4916, %v4917
        %v4919 = vrot.slane %v4918, 2
        %v4920 = vmax.f32 %v4918, %v4919
        %v4921 = vrot.slane %v4920, 1
        %v4922 = vmax.f32 %v4920, %v4921
        %v4923 = vmax.f32 %v4864, %v4866
        %v4924 = vmax.f32 %v4923, %v4868
        %v4925 = vrot.slane %v4924, 4
        %v4926 = vmax.f32 %v4924, %v4925
        %v4927 = vrot.slane %v4926, 2
        %v4928 = vmax.f32 %v4926, %v4927
        %v4929 = vrot.slane %v4928, 1
        %v4930 = vmax.f32 %v4928, %v4929
        %v4931 = vmax.f32 %v4870, %v4872
        %v4932 = vmax.f32 %v4931, %v4874
        %v4933 = vrot.slane %v4932, 4
        %v4934 = vmax.f32 %v4932, %v4933
        %v4935 = vrot.slane %v4934, 2
        %v4936 = vmax.f32 %v4934, %v4935
        %v4937 = vrot.slane %v4936, 1
        %v4938 = vmax.f32 %v4936, %v4937
        %v4939 = vsub.f32 %v4756, %v4882
        %v4940 = vsub.f32 %v4759, %v4882
        %v4941 = vsub.f32 %v4762, %v4882
        %v4942 = vsub.f32 %v4765, %v4890
        %v4943 = vsub.f32 %v4768, %v4890
        %v4944 = vsub.f32 %v4771, %v4890
        %v4945 = vsub.f32 %v4774, %v4898
        %v4946 = vsub.f32 %v4777, %v4898
        %v4947 = vsub.f32 %v4780, %v4898
        %v4948 = vsub.f32 %v4783, %v4906
        %v4949 = vsub.f32 %v4786, %v4906
        %v4950 = vsub.f32 %v4789, %v4906
        %v4951 = vsub.f32 %v4792, %v4914
        %v4952 = vsub.f32 %v4795, %v4914
        %v4953 = vsub.f32 %v4798, %v4914
        %v4954 = vsub.f32 %v4801, %v4922
        %v4955 = vsub.f32 %v4804, %v4922
        %v4956 = vsub.f32 %v4807, %v4922
        %v4957 = vsub.f32 %v4810, %v4930
        %v4958 = vsub.f32 %v4813, %v4930
        %v4959 = vsub.f32 %v4816, %v4930
        %v4960 = vsub.f32 %v4819, %v4938
        %v4961 = vsub.f32 %v4822, %v4938
        %v4962 = vsub.f32 %v4825, %v4938
        %v4963 = vmul.f32 %v4939, 1.442695
        %v4964 = vpow.pop %v4963
        %v4965 = vmul.f32 %v4940, 1.442695
        %v4966 = vpow.pop %v4965
        %v4967 = vmul.f32 %v4941, 1.442695
        %v4968 = vpow.pop %v4967
        %v4969 = vmul.f32 %v4942, 1.442695
        %v4970 = vpow.pop %v4969
        %v4971 = vmul.f32 %v4943, 1.442695
        %v4972 = vpow.pop %v4971
        %v4973 = vmul.f32 %v4944, 1.442695
        %v4974 = vpow.pop %v4973
        %v4975 = vmul.f32 %v4945, 1.442695
        %v4976 = vpow.pop %v4975
        %v4977 = vmul.f32 %v4946, 1.442695
        %v4978 = vpow.pop %v4977
        %v4979 = vmul.f32 %v4947, 1.442695
        %v4980 = vpow.pop %v4979
        %v4981 = vmul.f32 %v4948, 1.442695
        %v4982 = vpow.pop %v4981
        %v4983 = vmul.f32 %v4949, 1.442695
        %v4984 = vpow.pop %v4983
        %v4985 = vmul.f32 %v4950, 1.442695
        %v4986 = vpow.pop %v4985
        %v4987 = vmul.f32 %v4951, 1.442695
        %v4988 = vpow.pop %v4987
        %v4989 = vmul.f32 %v4952, 1.442695
        %v4990 = vpow.pop %v4989
        %v4991 = vmul.f32 %v4953, 1.442695
        %v4992 = vpow.pop %v4991
        %v4993 = vmul.f32 %v4954, 1.442695
        %v4994 = vpow.pop %v4993
        %v4995 = vmul.f32 %v4955, 1.442695
        %v4996 = vpow.pop %v4995
        %v4997 = vmul.f32 %v4956, 1.442695
        %v4998 = vpow.pop %v4997
        %v4999 = vmul.f32 %v4957, 1.442695
        %v5000 = vpow.pop %v4999
        %v5001 = vmul.f32 %v4958, 1.442695
        %v5002 = vpow.pop %v5001
        %v5003 = vmul.f32 %v4959, 1.442695
        %v5004 = vpow.pop %v5003
        %v5005 = vmul.f32 %v4960, 1.442695
        %v5006 = vpow.pop %v5005
        %v5007 = vmul.f32 %v4961, 1.442695
        %v5008 = vpow.pop %v5007
        %v5009 = vmul.f32 %v4962, 1.442695
        %v5010 = vpow.pop %v5009
        %v5011 = vmul.f32 %v4964, %v1440
        %v5012 = vmul.f32 %v4966, %v1441
        %v5013 = vmul.f32 %v4968, %v1442
        %v5014 = vmul.f32 %v4970, %v1443
        %v5015 = vmul.f32 %v4972, %v1444
        %v5016 = vmul.f32 %v4974, %v1445
        %v5017 = vmul.f32 %v4976, %v1446
        %v5018 = vmul.f32 %v4978, %v1447
        %v5019 = vmul.f32 %v4980, %v1448
        %v5020 = vmul.f32 %v4982, %v1449
        %v5021 = vmul.f32 %v4984, %v1450
        %v5022 = vmul.f32 %v4986, %v1451
        %v5023 = vmul.f32 %v4988, %v1452
        %v5024 = vmul.f32 %v4990, %v1453
        %v5025 = vmul.f32 %v4992, %v1454
        %v5026 = vmul.f32 %v4994, %v1455
        %v5027 = vmul.f32 %v4996, %v1456
        %v5028 = vmul.f32 %v4998, %v1457
        %v5029 = vmul.f32 %v5000, %v1458
        %v5030 = vmul.f32 %v5002, %v1459
        %v5031 = vmul.f32 %v5004, %v1460
        %v5032 = vmul.f32 %v5006, %v1461
        %v5033 = vmul.f32 %v5008, %v1462
        %v5034 = vmul.f32 %v5010, %v1463
        %5035 = vmatpush.msra.mxu0 %v5026
        %5036 = vmatpush.msra.mxu0 %v5025
        %5037 = vmatpush.msra.mxu0 %v5024
        %5038 = vmatpush.msra.mxu0 %v5023
        %5039 = vmatpush.msra.mxu0 %v5022
        %5040 = vmatpush.msra.mxu0 %v5021
        %5041 = vmatpush.msra.mxu0 %v5020
        %5042 = vmatpush.msra.mxu0 %v5019
        %5043 = vmatpush.msra.mxu0 %v5018
        %5044 = vmatpush.msra.mxu0 %v5017
        %5045 = vmatpush.msra.mxu0 %v5016
        %5046 = vmatpush.msra.mxu0 %v5015
        %5047 = vmatpush.msra.mxu0 %v5014
        %5048 = vmatpush.msra.mxu0 %v5013
        %5049 = vmatpush.msra.mxu0 %v5012
        %5050 = vmatpush.msra.mxu0 %v5011
        %5051 = vmatmul.f32.gmra.mxu0 %v939
        %v5052 = vpop.f32.mrf.mxu0
        %v5053 = vadd.f32 0.0, %v5052
        %5054 = vdwg.mxu0
        %5055 = vmatpush.msra.mxu0 0.0
        %5056 = vmatpush.msra.mxu0 0.0
        %5057 = vmatpush.msra.mxu0 0.0
        %5058 = vmatpush.msra.mxu0 0.0
        %5059 = vmatpush.msra.mxu0 0.0
        %5060 = vmatpush.msra.mxu0 0.0
        %5061 = vmatpush.msra.mxu0 0.0
        %5062 = vmatpush.msra.mxu0 0.0
        %5063 = vmatpush.msra.mxu0 %v5034
        %5064 = vmatpush.msra.mxu0 %v5033
        %5065 = vmatpush.msra.mxu0 %v5032
        %5066 = vmatpush.msra.mxu0 %v5031
        %5067 = vmatpush.msra.mxu0 %v5030
        %5068 = vmatpush.msra.mxu0 %v5029
        %5069 = vmatpush.msra.mxu0 %v5028
        %5070 = vmatpush.msra.mxu0 %v5027
        %5071 = vmatmul.f32.gmra.mxu0 %v1489
        %v5072 = vpop.f32.mrf.mxu0
        %v5073 = vadd.f32 %v5053, %v5072
        %5074 = vdwg.mxu0
        %v5075 = vmul.f32 %v5011, %v4584
        %v5076 = vmul.f32 %v5012, %v4587
        %v5077 = vmul.f32 %v5013, %v4590
        %v5078 = vmul.f32 %v5014, %v4584
        %v5079 = vmul.f32 %v5015, %v4587
        %v5080 = vmul.f32 %v5016, %v4590
        %v5081 = vmul.f32 %v5017, %v4584
        %v5082 = vmul.f32 %v5018, %v4587
        %v5083 = vmul.f32 %v5019, %v4590
        %v5084 = vmul.f32 %v5020, %v4584
        %v5085 = vmul.f32 %v5021, %v4587
        %v5086 = vmul.f32 %v5022, %v4590
        %v5087 = vmul.f32 %v5023, %v4584
        %v5088 = vmul.f32 %v5024, %v4587
        %v5089 = vmul.f32 %v5025, %v4590
        %v5090 = vmul.f32 %v5026, %v4584
        %v5091 = vmul.f32 %v5027, %v4587
        %v5092 = vmul.f32 %v5028, %v4590
        %v5093 = vmul.f32 %v5029, %v4584
        %v5094 = vmul.f32 %v5030, %v4587
        %v5095 = vmul.f32 %v5031, %v4590
        %v5096 = vmul.f32 %v5032, %v4584
        %v5097 = vmul.f32 %v5033, %v4587
        %v5098 = vmul.f32 %v5034, %v4590
        %5099 = vmatpush.msra.mxu0 %v5090
        %5100 = vmatpush.msra.mxu0 %v5089
        %5101 = vmatpush.msra.mxu0 %v5088
        %5102 = vmatpush.msra.mxu0 %v5087
        %5103 = vmatpush.msra.mxu0 %v5086
        %5104 = vmatpush.msra.mxu0 %v5085
        %5105 = vmatpush.msra.mxu0 %v5084
        %5106 = vmatpush.msra.mxu0 %v5083
        %5107 = vmatpush.msra.mxu0 %v5082
        %5108 = vmatpush.msra.mxu0 %v5081
        %5109 = vmatpush.msra.mxu0 %v5080
        %5110 = vmatpush.msra.mxu0 %v5079
        %5111 = vmatpush.msra.mxu0 %v5078
        %5112 = vmatpush.msra.mxu0 %v5077
        %5113 = vmatpush.msra.mxu0 %v5076
        %5114 = vmatpush.msra.mxu0 %v5075
        %5115 = vmatmul.f32.gmra.mxu0 %v939
        %v5116 = vpop.f32.mrf.mxu0
        %v5117 = vadd.f32 0.0, %v5116
        %5118 = vdwg.mxu0
        %5119 = vmatpush.msra.mxu0 0.0
        %5120 = vmatpush.msra.mxu0 0.0
        %5121 = vmatpush.msra.mxu0 0.0
        %5122 = vmatpush.msra.mxu0 0.0
        %5123 = vmatpush.msra.mxu0 0.0
        %5124 = vmatpush.msra.mxu0 0.0
        %5125 = vmatpush.msra.mxu0 0.0
        %5126 = vmatpush.msra.mxu0 0.0
        %5127 = vmatpush.msra.mxu0 %v5098
        %5128 = vmatpush.msra.mxu0 %v5097
        %5129 = vmatpush.msra.mxu0 %v5096
        %5130 = vmatpush.msra.mxu0 %v5095
        %5131 = vmatpush.msra.mxu0 %v5094
        %5132 = vmatpush.msra.mxu0 %v5093
        %5133 = vmatpush.msra.mxu0 %v5092
        %5134 = vmatpush.msra.mxu0 %v5091
        %5135 = vmatmul.f32.gmra.mxu0 %v1489
        %v5136 = vpop.f32.mrf.mxu0
        %v5137 = vadd.f32 %v5117, %v5136
        %5138 = vdwg.mxu0
        %v5139 = vrcp.pop %v5073
        %v5140 = vmul.f32 %v5137, %v5139
        %v5142 = vrot.slane %v4613, 1
        %v5143 = vrot.slane %v4613, 2
        %v5144 = vrot.slane %v4613, 3
        %v5145 = vrot.slane %v4613, 4
        %v5146 = vrot.slane %v4613, 5
        %v5147 = vrot.slane %v4613, 6
        %v5148 = vrot.slane %v4613, 7
        %v5149 = vperm.slane %v4613, 0
        %v5150 = vperm.slane %v5142, 0
        %v5151 = vperm.slane %v5143, 0
        %v5152 = vperm.slane %v5144, 0
        %v5153 = vperm.slane %v5145, 0
        %v5154 = vperm.slane %v5146, 0
        %v5155 = vperm.slane %v5147, 0
        %v5156 = vperm.slane %v5148, 0
        %v5165 = vadd.f32 %v5149, %v4584
        %v5166 = vadd.f32 %v5149, %v4587
        %v5167 = vadd.f32 %v5149, %v4590
        %v5168 = vadd.f32 %v5150, %v4584
        %v5169 = vadd.f32 %v5150, %v4587
        %v5170 = vadd.f32 %v5150, %v4590
        %v5171 = vadd.f32 %v5151, %v4584
        %v5172 = vadd.f32 %v5151, %v4587
        %v5173 = vadd.f32 %v5151, %v4590
        %v5174 = vadd.f32 %v5152, %v4584
        %v5175 = vadd.f32 %v5152, %v4587
        %v5176 = vadd.f32 %v5152, %v4590
        %v5177 = vadd.f32 %v5153, %v4584
        %v5178 = vadd.f32 %v5153, %v4587
        %v5179 = vadd.f32 %v5153, %v4590
        %v5180 = vadd.f32 %v5154, %v4584
        %v5181 = vadd.f32 %v5154, %v4587
        %v5182 = vadd.f32 %v5154, %v4590
        %v5183 = vadd.f32 %v5155, %v4584
        %v5184 = vadd.f32 %v5155, %v4587
        %v5185 = vadd.f32 %v5155, %v4590
        %v5186 = vadd.f32 %v5156, %v4584
        %v5187 = vadd.f32 %v5156, %v4587
        %v5188 = vadd.f32 %v5156, %v4590
        %vm5189 = vcmp.ge.f32.partialorder %v5165, 0.0
        %vm5190 = vcmp.ge.f32.partialorder %v5166, 0.0
        %vm5191 = vcmp.ge.f32.partialorder %v5167, 0.0
        %vm5192 = vcmp.ge.f32.partialorder %v5168, 0.0
        %vm5193 = vcmp.ge.f32.partialorder %v5169, 0.0
        %vm5194 = vcmp.ge.f32.partialorder %v5170, 0.0
        %vm5195 = vcmp.ge.f32.partialorder %v5171, 0.0
        %vm5196 = vcmp.ge.f32.partialorder %v5172, 0.0
        %vm5197 = vcmp.ge.f32.partialorder %v5173, 0.0
        %vm5198 = vcmp.ge.f32.partialorder %v5174, 0.0
        %vm5199 = vcmp.ge.f32.partialorder %v5175, 0.0
        %vm5200 = vcmp.ge.f32.partialorder %v5176, 0.0
        %vm5201 = vcmp.ge.f32.partialorder %v5177, 0.0
        %vm5202 = vcmp.ge.f32.partialorder %v5178, 0.0
        %vm5203 = vcmp.ge.f32.partialorder %v5179, 0.0
        %vm5204 = vcmp.ge.f32.partialorder %v5180, 0.0
        %vm5205 = vcmp.ge.f32.partialorder %v5181, 0.0
        %vm5206 = vcmp.ge.f32.partialorder %v5182, 0.0
        %vm5207 = vcmp.ge.f32.partialorder %v5183, 0.0
        %vm5208 = vcmp.ge.f32.partialorder %v5184, 0.0
        %vm5209 = vcmp.ge.f32.partialorder %v5185, 0.0
        %vm5210 = vcmp.ge.f32.partialorder %v5186, 0.0
        %vm5211 = vcmp.ge.f32.partialorder %v5187, 0.0
        %vm5212 = vcmp.ge.f32.partialorder %v5188, 0.0
        %v5213 = vmul.f32 %v5165, 0.2
        %v5214 = vmul.f32 %v5166, 0.2
        %v5215 = vmul.f32 %v5167, 0.2
        %v5216 = vmul.f32 %v5168, 0.2
        %v5217 = vmul.f32 %v5169, 0.2
        %v5218 = vmul.f32 %v5170, 0.2
        %v5219 = vmul.f32 %v5171, 0.2
        %v5220 = vmul.f32 %v5172, 0.2
        %v5221 = vmul.f32 %v5173, 0.2
        %v5222 = vmul.f32 %v5174, 0.2
        %v5223 = vmul.f32 %v5175, 0.2
        %v5224 = vmul.f32 %v5176, 0.2
        %v5225 = vmul.f32 %v5177, 0.2
        %v5226 = vmul.f32 %v5178, 0.2
        %v5227 = vmul.f32 %v5179, 0.2
        %v5228 = vmul.f32 %v5180, 0.2
        %v5229 = vmul.f32 %v5181, 0.2
        %v5230 = vmul.f32 %v5182, 0.2
        %v5231 = vmul.f32 %v5183, 0.2
        %v5232 = vmul.f32 %v5184, 0.2
        %v5233 = vmul.f32 %v5185, 0.2
        %v5234 = vmul.f32 %v5186, 0.2
        %v5235 = vmul.f32 %v5187, 0.2
        %v5236 = vmul.f32 %v5188, 0.2
        %v5237 = vsel %vm5189, %v5165, %v5213
        %v5238 = vsel %vm5190, %v5166, %v5214
        %v5239 = vsel %vm5191, %v5167, %v5215
        %v5240 = vsel %vm5192, %v5168, %v5216
        %v5241 = vsel %vm5193, %v5169, %v5217
        %v5242 = vsel %vm5194, %v5170, %v5218
        %v5243 = vsel %vm5195, %v5171, %v5219
        %v5244 = vsel %vm5196, %v5172, %v5220
        %v5245 = vsel %vm5197, %v5173, %v5221
        %v5246 = vsel %vm5198, %v5174, %v5222
        %v5247 = vsel %vm5199, %v5175, %v5223
        %v5248 = vsel %vm5200, %v5176, %v5224
        %v5249 = vsel %vm5201, %v5177, %v5225
        %v5250 = vsel %vm5202, %v5178, %v5226
        %v5251 = vsel %vm5203, %v5179, %v5227
        %v5252 = vsel %vm5204, %v5180, %v5228
        %v5253 = vsel %vm5205, %v5181, %v5229
        %v5254 = vsel %vm5206, %v5182, %v5230
        %v5255 = vsel %vm5207, %v5183, %v5231
        %v5256 = vsel %vm5208, %v5184, %v5232
        %v5257 = vsel %vm5209, %v5185, %v5233
        %v5258 = vsel %vm5210, %v5186, %v5234
        %v5259 = vsel %vm5211, %v5187, %v5235
        %v5260 = vsel %vm5212, %v5188, %v5236
        %5261 = vmatpush.msra.mxu0 %v4551
        %5262 = vmatpush.msra.mxu0 %v4550
        %5263 = vmatpush.msra.mxu0 %v4549
        %5264 = vmatpush.msra.mxu0 %v4548
        %5265 = vmatpush.msra.mxu0 %v4547
        %5266 = vmatpush.msra.mxu0 %v4546
        %5267 = vmatpush.msra.mxu0 %v4545
        %5268 = vmatpush.msra.mxu0 %v4544
        %5269 = vmatpush.msra.mxu0 %v4543
        %5270 = vmatpush.msra.mxu0 %v4542
        %5271 = vmatpush.msra.mxu0 %v4541
        %5272 = vmatpush.msra.mxu0 %v4540
        %5273 = vmatpush.msra.mxu0 %v4539
        %5274 = vmatpush.msra.mxu0 %v4538
        %5275 = vmatpush.msra.mxu0 %v4537
        %5276 = vmatpush.msra.mxu0 %v4536
        %5277 = vmatmul.f32.gmra.mxu0 %v5237
        %v5278 = vpop.f32.mrf.mxu0
        %v5279 = vadd.f32 0.0, %v5278
        %5280 = vmatmul.f32.gmra.mxu0 %v5238
        %v5281 = vpop.f32.mrf.mxu0
        %v5282 = vadd.f32 0.0, %v5281
        %5283 = vmatmul.f32.gmra.mxu0 %v5239
        %v5284 = vpop.f32.mrf.mxu0
        %v5285 = vadd.f32 0.0, %v5284
        %5286 = vmatmul.f32.gmra.mxu0 %v5240
        %v5287 = vpop.f32.mrf.mxu0
        %v5288 = vadd.f32 0.0, %v5287
        %5289 = vmatmul.f32.gmra.mxu0 %v5241
        %v5290 = vpop.f32.mrf.mxu0
        %v5291 = vadd.f32 0.0, %v5290
        %5292 = vmatmul.f32.gmra.mxu0 %v5242
        %v5293 = vpop.f32.mrf.mxu0
        %v5294 = vadd.f32 0.0, %v5293
        %5295 = vmatmul.f32.gmra.mxu0 %v5243
        %v5296 = vpop.f32.mrf.mxu0
        %v5297 = vadd.f32 0.0, %v5296
        %5298 = vmatmul.f32.gmra.mxu0 %v5244
        %v5299 = vpop.f32.mrf.mxu0
        %v5300 = vadd.f32 0.0, %v5299
        %5301 = vmatmul.f32.gmra.mxu0 %v5245
        %v5302 = vpop.f32.mrf.mxu0
        %v5303 = vadd.f32 0.0, %v5302
        %5304 = vmatmul.f32.gmra.mxu0 %v5246
        %v5305 = vpop.f32.mrf.mxu0
        %v5306 = vadd.f32 0.0, %v5305
        %5307 = vmatmul.f32.gmra.mxu0 %v5247
        %v5308 = vpop.f32.mrf.mxu0
        %v5309 = vadd.f32 0.0, %v5308
        %5310 = vmatmul.f32.gmra.mxu0 %v5248
        %v5311 = vpop.f32.mrf.mxu0
        %v5312 = vadd.f32 0.0, %v5311
        %5313 = vmatmul.f32.gmra.mxu0 %v5249
        %v5314 = vpop.f32.mrf.mxu0
        %v5315 = vadd.f32 0.0, %v5314
        %5316 = vmatmul.f32.gmra.mxu0 %v5250
        %v5317 = vpop.f32.mrf.mxu0
        %v5318 = vadd.f32 0.0, %v5317
        %5319 = vmatmul.f32.gmra.mxu0 %v5251
        %v5320 = vpop.f32.mrf.mxu0
        %v5321 = vadd.f32 0.0, %v5320
        %5322 = vmatmul.f32.gmra.mxu0 %v5252
        %v5323 = vpop.f32.mrf.mxu0
        %v5324 = vadd.f32 0.0, %v5323
        %5325 = vmatmul.f32.gmra.mxu0 %v5253
        %v5326 = vpop.f32.mrf.mxu0
        %v5327 = vadd.f32 0.0, %v5326
        %5328 = vmatmul.f32.gmra.mxu0 %v5254
        %v5329 = vpop.f32.mrf.mxu0
        %v5330 = vadd.f32 0.0, %v5329
        %5331 = vmatmul.f32.gmra.mxu0 %v5255
        %v5332 = vpop.f32.mrf.mxu0
        %v5333 = vadd.f32 0.0, %v5332
        %5334 = vmatmul.f32.gmra.mxu0 %v5256
        %v5335 = vpop.f32.mrf.mxu0
        %v5336 = vadd.f32 0.0, %v5335
        %5337 = vmatmul.f32.gmra.mxu0 %v5257
        %v5338 = vpop.f32.mrf.mxu0
        %v5339 = vadd.f32 0.0, %v5338
        %5340 = vmatmul.f32.gmra.mxu0 %v5258
        %v5341 = vpop.f32.mrf.mxu0
        %v5342 = vadd.f32 0.0, %v5341
        %5343 = vmatmul.f32.gmra.mxu0 %v5259
        %v5344 = vpop.f32.mrf.mxu0
        %v5345 = vadd.f32 0.0, %v5344
        %5346 = vmatmul.f32.gmra.mxu0 %v5260
        %v5347 = vpop.f32.mrf.mxu0
        %v5348 = vadd.f32 0.0, %v5347
        %5349 = vdwg.mxu0
        %5350 = vmax.xlane.f32.xlu0 %v5279
        %v5351 = vpop.xlane.xlu0 %5350
        %5352 = vmax.xlane.f32.xlu0 %v5282
        %v5353 = vpop.xlane.xlu0 %5352
        %5354 = vmax.xlane.f32.xlu0 %v5285
        %v5355 = vpop.xlane.xlu0 %5354
        %5356 = vmax.xlane.f32.xlu0 %v5288
        %v5357 = vpop.xlane.xlu0 %5356
        %5358 = vmax.xlane.f32.xlu0 %v5291
        %v5359 = vpop.xlane.xlu0 %5358
        %5360 = vmax.xlane.f32.xlu0 %v5294
        %v5361 = vpop.xlane.xlu0 %5360
        %5362 = vmax.xlane.f32.xlu0 %v5297
        %v5363 = vpop.xlane.xlu0 %5362
        %5364 = vmax.xlane.f32.xlu0 %v5300
        %v5365 = vpop.xlane.xlu0 %5364
        %5366 = vmax.xlane.f32.xlu0 %v5303
        %v5367 = vpop.xlane.xlu0 %5366
        %5368 = vmax.xlane.f32.xlu0 %v5306
        %v5369 = vpop.xlane.xlu0 %5368
        %5370 = vmax.xlane.f32.xlu0 %v5309
        %v5371 = vpop.xlane.xlu0 %5370
        %5372 = vmax.xlane.f32.xlu0 %v5312
        %v5373 = vpop.xlane.xlu0 %5372
        %5374 = vmax.xlane.f32.xlu0 %v5315
        %v5375 = vpop.xlane.xlu0 %5374
        %5376 = vmax.xlane.f32.xlu0 %v5318
        %v5377 = vpop.xlane.xlu0 %5376
        %5378 = vmax.xlane.f32.xlu0 %v5321
        %v5379 = vpop.xlane.xlu0 %5378
        %5380 = vmax.xlane.f32.xlu0 %v5324
        %v5381 = vpop.xlane.xlu0 %5380
        %5382 = vmax.xlane.f32.xlu0 %v5327
        %v5383 = vpop.xlane.xlu0 %5382
        %5384 = vmax.xlane.f32.xlu0 %v5330
        %v5385 = vpop.xlane.xlu0 %5384
        %5386 = vmax.xlane.f32.xlu0 %v5333
        %v5387 = vpop.xlane.xlu0 %5386
        %5388 = vmax.xlane.f32.xlu0 %v5336
        %v5389 = vpop.xlane.xlu0 %5388
        %5390 = vmax.xlane.f32.xlu0 %v5339
        %v5391 = vpop.xlane.xlu0 %5390
        %5392 = vmax.xlane.f32.xlu0 %v5342
        %v5393 = vpop.xlane.xlu0 %5392
        %5394 = vmax.xlane.f32.xlu0 %v5345
        %v5395 = vpop.xlane.xlu0 %5394
        %5396 = vmax.xlane.f32.xlu0 %v5348
        %v5397 = vpop.xlane.xlu0 %5396
        %v5398 = vmax.f32 %v5351, %v5353
        %v5399 = vmax.f32 %v5398, %v5355
        %v5400 = vrot.slane %v5399, 4
        %v5401 = vmax.f32 %v5399, %v5400
        %v5402 = vrot.slane %v5401, 2
        %v5403 = vmax.f32 %v5401, %v5402
        %v5404 = vrot.slane %v5403, 1
        %v5405 = vmax.f32 %v5403, %v5404
        %v5406 = vmax.f32 %v5357, %v5359
        %v5407 = vmax.f32 %v5406, %v5361
        %v5408 = vrot.slane %v5407, 4
        %v5409 = vmax.f32 %v5407, %v5408
        %v5410 = vrot.slane %v5409, 2
        %v5411 = vmax.f32 %v5409, %v5410
        %v5412 = vrot.slane %v5411, 1
        %v5413 = vmax.f32 %v5411, %v5412
        %v5414 = vmax.f32 %v5363, %v5365
        %v5415 = vmax.f32 %v5414, %v5367
        %v5416 = vrot.slane %v5415, 4
        %v5417 = vmax.f32 %v5415, %v5416
        %v5418 = vrot.slane %v5417, 2
        %v5419 = vmax.f32 %v5417, %v5418
        %v5420 = vrot.slane %v5419, 1
        %v5421 = vmax.f32 %v5419, %v5420
        %v5422 = vmax.f32 %v5369, %v5371
        %v5423 = vmax.f32 %v5422, %v5373
        %v5424 = vrot.slane %v5423, 4
        %v5425 = vmax.f32 %v5423, %v5424
        %v5426 = vrot.slane %v5425, 2
        %v5427 = vmax.f32 %v5425, %v5426
        %v5428 = vrot.slane %v5427, 1
        %v5429 = vmax.f32 %v5427, %v5428
        %v5430 = vmax.f32 %v5375, %v5377
        %v5431 = vmax.f32 %v5430, %v5379
        %v5432 = vrot.slane %v5431, 4
        %v5433 = vmax.f32 %v5431, %v5432
        %v5434 = vrot.slane %v5433, 2
        %v5435 = vmax.f32 %v5433, %v5434
        %v5436 = vrot.slane %v5435, 1
        %v5437 = vmax.f32 %v5435, %v5436
        %v5438 = vmax.f32 %v5381, %v5383
        %v5439 = vmax.f32 %v5438, %v5385
        %v5440 = vrot.slane %v5439, 4
        %v5441 = vmax.f32 %v5439, %v5440
        %v5442 = vrot.slane %v5441, 2
        %v5443 = vmax.f32 %v5441, %v5442
        %v5444 = vrot.slane %v5443, 1
        %v5445 = vmax.f32 %v5443, %v5444
        %v5446 = vmax.f32 %v5387, %v5389
        %v5447 = vmax.f32 %v5446, %v5391
        %v5448 = vrot.slane %v5447, 4
        %v5449 = vmax.f32 %v5447, %v5448
        %v5450 = vrot.slane %v5449, 2
        %v5451 = vmax.f32 %v5449, %v5450
        %v5452 = vrot.slane %v5451, 1
        %v5453 = vmax.f32 %v5451, %v5452
        %v5454 = vmax.f32 %v5393, %v5395
        %v5455 = vmax.f32 %v5454, %v5397
        %v5456 = vrot.slane %v5455, 4
        %v5457 = vmax.f32 %v5455, %v5456
        %v5458 = vrot.slane %v5457, 2
        %v5459 = vmax.f32 %v5457, %v5458
        %v5460 = vrot.slane %v5459, 1
        %v5461 = vmax.f32 %v5459, %v5460
        %v5462 = vsub.f32 %v5279, %v5405
        %v5463 = vsub.f32 %v5282, %v5405
        %v5464 = vsub.f32 %v5285, %v5405
        %v5465 = vsub.f32 %v5288, %v5413
        %v5466 = vsub.f32 %v5291, %v5413
        %v5467 = vsub.f32 %v5294, %v5413
        %v5468 = vsub.f32 %v5297, %v5421
        %v5469 = vsub.f32 %v5300, %v5421
        %v5470 = vsub.f32 %v5303, %v5421
        %v5471 = vsub.f32 %v5306, %v5429
        %v5472 = vsub.f32 %v5309, %v5429
        %v5473 = vsub.f32 %v5312, %v5429
        %v5474 = vsub.f32 %v5315, %v5437
        %v5475 = vsub.f32 %v5318, %v5437
        %v5476 = vsub.f32 %v5321, %v5437
        %v5477 = vsub.f32 %v5324, %v5445
        %v5478 = vsub.f32 %v5327, %v5445
        %v5479 = vsub.f32 %v5330, %v5445
        %v5480 = vsub.f32 %v5333, %v5453
        %v5481 = vsub.f32 %v5336, %v5453
        %v5482 = vsub.f32 %v5339, %v5453
        %v5483 = vsub.f32 %v5342, %v5461
        %v5484 = vsub.f32 %v5345, %v5461
        %v5485 = vsub.f32 %v5348, %v5461
        %v5486 = vmul.f32 %v5462, 1.442695
        %v5487 = vpow.pop %v5486
        %v5488 = vmul.f32 %v5463, 1.442695
        %v5489 = vpow.pop %v5488
        %v5490 = vmul.f32 %v5464, 1.442695
        %v5491 = vpow.pop %v5490
        %v5492 = vmul.f32 %v5465, 1.442695
        %v5493 = vpow.pop %v5492
        %v5494 = vmul.f32 %v5466, 1.442695
        %v5495 = vpow.pop %v5494
        %v5496 = vmul.f32 %v5467, 1.442695
        %v5497 = vpow.pop %v5496
        %v5498 = vmul.f32 %v5468, 1.442695
        %v5499 = vpow.pop %v5498
        %v5500 = vmul.f32 %v5469, 1.442695
        %v5501 = vpow.pop %v5500
        %v5502 = vmul.f32 %v5470, 1.442695
        %v5503 = vpow.pop %v5502
        %v5504 = vmul.f32 %v5471, 1.442695
        %v5505 = vpow.pop %v5504
        %v5506 = vmul.f32 %v5472, 1.442695
        %v5507 = vpow.pop %v5506
        %v5508 = vmul.f32 %v5473, 1.442695
        %v5509 = vpow.pop %v5508
        %v5510 = vmul.f32 %v5474, 1.442695
        %v5511 = vpow.pop %v5510
        %v5512 = vmul.f32 %v5475, 1.442695
        %v5513 = vpow.pop %v5512
        %v5514 = vmul.f32 %v5476, 1.442695
        %v5515 = vpow.pop %v5514
        %v5516 = vmul.f32 %v5477, 1.442695
        %v5517 = vpow.pop %v5516
        %v5518 = vmul.f32 %v5478, 1.442695
        %v5519 = vpow.pop %v5518
        %v5520 = vmul.f32 %v5479, 1.442695
        %v5521 = vpow.pop %v5520
        %v5522 = vmul.f32 %v5480, 1.442695
        %v5523 = vpow.pop %v5522
        %v5524 = vmul.f32 %v5481, 1.442695
        %v5525 = vpow.pop %v5524
        %v5526 = vmul.f32 %v5482, 1.442695
        %v5527 = vpow.pop %v5526
        %v5528 = vmul.f32 %v5483, 1.442695
        %v5529 = vpow.pop %v5528
        %v5530 = vmul.f32 %v5484, 1.442695
        %v5531 = vpow.pop %v5530
        %v5532 = vmul.f32 %v5485, 1.442695
        %v5533 = vpow.pop %v5532
        %v5534 = vmul.f32 %v5487, %v1990
        %v5535 = vmul.f32 %v5489, %v1991
        %v5536 = vmul.f32 %v5491, %v1992
        %v5537 = vmul.f32 %v5493, %v1993
        %v5538 = vmul.f32 %v5495, %v1994
        %v5539 = vmul.f32 %v5497, %v1995
        %v5540 = vmul.f32 %v5499, %v1996
        %v5541 = vmul.f32 %v5501, %v1997
        %v5542 = vmul.f32 %v5503, %v1998
        %v5543 = vmul.f32 %v5505, %v1999
        %v5544 = vmul.f32 %v5507, %v2000
        %v5545 = vmul.f32 %v5509, %v2001
        %v5546 = vmul.f32 %v5511, %v2002
        %v5547 = vmul.f32 %v5513, %v2003
        %v5548 = vmul.f32 %v5515, %v2004
        %v5549 = vmul.f32 %v5517, %v2005
        %v5550 = vmul.f32 %v5519, %v2006
        %v5551 = vmul.f32 %v5521, %v2007
        %v5552 = vmul.f32 %v5523, %v2008
        %v5553 = vmul.f32 %v5525, %v2009
        %v5554 = vmul.f32 %v5527, %v2010
        %v5555 = vmul.f32 %v5529, %v2011
        %v5556 = vmul.f32 %v5531, %v2012
        %v5557 = vmul.f32 %v5533, %v2013
        %5558 = vmatpush.msra.mxu0 %v5549
        %5559 = vmatpush.msra.mxu0 %v5548
        %5560 = vmatpush.msra.mxu0 %v5547
        %5561 = vmatpush.msra.mxu0 %v5546
        %5562 = vmatpush.msra.mxu0 %v5545
        %5563 = vmatpush.msra.mxu0 %v5544
        %5564 = vmatpush.msra.mxu0 %v5543
        %5565 = vmatpush.msra.mxu0 %v5542
        %5566 = vmatpush.msra.mxu0 %v5541
        %5567 = vmatpush.msra.mxu0 %v5540
        %5568 = vmatpush.msra.mxu0 %v5539
        %5569 = vmatpush.msra.mxu0 %v5538
        %5570 = vmatpush.msra.mxu0 %v5537
        %5571 = vmatpush.msra.mxu0 %v5536
        %5572 = vmatpush.msra.mxu0 %v5535
        %5573 = vmatpush.msra.mxu0 %v5534
        %5574 = vmatmul.f32.gmra.mxu0 %v939
        %v5575 = vpop.f32.mrf.mxu0
        %v5576 = vadd.f32 0.0, %v5575
        %5577 = vdwg.mxu0
        %5578 = vmatpush.msra.mxu0 0.0
        %5579 = vmatpush.msra.mxu0 0.0
        %5580 = vmatpush.msra.mxu0 0.0
        %5581 = vmatpush.msra.mxu0 0.0
        %5582 = vmatpush.msra.mxu0 0.0
        %5583 = vmatpush.msra.mxu0 0.0
        %5584 = vmatpush.msra.mxu0 0.0
        %5585 = vmatpush.msra.mxu0 0.0
        %5586 = vmatpush.msra.mxu0 %v5557
        %5587 = vmatpush.msra.mxu0 %v5556
        %5588 = vmatpush.msra.mxu0 %v5555
        %5589 = vmatpush.msra.mxu0 %v5554
        %5590 = vmatpush.msra.mxu0 %v5553
        %5591 = vmatpush.msra.mxu0 %v5552
        %5592 = vmatpush.msra.mxu0 %v5551
        %5593 = vmatpush.msra.mxu0 %v5550
        %5594 = vmatmul.f32.gmra.mxu0 %v1489
        %v5595 = vpop.f32.mrf.mxu0
        %v5596 = vadd.f32 %v5576, %v5595
        %5597 = vdwg.mxu0
        %v5598 = vmul.f32 %v5534, %v4584
        %v5599 = vmul.f32 %v5535, %v4587
        %v5600 = vmul.f32 %v5536, %v4590
        %v5601 = vmul.f32 %v5537, %v4584
        %v5602 = vmul.f32 %v5538, %v4587
        %v5603 = vmul.f32 %v5539, %v4590
        %v5604 = vmul.f32 %v5540, %v4584
        %v5605 = vmul.f32 %v5541, %v4587
        %v5606 = vmul.f32 %v5542, %v4590
        %v5607 = vmul.f32 %v5543, %v4584
        %v5608 = vmul.f32 %v5544, %v4587
        %v5609 = vmul.f32 %v5545, %v4590
        %v5610 = vmul.f32 %v5546, %v4584
        %v5611 = vmul.f32 %v5547, %v4587
        %v5612 = vmul.f32 %v5548, %v4590
        %v5613 = vmul.f32 %v5549, %v4584
        %v5614 = vmul.f32 %v5550, %v4587
        %v5615 = vmul.f32 %v5551, %v4590
        %v5616 = vmul.f32 %v5552, %v4584
        %v5617 = vmul.f32 %v5553, %v4587
        %v5618 = vmul.f32 %v5554, %v4590
        %v5619 = vmul.f32 %v5555, %v4584
        %v5620 = vmul.f32 %v5556, %v4587
        %v5621 = vmul.f32 %v5557, %v4590
        %5622 = vmatpush.msra.mxu0 %v5613
        %5623 = vmatpush.msra.mxu0 %v5612
        %5624 = vmatpush.msra.mxu0 %v5611
        %5625 = vmatpush.msra.mxu0 %v5610
        %5626 = vmatpush.msra.mxu0 %v5609
        %5627 = vmatpush.msra.mxu0 %v5608
        %5628 = vmatpush.msra.mxu0 %v5607
        %5629 = vmatpush.msra.mxu0 %v5606
        %5630 = vmatpush.msra.mxu0 %v5605
        %5631 = vmatpush.msra.mxu0 %v5604
        %5632 = vmatpush.msra.mxu0 %v5603
        %5633 = vmatpush.msra.mxu0 %v5602
        %5634 = vmatpush.msra.mxu0 %v5601
        %5635 = vmatpush.msra.mxu0 %v5600
        %5636 = vmatpush.msra.mxu0 %v5599
        %5637 = vmatpush.msra.mxu0 %v5598
        %5638 = vmatmul.f32.gmra.mxu0 %v939
        %v5639 = vpop.f32.mrf.mxu0
        %v5640 = vadd.f32 0.0, %v5639
        %5641 = vdwg.mxu0
        %5642 = vmatpush.msra.mxu0 0.0
        %5643 = vmatpush.msra.mxu0 0.0
        %5644 = vmatpush.msra.mxu0 0.0
        %5645 = vmatpush.msra.mxu0 0.0
        %5646 = vmatpush.msra.mxu0 0.0
        %5647 = vmatpush.msra.mxu0 0.0
        %5648 = vmatpush.msra.mxu0 0.0
        %5649 = vmatpush.msra.mxu0 0.0
        %5650 = vmatpush.msra.mxu0 %v5621
        %5651 = vmatpush.msra.mxu0 %v5620
        %5652 = vmatpush.msra.mxu0 %v5619
        %5653 = vmatpush.msra.mxu0 %v5618
        %5654 = vmatpush.msra.mxu0 %v5617
        %5655 = vmatpush.msra.mxu0 %v5616
        %5656 = vmatpush.msra.mxu0 %v5615
        %5657 = vmatpush.msra.mxu0 %v5614
        %5658 = vmatmul.f32.gmra.mxu0 %v1489
        %v5659 = vpop.f32.mrf.mxu0
        %v5660 = vadd.f32 %v5640, %v5659
        %5661 = vdwg.mxu0
        %v5662 = vrcp.pop %v5596
        %v5663 = vmul.f32 %v5660, %v5662
        %v5665 = vrot.slane %v4616, 1
        %v5666 = vrot.slane %v4616, 2
        %v5667 = vrot.slane %v4616, 3
        %v5668 = vrot.slane %v4616, 4
        %v5669 = vrot.slane %v4616, 5
        %v5670 = vrot.slane %v4616, 6
        %v5671 = vrot.slane %v4616, 7
        %v5672 = vperm.slane %v4616, 0
        %v5673 = vperm.slane %v5665, 0
        %v5674 = vperm.slane %v5666, 0
        %v5675 = vperm.slane %v5667, 0
        %v5676 = vperm.slane %v5668, 0
        %v5677 = vperm.slane %v5669, 0
        %v5678 = vperm.slane %v5670, 0
        %v5679 = vperm.slane %v5671, 0
        %v5688 = vadd.f32 %v5672, %v4584
        %v5689 = vadd.f32 %v5672, %v4587
        %v5690 = vadd.f32 %v5672, %v4590
        %v5691 = vadd.f32 %v5673, %v4584
        %v5692 = vadd.f32 %v5673, %v4587
        %v5693 = vadd.f32 %v5673, %v4590
        %v5694 = vadd.f32 %v5674, %v4584
        %v5695 = vadd.f32 %v5674, %v4587
        %v5696 = vadd.f32 %v5674, %v4590
        %v5697 = vadd.f32 %v5675, %v4584
        %v5698 = vadd.f32 %v5675, %v4587
        %v5699 = vadd.f32 %v5675, %v4590
        %v5700 = vadd.f32 %v5676, %v4584
        %v5701 = vadd.f32 %v5676, %v4587
        %v5702 = vadd.f32 %v5676, %v4590
        %v5703 = vadd.f32 %v5677, %v4584
        %v5704 = vadd.f32 %v5677, %v4587
        %v5705 = vadd.f32 %v5677, %v4590
        %v5706 = vadd.f32 %v5678, %v4584
        %v5707 = vadd.f32 %v5678, %v4587
        %v5708 = vadd.f32 %v5678, %v4590
        %v5709 = vadd.f32 %v5679, %v4584
        %v5710 = vadd.f32 %v5679, %v4587
        %v5711 = vadd.f32 %v5679, %v4590
        %vm5712 = vcmp.ge.f32.partialorder %v5688, 0.0
        %vm5713 = vcmp.ge.f32.partialorder %v5689, 0.0
        %vm5714 = vcmp.ge.f32.partialorder %v5690, 0.0
        %vm5715 = vcmp.ge.f32.partialorder %v5691, 0.0
        %vm5716 = vcmp.ge.f32.partialorder %v5692, 0.0
        %vm5717 = vcmp.ge.f32.partialorder %v5693, 0.0
        %vm5718 = vcmp.ge.f32.partialorder %v5694, 0.0
        %vm5719 = vcmp.ge.f32.partialorder %v5695, 0.0
        %vm5720 = vcmp.ge.f32.partialorder %v5696, 0.0
        %vm5721 = vcmp.ge.f32.partialorder %v5697, 0.0
        %vm5722 = vcmp.ge.f32.partialorder %v5698, 0.0
        %vm5723 = vcmp.ge.f32.partialorder %v5699, 0.0
        %vm5724 = vcmp.ge.f32.partialorder %v5700, 0.0
        %vm5725 = vcmp.ge.f32.partialorder %v5701, 0.0
        %vm5726 = vcmp.ge.f32.partialorder %v5702, 0.0
        %vm5727 = vcmp.ge.f32.partialorder %v5703, 0.0
        %vm5728 = vcmp.ge.f32.partialorder %v5704, 0.0
        %vm5729 = vcmp.ge.f32.partialorder %v5705, 0.0
        %vm5730 = vcmp.ge.f32.partialorder %v5706, 0.0
        %vm5731 = vcmp.ge.f32.partialorder %v5707, 0.0
        %vm5732 = vcmp.ge.f32.partialorder %v5708, 0.0
        %vm5733 = vcmp.ge.f32.partialorder %v5709, 0.0
        %vm5734 = vcmp.ge.f32.partialorder %v5710, 0.0
        %vm5735 = vcmp.ge.f32.partialorder %v5711, 0.0
        %v5736 = vmul.f32 %v5688, 0.2
        %v5737 = vmul.f32 %v5689, 0.2
        %v5738 = vmul.f32 %v5690, 0.2
        %v5739 = vmul.f32 %v5691, 0.2
        %v5740 = vmul.f32 %v5692, 0.2
        %v5741 = vmul.f32 %v5693, 0.2
        %v5742 = vmul.f32 %v5694, 0.2
        %v5743 = vmul.f32 %v5695, 0.2
        %v5744 = vmul.f32 %v5696, 0.2
        %v5745 = vmul.f32 %v5697, 0.2
        %v5746 = vmul.f32 %v5698, 0.2
        %v5747 = vmul.f32 %v5699, 0.2
        %v5748 = vmul.f32 %v5700, 0.2
        %v5749 = vmul.f32 %v5701, 0.2
        %v5750 = vmul.f32 %v5702, 0.2
        %v5751 = vmul.f32 %v5703, 0.2
        %v5752 = vmul.f32 %v5704, 0.2
        %v5753 = vmul.f32 %v5705, 0.2
        %v5754 = vmul.f32 %v5706, 0.2
        %v5755 = vmul.f32 %v5707, 0.2
        %v5756 = vmul.f32 %v5708, 0.2
        %v5757 = vmul.f32 %v5709, 0.2
        %v5758 = vmul.f32 %v5710, 0.2
        %v5759 = vmul.f32 %v5711, 0.2
        %v5760 = vsel %vm5712, %v5688, %v5736
        %v5761 = vsel %vm5713, %v5689, %v5737
        %v5762 = vsel %vm5714, %v5690, %v5738
        %v5763 = vsel %vm5715, %v5691, %v5739
        %v5764 = vsel %vm5716, %v5692, %v5740
        %v5765 = vsel %vm5717, %v5693, %v5741
        %v5766 = vsel %vm5718, %v5694, %v5742
        %v5767 = vsel %vm5719, %v5695, %v5743
        %v5768 = vsel %vm5720, %v5696, %v5744
        %v5769 = vsel %vm5721, %v5697, %v5745
        %v5770 = vsel %vm5722, %v5698, %v5746
        %v5771 = vsel %vm5723, %v5699, %v5747
        %v5772 = vsel %vm5724, %v5700, %v5748
        %v5773 = vsel %vm5725, %v5701, %v5749
        %v5774 = vsel %vm5726, %v5702, %v5750
        %v5775 = vsel %vm5727, %v5703, %v5751
        %v5776 = vsel %vm5728, %v5704, %v5752
        %v5777 = vsel %vm5729, %v5705, %v5753
        %v5778 = vsel %vm5730, %v5706, %v5754
        %v5779 = vsel %vm5731, %v5707, %v5755
        %v5780 = vsel %vm5732, %v5708, %v5756
        %v5781 = vsel %vm5733, %v5709, %v5757
        %v5782 = vsel %vm5734, %v5710, %v5758
        %v5783 = vsel %vm5735, %v5711, %v5759
        %5784 = vmatpush.msra.mxu0 %v4551
        %5785 = vmatpush.msra.mxu0 %v4550
        %5786 = vmatpush.msra.mxu0 %v4549
        %5787 = vmatpush.msra.mxu0 %v4548
        %5788 = vmatpush.msra.mxu0 %v4547
        %5789 = vmatpush.msra.mxu0 %v4546
        %5790 = vmatpush.msra.mxu0 %v4545
        %5791 = vmatpush.msra.mxu0 %v4544
        %5792 = vmatpush.msra.mxu0 %v4543
        %5793 = vmatpush.msra.mxu0 %v4542
        %5794 = vmatpush.msra.mxu0 %v4541
        %5795 = vmatpush.msra.mxu0 %v4540
        %5796 = vmatpush.msra.mxu0 %v4539
        %5797 = vmatpush.msra.mxu0 %v4538
        %5798 = vmatpush.msra.mxu0 %v4537
        %5799 = vmatpush.msra.mxu0 %v4536
        %5800 = vmatmul.f32.gmra.mxu0 %v5760
        %v5801 = vpop.f32.mrf.mxu0
        %v5802 = vadd.f32 0.0, %v5801
        %5803 = vmatmul.f32.gmra.mxu0 %v5761
        %v5804 = vpop.f32.mrf.mxu0
        %v5805 = vadd.f32 0.0, %v5804
        %5806 = vmatmul.f32.gmra.mxu0 %v5762
        %v5807 = vpop.f32.mrf.mxu0
        %v5808 = vadd.f32 0.0, %v5807
        %5809 = vmatmul.f32.gmra.mxu0 %v5763
        %v5810 = vpop.f32.mrf.mxu0
        %v5811 = vadd.f32 0.0, %v5810
        %5812 = vmatmul.f32.gmra.mxu0 %v5764
        %v5813 = vpop.f32.mrf.mxu0
        %v5814 = vadd.f32 0.0, %v5813
        %5815 = vmatmul.f32.gmra.mxu0 %v5765
        %v5816 = vpop.f32.mrf.mxu0
        %v5817 = vadd.f32 0.0, %v5816
        %5818 = vmatmul.f32.gmra.mxu0 %v5766
        %v5819 = vpop.f32.mrf.mxu0
        %v5820 = vadd.f32 0.0, %v5819
        %5821 = vmatmul.f32.gmra.mxu0 %v5767
        %v5822 = vpop.f32.mrf.mxu0
        %v5823 = vadd.f32 0.0, %v5822
        %5824 = vmatmul.f32.gmra.mxu0 %v5768
        %v5825 = vpop.f32.mrf.mxu0
        %v5826 = vadd.f32 0.0, %v5825
        %5827 = vmatmul.f32.gmra.mxu0 %v5769
        %v5828 = vpop.f32.mrf.mxu0
        %v5829 = vadd.f32 0.0, %v5828
        %5830 = vmatmul.f32.gmra.mxu0 %v5770
        %v5831 = vpop.f32.mrf.mxu0
        %v5832 = vadd.f32 0.0, %v5831
        %5833 = vmatmul.f32.gmra.mxu0 %v5771
        %v5834 = vpop.f32.mrf.mxu0
        %v5835 = vadd.f32 0.0, %v5834
        %5836 = vmatmul.f32.gmra.mxu0 %v5772
        %v5837 = vpop.f32.mrf.mxu0
        %v5838 = vadd.f32 0.0, %v5837
        %5839 = vmatmul.f32.gmra.mxu0 %v5773
        %v5840 = vpop.f32.mrf.mxu0
        %v5841 = vadd.f32 0.0, %v5840
        %5842 = vmatmul.f32.gmra.mxu0 %v5774
        %v5843 = vpop.f32.mrf.mxu0
        %v5844 = vadd.f32 0.0, %v5843
        %5845 = vmatmul.f32.gmra.mxu0 %v5775
        %v5846 = vpop.f32.mrf.mxu0
        %v5847 = vadd.f32 0.0, %v5846
        %5848 = vmatmul.f32.gmra.mxu0 %v5776
        %v5849 = vpop.f32.mrf.mxu0
        %v5850 = vadd.f32 0.0, %v5849
        %5851 = vmatmul.f32.gmra.mxu0 %v5777
        %v5852 = vpop.f32.mrf.mxu0
        %v5853 = vadd.f32 0.0, %v5852
        %5854 = vmatmul.f32.gmra.mxu0 %v5778
        %v5855 = vpop.f32.mrf.mxu0
        %v5856 = vadd.f32 0.0, %v5855
        %5857 = vmatmul.f32.gmra.mxu0 %v5779
        %v5858 = vpop.f32.mrf.mxu0
        %v5859 = vadd.f32 0.0, %v5858
        %5860 = vmatmul.f32.gmra.mxu0 %v5780
        %v5861 = vpop.f32.mrf.mxu0
        %v5862 = vadd.f32 0.0, %v5861
        %5863 = vmatmul.f32.gmra.mxu0 %v5781
        %v5864 = vpop.f32.mrf.mxu0
        %v5865 = vadd.f32 0.0, %v5864
        %5866 = vmatmul.f32.gmra.mxu0 %v5782
        %v5867 = vpop.f32.mrf.mxu0
        %v5868 = vadd.f32 0.0, %v5867
        %5869 = vmatmul.f32.gmra.mxu0 %v5783
        %v5870 = vpop.f32.mrf.mxu0
        %v5871 = vadd.f32 0.0, %v5870
        %5872 = vdwg.mxu0
        %5873 = vmax.xlane.f32.xlu0 %v5802
        %v5874 = vpop.xlane.xlu0 %5873
        %5875 = vmax.xlane.f32.xlu0 %v5805
        %v5876 = vpop.xlane.xlu0 %5875
        %5877 = vmax.xlane.f32.xlu0 %v5808
        %v5878 = vpop.xlane.xlu0 %5877
        %5879 = vmax.xlane.f32.xlu0 %v5811
        %v5880 = vpop.xlane.xlu0 %5879
        %5881 = vmax.xlane.f32.xlu0 %v5814
        %v5882 = vpop.xlane.xlu0 %5881
        %5883 = vmax.xlane.f32.xlu0 %v5817
        %v5884 = vpop.xlane.xlu0 %5883
        %5885 = vmax.xlane.f32.xlu0 %v5820
        %v5886 = vpop.xlane.xlu0 %5885
        %5887 = vmax.xlane.f32.xlu0 %v5823
        %v5888 = vpop.xlane.xlu0 %5887
        %5889 = vmax.xlane.f32.xlu0 %v5826
        %v5890 = vpop.xlane.xlu0 %5889
        %5891 = vmax.xlane.f32.xlu0 %v5829
        %v5892 = vpop.xlane.xlu0 %5891
        %5893 = vmax.xlane.f32.xlu0 %v5832
        %v5894 = vpop.xlane.xlu0 %5893
        %5895 = vmax.xlane.f32.xlu0 %v5835
        %v5896 = vpop.xlane.xlu0 %5895
        %5897 = vmax.xlane.f32.xlu0 %v5838
        %v5898 = vpop.xlane.xlu0 %5897
        %5899 = vmax.xlane.f32.xlu0 %v5841
        %v5900 = vpop.xlane.xlu0 %5899
        %5901 = vmax.xlane.f32.xlu0 %v5844
        %v5902 = vpop.xlane.xlu0 %5901
        %5903 = vmax.xlane.f32.xlu0 %v5847
        %v5904 = vpop.xlane.xlu0 %5903
        %5905 = vmax.xlane.f32.xlu0 %v5850
        %v5906 = vpop.xlane.xlu0 %5905
        %5907 = vmax.xlane.f32.xlu0 %v5853
        %v5908 = vpop.xlane.xlu0 %5907
        %5909 = vmax.xlane.f32.xlu0 %v5856
        %v5910 = vpop.xlane.xlu0 %5909
        %5911 = vmax.xlane.f32.xlu0 %v5859
        %v5912 = vpop.xlane.xlu0 %5911
        %5913 = vmax.xlane.f32.xlu0 %v5862
        %v5914 = vpop.xlane.xlu0 %5913
        %5915 = vmax.xlane.f32.xlu0 %v5865
        %v5916 = vpop.xlane.xlu0 %5915
        %5917 = vmax.xlane.f32.xlu0 %v5868
        %v5918 = vpop.xlane.xlu0 %5917
        %5919 = vmax.xlane.f32.xlu0 %v5871
        %v5920 = vpop.xlane.xlu0 %5919
        %v5921 = vmax.f32 %v5874, %v5876
        %v5922 = vmax.f32 %v5921, %v5878
        %v5923 = vrot.slane %v5922, 4
        %v5924 = vmax.f32 %v5922, %v5923
        %v5925 = vrot.slane %v5924, 2
        %v5926 = vmax.f32 %v5924, %v5925
        %v5927 = vrot.slane %v5926, 1
        %v5928 = vmax.f32 %v5926, %v5927
        %v5929 = vmax.f32 %v5880, %v5882
        %v5930 = vmax.f32 %v5929, %v5884
        %v5931 = vrot.slane %v5930, 4
        %v5932 = vmax.f32 %v5930, %v5931
        %v5933 = vrot.slane %v5932, 2
        %v5934 = vmax.f32 %v5932, %v5933
        %v5935 = vrot.slane %v5934, 1
        %v5936 = vmax.f32 %v5934, %v5935
        %v5937 = vmax.f32 %v5886, %v5888
        %v5938 = vmax.f32 %v5937, %v5890
        %v5939 = vrot.slane %v5938, 4
        %v5940 = vmax.f32 %v5938, %v5939
        %v5941 = vrot.slane %v5940, 2
        %v5942 = vmax.f32 %v5940, %v5941
        %v5943 = vrot.slane %v5942, 1
        %v5944 = vmax.f32 %v5942, %v5943
        %v5945 = vmax.f32 %v5892, %v5894
        %v5946 = vmax.f32 %v5945, %v5896
        %v5947 = vrot.slane %v5946, 4
        %v5948 = vmax.f32 %v5946, %v5947
        %v5949 = vrot.slane %v5948, 2
        %v5950 = vmax.f32 %v5948, %v5949
        %v5951 = vrot.slane %v5950, 1
        %v5952 = vmax.f32 %v5950, %v5951
        %v5953 = vmax.f32 %v5898, %v5900
        %v5954 = vmax.f32 %v5953, %v5902
        %v5955 = vrot.slane %v5954, 4
        %v5956 = vmax.f32 %v5954, %v5955
        %v5957 = vrot.slane %v5956, 2
        %v5958 = vmax.f32 %v5956, %v5957
        %v5959 = vrot.slane %v5958, 1
        %v5960 = vmax.f32 %v5958, %v5959
        %v5961 = vmax.f32 %v5904, %v5906
        %v5962 = vmax.f32 %v5961, %v5908
        %v5963 = vrot.slane %v5962, 4
        %v5964 = vmax.f32 %v5962, %v5963
        %v5965 = vrot.slane %v5964, 2
        %v5966 = vmax.f32 %v5964, %v5965
        %v5967 = vrot.slane %v5966, 1
        %v5968 = vmax.f32 %v5966, %v5967
        %v5969 = vmax.f32 %v5910, %v5912
        %v5970 = vmax.f32 %v5969, %v5914
        %v5971 = vrot.slane %v5970, 4
        %v5972 = vmax.f32 %v5970, %v5971
        %v5973 = vrot.slane %v5972, 2
        %v5974 = vmax.f32 %v5972, %v5973
        %v5975 = vrot.slane %v5974, 1
        %v5976 = vmax.f32 %v5974, %v5975
        %v5977 = vmax.f32 %v5916, %v5918
        %v5978 = vmax.f32 %v5977, %v5920
        %v5979 = vrot.slane %v5978, 4
        %v5980 = vmax.f32 %v5978, %v5979
        %v5981 = vrot.slane %v5980, 2
        %v5982 = vmax.f32 %v5980, %v5981
        %v5983 = vrot.slane %v5982, 1
        %v5984 = vmax.f32 %v5982, %v5983
        %v5985 = vsub.f32 %v5802, %v5928
        %v5986 = vsub.f32 %v5805, %v5928
        %v5987 = vsub.f32 %v5808, %v5928
        %v5988 = vsub.f32 %v5811, %v5936
        %v5989 = vsub.f32 %v5814, %v5936
        %v5990 = vsub.f32 %v5817, %v5936
        %v5991 = vsub.f32 %v5820, %v5944
        %v5992 = vsub.f32 %v5823, %v5944
        %v5993 = vsub.f32 %v5826, %v5944
        %v5994 = vsub.f32 %v5829, %v5952
        %v5995 = vsub.f32 %v5832, %v5952
        %v5996 = vsub.f32 %v5835, %v5952
        %v5997 = vsub.f32 %v5838, %v5960
        %v5998 = vsub.f32 %v5841, %v5960
        %v5999 = vsub.f32 %v5844, %v5960
        %v6000 = vsub.f32 %v5847, %v5968
        %v6001 = vsub.f32 %v5850, %v5968
        %v6002 = vsub.f32 %v5853, %v5968
        %v6003 = vsub.f32 %v5856, %v5976
        %v6004 = vsub.f32 %v5859, %v5976
        %v6005 = vsub.f32 %v5862, %v5976
        %v6006 = vsub.f32 %v5865, %v5984
        %v6007 = vsub.f32 %v5868, %v5984
        %v6008 = vsub.f32 %v5871, %v5984
        %v6009 = vmul.f32 %v5985, 1.442695
        %v6010 = vpow.pop %v6009
        %v6011 = vmul.f32 %v5986, 1.442695
        %v6012 = vpow.pop %v6011
        %v6013 = vmul.f32 %v5987, 1.442695
        %v6014 = vpow.pop %v6013
        %v6015 = vmul.f32 %v5988, 1.442695
        %v6016 = vpow.pop %v6015
        %v6017 = vmul.f32 %v5989, 1.442695
        %v6018 = vpow.pop %v6017
        %v6019 = vmul.f32 %v5990, 1.442695
        %v6020 = vpow.pop %v6019
        %v6021 = vmul.f32 %v5991, 1.442695
        %v6022 = vpow.pop %v6021
        %v6023 = vmul.f32 %v5992, 1.442695
        %v6024 = vpow.pop %v6023
        %v6025 = vmul.f32 %v5993, 1.442695
        %v6026 = vpow.pop %v6025
        %v6027 = vmul.f32 %v5994, 1.442695
        %v6028 = vpow.pop %v6027
        %v6029 = vmul.f32 %v5995, 1.442695
        %v6030 = vpow.pop %v6029
        %v6031 = vmul.f32 %v5996, 1.442695
        %v6032 = vpow.pop %v6031
        %v6033 = vmul.f32 %v5997, 1.442695
        %v6034 = vpow.pop %v6033
        %v6035 = vmul.f32 %v5998, 1.442695
        %v6036 = vpow.pop %v6035
        %v6037 = vmul.f32 %v5999, 1.442695
        %v6038 = vpow.pop %v6037
        %v6039 = vmul.f32 %v6000, 1.442695
        %v6040 = vpow.pop %v6039
        %v6041 = vmul.f32 %v6001, 1.442695
        %v6042 = vpow.pop %v6041
        %v6043 = vmul.f32 %v6002, 1.442695
        %v6044 = vpow.pop %v6043
        %v6045 = vmul.f32 %v6003, 1.442695
        %v6046 = vpow.pop %v6045
        %v6047 = vmul.f32 %v6004, 1.442695
        %v6048 = vpow.pop %v6047
        %v6049 = vmul.f32 %v6005, 1.442695
        %v6050 = vpow.pop %v6049
        %v6051 = vmul.f32 %v6006, 1.442695
        %v6052 = vpow.pop %v6051
        %v6053 = vmul.f32 %v6007, 1.442695
        %v6054 = vpow.pop %v6053
        %v6055 = vmul.f32 %v6008, 1.442695
        %v6056 = vpow.pop %v6055
        %v6057 = vmul.f32 %v6010, %v2537
        %v6058 = vmul.f32 %v6012, %v2538
        %v6059 = vmul.f32 %v6014, %v2539
        %v6060 = vmul.f32 %v6016, %v2540
        %v6061 = vmul.f32 %v6018, %v2541
        %v6062 = vmul.f32 %v6020, %v2542
        %v6063 = vmul.f32 %v6022, %v2543
        %v6064 = vmul.f32 %v6024, %v2544
        %v6065 = vmul.f32 %v6026, %v2545
        %v6066 = vmul.f32 %v6028, %v2546
        %v6067 = vmul.f32 %v6030, %v2547
        %v6068 = vmul.f32 %v6032, %v2548
        %v6069 = vmul.f32 %v6034, %v2549
        %v6070 = vmul.f32 %v6036, %v2550
        %v6071 = vmul.f32 %v6038, %v2551
        %v6072 = vmul.f32 %v6040, %v2552
        %v6073 = vmul.f32 %v6042, %v2553
        %v6074 = vmul.f32 %v6044, %v2554
        %v6075 = vmul.f32 %v6046, %v2555
        %v6076 = vmul.f32 %v6048, %v2556
        %v6077 = vmul.f32 %v6050, %v2557
        %v6078 = vmul.f32 %v6052, %v2558
        %v6079 = vmul.f32 %v6054, %v2559
        %v6080 = vmul.f32 %v6056, %v2560
        %6081 = vmatpush.msra.mxu0 %v6072
        %6082 = vmatpush.msra.mxu0 %v6071
        %6083 = vmatpush.msra.mxu0 %v6070
        %6084 = vmatpush.msra.mxu0 %v6069
        %6085 = vmatpush.msra.mxu0 %v6068
        %6086 = vmatpush.msra.mxu0 %v6067
        %6087 = vmatpush.msra.mxu0 %v6066
        %6088 = vmatpush.msra.mxu0 %v6065
        %6089 = vmatpush.msra.mxu0 %v6064
        %6090 = vmatpush.msra.mxu0 %v6063
        %6091 = vmatpush.msra.mxu0 %v6062
        %6092 = vmatpush.msra.mxu0 %v6061
        %6093 = vmatpush.msra.mxu0 %v6060
        %6094 = vmatpush.msra.mxu0 %v6059
        %6095 = vmatpush.msra.mxu0 %v6058
        %6096 = vmatpush.msra.mxu0 %v6057
        %6097 = vmatmul.f32.gmra.mxu0 %v939
        %v6098 = vpop.f32.mrf.mxu0
        %v6099 = vadd.f32 0.0, %v6098
        %6100 = vdwg.mxu0
        %6101 = vmatpush.msra.mxu0 0.0
        %6102 = vmatpush.msra.mxu0 0.0
        %6103 = vmatpush.msra.mxu0 0.0
        %6104 = vmatpush.msra.mxu0 0.0
        %6105 = vmatpush.msra.mxu0 0.0
        %6106 = vmatpush.msra.mxu0 0.0
        %6107 = vmatpush.msra.mxu0 0.0
        %6108 = vmatpush.msra.mxu0 0.0
        %6109 = vmatpush.msra.mxu0 %v6080
        %6110 = vmatpush.msra.mxu0 %v6079
        %6111 = vmatpush.msra.mxu0 %v6078
        %6112 = vmatpush.msra.mxu0 %v6077
        %6113 = vmatpush.msra.mxu0 %v6076
        %6114 = vmatpush.msra.mxu0 %v6075
        %6115 = vmatpush.msra.mxu0 %v6074
        %6116 = vmatpush.msra.mxu0 %v6073
        %6117 = vmatmul.f32.gmra.mxu0 %v1489
        %v6118 = vpop.f32.mrf.mxu0
        %v6119 = vadd.f32 %v6099, %v6118
        %6120 = vdwg.mxu0
        %v6121 = vmul.f32 %v6057, %v4584
        %v6122 = vmul.f32 %v6058, %v4587
        %v6123 = vmul.f32 %v6059, %v4590
        %v6124 = vmul.f32 %v6060, %v4584
        %v6125 = vmul.f32 %v6061, %v4587
        %v6126 = vmul.f32 %v6062, %v4590
        %v6127 = vmul.f32 %v6063, %v4584
        %v6128 = vmul.f32 %v6064, %v4587
        %v6129 = vmul.f32 %v6065, %v4590
        %v6130 = vmul.f32 %v6066, %v4584
        %v6131 = vmul.f32 %v6067, %v4587
        %v6132 = vmul.f32 %v6068, %v4590
        %v6133 = vmul.f32 %v6069, %v4584
        %v6134 = vmul.f32 %v6070, %v4587
        %v6135 = vmul.f32 %v6071, %v4590
        %v6136 = vmul.f32 %v6072, %v4584
        %v6137 = vmul.f32 %v6073, %v4587
        %v6138 = vmul.f32 %v6074, %v4590
        %v6139 = vmul.f32 %v6075, %v4584
        %v6140 = vmul.f32 %v6076, %v4587
        %v6141 = vmul.f32 %v6077, %v4590
        %v6142 = vmul.f32 %v6078, %v4584
        %v6143 = vmul.f32 %v6079, %v4587
        %v6144 = vmul.f32 %v6080, %v4590
        %6145 = vmatpush.msra.mxu0 %v6136
        %6146 = vmatpush.msra.mxu0 %v6135
        %6147 = vmatpush.msra.mxu0 %v6134
        %6148 = vmatpush.msra.mxu0 %v6133
        %6149 = vmatpush.msra.mxu0 %v6132
        %6150 = vmatpush.msra.mxu0 %v6131
        %6151 = vmatpush.msra.mxu0 %v6130
        %6152 = vmatpush.msra.mxu0 %v6129
        %6153 = vmatpush.msra.mxu0 %v6128
        %6154 = vmatpush.msra.mxu0 %v6127
        %6155 = vmatpush.msra.mxu0 %v6126
        %6156 = vmatpush.msra.mxu0 %v6125
        %6157 = vmatpush.msra.mxu0 %v6124
        %6158 = vmatpush.msra.mxu0 %v6123
        %6159 = vmatpush.msra.mxu0 %v6122
        %6160 = vmatpush.msra.mxu0 %v6121
        %6161 = vmatmul.f32.gmra.mxu0 %v939
        %v6162 = vpop.f32.mrf.mxu0
        %v6163 = vadd.f32 0.0, %v6162
        %6164 = vdwg.mxu0
        %6165 = vmatpush.msra.mxu0 0.0
        %6166 = vmatpush.msra.mxu0 0.0
        %6167 = vmatpush.msra.mxu0 0.0
        %6168 = vmatpush.msra.mxu0 0.0
        %6169 = vmatpush.msra.mxu0 0.0
        %6170 = vmatpush.msra.mxu0 0.0
        %6171 = vmatpush.msra.mxu0 0.0
        %6172 = vmatpush.msra.mxu0 0.0
        %6173 = vmatpush.msra.mxu0 %v6144
        %6174 = vmatpush.msra.mxu0 %v6143
        %6175 = vmatpush.msra.mxu0 %v6142
        %6176 = vmatpush.msra.mxu0 %v6141
        %6177 = vmatpush.msra.mxu0 %v6140
        %6178 = vmatpush.msra.mxu0 %v6139
        %6179 = vmatpush.msra.mxu0 %v6138
        %6180 = vmatpush.msra.mxu0 %v6137
        %6181 = vmatmul.f32.gmra.mxu0 %v1489
        %v6182 = vpop.f32.mrf.mxu0
        %v6183 = vadd.f32 %v6163, %v6182
        %6184 = vdwg.mxu0
        %v6185 = vrcp.pop %v6119
        %v6186 = vmul.f32 %v6183, %v6185
        %v6187 = vperm.slane %v4553, 1
        %6188 = vmatpush.msra.mxu0 %v956
        %6189 = vmatpush.msra.mxu0 %v955
        %6190 = vmatpush.msra.mxu0 %v954
        %6191 = vmatpush.msra.mxu0 %v953
        %6192 = vmatpush.msra.mxu0 %v952
        %6193 = vmatpush.msra.mxu0 %v951
        %6194 = vmatpush.msra.mxu0 %v950
        %6195 = vmatpush.msra.mxu0 %v949
        %6196 = vmatpush.msra.mxu0 %v948
        %6197 = vmatpush.msra.mxu0 %v947
        %6198 = vmatpush.msra.mxu0 %v946
        %6199 = vmatpush.msra.mxu0 %v945
        %6200 = vmatpush.msra.mxu0 %v944
        %6201 = vmatpush.msra.mxu0 %v943
        %6202 = vmatpush.msra.mxu0 %v942
        %6203 = vmatpush.msra.mxu0 %v941
        %6204 = vmatmul.f32.gmra.mxu0 %v5140
        %v6205 = vpop.f32.mrf.mxu0
        %v6206 = vadd.f32 %v6187, %v6205
        %6207 = vmatmul.f32.gmra.mxu0 %v5663
        %v6208 = vpop.f32.mrf.mxu0
        %v6209 = vadd.f32 %v6187, %v6208
        %6210 = vmatmul.f32.gmra.mxu0 %v6186
        %v6211 = vpop.f32.mrf.mxu0
        %v6212 = vadd.f32 %v6187, %v6211
        %6213 = vdwg.mxu0
        %v6214 = vmul.f32 %v6206, %v936
        %v6215 = vmul.f32 %v6209, %v937
        %v6216 = vmul.f32 %v6212, %v938
        %v6217 = vsel %vm985, %v6214, 0.0
        %v6218 = vsel %vm985, %v6215, 0.0
        %v6219 = vadd.f32 %v6217, %v6218
        %v6220 = vsel %vm985, %v6216, 0.0
        %v6221 = vadd.f32 %v6219, %v6220
        %v6222 = vrot.slane %v6221, 4
        %v6223 = vadd.f32 %v6221, %v6222
        %v6224 = vrot.slane %v6223, 2
        %v6225 = vadd.f32 %v6223, %v6224
        %v6226 = vrot.slane %v6225, 1
        %v6227 = vadd.f32 %v6225, %v6226
        %v6228 = vmul.f32 %v6227, 0.05
        %v6229 = vmul.f32 %v4553, %v6228
        %v6230 = vperm.slane %v6229, 4
        %v6231 = vsub.f32 %v6206, %v6230
        %v6232 = vsub.f32 %v6209, %v6230
        %v6233 = vsub.f32 %v6212, %v6230
        %v6234 = vmul.f32 %v6231, %v6231
        %v6235 = vmul.f32 %v6232, %v6232
        %v6236 = vmul.f32 %v6233, %v6233
        %v6237 = vmul.f32 %v6234, %v936
        %v6238 = vmul.f32 %v6235, %v937
        %v6239 = vmul.f32 %v6236, %v938
        %v6240 = vsel %vm985, %v6237, 0.0
        %v6241 = vsel %vm985, %v6238, 0.0
        %v6242 = vadd.f32 %v6240, %v6241
        %v6243 = vsel %vm985, %v6239, 0.0
        %v6244 = vadd.f32 %v6242, %v6243
        %v6245 = vrot.slane %v6244, 4
        %v6246 = vadd.f32 %v6244, %v6245
        %v6247 = vrot.slane %v6246, 2
        %v6248 = vadd.f32 %v6246, %v6247
        %v6249 = vrot.slane %v6248, 1
        %v6250 = vadd.f32 %v6248, %v6249
        %v6251 = vmul.f32 %v6250, 0.05
        %v6252 = vadd.f32 %v6251, 1e-05
        %v6253 = vrsqrt.pop %v6252
        %v6254 = vmul.f32 %v6253, %v6252
        %v6255 = vmul.f32 %v6254, %v6253
        %v6256 = vmul.f32 0.5, %v6255
        %v6257 = vsub.f32 1.5, %v6256
        %v6258 = vmul.f32 %v6253, %v6257
        %vm6259 = vweird.f32 %v6252
        %vm6260 = vweird.f32 %v6253
        %vm6261 = vmor %vm6259, %vm6260
        %v6262 = vsel %vm6261, %v6253, %v6258
        %v6263 = vmul.f32 %v6231, %v6262
        %v6264 = vmul.f32 %v6232, %v6262
        %v6265 = vmul.f32 %v6233, %v6262
        %v6266 = vperm.slane %v4553, 2
        %v6267 = vmul.f32 %v6263, %v6266
        %v6268 = vmul.f32 %v6264, %v6266
        %v6269 = vmul.f32 %v6265, %v6266
        %v6270 = vperm.slane %v4553, 3
        %v6271 = vadd.f32 %v6267, %v6270
        %v6272 = vadd.f32 %v6268, %v6270
        %v6273 = vadd.f32 %v6269, %v6270
        %s6274 = scalar_lea.vmem [#allocation8], 192
        %v6275 = vld [vmem:[%s6274] sm:$0xff]
        %v6276 = vld [vmem:[%s6274 + $0x8] sm:$0xff]
        %v6277 = vld [vmem:[%s6274 + $0x10] sm:$0xff]
        %v6278 = vld [vmem:[%s6274 + $0x18] sm:$0xff]
        %v6279 = vld [vmem:[%s6274 + $0x20] sm:$0xff]
        %v6280 = vld [vmem:[%s6274 + $0x28] sm:$0xff]
        %v6281 = vld [vmem:[%s6274 + $0x30] sm:$0xff]
        %v6282 = vld [vmem:[%s6274 + $0x38] sm:$0xff]
        %s6283 = scalar_lea.vmem [#allocation10], 384
        %v6284 = vld [vmem:[%s6283] sm:$0xff]
        %v6285 = vld [vmem:[%s6283 + $0x8] sm:$0xff]
        %v6286 = vld [vmem:[%s6283 + $0x10] sm:$0xff]
        %v6287 = vld [vmem:[%s6283 + $0x18] sm:$0xff]
        %v6288 = vld [vmem:[%s6283 + $0x20] sm:$0xff]
        %v6289 = vld [vmem:[%s6283 + $0x28] sm:$0xff]
        %v6290 = vld [vmem:[%s6283 + $0x30] sm:$0xff]
        %v6291 = vld [vmem:[%s6283 + $0x38] sm:$0xff]
        %v6292 = vld [vmem:[%s6283 + $0x40] sm:$0xff]
        %v6293 = vld [vmem:[%s6283 + $0x48] sm:$0xff]
        %v6294 = vld [vmem:[%s6283 + $0x50] sm:$0xff]
        %v6295 = vld [vmem:[%s6283 + $0x58] sm:$0xff]
        %v6296 = vld [vmem:[%s6283 + $0x60] sm:$0xff]
        %v6297 = vld [vmem:[%s6283 + $0x68] sm:$0xff]
        %v6298 = vld [vmem:[%s6283 + $0x70] sm:$0xff]
        %v6299 = vld [vmem:[%s6283 + $0x78] sm:$0xff]
        %s6300 = scalar_lea.vmem %s10, 48
        %v6301 = vld [vmem:[%s6300] sm:$0x1f]
        %v6302 = vld [vmem:[%s6300 + $0x8] sm:$0x1f]
        %v6303 = vperm.slane %v6301, 0
        %v6304 = vperm.slane %v6302, 0
        %v6306 = vsel %vm985, %v6271, 0
        %v6309 = vsel %vm985, %v6272, 0
        %v6312 = vsel %vm985, %v6273, 0
        %6314 = vmatpush.msra.mxu0 0.0
        %6315 = vmatpush.msra.mxu0 0.0
        %6316 = vmatpush.msra.mxu0 0.0
        %6317 = vmatpush.msra.mxu0 0.0
        %6318 = vmatpush.msra.mxu0 0.0
        %6319 = vmatpush.msra.mxu0 0.0
        %6320 = vmatpush.msra.mxu0 0.0
        %6321 = vmatpush.msra.mxu0 0.0
        %6322 = vmatpush.msra.mxu0 0.0
        %6323 = vmatpush.msra.mxu0 0.0
        %6324 = vmatpush.msra.mxu0 0.0
        %6325 = vmatpush.msra.mxu0 0.0
        %6326 = vmatpush.msra.mxu0 %v6281
        %6327 = vmatpush.msra.mxu0 %v6279
        %6328 = vmatpush.msra.mxu0 %v6277
        %6329 = vmatpush.msra.mxu0 %v6275
        %6330 = vmatmul.f32.gmra.mxu0 %v6306
        %v6331 = vpop.f32.mrf.mxu0
        %v6332 = vadd.f32 %v6303, %v6331
        %6333 = vmatmul.f32.gmra.mxu0 %v6309
        %v6334 = vpop.f32.mrf.mxu0
        %v6335 = vadd.f32 %v6303, %v6334
        %6336 = vmatmul.f32.gmra.mxu0 %v6312
        %v6337 = vpop.f32.mrf.mxu0
        %v6338 = vadd.f32 %v6303, %v6337
        %6339 = vdwg.mxu0
        %6340 = vmatpush.msra.mxu0 0.0
        %6341 = vmatpush.msra.mxu0 0.0
        %6342 = vmatpush.msra.mxu0 0.0
        %6343 = vmatpush.msra.mxu0 0.0
        %6344 = vmatpush.msra.mxu0 0.0
        %6345 = vmatpush.msra.mxu0 0.0
        %6346 = vmatpush.msra.mxu0 0.0
        %6347 = vmatpush.msra.mxu0 0.0
        %6348 = vmatpush.msra.mxu0 0.0
        %6349 = vmatpush.msra.mxu0 0.0
        %6350 = vmatpush.msra.mxu0 0.0
        %6351 = vmatpush.msra.mxu0 0.0
        %6352 = vmatpush.msra.mxu0 %v6282
        %6353 = vmatpush.msra.mxu0 %v6280
        %6354 = vmatpush.msra.mxu0 %v6278
        %6355 = vmatpush.msra.mxu0 %v6276
        %6356 = vmatmul.f32.gmra.mxu0 %v6306
        %v6357 = vpop.f32.mrf.mxu0
        %v6358 = vadd.f32 %v6304, %v6357
        %6359 = vmatmul.f32.gmra.mxu0 %v6309
        %v6360 = vpop.f32.mrf.mxu0
        %v6361 = vadd.f32 %v6304, %v6360
        %6362 = vmatmul.f32.gmra.mxu0 %v6312
        %v6363 = vpop.f32.mrf.mxu0
        %v6364 = vadd.f32 %v6304, %v6363
        %6365 = vdwg.mxu0
        %v6367 = vrot.slane %v6358, 1
        %v6368 = vrot.slane %v6358, 2
        %v6369 = vrot.slane %v6358, 3
        %v6370 = vrot.slane %v6358, 4
        %v6371 = vrot.slane %v6358, 5
        %v6372 = vrot.slane %v6358, 6
        %v6373 = vrot.slane %v6358, 7
        %v6374 = vperm.slane %v6358, 0
        %v6375 = vperm.slane %v6367, 0
        %v6376 = vperm.slane %v6368, 0
        %v6377 = vperm.slane %v6369, 0
        %v6378 = vperm.slane %v6370, 0
        %v6379 = vperm.slane %v6371, 0
        %v6380 = vperm.slane %v6372, 0
        %v6381 = vperm.slane %v6373, 0
        %v6390 = vadd.f32 %v6374, %v6332
        %v6391 = vadd.f32 %v6374, %v6335
        %v6392 = vadd.f32 %v6374, %v6338
        %v6393 = vadd.f32 %v6375, %v6332
        %v6394 = vadd.f32 %v6375, %v6335
        %v6395 = vadd.f32 %v6375, %v6338
        %v6396 = vadd.f32 %v6376, %v6332
        %v6397 = vadd.f32 %v6376, %v6335
        %v6398 = vadd.f32 %v6376, %v6338
        %v6399 = vadd.f32 %v6377, %v6332
        %v6400 = vadd.f32 %v6377, %v6335
        %v6401 = vadd.f32 %v6377, %v6338
        %v6402 = vadd.f32 %v6378, %v6332
        %v6403 = vadd.f32 %v6378, %v6335
        %v6404 = vadd.f32 %v6378, %v6338
        %v6405 = vadd.f32 %v6379, %v6332
        %v6406 = vadd.f32 %v6379, %v6335
        %v6407 = vadd.f32 %v6379, %v6338
        %v6408 = vadd.f32 %v6380, %v6332
        %v6409 = vadd.f32 %v6380, %v6335
        %v6410 = vadd.f32 %v6380, %v6338
        %v6411 = vadd.f32 %v6381, %v6332
        %v6412 = vadd.f32 %v6381, %v6335
        %v6413 = vadd.f32 %v6381, %v6338
        %vm6414 = vcmp.ge.f32.partialorder %v6390, 0.0
        %vm6415 = vcmp.ge.f32.partialorder %v6391, 0.0
        %vm6416 = vcmp.ge.f32.partialorder %v6392, 0.0
        %vm6417 = vcmp.ge.f32.partialorder %v6393, 0.0
        %vm6418 = vcmp.ge.f32.partialorder %v6394, 0.0
        %vm6419 = vcmp.ge.f32.partialorder %v6395, 0.0
        %vm6420 = vcmp.ge.f32.partialorder %v6396, 0.0
        %vm6421 = vcmp.ge.f32.partialorder %v6397, 0.0
        %vm6422 = vcmp.ge.f32.partialorder %v6398, 0.0
        %vm6423 = vcmp.ge.f32.partialorder %v6399, 0.0
        %vm6424 = vcmp.ge.f32.partialorder %v6400, 0.0
        %vm6425 = vcmp.ge.f32.partialorder %v6401, 0.0
        %vm6426 = vcmp.ge.f32.partialorder %v6402, 0.0
        %vm6427 = vcmp.ge.f32.partialorder %v6403, 0.0
        %vm6428 = vcmp.ge.f32.partialorder %v6404, 0.0
        %vm6429 = vcmp.ge.f32.partialorder %v6405, 0.0
        %vm6430 = vcmp.ge.f32.partialorder %v6406, 0.0
        %vm6431 = vcmp.ge.f32.partialorder %v6407, 0.0
        %vm6432 = vcmp.ge.f32.partialorder %v6408, 0.0
        %vm6433 = vcmp.ge.f32.partialorder %v6409, 0.0
        %vm6434 = vcmp.ge.f32.partialorder %v6410, 0.0
        %vm6435 = vcmp.ge.f32.partialorder %v6411, 0.0
        %vm6436 = vcmp.ge.f32.partialorder %v6412, 0.0
        %vm6437 = vcmp.ge.f32.partialorder %v6413, 0.0
        %v6438 = vmul.f32 %v6390, 0.2
        %v6439 = vmul.f32 %v6391, 0.2
        %v6440 = vmul.f32 %v6392, 0.2
        %v6441 = vmul.f32 %v6393, 0.2
        %v6442 = vmul.f32 %v6394, 0.2
        %v6443 = vmul.f32 %v6395, 0.2
        %v6444 = vmul.f32 %v6396, 0.2
        %v6445 = vmul.f32 %v6397, 0.2
        %v6446 = vmul.f32 %v6398, 0.2
        %v6447 = vmul.f32 %v6399, 0.2
        %v6448 = vmul.f32 %v6400, 0.2
        %v6449 = vmul.f32 %v6401, 0.2
        %v6450 = vmul.f32 %v6402, 0.2
        %v6451 = vmul.f32 %v6403, 0.2
        %v6452 = vmul.f32 %v6404, 0.2
        %v6453 = vmul.f32 %v6405, 0.2
        %v6454 = vmul.f32 %v6406, 0.2
        %v6455 = vmul.f32 %v6407, 0.2
        %v6456 = vmul.f32 %v6408, 0.2
        %v6457 = vmul.f32 %v6409, 0.2
        %v6458 = vmul.f32 %v6410, 0.2
        %v6459 = vmul.f32 %v6411, 0.2
        %v6460 = vmul.f32 %v6412, 0.2
        %v6461 = vmul.f32 %v6413, 0.2
        %v6462 = vsel %vm6414, %v6390, %v6438
        %v6463 = vsel %vm6415, %v6391, %v6439
        %v6464 = vsel %vm6416, %v6392, %v6440
        %v6465 = vsel %vm6417, %v6393, %v6441
        %v6466 = vsel %vm6418, %v6394, %v6442
        %v6467 = vsel %vm6419, %v6395, %v6443
        %v6468 = vsel %vm6420, %v6396, %v6444
        %v6469 = vsel %vm6421, %v6397, %v6445
        %v6470 = vsel %vm6422, %v6398, %v6446
        %v6471 = vsel %vm6423, %v6399, %v6447
        %v6472 = vsel %vm6424, %v6400, %v6448
        %v6473 = vsel %vm6425, %v6401, %v6449
        %v6474 = vsel %vm6426, %v6402, %v6450
        %v6475 = vsel %vm6427, %v6403, %v6451
        %v6476 = vsel %vm6428, %v6404, %v6452
        %v6477 = vsel %vm6429, %v6405, %v6453
        %v6478 = vsel %vm6430, %v6406, %v6454
        %v6479 = vsel %vm6431, %v6407, %v6455
        %v6480 = vsel %vm6432, %v6408, %v6456
        %v6481 = vsel %vm6433, %v6409, %v6457
        %v6482 = vsel %vm6434, %v6410, %v6458
        %v6483 = vsel %vm6435, %v6411, %v6459
        %v6484 = vsel %vm6436, %v6412, %v6460
        %v6485 = vsel %vm6437, %v6413, %v6461
        %6486 = vmatpush.msra.mxu0 %v6299
        %6487 = vmatpush.msra.mxu0 %v6298
        %6488 = vmatpush.msra.mxu0 %v6297
        %6489 = vmatpush.msra.mxu0 %v6296
        %6490 = vmatpush.msra.mxu0 %v6295
        %6491 = vmatpush.msra.mxu0 %v6294
        %6492 = vmatpush.msra.mxu0 %v6293
        %6493 = vmatpush.msra.mxu0 %v6292
        %6494 = vmatpush.msra.mxu0 %v6291
        %6495 = vmatpush.msra.mxu0 %v6290
        %6496 = vmatpush.msra.mxu0 %v6289
        %6497 = vmatpush.msra.mxu0 %v6288
        %6498 = vmatpush.msra.mxu0 %v6287
        %6499 = vmatpush.msra.mxu0 %v6286
        %6500 = vmatpush.msra.mxu0 %v6285
        %6501 = vmatpush.msra.mxu0 %v6284
        %6502 = vmatmul.f32.gmra.mxu0 %v6462
        %v6503 = vpop.f32.mrf.mxu0
        %v6504 = vadd.f32 0.0, %v6503
        %6505 = vmatmul.f32.gmra.mxu0 %v6463
        %v6506 = vpop.f32.mrf.mxu0
        %v6507 = vadd.f32 0.0, %v6506
        %6508 = vmatmul.f32.gmra.mxu0 %v6464
        %v6509 = vpop.f32.mrf.mxu0
        %v6510 = vadd.f32 0.0, %v6509
        %6511 = vmatmul.f32.gmra.mxu0 %v6465
        %v6512 = vpop.f32.mrf.mxu0
        %v6513 = vadd.f32 0.0, %v6512
        %6514 = vmatmul.f32.gmra.mxu0 %v6466
        %v6515 = vpop.f32.mrf.mxu0
        %v6516 = vadd.f32 0.0, %v6515
        %6517 = vmatmul.f32.gmra.mxu0 %v6467
        %v6518 = vpop.f32.mrf.mxu0
        %v6519 = vadd.f32 0.0, %v6518
        %6520 = vmatmul.f32.gmra.mxu0 %v6468
        %v6521 = vpop.f32.mrf.mxu0
        %v6522 = vadd.f32 0.0, %v6521
        %6523 = vmatmul.f32.gmra.mxu0 %v6469
        %v6524 = vpop.f32.mrf.mxu0
        %v6525 = vadd.f32 0.0, %v6524
        %6526 = vmatmul.f32.gmra.mxu0 %v6470
        %v6527 = vpop.f32.mrf.mxu0
        %v6528 = vadd.f32 0.0, %v6527
        %6529 = vmatmul.f32.gmra.mxu0 %v6471
        %v6530 = vpop.f32.mrf.mxu0
        %v6531 = vadd.f32 0.0, %v6530
        %6532 = vmatmul.f32.gmra.mxu0 %v6472
        %v6533 = vpop.f32.mrf.mxu0
        %v6534 = vadd.f32 0.0, %v6533
        %6535 = vmatmul.f32.gmra.mxu0 %v6473
        %v6536 = vpop.f32.mrf.mxu0
        %v6537 = vadd.f32 0.0, %v6536
        %6538 = vmatmul.f32.gmra.mxu0 %v6474
        %v6539 = vpop.f32.mrf.mxu0
        %v6540 = vadd.f32 0.0, %v6539
        %6541 = vmatmul.f32.gmra.mxu0 %v6475
        %v6542 = vpop.f32.mrf.mxu0
        %v6543 = vadd.f32 0.0, %v6542
        %6544 = vmatmul.f32.gmra.mxu0 %v6476
        %v6545 = vpop.f32.mrf.mxu0
        %v6546 = vadd.f32 0.0, %v6545
        %6547 = vmatmul.f32.gmra.mxu0 %v6477
        %v6548 = vpop.f32.mrf.mxu0
        %v6549 = vadd.f32 0.0, %v6548
        %6550 = vmatmul.f32.gmra.mxu0 %v6478
        %v6551 = vpop.f32.mrf.mxu0
        %v6552 = vadd.f32 0.0, %v6551
        %6553 = vmatmul.f32.gmra.mxu0 %v6479
        %v6554 = vpop.f32.mrf.mxu0
        %v6555 = vadd.f32 0.0, %v6554
        %6556 = vmatmul.f32.gmra.mxu0 %v6480
        %v6557 = vpop.f32.mrf.mxu0
        %v6558 = vadd.f32 0.0, %v6557
        %6559 = vmatmul.f32.gmra.mxu0 %v6481
        %v6560 = vpop.f32.mrf.mxu0
        %v6561 = vadd.f32 0.0, %v6560
        %6562 = vmatmul.f32.gmra.mxu0 %v6482
        %v6563 = vpop.f32.mrf.mxu0
        %v6564 = vadd.f32 0.0, %v6563
        %6565 = vmatmul.f32.gmra.mxu0 %v6483
        %v6566 = vpop.f32.mrf.mxu0
        %v6567 = vadd.f32 0.0, %v6566
        %6568 = vmatmul.f32.gmra.mxu0 %v6484
        %v6569 = vpop.f32.mrf.mxu0
        %v6570 = vadd.f32 0.0, %v6569
        %6571 = vmatmul.f32.gmra.mxu0 %v6485
        %v6572 = vpop.f32.mrf.mxu0
        %v6573 = vadd.f32 0.0, %v6572
        %6574 = vdwg.mxu0
        %6575 = vmax.xlane.f32.xlu0 %v6504
        %v6576 = vpop.xlane.xlu0 %6575
        %6577 = vmax.xlane.f32.xlu0 %v6507
        %v6578 = vpop.xlane.xlu0 %6577
        %6579 = vmax.xlane.f32.xlu0 %v6510
        %v6580 = vpop.xlane.xlu0 %6579
        %6581 = vmax.xlane.f32.xlu0 %v6513
        %v6582 = vpop.xlane.xlu0 %6581
        %6583 = vmax.xlane.f32.xlu0 %v6516
        %v6584 = vpop.xlane.xlu0 %6583
        %6585 = vmax.xlane.f32.xlu0 %v6519
        %v6586 = vpop.xlane.xlu0 %6585
        %6587 = vmax.xlane.f32.xlu0 %v6522
        %v6588 = vpop.xlane.xlu0 %6587
        %6589 = vmax.xlane.f32.xlu0 %v6525
        %v6590 = vpop.xlane.xlu0 %6589
        %6591 = vmax.xlane.f32.xlu0 %v6528
        %v6592 = vpop.xlane.xlu0 %6591
        %6593 = vmax.xlane.f32.xlu0 %v6531
        %v6594 = vpop.xlane.xlu0 %6593
        %6595 = vmax.xlane.f32.xlu0 %v6534
        %v6596 = vpop.xlane.xlu0 %6595
        %6597 = vmax.xlane.f32.xlu0 %v6537
        %v6598 = vpop.xlane.xlu0 %6597
        %6599 = vmax.xlane.f32.xlu0 %v6540
        %v6600 = vpop.xlane.xlu0 %6599
        %6601 = vmax.xlane.f32.xlu0 %v6543
        %v6602 = vpop.xlane.xlu0 %6601
        %6603 = vmax.xlane.f32.xlu0 %v6546
        %v6604 = vpop.xlane.xlu0 %6603
        %6605 = vmax.xlane.f32.xlu0 %v6549
        %v6606 = vpop.xlane.xlu0 %6605
        %6607 = vmax.xlane.f32.xlu0 %v6552
        %v6608 = vpop.xlane.xlu0 %6607
        %6609 = vmax.xlane.f32.xlu0 %v6555
        %v6610 = vpop.xlane.xlu0 %6609
        %6611 = vmax.xlane.f32.xlu0 %v6558
        %v6612 = vpop.xlane.xlu0 %6611
        %6613 = vmax.xlane.f32.xlu0 %v6561
        %v6614 = vpop.xlane.xlu0 %6613
        %6615 = vmax.xlane.f32.xlu0 %v6564
        %v6616 = vpop.xlane.xlu0 %6615
        %6617 = vmax.xlane.f32.xlu0 %v6567
        %v6618 = vpop.xlane.xlu0 %6617
        %6619 = vmax.xlane.f32.xlu0 %v6570
        %v6620 = vpop.xlane.xlu0 %6619
        %6621 = vmax.xlane.f32.xlu0 %v6573
        %v6622 = vpop.xlane.xlu0 %6621
        %v6623 = vmax.f32 %v6576, %v6578
        %v6624 = vmax.f32 %v6623, %v6580
        %v6625 = vrot.slane %v6624, 4
        %v6626 = vmax.f32 %v6624, %v6625
        %v6627 = vrot.slane %v6626, 2
        %v6628 = vmax.f32 %v6626, %v6627
        %v6629 = vrot.slane %v6628, 1
        %v6630 = vmax.f32 %v6628, %v6629
        %v6631 = vmax.f32 %v6582, %v6584
        %v6632 = vmax.f32 %v6631, %v6586
        %v6633 = vrot.slane %v6632, 4
        %v6634 = vmax.f32 %v6632, %v6633
        %v6635 = vrot.slane %v6634, 2
        %v6636 = vmax.f32 %v6634, %v6635
        %v6637 = vrot.slane %v6636, 1
        %v6638 = vmax.f32 %v6636, %v6637
        %v6639 = vmax.f32 %v6588, %v6590
        %v6640 = vmax.f32 %v6639, %v6592
        %v6641 = vrot.slane %v6640, 4
        %v6642 = vmax.f32 %v6640, %v6641
        %v6643 = vrot.slane %v6642, 2
        %v6644 = vmax.f32 %v6642, %v6643
        %v6645 = vrot.slane %v6644, 1
        %v6646 = vmax.f32 %v6644, %v6645
        %v6647 = vmax.f32 %v6594, %v6596
        %v6648 = vmax.f32 %v6647, %v6598
        %v6649 = vrot.slane %v6648, 4
        %v6650 = vmax.f32 %v6648, %v6649
        %v6651 = vrot.slane %v6650, 2
        %v6652 = vmax.f32 %v6650, %v6651
        %v6653 = vrot.slane %v6652, 1
        %v6654 = vmax.f32 %v6652, %v6653
        %v6655 = vmax.f32 %v6600, %v6602
        %v6656 = vmax.f32 %v6655, %v6604
        %v6657 = vrot.slane %v6656, 4
        %v6658 = vmax.f32 %v6656, %v6657
        %v6659 = vrot.slane %v6658, 2
        %v6660 = vmax.f32 %v6658, %v6659
        %v6661 = vrot.slane %v6660, 1
        %v6662 = vmax.f32 %v6660, %v6661
        %v6663 = vmax.f32 %v6606, %v6608
        %v6664 = vmax.f32 %v6663, %v6610
        %v6665 = vrot.slane %v6664, 4
        %v6666 = vmax.f32 %v6664, %v6665
        %v6667 = vrot.slane %v6666, 2
        %v6668 = vmax.f32 %v6666, %v6667
        %v6669 = vrot.slane %v6668, 1
        %v6670 = vmax.f32 %v6668, %v6669
        %v6671 = vmax.f32 %v6612, %v6614
        %v6672 = vmax.f32 %v6671, %v6616
        %v6673 = vrot.slane %v6672, 4
        %v6674 = vmax.f32 %v6672, %v6673
        %v6675 = vrot.slane %v6674, 2
        %v6676 = vmax.f32 %v6674, %v6675
        %v6677 = vrot.slane %v6676, 1
        %v6678 = vmax.f32 %v6676, %v6677
        %v6679 = vmax.f32 %v6618, %v6620
        %v6680 = vmax.f32 %v6679, %v6622
        %v6681 = vrot.slane %v6680, 4
        %v6682 = vmax.f32 %v6680, %v6681
        %v6683 = vrot.slane %v6682, 2
        %v6684 = vmax.f32 %v6682, %v6683
        %v6685 = vrot.slane %v6684, 1
        %v6686 = vmax.f32 %v6684, %v6685
        %v6687 = vsub.f32 %v6504, %v6630
        %v6688 = vsub.f32 %v6507, %v6630
        %v6689 = vsub.f32 %v6510, %v6630
        %v6690 = vsub.f32 %v6513, %v6638
        %v6691 = vsub.f32 %v6516, %v6638
        %v6692 = vsub.f32 %v6519, %v6638
        %v6693 = vsub.f32 %v6522, %v6646
        %v6694 = vsub.f32 %v6525, %v6646
        %v6695 = vsub.f32 %v6528, %v6646
        %v6696 = vsub.f32 %v6531, %v6654
        %v6697 = vsub.f32 %v6534, %v6654
        %v6698 = vsub.f32 %v6537, %v6654
        %v6699 = vsub.f32 %v6540, %v6662
        %v6700 = vsub.f32 %v6543, %v6662
        %v6701 = vsub.f32 %v6546, %v6662
        %v6702 = vsub.f32 %v6549, %v6670
        %v6703 = vsub.f32 %v6552, %v6670
        %v6704 = vsub.f32 %v6555, %v6670
        %v6705 = vsub.f32 %v6558, %v6678
        %v6706 = vsub.f32 %v6561, %v6678
        %v6707 = vsub.f32 %v6564, %v6678
        %v6708 = vsub.f32 %v6567, %v6686
        %v6709 = vsub.f32 %v6570, %v6686
        %v6710 = vsub.f32 %v6573, %v6686
        %v6711 = vmul.f32 %v6687, 1.442695
        %v6712 = vpow.pop %v6711
        %v6713 = vmul.f32 %v6688, 1.442695
        %v6714 = vpow.pop %v6713
        %v6715 = vmul.f32 %v6689, 1.442695
        %v6716 = vpow.pop %v6715
        %v6717 = vmul.f32 %v6690, 1.442695
        %v6718 = vpow.pop %v6717
        %v6719 = vmul.f32 %v6691, 1.442695
        %v6720 = vpow.pop %v6719
        %v6721 = vmul.f32 %v6692, 1.442695
        %v6722 = vpow.pop %v6721
        %v6723 = vmul.f32 %v6693, 1.442695
        %v6724 = vpow.pop %v6723
        %v6725 = vmul.f32 %v6694, 1.442695
        %v6726 = vpow.pop %v6725
        %v6727 = vmul.f32 %v6695, 1.442695
        %v6728 = vpow.pop %v6727
        %v6729 = vmul.f32 %v6696, 1.442695
        %v6730 = vpow.pop %v6729
        %v6731 = vmul.f32 %v6697, 1.442695
        %v6732 = vpow.pop %v6731
        %v6733 = vmul.f32 %v6698, 1.442695
        %v6734 = vpow.pop %v6733
        %v6735 = vmul.f32 %v6699, 1.442695
        %v6736 = vpow.pop %v6735
        %v6737 = vmul.f32 %v6700, 1.442695
        %v6738 = vpow.pop %v6737
        %v6739 = vmul.f32 %v6701, 1.442695
        %v6740 = vpow.pop %v6739
        %v6741 = vmul.f32 %v6702, 1.442695
        %v6742 = vpow.pop %v6741
        %v6743 = vmul.f32 %v6703, 1.442695
        %v6744 = vpow.pop %v6743
        %v6745 = vmul.f32 %v6704, 1.442695
        %v6746 = vpow.pop %v6745
        %v6747 = vmul.f32 %v6705, 1.442695
        %v6748 = vpow.pop %v6747
        %v6749 = vmul.f32 %v6706, 1.442695
        %v6750 = vpow.pop %v6749
        %v6751 = vmul.f32 %v6707, 1.442695
        %v6752 = vpow.pop %v6751
        %v6753 = vmul.f32 %v6708, 1.442695
        %v6754 = vpow.pop %v6753
        %v6755 = vmul.f32 %v6709, 1.442695
        %v6756 = vpow.pop %v6755
        %v6757 = vmul.f32 %v6710, 1.442695
        %v6758 = vpow.pop %v6757
        %v6759 = vmul.f32 %v6712, %v1440
        %v6760 = vmul.f32 %v6714, %v1441
        %v6761 = vmul.f32 %v6716, %v1442
        %v6762 = vmul.f32 %v6718, %v1443
        %v6763 = vmul.f32 %v6720, %v1444
        %v6764 = vmul.f32 %v6722, %v1445
        %v6765 = vmul.f32 %v6724, %v1446
        %v6766 = vmul.f32 %v6726, %v1447
        %v6767 = vmul.f32 %v6728, %v1448
        %v6768 = vmul.f32 %v6730, %v1449
        %v6769 = vmul.f32 %v6732, %v1450
        %v6770 = vmul.f32 %v6734, %v1451
        %v6771 = vmul.f32 %v6736, %v1452
        %v6772 = vmul.f32 %v6738, %v1453
        %v6773 = vmul.f32 %v6740, %v1454
        %v6774 = vmul.f32 %v6742, %v1455
        %v6775 = vmul.f32 %v6744, %v1456
        %v6776 = vmul.f32 %v6746, %v1457
        %v6777 = vmul.f32 %v6748, %v1458
        %v6778 = vmul.f32 %v6750, %v1459
        %v6779 = vmul.f32 %v6752, %v1460
        %v6780 = vmul.f32 %v6754, %v1461
        %v6781 = vmul.f32 %v6756, %v1462
        %v6782 = vmul.f32 %v6758, %v1463
        %6783 = vmatpush.msra.mxu0 %v6774
        %6784 = vmatpush.msra.mxu0 %v6773
        %6785 = vmatpush.msra.mxu0 %v6772
        %6786 = vmatpush.msra.mxu0 %v6771
        %6787 = vmatpush.msra.mxu0 %v6770
        %6788 = vmatpush.msra.mxu0 %v6769
        %6789 = vmatpush.msra.mxu0 %v6768
        %6790 = vmatpush.msra.mxu0 %v6767
        %6791 = vmatpush.msra.mxu0 %v6766
        %6792 = vmatpush.msra.mxu0 %v6765
        %6793 = vmatpush.msra.mxu0 %v6764
        %6794 = vmatpush.msra.mxu0 %v6763
        %6795 = vmatpush.msra.mxu0 %v6762
        %6796 = vmatpush.msra.mxu0 %v6761
        %6797 = vmatpush.msra.mxu0 %v6760
        %6798 = vmatpush.msra.mxu0 %v6759
        %6799 = vmatmul.f32.gmra.mxu0 %v939
        %v6800 = vpop.f32.mrf.mxu0
        %v6801 = vadd.f32 0.0, %v6800
        %6802 = vdwg.mxu0
        %6803 = vmatpush.msra.mxu0 0.0
        %6804 = vmatpush.msra.mxu0 0.0
        %6805 = vmatpush.msra.mxu0 0.0
        %6806 = vmatpush.msra.mxu0 0.0
        %6807 = vmatpush.msra.mxu0 0.0
        %6808 = vmatpush.msra.mxu0 0.0
        %6809 = vmatpush.msra.mxu0 0.0
        %6810 = vmatpush.msra.mxu0 0.0
        %6811 = vmatpush.msra.mxu0 %v6782
        %6812 = vmatpush.msra.mxu0 %v6781
        %6813 = vmatpush.msra.mxu0 %v6780
        %6814 = vmatpush.msra.mxu0 %v6779
        %6815 = vmatpush.msra.mxu0 %v6778
        %6816 = vmatpush.msra.mxu0 %v6777
        %6817 = vmatpush.msra.mxu0 %v6776
        %6818 = vmatpush.msra.mxu0 %v6775
        %6819 = vmatmul.f32.gmra.mxu0 %v1489
        %v6820 = vpop.f32.mrf.mxu0
        %v6821 = vadd.f32 %v6801, %v6820
        %6822 = vdwg.mxu0
        %v6823 = vmul.f32 %v6759, %v6332
        %v6824 = vmul.f32 %v6760, %v6335
        %v6825 = vmul.f32 %v6761, %v6338
        %v6826 = vmul.f32 %v6762, %v6332
        %v6827 = vmul.f32 %v6763, %v6335
        %v6828 = vmul.f32 %v6764, %v6338
        %v6829 = vmul.f32 %v6765, %v6332
        %v6830 = vmul.f32 %v6766, %v6335
        %v6831 = vmul.f32 %v6767, %v6338
        %v6832 = vmul.f32 %v6768, %v6332
        %v6833 = vmul.f32 %v6769, %v6335
        %v6834 = vmul.f32 %v6770, %v6338
        %v6835 = vmul.f32 %v6771, %v6332
        %v6836 = vmul.f32 %v6772, %v6335
        %v6837 = vmul.f32 %v6773, %v6338
        %v6838 = vmul.f32 %v6774, %v6332
        %v6839 = vmul.f32 %v6775, %v6335
        %v6840 = vmul.f32 %v6776, %v6338
        %v6841 = vmul.f32 %v6777, %v6332
        %v6842 = vmul.f32 %v6778, %v6335
        %v6843 = vmul.f32 %v6779, %v6338
        %v6844 = vmul.f32 %v6780, %v6332
        %v6845 = vmul.f32 %v6781, %v6335
        %v6846 = vmul.f32 %v6782, %v6338
        %6847 = vmatpush.msra.mxu0 %v6838
        %6848 = vmatpush.msra.mxu0 %v6837
        %6849 = vmatpush.msra.mxu0 %v6836
        %6850 = vmatpush.msra.mxu0 %v6835
        %6851 = vmatpush.msra.mxu0 %v6834
        %6852 = vmatpush.msra.mxu0 %v6833
        %6853 = vmatpush.msra.mxu0 %v6832
        %6854 = vmatpush.msra.mxu0 %v6831
        %6855 = vmatpush.msra.mxu0 %v6830
        %6856 = vmatpush.msra.mxu0 %v6829
        %6857 = vmatpush.msra.mxu0 %v6828
        %6858 = vmatpush.msra.mxu0 %v6827
        %6859 = vmatpush.msra.mxu0 %v6826
        %6860 = vmatpush.msra.mxu0 %v6825
        %6861 = vmatpush.msra.mxu0 %v6824
        %6862 = vmatpush.msra.mxu0 %v6823
        %6863 = vmatmul.f32.gmra.mxu0 %v939
        %v6864 = vpop.f32.mrf.mxu0
        %v6865 = vadd.f32 0.0, %v6864
        %6866 = vdwg.mxu0
        %6867 = vmatpush.msra.mxu0 0.0
        %6868 = vmatpush.msra.mxu0 0.0
        %6869 = vmatpush.msra.mxu0 0.0
        %6870 = vmatpush.msra.mxu0 0.0
        %6871 = vmatpush.msra.mxu0 0.0
        %6872 = vmatpush.msra.mxu0 0.0
        %6873 = vmatpush.msra.mxu0 0.0
        %6874 = vmatpush.msra.mxu0 0.0
        %6875 = vmatpush.msra.mxu0 %v6846
        %6876 = vmatpush.msra.mxu0 %v6845
        %6877 = vmatpush.msra.mxu0 %v6844
        %6878 = vmatpush.msra.mxu0 %v6843
        %6879 = vmatpush.msra.mxu0 %v6842
        %6880 = vmatpush.msra.mxu0 %v6841
        %6881 = vmatpush.msra.mxu0 %v6840
        %6882 = vmatpush.msra.mxu0 %v6839
        %6883 = vmatmul.f32.gmra.mxu0 %v1489
        %v6884 = vpop.f32.mrf.mxu0
        %v6885 = vadd.f32 %v6865, %v6884
        %6886 = vdwg.mxu0
        %v6887 = vrcp.pop %v6821
        %v6888 = vmul.f32 %v6885, %v6887
        %v6890 = vrot.slane %v6361, 1
        %v6891 = vrot.slane %v6361, 2
        %v6892 = vrot.slane %v6361, 3
        %v6893 = vrot.slane %v6361, 4
        %v6894 = vrot.slane %v6361, 5
        %v6895 = vrot.slane %v6361, 6
        %v6896 = vrot.slane %v6361, 7
        %v6897 = vperm.slane %v6361, 0
        %v6898 = vperm.slane %v6890, 0
        %v6899 = vperm.slane %v6891, 0
        %v6900 = vperm.slane %v6892, 0
        %v6901 = vperm.slane %v6893, 0
        %v6902 = vperm.slane %v6894, 0
        %v6903 = vperm.slane %v6895, 0
        %v6904 = vperm.slane %v6896, 0
        %v6913 = vadd.f32 %v6897, %v6332
        %v6914 = vadd.f32 %v6897, %v6335
        %v6915 = vadd.f32 %v6897, %v6338
        %v6916 = vadd.f32 %v6898, %v6332
        %v6917 = vadd.f32 %v6898, %v6335
        %v6918 = vadd.f32 %v6898, %v6338
        %v6919 = vadd.f32 %v6899, %v6332
        %v6920 = vadd.f32 %v6899, %v6335
        %v6921 = vadd.f32 %v6899, %v6338
        %v6922 = vadd.f32 %v6900, %v6332
        %v6923 = vadd.f32 %v6900, %v6335
        %v6924 = vadd.f32 %v6900, %v6338
        %v6925 = vadd.f32 %v6901, %v6332
        %v6926 = vadd.f32 %v6901, %v6335
        %v6927 = vadd.f32 %v6901, %v6338
        %v6928 = vadd.f32 %v6902, %v6332
        %v6929 = vadd.f32 %v6902, %v6335
        %v6930 = vadd.f32 %v6902, %v6338
        %v6931 = vadd.f32 %v6903, %v6332
        %v6932 = vadd.f32 %v6903, %v6335
        %v6933 = vadd.f32 %v6903, %v6338
        %v6934 = vadd.f32 %v6904, %v6332
        %v6935 = vadd.f32 %v6904, %v6335
        %v6936 = vadd.f32 %v6904, %v6338
        %vm6937 = vcmp.ge.f32.partialorder %v6913, 0.0
        %vm6938 = vcmp.ge.f32.partialorder %v6914, 0.0
        %vm6939 = vcmp.ge.f32.partialorder %v6915, 0.0
        %vm6940 = vcmp.ge.f32.partialorder %v6916, 0.0
        %vm6941 = vcmp.ge.f32.partialorder %v6917, 0.0
        %vm6942 = vcmp.ge.f32.partialorder %v6918, 0.0
        %vm6943 = vcmp.ge.f32.partialorder %v6919, 0.0
        %vm6944 = vcmp.ge.f32.partialorder %v6920, 0.0
        %vm6945 = vcmp.ge.f32.partialorder %v6921, 0.0
        %vm6946 = vcmp.ge.f32.partialorder %v6922, 0.0
        %vm6947 = vcmp.ge.f32.partialorder %v6923, 0.0
        %vm6948 = vcmp.ge.f32.partialorder %v6924, 0.0
        %vm6949 = vcmp.ge.f32.partialorder %v6925, 0.0
        %vm6950 = vcmp.ge.f32.partialorder %v6926, 0.0
        %vm6951 = vcmp.ge.f32.partialorder %v6927, 0.0
        %vm6952 = vcmp.ge.f32.partialorder %v6928, 0.0
        %vm6953 = vcmp.ge.f32.partialorder %v6929, 0.0
        %vm6954 = vcmp.ge.f32.partialorder %v6930, 0.0
        %vm6955 = vcmp.ge.f32.partialorder %v6931, 0.0
        %vm6956 = vcmp.ge.f32.partialorder %v6932, 0.0
        %vm6957 = vcmp.ge.f32.partialorder %v6933, 0.0
        %vm6958 = vcmp.ge.f32.partialorder %v6934, 0.0
        %vm6959 = vcmp.ge.f32.partialorder %v6935, 0.0
        %vm6960 = vcmp.ge.f32.partialorder %v6936, 0.0
        %v6961 = vmul.f32 %v6913, 0.2
        %v6962 = vmul.f32 %v6914, 0.2
        %v6963 = vmul.f32 %v6915, 0.2
        %v6964 = vmul.f32 %v6916, 0.2
        %v6965 = vmul.f32 %v6917, 0.2
        %v6966 = vmul.f32 %v6918, 0.2
        %v6967 = vmul.f32 %v6919, 0.2
        %v6968 = vmul.f32 %v6920, 0.2
        %v6969 = vmul.f32 %v6921, 0.2
        %v6970 = vmul.f32 %v6922, 0.2
        %v6971 = vmul.f32 %v6923, 0.2
        %v6972 = vmul.f32 %v6924, 0.2
        %v6973 = vmul.f32 %v6925, 0.2
        %v6974 = vmul.f32 %v6926, 0.2
        %v6975 = vmul.f32 %v6927, 0.2
        %v6976 = vmul.f32 %v6928, 0.2
        %v6977 = vmul.f32 %v6929, 0.2
        %v6978 = vmul.f32 %v6930, 0.2
        %v6979 = vmul.f32 %v6931, 0.2
        %v6980 = vmul.f32 %v6932, 0.2
        %v6981 = vmul.f32 %v6933, 0.2
        %v6982 = vmul.f32 %v6934, 0.2
        %v6983 = vmul.f32 %v6935, 0.2
        %v6984 = vmul.f32 %v6936, 0.2
        %v6985 = vsel %vm6937, %v6913, %v6961
        %v6986 = vsel %vm6938, %v6914, %v6962
        %v6987 = vsel %vm6939, %v6915, %v6963
        %v6988 = vsel %vm6940, %v6916, %v6964
        %v6989 = vsel %vm6941, %v6917, %v6965
        %v6990 = vsel %vm6942, %v6918, %v6966
        %v6991 = vsel %vm6943, %v6919, %v6967
        %v6992 = vsel %vm6944, %v6920, %v6968
        %v6993 = vsel %vm6945, %v6921, %v6969
        %v6994 = vsel %vm6946, %v6922, %v6970
        %v6995 = vsel %vm6947, %v6923, %v6971
        %v6996 = vsel %vm6948, %v6924, %v6972
        %v6997 = vsel %vm6949, %v6925, %v6973
        %v6998 = vsel %vm6950, %v6926, %v6974
        %v6999 = vsel %vm6951, %v6927, %v6975
        %v7000 = vsel %vm6952, %v6928, %v6976
        %v7001 = vsel %vm6953, %v6929, %v6977
        %v7002 = vsel %vm6954, %v6930, %v6978
        %v7003 = vsel %vm6955, %v6931, %v6979
        %v7004 = vsel %vm6956, %v6932, %v6980
        %v7005 = vsel %vm6957, %v6933, %v6981
        %v7006 = vsel %vm6958, %v6934, %v6982
        %v7007 = vsel %vm6959, %v6935, %v6983
        %v7008 = vsel %vm6960, %v6936, %v6984
        %7009 = vmatpush.msra.mxu0 %v6299
        %7010 = vmatpush.msra.mxu0 %v6298
        %7011 = vmatpush.msra.mxu0 %v6297
        %7012 = vmatpush.msra.mxu0 %v6296
        %7013 = vmatpush.msra.mxu0 %v6295
        %7014 = vmatpush.msra.mxu0 %v6294
        %7015 = vmatpush.msra.mxu0 %v6293
        %7016 = vmatpush.msra.mxu0 %v6292
        %7017 = vmatpush.msra.mxu0 %v6291
        %7018 = vmatpush.msra.mxu0 %v6290
        %7019 = vmatpush.msra.mxu0 %v6289
        %7020 = vmatpush.msra.mxu0 %v6288
        %7021 = vmatpush.msra.mxu0 %v6287
        %7022 = vmatpush.msra.mxu0 %v6286
        %7023 = vmatpush.msra.mxu0 %v6285
        %7024 = vmatpush.msra.mxu0 %v6284
        %7025 = vmatmul.f32.gmra.mxu0 %v6985
        %v7026 = vpop.f32.mrf.mxu0
        %v7027 = vadd.f32 0.0, %v7026
        %7028 = vmatmul.f32.gmra.mxu0 %v6986
        %v7029 = vpop.f32.mrf.mxu0
        %v7030 = vadd.f32 0.0, %v7029
        %7031 = vmatmul.f32.gmra.mxu0 %v6987
        %v7032 = vpop.f32.mrf.mxu0
        %v7033 = vadd.f32 0.0, %v7032
        %7034 = vmatmul.f32.gmra.mxu0 %v6988
        %v7035 = vpop.f32.mrf.mxu0
        %v7036 = vadd.f32 0.0, %v7035
        %7037 = vmatmul.f32.gmra.mxu0 %v6989
        %v7038 = vpop.f32.mrf.mxu0
        %v7039 = vadd.f32 0.0, %v7038
        %7040 = vmatmul.f32.gmra.mxu0 %v6990
        %v7041 = vpop.f32.mrf.mxu0
        %v7042 = vadd.f32 0.0, %v7041
        %7043 = vmatmul.f32.gmra.mxu0 %v6991
        %v7044 = vpop.f32.mrf.mxu0
        %v7045 = vadd.f32 0.0, %v7044
        %7046 = vmatmul.f32.gmra.mxu0 %v6992
        %v7047 = vpop.f32.mrf.mxu0
        %v7048 = vadd.f32 0.0, %v7047
        %7049 = vmatmul.f32.gmra.mxu0 %v6993
        %v7050 = vpop.f32.mrf.mxu0
        %v7051 = vadd.f32 0.0, %v7050
        %7052 = vmatmul.f32.gmra.mxu0 %v6994
        %v7053 = vpop.f32.mrf.mxu0
        %v7054 = vadd.f32 0.0, %v7053
        %7055 = vmatmul.f32.gmra.mxu0 %v6995
        %v7056 = vpop.f32.mrf.mxu0
        %v7057 = vadd.f32 0.0, %v7056
        %7058 = vmatmul.f32.gmra.mxu0 %v6996
        %v7059 = vpop.f32.mrf.mxu0
        %v7060 = vadd.f32 0.0, %v7059
        %7061 = vmatmul.f32.gmra.mxu0 %v6997
        %v7062 = vpop.f32.mrf.mxu0
        %v7063 = vadd.f32 0.0, %v7062
        %7064 = vmatmul.f32.gmra.mxu0 %v6998
        %v7065 = vpop.f32.mrf.mxu0
        %v7066 = vadd.f32 0.0, %v7065
        %7067 = vmatmul.f32.gmra.mxu0 %v6999
        %v7068 = vpop.f32.mrf.mxu0
        %v7069 = vadd.f32 0.0, %v7068
        %7070 = vmatmul.f32.gmra.mxu0 %v7000
        %v7071 = vpop.f32.mrf.mxu0
        %v7072 = vadd.f32 0.0, %v7071
        %7073 = vmatmul.f32.gmra.mxu0 %v7001
        %v7074 = vpop.f32.mrf.mxu0
        %v7075 = vadd.f32 0.0, %v7074
        %7076 = vmatmul.f32.gmra.mxu0 %v7002
        %v7077 = vpop.f32.mrf.mxu0
        %v7078 = vadd.f32 0.0, %v7077
        %7079 = vmatmul.f32.gmra.mxu0 %v7003
        %v7080 = vpop.f32.mrf.mxu0
        %v7081 = vadd.f32 0.0, %v7080
        %7082 = vmatmul.f32.gmra.mxu0 %v7004
        %v7083 = vpop.f32.mrf.mxu0
        %v7084 = vadd.f32 0.0, %v7083
        %7085 = vmatmul.f32.gmra.mxu0 %v7005
        %v7086 = vpop.f32.mrf.mxu0
        %v7087 = vadd.f32 0.0, %v7086
        %7088 = vmatmul.f32.gmra.mxu0 %v7006
        %v7089 = vpop.f32.mrf.mxu0
        %v7090 = vadd.f32 0.0, %v7089
        %7091 = vmatmul.f32.gmra.mxu0 %v7007
        %v7092 = vpop.f32.mrf.mxu0
        %v7093 = vadd.f32 0.0, %v7092
        %7094 = vmatmul.f32.gmra.mxu0 %v7008
        %v7095 = vpop.f32.mrf.mxu0
        %v7096 = vadd.f32 0.0, %v7095
        %7097 = vdwg.mxu0
        %7098 = vmax.xlane.f32.xlu0 %v7027
        %v7099 = vpop.xlane.xlu0 %7098
        %7100 = vmax.xlane.f32.xlu0 %v7030
        %v7101 = vpop.xlane.xlu0 %7100
        %7102 = vmax.xlane.f32.xlu0 %v7033
        %v7103 = vpop.xlane.xlu0 %7102
        %7104 = vmax.xlane.f32.xlu0 %v7036
        %v7105 = vpop.xlane.xlu0 %7104
        %7106 = vmax.xlane.f32.xlu0 %v7039
        %v7107 = vpop.xlane.xlu0 %7106
        %7108 = vmax.xlane.f32.xlu0 %v7042
        %v7109 = vpop.xlane.xlu0 %7108
        %7110 = vmax.xlane.f32.xlu0 %v7045
        %v7111 = vpop.xlane.xlu0 %7110
        %7112 = vmax.xlane.f32.xlu0 %v7048
        %v7113 = vpop.xlane.xlu0 %7112
        %7114 = vmax.xlane.f32.xlu0 %v7051
        %v7115 = vpop.xlane.xlu0 %7114
        %7116 = vmax.xlane.f32.xlu0 %v7054
        %v7117 = vpop.xlane.xlu0 %7116
        %7118 = vmax.xlane.f32.xlu0 %v7057
        %v7119 = vpop.xlane.xlu0 %7118
        %7120 = vmax.xlane.f32.xlu0 %v7060
        %v7121 = vpop.xlane.xlu0 %7120
        %7122 = vmax.xlane.f32.xlu0 %v7063
        %v7123 = vpop.xlane.xlu0 %7122
        %7124 = vmax.xlane.f32.xlu0 %v7066
        %v7125 = vpop.xlane.xlu0 %7124
        %7126 = vmax.xlane.f32.xlu0 %v7069
        %v7127 = vpop.xlane.xlu0 %7126
        %7128 = vmax.xlane.f32.xlu0 %v7072
        %v7129 = vpop.xlane.xlu0 %7128
        %7130 = vmax.xlane.f32.xlu0 %v7075
        %v7131 = vpop.xlane.xlu0 %7130
        %7132 = vmax.xlane.f32.xlu0 %v7078
        %v7133 = vpop.xlane.xlu0 %7132
        %7134 = vmax.xlane.f32.xlu0 %v7081
        %v7135 = vpop.xlane.xlu0 %7134
        %7136 = vmax.xlane.f32.xlu0 %v7084
        %v7137 = vpop.xlane.xlu0 %7136
        %7138 = vmax.xlane.f32.xlu0 %v7087
        %v7139 = vpop.xlane.xlu0 %7138
        %7140 = vmax.xlane.f32.xlu0 %v7090
        %v7141 = vpop.xlane.xlu0 %7140
        %7142 = vmax.xlane.f32.xlu0 %v7093
        %v7143 = vpop.xlane.xlu0 %7142
        %7144 = vmax.xlane.f32.xlu0 %v7096
        %v7145 = vpop.xlane.xlu0 %7144
        %v7146 = vmax.f32 %v7099, %v7101
        %v7147 = vmax.f32 %v7146, %v7103
        %v7148 = vrot.slane %v7147, 4
        %v7149 = vmax.f32 %v7147, %v7148
        %v7150 = vrot.slane %v7149, 2
        %v7151 = vmax.f32 %v7149, %v7150
        %v7152 = vrot.slane %v7151, 1
        %v7153 = vmax.f32 %v7151, %v7152
        %v7154 = vmax.f32 %v7105, %v7107
        %v7155 = vmax.f32 %v7154, %v7109
        %v7156 = vrot.slane %v7155, 4
        %v7157 = vmax.f32 %v7155, %v7156
        %v7158 = vrot.slane %v7157, 2
        %v7159 = vmax.f32 %v7157, %v7158
        %v7160 = vrot.slane %v7159, 1
        %v7161 = vmax.f32 %v7159, %v7160
        %v7162 = vmax.f32 %v7111, %v7113
        %v7163 = vmax.f32 %v7162, %v7115
        %v7164 = vrot.slane %v7163, 4
        %v7165 = vmax.f32 %v7163, %v7164
        %v7166 = vrot.slane %v7165, 2
        %v7167 = vmax.f32 %v7165, %v7166
        %v7168 = vrot.slane %v7167, 1
        %v7169 = vmax.f32 %v7167, %v7168
        %v7170 = vmax.f32 %v7117, %v7119
        %v7171 = vmax.f32 %v7170, %v7121
        %v7172 = vrot.slane %v7171, 4
        %v7173 = vmax.f32 %v7171, %v7172
        %v7174 = vrot.slane %v7173, 2
        %v7175 = vmax.f32 %v7173, %v7174
        %v7176 = vrot.slane %v7175, 1
        %v7177 = vmax.f32 %v7175, %v7176
        %v7178 = vmax.f32 %v7123, %v7125
        %v7179 = vmax.f32 %v7178, %v7127
        %v7180 = vrot.slane %v7179, 4
        %v7181 = vmax.f32 %v7179, %v7180
        %v7182 = vrot.slane %v7181, 2
        %v7183 = vmax.f32 %v7181, %v7182
        %v7184 = vrot.slane %v7183, 1
        %v7185 = vmax.f32 %v7183, %v7184
        %v7186 = vmax.f32 %v7129, %v7131
        %v7187 = vmax.f32 %v7186, %v7133
        %v7188 = vrot.slane %v7187, 4
        %v7189 = vmax.f32 %v7187, %v7188
        %v7190 = vrot.slane %v7189, 2
        %v7191 = vmax.f32 %v7189, %v7190
        %v7192 = vrot.slane %v7191, 1
        %v7193 = vmax.f32 %v7191, %v7192
        %v7194 = vmax.f32 %v7135, %v7137
        %v7195 = vmax.f32 %v7194, %v7139
        %v7196 = vrot.slane %v7195, 4
        %v7197 = vmax.f32 %v7195, %v7196
        %v7198 = vrot.slane %v7197, 2
        %v7199 = vmax.f32 %v7197, %v7198
        %v7200 = vrot.slane %v7199, 1
        %v7201 = vmax.f32 %v7199, %v7200
        %v7202 = vmax.f32 %v7141, %v7143
        %v7203 = vmax.f32 %v7202, %v7145
        %v7204 = vrot.slane %v7203, 4
        %v7205 = vmax.f32 %v7203, %v7204
        %v7206 = vrot.slane %v7205, 2
        %v7207 = vmax.f32 %v7205, %v7206
        %v7208 = vrot.slane %v7207, 1
        %v7209 = vmax.f32 %v7207, %v7208
        %v7210 = vsub.f32 %v7027, %v7153
        %v7211 = vsub.f32 %v7030, %v7153
        %v7212 = vsub.f32 %v7033, %v7153
        %v7213 = vsub.f32 %v7036, %v7161
        %v7214 = vsub.f32 %v7039, %v7161
        %v7215 = vsub.f32 %v7042, %v7161
        %v7216 = vsub.f32 %v7045, %v7169
        %v7217 = vsub.f32 %v7048, %v7169
        %v7218 = vsub.f32 %v7051, %v7169
        %v7219 = vsub.f32 %v7054, %v7177
        %v7220 = vsub.f32 %v7057, %v7177
        %v7221 = vsub.f32 %v7060, %v7177
        %v7222 = vsub.f32 %v7063, %v7185
        %v7223 = vsub.f32 %v7066, %v7185
        %v7224 = vsub.f32 %v7069, %v7185
        %v7225 = vsub.f32 %v7072, %v7193
        %v7226 = vsub.f32 %v7075, %v7193
        %v7227 = vsub.f32 %v7078, %v7193
        %v7228 = vsub.f32 %v7081, %v7201
        %v7229 = vsub.f32 %v7084, %v7201
        %v7230 = vsub.f32 %v7087, %v7201
        %v7231 = vsub.f32 %v7090, %v7209
        %v7232 = vsub.f32 %v7093, %v7209
        %v7233 = vsub.f32 %v7096, %v7209
        %v7234 = vmul.f32 %v7210, 1.442695
        %v7235 = vpow.pop %v7234
        %v7236 = vmul.f32 %v7211, 1.442695
        %v7237 = vpow.pop %v7236
        %v7238 = vmul.f32 %v7212, 1.442695
        %v7239 = vpow.pop %v7238
        %v7240 = vmul.f32 %v7213, 1.442695
        %v7241 = vpow.pop %v7240
        %v7242 = vmul.f32 %v7214, 1.442695
        %v7243 = vpow.pop %v7242
        %v7244 = vmul.f32 %v7215, 1.442695
        %v7245 = vpow.pop %v7244
        %v7246 = vmul.f32 %v7216, 1.442695
        %v7247 = vpow.pop %v7246
        %v7248 = vmul.f32 %v7217, 1.442695
        %v7249 = vpow.pop %v7248
        %v7250 = vmul.f32 %v7218, 1.442695
        %v7251 = vpow.pop %v7250
        %v7252 = vmul.f32 %v7219, 1.442695
        %v7253 = vpow.pop %v7252
        %v7254 = vmul.f32 %v7220, 1.442695
        %v7255 = vpow.pop %v7254
        %v7256 = vmul.f32 %v7221, 1.442695
        %v7257 = vpow.pop %v7256
        %v7258 = vmul.f32 %v7222, 1.442695
        %v7259 = vpow.pop %v7258
        %v7260 = vmul.f32 %v7223, 1.442695
        %v7261 = vpow.pop %v7260
        %v7262 = vmul.f32 %v7224, 1.442695
        %v7263 = vpow.pop %v7262
        %v7264 = vmul.f32 %v7225, 1.442695
        %v7265 = vpow.pop %v7264
        %v7266 = vmul.f32 %v7226, 1.442695
        %v7267 = vpow.pop %v7266
        %v7268 = vmul.f32 %v7227, 1.442695
        %v7269 = vpow.pop %v7268
        %v7270 = vmul.f32 %v7228, 1.442695
        %v7271 = vpow.pop %v7270
        %v7272 = vmul.f32 %v7229, 1.442695
        %v7273 = vpow.pop %v7272
        %v7274 = vmul.f32 %v7230, 1.442695
        %v7275 = vpow.pop %v7274
        %v7276 = vmul.f32 %v7231, 1.442695
        %v7277 = vpow.pop %v7276
        %v7278 = vmul.f32 %v7232, 1.442695
        %v7279 = vpow.pop %v7278
        %v7280 = vmul.f32 %v7233, 1.442695
        %v7281 = vpow.pop %v7280
        %v7282 = vmul.f32 %v7235, %v1990
        %v7283 = vmul.f32 %v7237, %v1991
        %v7284 = vmul.f32 %v7239, %v1992
        %v7285 = vmul.f32 %v7241, %v1993
        %v7286 = vmul.f32 %v7243, %v1994
        %v7287 = vmul.f32 %v7245, %v1995
        %v7288 = vmul.f32 %v7247, %v1996
        %v7289 = vmul.f32 %v7249, %v1997
        %v7290 = vmul.f32 %v7251, %v1998
        %v7291 = vmul.f32 %v7253, %v1999
        %v7292 = vmul.f32 %v7255, %v2000
        %v7293 = vmul.f32 %v7257, %v2001
        %v7294 = vmul.f32 %v7259, %v2002
        %v7295 = vmul.f32 %v7261, %v2003
        %v7296 = vmul.f32 %v7263, %v2004
        %v7297 = vmul.f32 %v7265, %v2005
        %v7298 = vmul.f32 %v7267, %v2006
        %v7299 = vmul.f32 %v7269, %v2007
        %v7300 = vmul.f32 %v7271, %v2008
        %v7301 = vmul.f32 %v7273, %v2009
        %v7302 = vmul.f32 %v7275, %v2010
        %v7303 = vmul.f32 %v7277, %v2011
        %v7304 = vmul.f32 %v7279, %v2012
        %v7305 = vmul.f32 %v7281, %v2013
        %7306 = vmatpush.msra.mxu0 %v7297
        %7307 = vmatpush.msra.mxu0 %v7296
        %7308 = vmatpush.msra.mxu0 %v7295
        %7309 = vmatpush.msra.mxu0 %v7294
        %7310 = vmatpush.msra.mxu0 %v7293
        %7311 = vmatpush.msra.mxu0 %v7292
        %7312 = vmatpush.msra.mxu0 %v7291
        %7313 = vmatpush.msra.mxu0 %v7290
        %7314 = vmatpush.msra.mxu0 %v7289
        %7315 = vmatpush.msra.mxu0 %v7288
        %7316 = vmatpush.msra.mxu0 %v7287
        %7317 = vmatpush.msra.mxu0 %v7286
        %7318 = vmatpush.msra.mxu0 %v7285
        %7319 = vmatpush.msra.mxu0 %v7284
        %7320 = vmatpush.msra.mxu0 %v7283
        %7321 = vmatpush.msra.mxu0 %v7282
        %7322 = vmatmul.f32.gmra.mxu0 %v939
        %v7323 = vpop.f32.mrf.mxu0
        %v7324 = vadd.f32 0.0, %v7323
        %7325 = vdwg.mxu0
        %7326 = vmatpush.msra.mxu0 0.0
        %7327 = vmatpush.msra.mxu0 0.0
        %7328 = vmatpush.msra.mxu0 0.0
        %7329 = vmatpush.msra.mxu0 0.0
        %7330 = vmatpush.msra.mxu0 0.0
        %7331 = vmatpush.msra.mxu0 0.0
        %7332 = vmatpush.msra.mxu0 0.0
        %7333 = vmatpush.msra.mxu0 0.0
        %7334 = vmatpush.msra.mxu0 %v7305
        %7335 = vmatpush.msra.mxu0 %v7304
        %7336 = vmatpush.msra.mxu0 %v7303
        %7337 = vmatpush.msra.mxu0 %v7302
        %7338 = vmatpush.msra.mxu0 %v7301
        %7339 = vmatpush.msra.mxu0 %v7300
        %7340 = vmatpush.msra.mxu0 %v7299
        %7341 = vmatpush.msra.mxu0 %v7298
        %7342 = vmatmul.f32.gmra.mxu0 %v1489
        %v7343 = vpop.f32.mrf.mxu0
        %v7344 = vadd.f32 %v7324, %v7343
        %7345 = vdwg.mxu0
        %v7346 = vmul.f32 %v7282, %v6332
        %v7347 = vmul.f32 %v7283, %v6335
        %v7348 = vmul.f32 %v7284, %v6338
        %v7349 = vmul.f32 %v7285, %v6332
        %v7350 = vmul.f32 %v7286, %v6335
        %v7351 = vmul.f32 %v7287, %v6338
        %v7352 = vmul.f32 %v7288, %v6332
        %v7353 = vmul.f32 %v7289, %v6335
        %v7354 = vmul.f32 %v7290, %v6338
        %v7355 = vmul.f32 %v7291, %v6332
        %v7356 = vmul.f32 %v7292, %v6335
        %v7357 = vmul.f32 %v7293, %v6338
        %v7358 = vmul.f32 %v7294, %v6332
        %v7359 = vmul.f32 %v7295, %v6335
        %v7360 = vmul.f32 %v7296, %v6338
        %v7361 = vmul.f32 %v7297, %v6332
        %v7362 = vmul.f32 %v7298, %v6335
        %v7363 = vmul.f32 %v7299, %v6338
        %v7364 = vmul.f32 %v7300, %v6332
        %v7365 = vmul.f32 %v7301, %v6335
        %v7366 = vmul.f32 %v7302, %v6338
        %v7367 = vmul.f32 %v7303, %v6332
        %v7368 = vmul.f32 %v7304, %v6335
        %v7369 = vmul.f32 %v7305, %v6338
        %7370 = vmatpush.msra.mxu0 %v7361
        %7371 = vmatpush.msra.mxu0 %v7360
        %7372 = vmatpush.msra.mxu0 %v7359
        %7373 = vmatpush.msra.mxu0 %v7358
        %7374 = vmatpush.msra.mxu0 %v7357
        %7375 = vmatpush.msra.mxu0 %v7356
        %7376 = vmatpush.msra.mxu0 %v7355
        %7377 = vmatpush.msra.mxu0 %v7354
        %7378 = vmatpush.msra.mxu0 %v7353
        %7379 = vmatpush.msra.mxu0 %v7352
        %7380 = vmatpush.msra.mxu0 %v7351
        %7381 = vmatpush.msra.mxu0 %v7350
        %7382 = vmatpush.msra.mxu0 %v7349
        %7383 = vmatpush.msra.mxu0 %v7348
        %7384 = vmatpush.msra.mxu0 %v7347
        %7385 = vmatpush.msra.mxu0 %v7346
        %7386 = vmatmul.f32.gmra.mxu0 %v939
        %v7387 = vpop.f32.mrf.mxu0
        %v7388 = vadd.f32 0.0, %v7387
        %7389 = vdwg.mxu0
        %7390 = vmatpush.msra.mxu0 0.0
        %7391 = vmatpush.msra.mxu0 0.0
        %7392 = vmatpush.msra.mxu0 0.0
        %7393 = vmatpush.msra.mxu0 0.0
        %7394 = vmatpush.msra.mxu0 0.0
        %7395 = vmatpush.msra.mxu0 0.0
        %7396 = vmatpush.msra.mxu0 0.0
        %7397 = vmatpush.msra.mxu0 0.0
        %7398 = vmatpush.msra.mxu0 %v7369
        %7399 = vmatpush.msra.mxu0 %v7368
        %7400 = vmatpush.msra.mxu0 %v7367
        %7401 = vmatpush.msra.mxu0 %v7366
        %7402 = vmatpush.msra.mxu0 %v7365
        %7403 = vmatpush.msra.mxu0 %v7364
        %7404 = vmatpush.msra.mxu0 %v7363
        %7405 = vmatpush.msra.mxu0 %v7362
        %7406 = vmatmul.f32.gmra.mxu0 %v1489
        %v7407 = vpop.f32.mrf.mxu0
        %v7408 = vadd.f32 %v7388, %v7407
        %7409 = vdwg.mxu0
        %v7410 = vrcp.pop %v7344
        %v7411 = vmul.f32 %v7408, %v7410
        %v7413 = vrot.slane %v6364, 1
        %v7414 = vrot.slane %v6364, 2
        %v7415 = vrot.slane %v6364, 3
        %v7416 = vrot.slane %v6364, 4
        %v7417 = vrot.slane %v6364, 5
        %v7418 = vrot.slane %v6364, 6
        %v7419 = vrot.slane %v6364, 7
        %v7420 = vperm.slane %v6364, 0
        %v7421 = vperm.slane %v7413, 0
        %v7422 = vperm.slane %v7414, 0
        %v7423 = vperm.slane %v7415, 0
        %v7424 = vperm.slane %v7416, 0
        %v7425 = vperm.slane %v7417, 0
        %v7426 = vperm.slane %v7418, 0
        %v7427 = vperm.slane %v7419, 0
        %v7436 = vadd.f32 %v7420, %v6332
        %v7437 = vadd.f32 %v7420, %v6335
        %v7438 = vadd.f32 %v7420, %v6338
        %v7439 = vadd.f32 %v7421, %v6332
        %v7440 = vadd.f32 %v7421, %v6335
        %v7441 = vadd.f32 %v7421, %v6338
        %v7442 = vadd.f32 %v7422, %v6332
        %v7443 = vadd.f32 %v7422, %v6335
        %v7444 = vadd.f32 %v7422, %v6338
        %v7445 = vadd.f32 %v7423, %v6332
        %v7446 = vadd.f32 %v7423, %v6335
        %v7447 = vadd.f32 %v7423, %v6338
        %v7448 = vadd.f32 %v7424, %v6332
        %v7449 = vadd.f32 %v7424, %v6335
        %v7450 = vadd.f32 %v7424, %v6338
        %v7451 = vadd.f32 %v7425, %v6332
        %v7452 = vadd.f32 %v7425, %v6335
        %v7453 = vadd.f32 %v7425, %v6338
        %v7454 = vadd.f32 %v7426, %v6332
        %v7455 = vadd.f32 %v7426, %v6335
        %v7456 = vadd.f32 %v7426, %v6338
        %v7457 = vadd.f32 %v7427, %v6332
        %v7458 = vadd.f32 %v7427, %v6335
        %v7459 = vadd.f32 %v7427, %v6338
        %vm7460 = vcmp.ge.f32.partialorder %v7436, 0.0
        %vm7461 = vcmp.ge.f32.partialorder %v7437, 0.0
        %vm7462 = vcmp.ge.f32.partialorder %v7438, 0.0
        %vm7463 = vcmp.ge.f32.partialorder %v7439, 0.0
        %vm7464 = vcmp.ge.f32.partialorder %v7440, 0.0
        %vm7465 = vcmp.ge.f32.partialorder %v7441, 0.0
        %vm7466 = vcmp.ge.f32.partialorder %v7442, 0.0
        %vm7467 = vcmp.ge.f32.partialorder %v7443, 0.0
        %vm7468 = vcmp.ge.f32.partialorder %v7444, 0.0
        %vm7469 = vcmp.ge.f32.partialorder %v7445, 0.0
        %vm7470 = vcmp.ge.f32.partialorder %v7446, 0.0
        %vm7471 = vcmp.ge.f32.partialorder %v7447, 0.0
        %vm7472 = vcmp.ge.f32.partialorder %v7448, 0.0
        %vm7473 = vcmp.ge.f32.partialorder %v7449, 0.0
        %vm7474 = vcmp.ge.f32.partialorder %v7450, 0.0
        %vm7475 = vcmp.ge.f32.partialorder %v7451, 0.0
        %vm7476 = vcmp.ge.f32.partialorder %v7452, 0.0
        %vm7477 = vcmp.ge.f32.partialorder %v7453, 0.0
        %vm7478 = vcmp.ge.f32.partialorder %v7454, 0.0
        %vm7479 = vcmp.ge.f32.partialorder %v7455, 0.0
        %vm7480 = vcmp.ge.f32.partialorder %v7456, 0.0
        %vm7481 = vcmp.ge.f32.partialorder %v7457, 0.0
        %vm7482 = vcmp.ge.f32.partialorder %v7458, 0.0
        %vm7483 = vcmp.ge.f32.partialorder %v7459, 0.0
        %v7484 = vmul.f32 %v7436, 0.2
        %v7485 = vmul.f32 %v7437, 0.2
        %v7486 = vmul.f32 %v7438, 0.2
        %v7487 = vmul.f32 %v7439, 0.2
        %v7488 = vmul.f32 %v7440, 0.2
        %v7489 = vmul.f32 %v7441, 0.2
        %v7490 = vmul.f32 %v7442, 0.2
        %v7491 = vmul.f32 %v7443, 0.2
        %v7492 = vmul.f32 %v7444, 0.2
        %v7493 = vmul.f32 %v7445, 0.2
        %v7494 = vmul.f32 %v7446, 0.2
        %v7495 = vmul.f32 %v7447, 0.2
        %v7496 = vmul.f32 %v7448, 0.2
        %v7497 = vmul.f32 %v7449, 0.2
        %v7498 = vmul.f32 %v7450, 0.2
        %v7499 = vmul.f32 %v7451, 0.2
        %v7500 = vmul.f32 %v7452, 0.2
        %v7501 = vmul.f32 %v7453, 0.2
        %v7502 = vmul.f32 %v7454, 0.2
        %v7503 = vmul.f32 %v7455, 0.2
        %v7504 = vmul.f32 %v7456, 0.2
        %v7505 = vmul.f32 %v7457, 0.2
        %v7506 = vmul.f32 %v7458, 0.2
        %v7507 = vmul.f32 %v7459, 0.2
        %v7508 = vsel %vm7460, %v7436, %v7484
        %v7509 = vsel %vm7461, %v7437, %v7485
        %v7510 = vsel %vm7462, %v7438, %v7486
        %v7511 = vsel %vm7463, %v7439, %v7487
        %v7512 = vsel %vm7464, %v7440, %v7488
        %v7513 = vsel %vm7465, %v7441, %v7489
        %v7514 = vsel %vm7466, %v7442, %v7490
        %v7515 = vsel %vm7467, %v7443, %v7491
        %v7516 = vsel %vm7468, %v7444, %v7492
        %v7517 = vsel %vm7469, %v7445, %v7493
        %v7518 = vsel %vm7470, %v7446, %v7494
        %v7519 = vsel %vm7471, %v7447, %v7495
        %v7520 = vsel %vm7472, %v7448, %v7496
        %v7521 = vsel %vm7473, %v7449, %v7497
        %v7522 = vsel %vm7474, %v7450, %v7498
        %v7523 = vsel %vm7475, %v7451, %v7499
        %v7524 = vsel %vm7476, %v7452, %v7500
        %v7525 = vsel %vm7477, %v7453, %v7501
        %v7526 = vsel %vm7478, %v7454, %v7502
        %v7527 = vsel %vm7479, %v7455, %v7503
        %v7528 = vsel %vm7480, %v7456, %v7504
        %v7529 = vsel %vm7481, %v7457, %v7505
        %v7530 = vsel %vm7482, %v7458, %v7506
        %v7531 = vsel %vm7483, %v7459, %v7507
        %7532 = vmatpush.msra.mxu0 %v6299
        %7533 = vmatpush.msra.mxu0 %v6298
        %7534 = vmatpush.msra.mxu0 %v6297
        %7535 = vmatpush.msra.mxu0 %v6296
        %7536 = vmatpush.msra.mxu0 %v6295
        %7537 = vmatpush.msra.mxu0 %v6294
        %7538 = vmatpush.msra.mxu0 %v6293
        %7539 = vmatpush.msra.mxu0 %v6292
        %7540 = vmatpush.msra.mxu0 %v6291
        %7541 = vmatpush.msra.mxu0 %v6290
        %7542 = vmatpush.msra.mxu0 %v6289
        %7543 = vmatpush.msra.mxu0 %v6288
        %7544 = vmatpush.msra.mxu0 %v6287
        %7545 = vmatpush.msra.mxu0 %v6286
        %7546 = vmatpush.msra.mxu0 %v6285
        %7547 = vmatpush.msra.mxu0 %v6284
        %7548 = vmatmul.f32.gmra.mxu0 %v7508
        %v7549 = vpop.f32.mrf.mxu0
        %v7550 = vadd.f32 0.0, %v7549
        %7551 = vmatmul.f32.gmra.mxu0 %v7509
        %v7552 = vpop.f32.mrf.mxu0
        %v7553 = vadd.f32 0.0, %v7552
        %7554 = vmatmul.f32.gmra.mxu0 %v7510
        %v7555 = vpop.f32.mrf.mxu0
        %v7556 = vadd.f32 0.0, %v7555
        %7557 = vmatmul.f32.gmra.mxu0 %v7511
        %v7558 = vpop.f32.mrf.mxu0
        %v7559 = vadd.f32 0.0, %v7558
        %7560 = vmatmul.f32.gmra.mxu0 %v7512
        %v7561 = vpop.f32.mrf.mxu0
        %v7562 = vadd.f32 0.0, %v7561
        %7563 = vmatmul.f32.gmra.mxu0 %v7513
        %v7564 = vpop.f32.mrf.mxu0
        %v7565 = vadd.f32 0.0, %v7564
        %7566 = vmatmul.f32.gmra.mxu0 %v7514
        %v7567 = vpop.f32.mrf.mxu0
        %v7568 = vadd.f32 0.0, %v7567
        %7569 = vmatmul.f32.gmra.mxu0 %v7515
        %v7570 = vpop.f32.mrf.mxu0
        %v7571 = vadd.f32 0.0, %v7570
        %7572 = vmatmul.f32.gmra.mxu0 %v7516
        %v7573 = vpop.f32.mrf.mxu0
        %v7574 = vadd.f32 0.0, %v7573
        %7575 = vmatmul.f32.gmra.mxu0 %v7517
        %v7576 = vpop.f32.mrf.mxu0
        %v7577 = vadd.f32 0.0, %v7576
        %7578 = vmatmul.f32.gmra.mxu0 %v7518
        %v7579 = vpop.f32.mrf.mxu0
        %v7580 = vadd.f32 0.0, %v7579
        %7581 = vmatmul.f32.gmra.mxu0 %v7519
        %v7582 = vpop.f32.mrf.mxu0
        %v7583 = vadd.f32 0.0, %v7582
        %7584 = vmatmul.f32.gmra.mxu0 %v7520
        %v7585 = vpop.f32.mrf.mxu0
        %v7586 = vadd.f32 0.0, %v7585
        %7587 = vmatmul.f32.gmra.mxu0 %v7521
        %v7588 = vpop.f32.mrf.mxu0
        %v7589 = vadd.f32 0.0, %v7588
        %7590 = vmatmul.f32.gmra.mxu0 %v7522
        %v7591 = vpop.f32.mrf.mxu0
        %v7592 = vadd.f32 0.0, %v7591
        %7593 = vmatmul.f32.gmra.mxu0 %v7523
        %v7594 = vpop.f32.mrf.mxu0
        %v7595 = vadd.f32 0.0, %v7594
        %7596 = vmatmul.f32.gmra.mxu0 %v7524
        %v7597 = vpop.f32.mrf.mxu0
        %v7598 = vadd.f32 0.0, %v7597
        %7599 = vmatmul.f32.gmra.mxu0 %v7525
        %v7600 = vpop.f32.mrf.mxu0
        %v7601 = vadd.f32 0.0, %v7600
        %7602 = vmatmul.f32.gmra.mxu0 %v7526
        %v7603 = vpop.f32.mrf.mxu0
        %v7604 = vadd.f32 0.0, %v7603
        %7605 = vmatmul.f32.gmra.mxu0 %v7527
        %v7606 = vpop.f32.mrf.mxu0
        %v7607 = vadd.f32 0.0, %v7606
        %7608 = vmatmul.f32.gmra.mxu0 %v7528
        %v7609 = vpop.f32.mrf.mxu0
        %v7610 = vadd.f32 0.0, %v7609
        %7611 = vmatmul.f32.gmra.mxu0 %v7529
        %v7612 = vpop.f32.mrf.mxu0
        %v7613 = vadd.f32 0.0, %v7612
        %7614 = vmatmul.f32.gmra.mxu0 %v7530
        %v7615 = vpop.f32.mrf.mxu0
        %v7616 = vadd.f32 0.0, %v7615
        %7617 = vmatmul.f32.gmra.mxu0 %v7531
        %v7618 = vpop.f32.mrf.mxu0
        %v7619 = vadd.f32 0.0, %v7618
        %7620 = vdwg.mxu0
        %7621 = vmax.xlane.f32.xlu0 %v7550
        %v7622 = vpop.xlane.xlu0 %7621
        %7623 = vmax.xlane.f32.xlu0 %v7553
        %v7624 = vpop.xlane.xlu0 %7623
        %7625 = vmax.xlane.f32.xlu0 %v7556
        %v7626 = vpop.xlane.xlu0 %7625
        %7627 = vmax.xlane.f32.xlu0 %v7559
        %v7628 = vpop.xlane.xlu0 %7627
        %7629 = vmax.xlane.f32.xlu0 %v7562
        %v7630 = vpop.xlane.xlu0 %7629
        %7631 = vmax.xlane.f32.xlu0 %v7565
        %v7632 = vpop.xlane.xlu0 %7631
        %7633 = vmax.xlane.f32.xlu0 %v7568
        %v7634 = vpop.xlane.xlu0 %7633
        %7635 = vmax.xlane.f32.xlu0 %v7571
        %v7636 = vpop.xlane.xlu0 %7635
        %7637 = vmax.xlane.f32.xlu0 %v7574
        %v7638 = vpop.xlane.xlu0 %7637
        %7639 = vmax.xlane.f32.xlu0 %v7577
        %v7640 = vpop.xlane.xlu0 %7639
        %7641 = vmax.xlane.f32.xlu0 %v7580
        %v7642 = vpop.xlane.xlu0 %7641
        %7643 = vmax.xlane.f32.xlu0 %v7583
        %v7644 = vpop.xlane.xlu0 %7643
        %7645 = vmax.xlane.f32.xlu0 %v7586
        %v7646 = vpop.xlane.xlu0 %7645
        %7647 = vmax.xlane.f32.xlu0 %v7589
        %v7648 = vpop.xlane.xlu0 %7647
        %7649 = vmax.xlane.f32.xlu0 %v7592
        %v7650 = vpop.xlane.xlu0 %7649
        %7651 = vmax.xlane.f32.xlu0 %v7595
        %v7652 = vpop.xlane.xlu0 %7651
        %7653 = vmax.xlane.f32.xlu0 %v7598
        %v7654 = vpop.xlane.xlu0 %7653
        %7655 = vmax.xlane.f32.xlu0 %v7601
        %v7656 = vpop.xlane.xlu0 %7655
        %7657 = vmax.xlane.f32.xlu0 %v7604
        %v7658 = vpop.xlane.xlu0 %7657
        %7659 = vmax.xlane.f32.xlu0 %v7607
        %v7660 = vpop.xlane.xlu0 %7659
        %7661 = vmax.xlane.f32.xlu0 %v7610
        %v7662 = vpop.xlane.xlu0 %7661
        %7663 = vmax.xlane.f32.xlu0 %v7613
        %v7664 = vpop.xlane.xlu0 %7663
        %7665 = vmax.xlane.f32.xlu0 %v7616
        %v7666 = vpop.xlane.xlu0 %7665
        %7667 = vmax.xlane.f32.xlu0 %v7619
        %v7668 = vpop.xlane.xlu0 %7667
        %v7669 = vmax.f32 %v7622, %v7624
        %v7670 = vmax.f32 %v7669, %v7626
        %v7671 = vrot.slane %v7670, 4
        %v7672 = vmax.f32 %v7670, %v7671
        %v7673 = vrot.slane %v7672, 2
        %v7674 = vmax.f32 %v7672, %v7673
        %v7675 = vrot.slane %v7674, 1
        %v7676 = vmax.f32 %v7674, %v7675
        %v7677 = vmax.f32 %v7628, %v7630
        %v7678 = vmax.f32 %v7677, %v7632
        %v7679 = vrot.slane %v7678, 4
        %v7680 = vmax.f32 %v7678, %v7679
        %v7681 = vrot.slane %v7680, 2
        %v7682 = vmax.f32 %v7680, %v7681
        %v7683 = vrot.slane %v7682, 1
        %v7684 = vmax.f32 %v7682, %v7683
        %v7685 = vmax.f32 %v7634, %v7636
        %v7686 = vmax.f32 %v7685, %v7638
        %v7687 = vrot.slane %v7686, 4
        %v7688 = vmax.f32 %v7686, %v7687
        %v7689 = vrot.slane %v7688, 2
        %v7690 = vmax.f32 %v7688, %v7689
        %v7691 = vrot.slane %v7690, 1
        %v7692 = vmax.f32 %v7690, %v7691
        %v7693 = vmax.f32 %v7640, %v7642
        %v7694 = vmax.f32 %v7693, %v7644
        %v7695 = vrot.slane %v7694, 4
        %v7696 = vmax.f32 %v7694, %v7695
        %v7697 = vrot.slane %v7696, 2
        %v7698 = vmax.f32 %v7696, %v7697
        %v7699 = vrot.slane %v7698, 1
        %v7700 = vmax.f32 %v7698, %v7699
        %v7701 = vmax.f32 %v7646, %v7648
        %v7702 = vmax.f32 %v7701, %v7650
        %v7703 = vrot.slane %v7702, 4
        %v7704 = vmax.f32 %v7702, %v7703
        %v7705 = vrot.slane %v7704, 2
        %v7706 = vmax.f32 %v7704, %v7705
        %v7707 = vrot.slane %v7706, 1
        %v7708 = vmax.f32 %v7706, %v7707
        %v7709 = vmax.f32 %v7652, %v7654
        %v7710 = vmax.f32 %v7709, %v7656
        %v7711 = vrot.slane %v7710, 4
        %v7712 = vmax.f32 %v7710, %v7711
        %v7713 = vrot.slane %v7712, 2
        %v7714 = vmax.f32 %v7712, %v7713
        %v7715 = vrot.slane %v7714, 1
        %v7716 = vmax.f32 %v7714, %v7715
        %v7717 = vmax.f32 %v7658, %v7660
        %v7718 = vmax.f32 %v7717, %v7662
        %v7719 = vrot.slane %v7718, 4
        %v7720 = vmax.f32 %v7718, %v7719
        %v7721 = vrot.slane %v7720, 2
        %v7722 = vmax.f32 %v7720, %v7721
        %v7723 = vrot.slane %v7722, 1
        %v7724 = vmax.f32 %v7722, %v7723
        %v7725 = vmax.f32 %v7664, %v7666
        %v7726 = vmax.f32 %v7725, %v7668
        %v7727 = vrot.slane %v7726, 4
        %v7728 = vmax.f32 %v7726, %v7727
        %v7729 = vrot.slane %v7728, 2
        %v7730 = vmax.f32 %v7728, %v7729
        %v7731 = vrot.slane %v7730, 1
        %v7732 = vmax.f32 %v7730, %v7731
        %v7733 = vsub.f32 %v7550, %v7676
        %v7734 = vsub.f32 %v7553, %v7676
        %v7735 = vsub.f32 %v7556, %v7676
        %v7736 = vsub.f32 %v7559, %v7684
        %v7737 = vsub.f32 %v7562, %v7684
        %v7738 = vsub.f32 %v7565, %v7684
        %v7739 = vsub.f32 %v7568, %v7692
        %v7740 = vsub.f32 %v7571, %v7692
        %v7741 = vsub.f32 %v7574, %v7692
        %v7742 = vsub.f32 %v7577, %v7700
        %v7743 = vsub.f32 %v7580, %v7700
        %v7744 = vsub.f32 %v7583, %v7700
        %v7745 = vsub.f32 %v7586, %v7708
        %v7746 = vsub.f32 %v7589, %v7708
        %v7747 = vsub.f32 %v7592, %v7708
        %v7748 = vsub.f32 %v7595, %v7716
        %v7749 = vsub.f32 %v7598, %v7716
        %v7750 = vsub.f32 %v7601, %v7716
        %v7751 = vsub.f32 %v7604, %v7724
        %v7752 = vsub.f32 %v7607, %v7724
        %v7753 = vsub.f32 %v7610, %v7724
        %v7754 = vsub.f32 %v7613, %v7732
        %v7755 = vsub.f32 %v7616, %v7732
        %v7756 = vsub.f32 %v7619, %v7732
        %v7757 = vmul.f32 %v7733, 1.442695
        %v7758 = vpow.pop %v7757
        %v7759 = vmul.f32 %v7734, 1.442695
        %v7760 = vpow.pop %v7759
        %v7761 = vmul.f32 %v7735, 1.442695
        %v7762 = vpow.pop %v7761
        %v7763 = vmul.f32 %v7736, 1.442695
        %v7764 = vpow.pop %v7763
        %v7765 = vmul.f32 %v7737, 1.442695
        %v7766 = vpow.pop %v7765
        %v7767 = vmul.f32 %v7738, 1.442695
        %v7768 = vpow.pop %v7767
        %v7769 = vmul.f32 %v7739, 1.442695
        %v7770 = vpow.pop %v7769
        %v7771 = vmul.f32 %v7740, 1.442695
        %v7772 = vpow.pop %v7771
        %v7773 = vmul.f32 %v7741, 1.442695
        %v7774 = vpow.pop %v7773
        %v7775 = vmul.f32 %v7742, 1.442695
        %v7776 = vpow.pop %v7775
        %v7777 = vmul.f32 %v7743, 1.442695
        %v7778 = vpow.pop %v7777
        %v7779 = vmul.f32 %v7744, 1.442695
        %v7780 = vpow.pop %v7779
        %v7781 = vmul.f32 %v7745, 1.442695
        %v7782 = vpow.pop %v7781
        %v7783 = vmul.f32 %v7746, 1.442695
        %v7784 = vpow.pop %v7783
        %v7785 = vmul.f32 %v7747, 1.442695
        %v7786 = vpow.pop %v7785
        %v7787 = vmul.f32 %v7748, 1.442695
        %v7788 = vpow.pop %v7787
        %v7789 = vmul.f32 %v7749, 1.442695
        %v7790 = vpow.pop %v7789
        %v7791 = vmul.f32 %v7750, 1.442695
        %v7792 = vpow.pop %v7791
        %v7793 = vmul.f32 %v7751, 1.442695
        %v7794 = vpow.pop %v7793
        %v7795 = vmul.f32 %v7752, 1.442695
        %v7796 = vpow.pop %v7795
        %v7797 = vmul.f32 %v7753, 1.442695
        %v7798 = vpow.pop %v7797
        %v7799 = vmul.f32 %v7754, 1.442695
        %v7800 = vpow.pop %v7799
        %v7801 = vmul.f32 %v7755, 1.442695
        %v7802 = vpow.pop %v7801
        %v7803 = vmul.f32 %v7756, 1.442695
        %v7804 = vpow.pop %v7803
        %v7805 = vmul.f32 %v7758, %v2537
        %v7806 = vmul.f32 %v7760, %v2538
        %v7807 = vmul.f32 %v7762, %v2539
        %v7808 = vmul.f32 %v7764, %v2540
        %v7809 = vmul.f32 %v7766, %v2541
        %v7810 = vmul.f32 %v7768, %v2542
        %v7811 = vmul.f32 %v7770, %v2543
        %v7812 = vmul.f32 %v7772, %v2544
        %v7813 = vmul.f32 %v7774, %v2545
        %v7814 = vmul.f32 %v7776, %v2546
        %v7815 = vmul.f32 %v7778, %v2547
        %v7816 = vmul.f32 %v7780, %v2548
        %v7817 = vmul.f32 %v7782, %v2549
        %v7818 = vmul.f32 %v7784, %v2550
        %v7819 = vmul.f32 %v7786, %v2551
        %v7820 = vmul.f32 %v7788, %v2552
        %v7821 = vmul.f32 %v7790, %v2553
        %v7822 = vmul.f32 %v7792, %v2554
        %v7823 = vmul.f32 %v7794, %v2555
        %v7824 = vmul.f32 %v7796, %v2556
        %v7825 = vmul.f32 %v7798, %v2557
        %v7826 = vmul.f32 %v7800, %v2558
        %v7827 = vmul.f32 %v7802, %v2559
        %v7828 = vmul.f32 %v7804, %v2560
        %7829 = vmatpush.msra.mxu0 %v7820
        %7830 = vmatpush.msra.mxu0 %v7819
        %7831 = vmatpush.msra.mxu0 %v7818
        %7832 = vmatpush.msra.mxu0 %v7817
        %7833 = vmatpush.msra.mxu0 %v7816
        %7834 = vmatpush.msra.mxu0 %v7815
        %7835 = vmatpush.msra.mxu0 %v7814
        %7836 = vmatpush.msra.mxu0 %v7813
        %7837 = vmatpush.msra.mxu0 %v7812
        %7838 = vmatpush.msra.mxu0 %v7811
        %7839 = vmatpush.msra.mxu0 %v7810
        %7840 = vmatpush.msra.mxu0 %v7809
        %7841 = vmatpush.msra.mxu0 %v7808
        %7842 = vmatpush.msra.mxu0 %v7807
        %7843 = vmatpush.msra.mxu0 %v7806
        %7844 = vmatpush.msra.mxu0 %v7805
        %7845 = vmatmul.f32.gmra.mxu0 %v939
        %v7846 = vpop.f32.mrf.mxu0
        %v7847 = vadd.f32 0.0, %v7846
        %7848 = vdwg.mxu0
        %7849 = vmatpush.msra.mxu0 0.0
        %7850 = vmatpush.msra.mxu0 0.0
        %7851 = vmatpush.msra.mxu0 0.0
        %7852 = vmatpush.msra.mxu0 0.0
        %7853 = vmatpush.msra.mxu0 0.0
        %7854 = vmatpush.msra.mxu0 0.0
        %7855 = vmatpush.msra.mxu0 0.0
        %7856 = vmatpush.msra.mxu0 0.0
        %7857 = vmatpush.msra.mxu0 %v7828
        %7858 = vmatpush.msra.mxu0 %v7827
        %7859 = vmatpush.msra.mxu0 %v7826
        %7860 = vmatpush.msra.mxu0 %v7825
        %7861 = vmatpush.msra.mxu0 %v7824
        %7862 = vmatpush.msra.mxu0 %v7823
        %7863 = vmatpush.msra.mxu0 %v7822
        %7864 = vmatpush.msra.mxu0 %v7821
        %7865 = vmatmul.f32.gmra.mxu0 %v1489
        %v7866 = vpop.f32.mrf.mxu0
        %v7867 = vadd.f32 %v7847, %v7866
        %7868 = vdwg.mxu0
        %v7869 = vmul.f32 %v7805, %v6332
        %v7870 = vmul.f32 %v7806, %v6335
        %v7871 = vmul.f32 %v7807, %v6338
        %v7872 = vmul.f32 %v7808, %v6332
        %v7873 = vmul.f32 %v7809, %v6335
        %v7874 = vmul.f32 %v7810, %v6338
        %v7875 = vmul.f32 %v7811, %v6332
        %v7876 = vmul.f32 %v7812, %v6335
        %v7877 = vmul.f32 %v7813, %v6338
        %v7878 = vmul.f32 %v7814, %v6332
        %v7879 = vmul.f32 %v7815, %v6335
        %v7880 = vmul.f32 %v7816, %v6338
        %v7881 = vmul.f32 %v7817, %v6332
        %v7882 = vmul.f32 %v7818, %v6335
        %v7883 = vmul.f32 %v7819, %v6338
        %v7884 = vmul.f32 %v7820, %v6332
        %v7885 = vmul.f32 %v7821, %v6335
        %v7886 = vmul.f32 %v7822, %v6338
        %v7887 = vmul.f32 %v7823, %v6332
        %v7888 = vmul.f32 %v7824, %v6335
        %v7889 = vmul.f32 %v7825, %v6338
        %v7890 = vmul.f32 %v7826, %v6332
        %v7891 = vmul.f32 %v7827, %v6335
        %v7892 = vmul.f32 %v7828, %v6338
        %7893 = vmatpush.msra.mxu0 %v7884
        %7894 = vmatpush.msra.mxu0 %v7883
        %7895 = vmatpush.msra.mxu0 %v7882
        %7896 = vmatpush.msra.mxu0 %v7881
        %7897 = vmatpush.msra.mxu0 %v7880
        %7898 = vmatpush.msra.mxu0 %v7879
        %7899 = vmatpush.msra.mxu0 %v7878
        %7900 = vmatpush.msra.mxu0 %v7877
        %7901 = vmatpush.msra.mxu0 %v7876
        %7902 = vmatpush.msra.mxu0 %v7875
        %7903 = vmatpush.msra.mxu0 %v7874
        %7904 = vmatpush.msra.mxu0 %v7873
        %7905 = vmatpush.msra.mxu0 %v7872
        %7906 = vmatpush.msra.mxu0 %v7871
        %7907 = vmatpush.msra.mxu0 %v7870
        %7908 = vmatpush.msra.mxu0 %v7869
        %7909 = vmatmul.f32.gmra.mxu0 %v939
        %v7910 = vpop.f32.mrf.mxu0
        %v7911 = vadd.f32 0.0, %v7910
        %7912 = vdwg.mxu0
        %7913 = vmatpush.msra.mxu0 0.0
        %7914 = vmatpush.msra.mxu0 0.0
        %7915 = vmatpush.msra.mxu0 0.0
        %7916 = vmatpush.msra.mxu0 0.0
        %7917 = vmatpush.msra.mxu0 0.0
        %7918 = vmatpush.msra.mxu0 0.0
        %7919 = vmatpush.msra.mxu0 0.0
        %7920 = vmatpush.msra.mxu0 0.0
        %7921 = vmatpush.msra.mxu0 %v7892
        %7922 = vmatpush.msra.mxu0 %v7891
        %7923 = vmatpush.msra.mxu0 %v7890
        %7924 = vmatpush.msra.mxu0 %v7889
        %7925 = vmatpush.msra.mxu0 %v7888
        %7926 = vmatpush.msra.mxu0 %v7887
        %7927 = vmatpush.msra.mxu0 %v7886
        %7928 = vmatpush.msra.mxu0 %v7885
        %7929 = vmatmul.f32.gmra.mxu0 %v1489
        %v7930 = vpop.f32.mrf.mxu0
        %v7931 = vadd.f32 %v7911, %v7930
        %7932 = vdwg.mxu0
        %v7933 = vrcp.pop %v7867
        %v7934 = vmul.f32 %v7931, %v7933
        %v7935 = vperm.slane %v6301, 1
        %7936 = vmatpush.msra.mxu0 %v956
        %7937 = vmatpush.msra.mxu0 %v955
        %7938 = vmatpush.msra.mxu0 %v954
        %7939 = vmatpush.msra.mxu0 %v953
        %7940 = vmatpush.msra.mxu0 %v952
        %7941 = vmatpush.msra.mxu0 %v951
        %7942 = vmatpush.msra.mxu0 %v950
        %7943 = vmatpush.msra.mxu0 %v949
        %7944 = vmatpush.msra.mxu0 %v948
        %7945 = vmatpush.msra.mxu0 %v947
        %7946 = vmatpush.msra.mxu0 %v946
        %7947 = vmatpush.msra.mxu0 %v945
        %7948 = vmatpush.msra.mxu0 %v944
        %7949 = vmatpush.msra.mxu0 %v943
        %7950 = vmatpush.msra.mxu0 %v942
        %7951 = vmatpush.msra.mxu0 %v941
        %7952 = vmatmul.f32.gmra.mxu0 %v6888
        %v7953 = vpop.f32.mrf.mxu0
        %v7954 = vadd.f32 %v7935, %v7953
        %7955 = vmatmul.f32.gmra.mxu0 %v7411
        %v7956 = vpop.f32.mrf.mxu0
        %v7957 = vadd.f32 %v7935, %v7956
        %7958 = vmatmul.f32.gmra.mxu0 %v7934
        %v7959 = vpop.f32.mrf.mxu0
        %v7960 = vadd.f32 %v7935, %v7959
        %7961 = vdwg.mxu0
        %v7962 = vmul.f32 %v7954, %v936
        %v7963 = vmul.f32 %v7957, %v937
        %v7964 = vmul.f32 %v7960, %v938
        %v7965 = vsel %vm985, %v7962, 0.0
        %v7966 = vsel %vm985, %v7963, 0.0
        %v7967 = vadd.f32 %v7965, %v7966
        %v7968 = vsel %vm985, %v7964, 0.0
        %v7969 = vadd.f32 %v7967, %v7968
        %v7970 = vrot.slane %v7969, 4
        %v7971 = vadd.f32 %v7969, %v7970
        %v7972 = vrot.slane %v7971, 2
        %v7973 = vadd.f32 %v7971, %v7972
        %v7974 = vrot.slane %v7973, 1
        %v7975 = vadd.f32 %v7973, %v7974
        %v7976 = vmul.f32 %v7975, 0.05
        %v7977 = vmul.f32 %v6301, %v7976
        %v7978 = vperm.slane %v7977, 4
        %v7979 = vsub.f32 %v7954, %v7978
        %v7980 = vsub.f32 %v7957, %v7978
        %v7981 = vsub.f32 %v7960, %v7978
        %v7982 = vmul.f32 %v7979, %v7979
        %v7983 = vmul.f32 %v7980, %v7980
        %v7984 = vmul.f32 %v7981, %v7981
        %v7985 = vmul.f32 %v7982, %v936
        %v7986 = vmul.f32 %v7983, %v937
        %v7987 = vmul.f32 %v7984, %v938
        %v7988 = vsel %vm985, %v7985, 0.0
        %v7989 = vsel %vm985, %v7986, 0.0
        %v7990 = vadd.f32 %v7988, %v7989
        %v7991 = vsel %vm985, %v7987, 0.0
        %v7992 = vadd.f32 %v7990, %v7991
        %v7993 = vrot.slane %v7992, 4
        %v7994 = vadd.f32 %v7992, %v7993
        %v7995 = vrot.slane %v7994, 2
        %v7996 = vadd.f32 %v7994, %v7995
        %v7997 = vrot.slane %v7996, 1
        %v7998 = vadd.f32 %v7996, %v7997
        %v7999 = vmul.f32 %v7998, 0.05
        %v8000 = vadd.f32 %v7999, 1e-05
        %v8001 = vrsqrt.pop %v8000
        %v8002 = vmul.f32 %v8001, %v8000
        %v8003 = vmul.f32 %v8002, %v8001
        %v8004 = vmul.f32 0.5, %v8003
        %v8005 = vsub.f32 1.5, %v8004
        %v8006 = vmul.f32 %v8001, %v8005
        %vm8007 = vweird.f32 %v8000
        %vm8008 = vweird.f32 %v8001
        %vm8009 = vmor %vm8007, %vm8008
        %v8010 = vsel %vm8009, %v8001, %v8006
        %v8011 = vmul.f32 %v7979, %v8010
        %v8012 = vmul.f32 %v7980, %v8010
        %v8013 = vmul.f32 %v7981, %v8010
        %v8014 = vperm.slane %v6301, 2
        %v8015 = vmul.f32 %v8011, %v8014
        %v8016 = vmul.f32 %v8012, %v8014
        %v8017 = vmul.f32 %v8013, %v8014
        %v8018 = vperm.slane %v6301, 3
        %v8019 = vadd.f32 %v8015, %v8018
        %v8020 = vadd.f32 %v8016, %v8018
        %v8021 = vadd.f32 %v8017, %v8018
        %v8022 = vld [vmem:[%s574] sm:$0xf]
        %vm8023 = vcmask 195584
        %v8025 = vsel %vm8023, %v8022, 0
        %8027 = vmatpush.msra.mxu0 0.0
        %8028 = vmatpush.msra.mxu0 0.0
        %8029 = vmatpush.msra.mxu0 0.0
        %8030 = vmatpush.msra.mxu0 0.0
        %8031 = vmatpush.msra.mxu0 0.0
        %8032 = vmatpush.msra.mxu0 0.0
        %8033 = vmatpush.msra.mxu0 0.0
        %8034 = vmatpush.msra.mxu0 0.0
        %8035 = vmatpush.msra.mxu0 0.0
        %8036 = vmatpush.msra.mxu0 0.0
        %8037 = vmatpush.msra.mxu0 0.0
        %8038 = vmatpush.msra.mxu0 0.0
        %8039 = vmatpush.msra.mxu0 0.0
        %8040 = vmatpush.msra.mxu0 %v8021
        %8041 = vmatpush.msra.mxu0 %v8020
        %8042 = vmatpush.msra.mxu0 %v8019
        %8043 = vmatmul.f32.gmra.mxu0 %v8025
        %v8044 = vpop.f32.mrf.mxu0
        %v8045 = vadd.f32 0.0, %v8044
        %8046 = vdwg.mxu0
        %v8047 = vld [vmem:[%s11 + $0x100] sm:$0xff]
        %v8048 = vld [vmem:[%s11 + $0x108] sm:$0xff]
        %v8049 = vld [vmem:[%s11 + $0x110] sm:$0xff]
        %v8050 = vld [vmem:[%s11 + $0x118] sm:$0xff]
        %v8051 = vld [vmem:[%s11 + $0x120] sm:$0xff]
        %v8052 = vld [vmem:[%s11 + $0x128] sm:$0xff]
        %v8053 = vld [vmem:[%s11 + $0x130] sm:$0xff]
        %v8054 = vld [vmem:[%s11 + $0x138] sm:$0xff]
        %v8056 = vrot.slane %v657, 4
        %v8057 = vrot.slane %v658, 4
        %v8061 = vsel %vm985, %v750, 0
        %8063 = vmatpush.msra.mxu0 0.0
        %8064 = vmatpush.msra.mxu0 0.0
        %8065 = vmatpush.msra.mxu0 0.0
        %8066 = vmatpush.msra.mxu0 0.0
        %8067 = vmatpush.msra.mxu0 0.0
        %8068 = vmatpush.msra.mxu0 0.0
        %8069 = vmatpush.msra.mxu0 0.0
        %8070 = vmatpush.msra.mxu0 0.0
        %8071 = vmatpush.msra.mxu0 0.0
        %8072 = vmatpush.msra.mxu0 0.0
        %8073 = vmatpush.msra.mxu0 0.0
        %8074 = vmatpush.msra.mxu0 0.0
        %8075 = vmatpush.msra.mxu0 %v8053
        %8076 = vmatpush.msra.mxu0 %v8051
        %8077 = vmatpush.msra.mxu0 %v8049
        %8078 = vmatpush.msra.mxu0 %v8047
        %8079 = vmatmul.f32.gmra.mxu0 %v8061
        %v8080 = vpop.f32.mrf.mxu0
        %v8081 = vadd.f32 %v8056, %v8080
        %8082 = vdwg.mxu0
        %8083 = vmatpush.msra.mxu0 0.0
        %8084 = vmatpush.msra.mxu0 0.0
        %8085 = vmatpush.msra.mxu0 0.0
        %8086 = vmatpush.msra.mxu0 0.0
        %8087 = vmatpush.msra.mxu0 0.0
        %8088 = vmatpush.msra.mxu0 0.0
        %8089 = vmatpush.msra.mxu0 0.0
        %8090 = vmatpush.msra.mxu0 0.0
        %8091 = vmatpush.msra.mxu0 0.0
        %8092 = vmatpush.msra.mxu0 0.0
        %8093 = vmatpush.msra.mxu0 0.0
        %8094 = vmatpush.msra.mxu0 0.0
        %8095 = vmatpush.msra.mxu0 %v8054
        %8096 = vmatpush.msra.mxu0 %v8052
        %8097 = vmatpush.msra.mxu0 %v8050
        %8098 = vmatpush.msra.mxu0 %v8048
        %8099 = vmatmul.f32.gmra.mxu0 %v8061
        %v8100 = vpop.f32.mrf.mxu0
        %v8101 = vadd.f32 %v8057, %v8100
        %8102 = vdwg.mxu0
        %v8103 = vld [vmem:[%s11] sm:$0xff]
        %v8104 = vld [vmem:[%s11 + $0x8] sm:$0xff]
        %v8105 = vld [vmem:[%s11 + $0x10] sm:$0xff]
        %v8106 = vld [vmem:[%s11 + $0x18] sm:$0xff]
        %v8107 = vld [vmem:[%s11 + $0x20] sm:$0xff]
        %v8108 = vld [vmem:[%s11 + $0x28] sm:$0xff]
        %v8109 = vld [vmem:[%s11 + $0x30] sm:$0xff]
        %v8110 = vld [vmem:[%s11 + $0x38] sm:$0xff]
        %v8112 = vsel %vm985, %v8045, 0
        %8114 = vmatpush.msra.mxu0 0.0
        %8115 = vmatpush.msra.mxu0 0.0
        %8116 = vmatpush.msra.mxu0 0.0
        %8117 = vmatpush.msra.mxu0 0.0
        %8118 = vmatpush.msra.mxu0 0.0
        %8119 = vmatpush.msra.mxu0 0.0
        %8120 = vmatpush.msra.mxu0 0.0
        %8121 = vmatpush.msra.mxu0 0.0
        %8122 = vmatpush.msra.mxu0 0.0
        %8123 = vmatpush.msra.mxu0 0.0
        %8124 = vmatpush.msra.mxu0 0.0
        %8125 = vmatpush.msra.mxu0 0.0
        %8126 = vmatpush.msra.mxu0 %v8109
        %8127 = vmatpush.msra.mxu0 %v8107
        %8128 = vmatpush.msra.mxu0 %v8105
        %8129 = vmatpush.msra.mxu0 %v8103
        %8130 = vmatmul.f32.gmra.mxu0 %v8112
        %v8131 = vpop.f32.mrf.mxu0
        %v8132 = vadd.f32 0.0, %v8131
        %8133 = vdwg.mxu0
        %8134 = vmatpush.msra.mxu0 0.0
        %8135 = vmatpush.msra.mxu0 0.0
        %8136 = vmatpush.msra.mxu0 0.0
        %8137 = vmatpush.msra.mxu0 0.0
        %8138 = vmatpush.msra.mxu0 0.0
        %8139 = vmatpush.msra.mxu0 0.0
        %8140 = vmatpush.msra.mxu0 0.0
        %8141 = vmatpush.msra.mxu0 0.0
        %8142 = vmatpush.msra.mxu0 0.0
        %8143 = vmatpush.msra.mxu0 0.0
        %8144 = vmatpush.msra.mxu0 0.0
        %8145 = vmatpush.msra.mxu0 0.0
        %8146 = vmatpush.msra.mxu0 %v8110
        %8147 = vmatpush.msra.mxu0 %v8108
        %8148 = vmatpush.msra.mxu0 %v8106
        %8149 = vmatpush.msra.mxu0 %v8104
        %8150 = vmatmul.f32.gmra.mxu0 %v8112
        %v8151 = vpop.f32.mrf.mxu0
        %v8152 = vadd.f32 0.0, %v8151
        %8153 = vdwg.mxu0
        %v8154 = vadd.f32 %v8081, %v8132
        %v8155 = vadd.f32 %v8101, %v8152
        %v8156 = vld [vmem:[%s11 + $0x40] sm:$0xff]
        %v8157 = vld [vmem:[%s11 + $0x48] sm:$0xff]
        %v8158 = vld [vmem:[%s11 + $0x50] sm:$0xff]
        %v8159 = vld [vmem:[%s11 + $0x58] sm:$0xff]
        %v8160 = vld [vmem:[%s11 + $0x60] sm:$0xff]
        %v8161 = vld [vmem:[%s11 + $0x68] sm:$0xff]
        %v8162 = vld [vmem:[%s11 + $0x70] sm:$0xff]
        %v8163 = vld [vmem:[%s11 + $0x78] sm:$0xff]
        %v8164 = vrot.slane %v8045, 1
        %v8165 = vsel %vm985, %v8164, 0
        %8167 = vmatpush.msra.mxu0 0.0
        %8168 = vmatpush.msra.mxu0 0.0
        %8169 = vmatpush.msra.mxu0 0.0
        %8170 = vmatpush.msra.mxu0 0.0
        %8171 = vmatpush.msra.mxu0 0.0
        %8172 = vmatpush.msra.mxu0 0.0
        %8173 = vmatpush.msra.mxu0 0.0
        %8174 = vmatpush.msra.mxu0 0.0
        %8175 = vmatpush.msra.mxu0 0.0
        %8176 = vmatpush.msra.mxu0 0.0
        %8177 = vmatpush.msra.mxu0 0.0
        %8178 = vmatpush.msra.mxu0 0.0
        %8179 = vmatpush.msra.mxu0 %v8162
        %8180 = vmatpush.msra.mxu0 %v8160
        %8181 = vmatpush.msra.mxu0 %v8158
        %8182 = vmatpush.msra.mxu0 %v8156
        %8183 = vmatmul.f32.gmra.mxu0 %v8165
        %v8184 = vpop.f32.mrf.mxu0
        %v8185 = vadd.f32 0.0, %v8184
        %8186 = vdwg.mxu0
        %8187 = vmatpush.msra.mxu0 0.0
        %8188 = vmatpush.msra.mxu0 0.0
        %8189 = vmatpush.msra.mxu0 0.0
        %8190 = vmatpush.msra.mxu0 0.0
        %8191 = vmatpush.msra.mxu0 0.0
        %8192 = vmatpush.msra.mxu0 0.0
        %8193 = vmatpush.msra.mxu0 0.0
        %8194 = vmatpush.msra.mxu0 0.0
        %8195 = vmatpush.msra.mxu0 0.0
        %8196 = vmatpush.msra.mxu0 0.0
        %8197 = vmatpush.msra.mxu0 0.0
        %8198 = vmatpush.msra.mxu0 0.0
        %8199 = vmatpush.msra.mxu0 %v8163
        %8200 = vmatpush.msra.mxu0 %v8161
        %8201 = vmatpush.msra.mxu0 %v8159
        %8202 = vmatpush.msra.mxu0 %v8157
        %8203 = vmatmul.f32.gmra.mxu0 %v8165
        %v8204 = vpop.f32.mrf.mxu0
        %v8205 = vadd.f32 0.0, %v8204
        %8206 = vdwg.mxu0
        %v8207 = vadd.f32 %v8154, %v8185
        %v8208 = vadd.f32 %v8155, %v8205
        %v8209 = vld [vmem:[%s11 + $0x80] sm:$0xff]
        %v8210 = vld [vmem:[%s11 + $0x88] sm:$0xff]
        %v8211 = vld [vmem:[%s11 + $0x90] sm:$0xff]
        %v8212 = vld [vmem:[%s11 + $0x98] sm:$0xff]
        %v8213 = vld [vmem:[%s11 + $0xa0] sm:$0xff]
        %v8214 = vld [vmem:[%s11 + $0xa8] sm:$0xff]
        %v8215 = vld [vmem:[%s11 + $0xb0] sm:$0xff]
        %v8216 = vld [vmem:[%s11 + $0xb8] sm:$0xff]
        %v8217 = vrot.slane %v8045, 2
        %v8218 = vsel %vm985, %v8217, 0
        %8220 = vmatpush.msra.mxu0 0.0
        %8221 = vmatpush.msra.mxu0 0.0
        %8222 = vmatpush.msra.mxu0 0.0
        %8223 = vmatpush.msra.mxu0 0.0
        %8224 = vmatpush.msra.mxu0 0.0
        %8225 = vmatpush.msra.mxu0 0.0
        %8226 = vmatpush.msra.mxu0 0.0
        %8227 = vmatpush.msra.mxu0 0.0
        %8228 = vmatpush.msra.mxu0 0.0
        %8229 = vmatpush.msra.mxu0 0.0
        %8230 = vmatpush.msra.mxu0 0.0
        %8231 = vmatpush.msra.mxu0 0.0
        %8232 = vmatpush.msra.mxu0 %v8215
        %8233 = vmatpush.msra.mxu0 %v8213
        %8234 = vmatpush.msra.mxu0 %v8211
        %8235 = vmatpush.msra.mxu0 %v8209
        %8236 = vmatmul.f32.gmra.mxu0 %v8218
        %v8237 = vpop.f32.mrf.mxu0
        %v8238 = vadd.f32 0.0, %v8237
        %8239 = vdwg.mxu0
        %8240 = vmatpush.msra.mxu0 0.0
        %8241 = vmatpush.msra.mxu0 0.0
        %8242 = vmatpush.msra.mxu0 0.0
        %8243 = vmatpush.msra.mxu0 0.0
        %8244 = vmatpush.msra.mxu0 0.0
        %8245 = vmatpush.msra.mxu0 0.0
        %8246 = vmatpush.msra.mxu0 0.0
        %8247 = vmatpush.msra.mxu0 0.0
        %8248 = vmatpush.msra.mxu0 0.0
        %8249 = vmatpush.msra.mxu0 0.0
        %8250 = vmatpush.msra.mxu0 0.0
        %8251 = vmatpush.msra.mxu0 0.0
        %8252 = vmatpush.msra.mxu0 %v8216
        %8253 = vmatpush.msra.mxu0 %v8214
        %8254 = vmatpush.msra.mxu0 %v8212
        %8255 = vmatpush.msra.mxu0 %v8210
        %8256 = vmatmul.f32.gmra.mxu0 %v8218
        %v8257 = vpop.f32.mrf.mxu0
        %v8258 = vadd.f32 0.0, %v8257
        %8259 = vdwg.mxu0
        %v8260 = vadd.f32 %v8207, %v8238
        %v8261 = vadd.f32 %v8208, %v8258
        %v8262 = vld [vmem:[%s11 + $0xc0] sm:$0xff]
        %v8263 = vld [vmem:[%s11 + $0xc8] sm:$0xff]
        %v8264 = vld [vmem:[%s11 + $0xd0] sm:$0xff]
        %v8265 = vld [vmem:[%s11 + $0xd8] sm:$0xff]
        %v8266 = vld [vmem:[%s11 + $0xe0] sm:$0xff]
        %v8267 = vld [vmem:[%s11 + $0xe8] sm:$0xff]
        %v8268 = vld [vmem:[%s11 + $0xf0] sm:$0xff]
        %v8269 = vld [vmem:[%s11 + $0xf8] sm:$0xff]
        %v8270 = vrot.slane %v8045, 3
        %v8271 = vsel %vm985, %v8270, 0
        %8273 = vmatpush.msra.mxu0 0.0
        %8274 = vmatpush.msra.mxu0 0.0
        %8275 = vmatpush.msra.mxu0 0.0
        %8276 = vmatpush.msra.mxu0 0.0
        %8277 = vmatpush.msra.mxu0 0.0
        %8278 = vmatpush.msra.mxu0 0.0
        %8279 = vmatpush.msra.mxu0 0.0
        %8280 = vmatpush.msra.mxu0 0.0
        %8281 = vmatpush.msra.mxu0 0.0
        %8282 = vmatpush.msra.mxu0 0.0
        %8283 = vmatpush.msra.mxu0 0.0
        %8284 = vmatpush.msra.mxu0 0.0
        %8285 = vmatpush.msra.mxu0 %v8268
        %8286 = vmatpush.msra.mxu0 %v8266
        %8287 = vmatpush.msra.mxu0 %v8264
        %8288 = vmatpush.msra.mxu0 %v8262
        %8289 = vmatmul.f32.gmra.mxu0 %v8271
        %v8290 = vpop.f32.mrf.mxu0
        %v8291 = vadd.f32 0.0, %v8290
        %8292 = vdwg.mxu0
        %8293 = vmatpush.msra.mxu0 0.0
        %8294 = vmatpush.msra.mxu0 0.0
        %8295 = vmatpush.msra.mxu0 0.0
        %8296 = vmatpush.msra.mxu0 0.0
        %8297 = vmatpush.msra.mxu0 0.0
        %8298 = vmatpush.msra.mxu0 0.0
        %8299 = vmatpush.msra.mxu0 0.0
        %8300 = vmatpush.msra.mxu0 0.0
        %8301 = vmatpush.msra.mxu0 0.0
        %8302 = vmatpush.msra.mxu0 0.0
        %8303 = vmatpush.msra.mxu0 0.0
        %8304 = vmatpush.msra.mxu0 0.0
        %8305 = vmatpush.msra.mxu0 %v8269
        %8306 = vmatpush.msra.mxu0 %v8267
        %8307 = vmatpush.msra.mxu0 %v8265
        %8308 = vmatpush.msra.mxu0 %v8263
        %8309 = vmatmul.f32.gmra.mxu0 %v8271
        %v8310 = vpop.f32.mrf.mxu0
        %v8311 = vadd.f32 0.0, %v8310
        %8312 = vdwg.mxu0
        %v8313 = vadd.f32 %v8260, %v8291
        %v8314 = vadd.f32 %v8261, %v8311
        %vm8315 = vcmp.ge.f32.partialorder %v8313, 0.0
        %vm8316 = vcmp.ge.f32.partialorder %v8314, 0.0
        %v8317 = vmul.f32 %v8313, 0.01
        %v8318 = vmul.f32 %v8314, 0.01
        %v8319 = vsel %vm8315, %v8313, %v8317
        %v8320 = vsel %vm8316, %v8314, %v8318
        %v8321 = vld [vmem:[%s12] sm:$0xff]
        %v8322 = vld [vmem:[%s12 + $0x8] sm:$0xff]
        %v8323 = vld [vmem:[%s12 + $0x10] sm:$0xff]
        %v8324 = vld [vmem:[%s12 + $0x18] sm:$0xff]
        %v8325 = vld [vmem:[%s12 + $0x20] sm:$0xff]
        %v8326 = vld [vmem:[%s12 + $0x28] sm:$0xff]
        %v8327 = vld [vmem:[%s12 + $0x30] sm:$0xff]
        %v8328 = vld [vmem:[%s12 + $0x38] sm:$0xff]
        %v8329 = vld [vmem:[%s12 + $0x40] sm:$0xff]
        %v8330 = vld [vmem:[%s12 + $0x48] sm:$0xff]
        %v8331 = vld [vmem:[%s12 + $0x50] sm:$0xff]
        %v8332 = vld [vmem:[%s12 + $0x58] sm:$0xff]
        %v8333 = vld [vmem:[%s12 + $0x60] sm:$0xff]
        %v8334 = vld [vmem:[%s12 + $0x68] sm:$0xff]
        %v8335 = vld [vmem:[%s12 + $0x70] sm:$0xff]
        %v8336 = vld [vmem:[%s12 + $0x78] sm:$0xff]
        %v8337 = vld [vmem:[%s12 + $0x80] sm:$0xff]
        %v8338 = vld [vmem:[%s12 + $0x88] sm:$0xff]
        %v8339 = vld [vmem:[%s12 + $0x90] sm:$0xff]
        %v8340 = vld [vmem:[%s12 + $0x98] sm:$0xff]
        %v8341 = vrot.slane %v657, 5
        %8343 = vmatpush.msra.mxu0 %v8336
        %8344 = vmatpush.msra.mxu0 %v8335
        %8345 = vmatpush.msra.mxu0 %v8334
        %8346 = vmatpush.msra.mxu0 %v8333
        %8347 = vmatpush.msra.mxu0 %v8332
        %8348 = vmatpush.msra.mxu0 %v8331
        %8349 = vmatpush.msra.mxu0 %v8330
        %8350 = vmatpush.msra.mxu0 %v8329
        %8351 = vmatpush.msra.mxu0 %v8328
        %8352 = vmatpush.msra.mxu0 %v8327
        %8353 = vmatpush.msra.mxu0 %v8326
        %8354 = vmatpush.msra.mxu0 %v8325
        %8355 = vmatpush.msra.mxu0 %v8324
        %8356 = vmatpush.msra.mxu0 %v8323
        %8357 = vmatpush.msra.mxu0 %v8322
        %8358 = vmatpush.msra.mxu0 %v8321
        %8359 = vmatmul.f32.gmra.mxu0 %v8319
        %v8360 = vpop.f32.mrf.mxu0
        %v8361 = vadd.f32 %v8341, %v8360
        %8362 = vdwg.mxu0
        %vm8363 = vcmp.ge.f32.partialorder %v8361, 0.0
        %v8364 = vmul.f32 %v8361, 0.01
        %v8365 = vsel %vm8363, %v8361, %v8364
        %8366 = vrot.lane.b32.xlu0 %v8341, 96
        %v8367 = vpop.permute.xlu0 %8366
        %v8370 = vsel %vm985, %v8365, 0
        %8372 = vmatpush.msra.mxu0 0.0
        %8373 = vmatpush.msra.mxu0 0.0
        %8374 = vmatpush.msra.mxu0 0.0
        %8375 = vmatpush.msra.mxu0 0.0
        %8376 = vmatpush.msra.mxu0 0.0
        %8377 = vmatpush.msra.mxu0 0.0
        %8378 = vmatpush.msra.mxu0 0.0
        %8379 = vmatpush.msra.mxu0 0.0
        %8380 = vmatpush.msra.mxu0 0.0
        %8381 = vmatpush.msra.mxu0 0.0
        %8382 = vmatpush.msra.mxu0 0.0
        %8383 = vmatpush.msra.mxu0 0.0
        %8384 = vmatpush.msra.mxu0 %v8340
        %8385 = vmatpush.msra.mxu0 %v8339
        %8386 = vmatpush.msra.mxu0 %v8338
        %8387 = vmatpush.msra.mxu0 %v8337
        %8388 = vmatmul.f32.gmra.mxu0 %v8370
        %v8389 = vpop.f32.mrf.mxu0
        %v8390 = vadd.f32 %v8367, %v8389
        %8391 = vdwg.mxu0
        %v8392 = vld [vmem:[#allocation11] sm:$0xff]
        %v8393 = vld [vmem:[#allocation11 + $0x8] sm:$0xff]
        %v8394 = vld [vmem:[#allocation11 + $0x10] sm:$0xff]
        %v8395 = vld [vmem:[#allocation11 + $0x18] sm:$0xff]
        %v8396 = vld [vmem:[#allocation11 + $0x20] sm:$0xff]
        %v8397 = vld [vmem:[#allocation11 + $0x28] sm:$0xff]
        %v8398 = vld [vmem:[#allocation11 + $0x30] sm:$0xff]
        %v8399 = vld [vmem:[#allocation11 + $0x38] sm:$0xff]
        %v8400 = vld [vmem:[#allocation11 + $0x40] sm:$0xff]
        %v8401 = vld [vmem:[#allocation11 + $0x48] sm:$0xff]
        %v8402 = vld [vmem:[#allocation11 + $0x50] sm:$0xff]
        %v8403 = vld [vmem:[#allocation11 + $0x58] sm:$0xff]
        %v8404 = vld [vmem:[#allocation11 + $0x60] sm:$0xff]
        %v8405 = vld [vmem:[#allocation11 + $0x68] sm:$0xff]
        %v8406 = vld [vmem:[#allocation11 + $0x70] sm:$0xff]
        %v8407 = vld [vmem:[#allocation11 + $0x78] sm:$0xff]
        %v8408 = vld [vmem:[#allocation11 + $0x80] sm:$0xff]
        %v8409 = vld [vmem:[#allocation11 + $0x88] sm:$0xff]
        %v8410 = vld [vmem:[#allocation11 + $0x90] sm:$0xff]
        %v8411 = vld [vmem:[#allocation11 + $0x98] sm:$0xff]
        %v8412 = vld [vmem:[#allocation11 + $0xa0] sm:$0xff]
        %v8413 = vld [vmem:[#allocation11 + $0xa8] sm:$0xff]
        %v8414 = vld [vmem:[#allocation11 + $0xb0] sm:$0xff]
        %v8415 = vld [vmem:[#allocation11 + $0xb8] sm:$0xff]
        %v8416 = vld [vmem:[#allocation11 + $0xc0] sm:$0xff]
        %v8417 = vld [vmem:[#allocation11 + $0xc8] sm:$0xff]
        %v8418 = vld [vmem:[#allocation11 + $0xd0] sm:$0xff]
        %v8419 = vld [vmem:[#allocation11 + $0xd8] sm:$0xff]
        %v8420 = vld [vmem:[#allocation11 + $0xe0] sm:$0xff]
        %v8421 = vld [vmem:[#allocation11 + $0xe8] sm:$0xff]
        %v8422 = vld [vmem:[#allocation11 + $0xf0] sm:$0xff]
        %v8423 = vld [vmem:[#allocation11 + $0xf8] sm:$0xff]
        %v8424 = vld [vmem:[#allocation11 + $0x100] sm:$0xff]
        %v8425 = vld [vmem:[#allocation11 + $0x108] sm:$0xff]
        %v8426 = vld [vmem:[#allocation11 + $0x110] sm:$0xff]
        %v8427 = vld [vmem:[#allocation11 + $0x118] sm:$0xff]
        %v8428 = vrot.slane %v657, 6
        %8430 = vmatpush.msra.mxu0 %v8407
        %8431 = vmatpush.msra.mxu0 %v8406
        %8432 = vmatpush.msra.mxu0 %v8405
        %8433 = vmatpush.msra.mxu0 %v8404
        %8434 = vmatpush.msra.mxu0 %v8403
        %8435 = vmatpush.msra.mxu0 %v8402
        %8436 = vmatpush.msra.mxu0 %v8401
        %8437 = vmatpush.msra.mxu0 %v8400
        %8438 = vmatpush.msra.mxu0 %v8399
        %8439 = vmatpush.msra.mxu0 %v8398
        %8440 = vmatpush.msra.mxu0 %v8397
        %8441 = vmatpush.msra.mxu0 %v8396
        %8442 = vmatpush.msra.mxu0 %v8395
        %8443 = vmatpush.msra.mxu0 %v8394
        %8444 = vmatpush.msra.mxu0 %v8393
        %8445 = vmatpush.msra.mxu0 %v8392
        %8446 = vmatmul.f32.gmra.mxu0 %v8320
        %v8447 = vpop.f32.mrf.mxu0
        %v8448 = vadd.f32 %v8428, %v8447
        %8449 = vdwg.mxu0
        %vm8450 = vcmp.ge.f32.partialorder %v8448, 0.0
        %v8451 = vmul.f32 %v8448, 0.01
        %v8452 = vsel %vm8450, %v8448, %v8451
        %v8453 = vrot.slane %v658, 6
        %8455 = vmatpush.msra.mxu0 %v8423
        %8456 = vmatpush.msra.mxu0 %v8422
        %8457 = vmatpush.msra.mxu0 %v8421
        %8458 = vmatpush.msra.mxu0 %v8420
        %8459 = vmatpush.msra.mxu0 %v8419
        %8460 = vmatpush.msra.mxu0 %v8418
        %8461 = vmatpush.msra.mxu0 %v8417
        %8462 = vmatpush.msra.mxu0 %v8416
        %8463 = vmatpush.msra.mxu0 %v8415
        %8464 = vmatpush.msra.mxu0 %v8414
        %8465 = vmatpush.msra.mxu0 %v8413
        %8466 = vmatpush.msra.mxu0 %v8412
        %8467 = vmatpush.msra.mxu0 %v8411
        %8468 = vmatpush.msra.mxu0 %v8410
        %8469 = vmatpush.msra.mxu0 %v8409
        %8470 = vmatpush.msra.mxu0 %v8408
        %8471 = vmatmul.f32.gmra.mxu0 %v8452
        %v8472 = vpop.f32.mrf.mxu0
        %v8473 = vadd.f32 %v8453, %v8472
        %8474 = vdwg.mxu0
        %vm8475 = vcmp.ge.f32.partialorder %v8473, 0.0
        %v8476 = vmul.f32 %v8473, 0.01
        %v8477 = vsel %vm8475, %v8473, %v8476
        %8478 = vrot.lane.b32.xlu0 %v8453, 96
        %v8479 = vpop.permute.xlu0 %8478
        %v8482 = vsel %vm985, %v8477, 0
        %8484 = vmatpush.msra.mxu0 0.0
        %8485 = vmatpush.msra.mxu0 0.0
        %8486 = vmatpush.msra.mxu0 0.0
        %8487 = vmatpush.msra.mxu0 0.0
        %8488 = vmatpush.msra.mxu0 0.0
        %8489 = vmatpush.msra.mxu0 0.0
        %8490 = vmatpush.msra.mxu0 0.0
        %8491 = vmatpush.msra.mxu0 0.0
        %8492 = vmatpush.msra.mxu0 0.0
        %8493 = vmatpush.msra.mxu0 0.0
        %8494 = vmatpush.msra.mxu0 0.0
        %8495 = vmatpush.msra.mxu0 0.0
        %8496 = vmatpush.msra.mxu0 %v8427
        %8497 = vmatpush.msra.mxu0 %v8426
        %8498 = vmatpush.msra.mxu0 %v8425
        %8499 = vmatpush.msra.mxu0 %v8424
        %8500 = vmatmul.f32.gmra.mxu0 %v8482
        %v8501 = vpop.f32.mrf.mxu0
        %v8502 = vadd.f32 %v8479, %v8501
        %8503 = vdwg.mxu0
        %8505 = vrot.lane.b32.xlu0 %v8502, 6
        %v8506 = vpop.permute.xlu0 %8505
        %vm8508 = vcmask 48128
        %v8509 = vsel %vm8508, %v8390, %v8506
        %vm8510 = vcmask 56320
        %v8511 = vsel %vm8510, %v8509, 0.0
        %vm8512 = vcmask 57344
        %8513 = vst.msk [vmem:[%s651] sm:$0x1] %vm8512, %v8511
        %s8514 = sand.u32 %s397, 1
        %s8515 = scalar_lea.sflag [#allocation4], %s8514
        %s8516 = sand.u32 %s397, 1
        %s8517 = scalar_lea.vmem [#allocation13], %s8516
        // Predicated region
        $region109: #{tpu_custom_call.1} parent=83 // pred_check
          %p8518 = pneg %p407
        $region110: #{tpu_custom_call.1} parent=83 // pred_check_branch
          %8520 = sbr.rel (%p8518) target = $region112
        $region111: #{tpu_custom_call.1} parent=83 // pred_region
          %8522 = vsyncadd %s8515, 0
          %s8523 = scalar_lea.hbm %s16, %s38
          %s8525 = sshll.u32 %s8517, 4
          %s8526 = int_to_ptr.vmem [resolvable:$true] %s8525
          %s8527 = sshll.u32 %s8523, 4
          %s8528 = int_to_ptr.hbm [resolvable:$true] %s8527
          %8530 = dma.vmem_to_hbm [thread:$0]  %s8526, 16, %s8528, %s8515
        $region112: #{tpu_custom_call.1} parent=83 // pred_fallthru
          _
      $region84: #{tpu_custom_call.1} parent=5 // pred_fallthru
        _
      %p8531 = scmp.le.s32.totalorder 2, %s33
      // Predicated region
      $region113: #{tpu_custom_call.1} parent=5 // pred_check
        %p8532 = pneg %p8531
      $region114: #{tpu_custom_call.1} parent=5 // pred_check_branch
        %8534 = sbr.rel (%p8532) target = $region116
      $region115: #{tpu_custom_call.1} parent=5 // pred_region
        %s8535 = ssub.s32 %s33, 2
        // Predicated region
        $region117: #{tpu_custom_call.1} parent=115 // pred_check
          %p8536 = pneg %p413
        $region118: #{tpu_custom_call.1} parent=115 // pred_check_branch
          %8538 = sbr.rel (%p8536) target = $region120
        $region119: #{tpu_custom_call.1} parent=115 // pred_region
          %s8539 = sand.u32 %s398, 1
          %s8540 = scalar_lea.sflag [#allocation4], %s8539
          %s8541 = sand.u32 %s398, 1
          %s8542 = scalar_lea.vmem [#allocation13], %s8541
          %8544 = dma.done %s8540, 16
        $region120: #{tpu_custom_call.1} parent=115 // pred_fallthru
          _
      $region116: #{tpu_custom_call.1} parent=5 // pred_fallthru
        _
    $region6: #{tpu_custom_call.1} parent=1 // loop_footer
      %s37 = sadd.s32 1, %s33
    $region7: #{tpu_custom_call.1} parent=1 // loop_footer_branch
      %32 = sbr.rel target = $region3
    $region8: #{tpu_custom_call.1} parent=1 // loop_exit
      _
    %8545 = vsyncpa [#allocation3], 1
    %s8546 = scalar_lea.sflag [#allocation3], 1
    %8547 = vsyncpa %s8546, 1
    %8548 = vsyncpa [#allocation6], 1
    %s8549 = scalar_lea.sflag [#allocation6], 1
    %8550 = vsyncpa %s8549, 1
    %8551 = vsyncpa [#allocation9], 1
    %8552 = vsyncpa [#allocation12], 1
    %8553 = vsyncpa [#allocation4], 1
    %s8554 = scalar_lea.sflag [#allocation4], 1
    %8555 = vsyncpa %s8554, 1

</llo_original>
